<compile_context>
chip_gen: v7x
topology: tpu7x:2x2x1
jax: 0.10.0
libtpu: 0.0.40
codegen_flags: <defaults>
</compile_context>

<pallas_src>
import jax
import jax.numpy as jnp
from jax.experimental import pallas as pl
from jax.experimental.pallas import tpu as pltpu


# ---------------------------------------------------------------------------
# Fused kernel: one grid step == one batch element.
# ---------------------------------------------------------------------------
def _decoder_block_kernel(x_ref, skip_ref, wup_ref, bup_ref, w1_ref, b1_ref,
                          w2_ref, b2_ref, o_ref, z_ref, y1_ref, p1_ref, p2_ref):
    # x_ref:    (1, H, W, Cin)          skip_ref: (1, 2H, 2W, Cout)
    # wup_ref:  (Cin, 4*Cout)  columns ordered (di, dj, co)
    # w1_ref:   (9*2*Cout, Cout)  rows ordered (dh, dw, c)
    # w2_ref:   (9*Cout, Cout)    rows ordered (dh, dw, c)
    # o_ref:    (1, 2H, 2W, Cout)
    # z_ref:    (2H+2, 2W+2, 2*Cout)  zero-padded concat buffer (conv1 input)
    # y1_ref:   (2H+2, 2W+2, Cout)    zero-padded conv1 output (conv2 input)
    # p1_ref:   (2H*2W, 9*2*Cout)     im2col buffer for conv1
    # p2_ref:   (2H*2W, 9*Cout)       im2col buffer for conv2
    _, H, W, Cin = x_ref.shape
    _, H2, W2, Cout = o_ref.shape
    C2 = 2 * Cout

    # Zero the padded scratch buffers every step (the 1-pixel halo must be 0;
    # scratch persists across grid steps and "parallel" may split N per core).
    z_ref[...] = jnp.zeros_like(z_ref)
    y1_ref[...] = jnp.zeros_like(y1_ref)

    # ---- ConvTranspose2d(k=2, s=2): a single matmul, K = Cin --------------
    # up[(i, j), (di, dj, co)] = sum_ci x[i, j, ci] * W[ci, co, di, dj] + b[co]
    x2d = x_ref[0].reshape(H * W, Cin)
    up = jnp.dot(x2d, wup_ref[...], preferred_element_type=jnp.float32)
    up = up + bup_ref[...]

    # 2x2 sub-pixel interleave done entirely on VMEM values (no strided
    # scatter, no HBM transpose).  phase (di, dj) = fine pixel (2i+di, 2j+dj).
    def phase(di, dj):
        c0 = (2 * di + dj) * Cout
        return up[:, c0:c0 + Cout].reshape(H, W, 1, Cout)

    sel_w = jax.lax.broadcasted_iota(jnp.int32, (H, W, 2, Cout), 2) == 0
    row_even = jnp.where(sel_w, phase(0, 0), phase(0, 1)).reshape(H, 1, W2, Cout)
    row_odd = jnp.where(sel_w, phase(1, 0), phase(1, 1)).reshape(H, 1, W2, Cout)
    sel_h = jax.lax.broadcasted_iota(jnp.int32, (H, 2, W2, Cout), 1) == 0
    up_full = jnp.where(sel_h, row_even, row_odd).reshape(H2, W2, Cout)

    # ---- channel concat with skip, written into the zero-padded buffer ----
    z_ref[1:H2 + 1, 1:W2 + 1, 0:Cout] = up_full
    z_ref[1:H2 + 1, 1:W2 + 1, Cout:C2] = skip_ref[0]

    taps = [(dh, dw) for dh in range(3) for dw in range(3)]

    # ---- conv1 (3x3, pad=1) + ReLU: folded-tap im2col, K = 9*2*Cout -------
    for t, (dh, dw) in enumerate(taps):
        p1_ref[:, t * C2:(t + 1) * C2] = (
            z_ref[dh:dh + H2, dw:dw + W2, :].reshape(H2 * W2, C2))
    y1 = jnp.dot(p1_ref[...], w1_ref[...], preferred_element_type=jnp.float32)
    y1 = jnp.maximum(y1 + b1_ref[...], 0.0)
    y1_ref[1:H2 + 1, 1:W2 + 1, :] = y1.reshape(H2, W2, Cout)

    # ---- conv2 (3x3, pad=1) + ReLU: folded-tap im2col, K = 9*Cout ---------
    for t, (dh, dw) in enumerate(taps):
        p2_ref[:, t * Cout:(t + 1) * Cout] = (
            y1_ref[dh:dh + H2, dw:dw + W2, :].reshape(H2 * W2, Cout))
    y2 = jnp.dot(p2_ref[...], w2_ref[...], preferred_element_type=jnp.float32)
    y2 = jnp.maximum(y2 + b2_ref[...], 0.0)
    o_ref[...] = y2.reshape(1, H2, W2, Cout)


# ---------------------------------------------------------------------------
# Wrapper: parameter re-layout (tiny, one-time) + fused pallas_call.
# ---------------------------------------------------------------------------
@jax.jit
def decoder_block(x_nhwc, skip_nhwc, params):
    """x_nhwc: (N,H,W,Cin); skip_nhwc: (N,2H,2W,Cout); params in PyTorch layout."""
    N, H, W, Cin = x_nhwc.shape
    Cout = params["up_b"].shape[0]
    H2, W2 = 2 * H, 2 * W
    C2 = 2 * Cout

    # ConvTranspose2d weight (Cin, Cout, 2, 2) -> (Cin, 4*Cout), cols (di,dj,co)
    wup = jnp.transpose(params["up_w"], (0, 2, 3, 1)).reshape(Cin, 4 * Cout)
    bup = jnp.tile(params["up_b"], 4).reshape(1, 4 * Cout)
    # Conv2d weights (Cout, Cin_, 3, 3) -> (9*Cin_, Cout), rows (dh, dw, c)
    w1 = jnp.transpose(params["c1_w"], (2, 3, 1, 0)).reshape(9 * C2, Cout)
    b1 = params["c1_b"].reshape(1, Cout)
    w2 = jnp.transpose(params["c2_w"], (2, 3, 1, 0)).reshape(9 * Cout, Cout)
    b2 = params["c2_b"].reshape(1, Cout)

    # Rough VMEM budget (f32): scratch + double-buffered IO blocks + weights.
    scratch_bytes = 4 * ((H2 + 2) * (W2 + 2) * (C2 + Cout)
                         + H2 * W2 * 9 * (C2 + Cout))
    io_bytes = 4 * 2 * (H * W * Cin + 2 * H2 * W2 * Cout)
    w_bytes = 4 * (Cin * 4 * Cout + 9 * C2 * Cout + 9 * Cout * Cout + 6 * Cout)
    vmem_limit = int(min(max(2 * (scratch_bytes + io_bytes + w_bytes),
                             16 * 1024 * 1024), 48 * 1024 * 1024))

    return pl.pallas_call(
        _decoder_block_kernel,
        out_shape=jax.ShapeDtypeStruct((N, H2, W2, Cout), jnp.float32),
        grid=(N,),
        in_specs=[
            pl.BlockSpec((1, H, W, Cin), lambda n: (n, 0, 0, 0)),
            pl.BlockSpec((1, H2, W2, Cout), lambda n: (n, 0, 0, 0)),
            pl.BlockSpec((Cin, 4 * Cout), lambda n: (0, 0)),
            pl.BlockSpec((1, 4 * Cout), lambda n: (0, 0)),
            pl.BlockSpec((9 * C2, Cout), lambda n: (0, 0)),
            pl.BlockSpec((1, Cout), lambda n: (0, 0)),
            pl.BlockSpec((9 * Cout, Cout), lambda n: (0, 0)),
            pl.BlockSpec((1, Cout), lambda n: (0, 0)),
        ],
        out_specs=pl.BlockSpec((1, H2, W2, Cout), lambda n: (n, 0, 0, 0)),
        scratch_shapes=[
            pltpu.VMEM((H2 + 2, W2 + 2, C2), jnp.float32),     # padded concat
            pltpu.VMEM((H2 + 2, W2 + 2, Cout), jnp.float32),   # padded conv1 out
            pltpu.VMEM((H2 * W2, 9 * C2), jnp.float32),        # im2col conv1
            pltpu.VMEM((H2 * W2, 9 * Cout), jnp.float32),      # im2col conv2
        ],
        compiler_params=pltpu.CompilerParams(
            dimension_semantics=("parallel",),
            vmem_limit_bytes=vmem_limit),
    )(x_nhwc, skip_nhwc, wup, bup, w1, b1, w2, b2)


# ---------------------------------------------------------------------------
# Pure-JAX reference (for a self-check) and parameter init.
# ---------------------------------------------------------------------------
def reference_decoder_block(x, skip, params):
    hi = jax.lax.Precision.HIGHEST
    N, H, W, Cin = x.shape
    Cout = params["up_b"].shape[0]
    t = jnp.einsum("nijc,cokl->nikjlo", x, params["up_w"], precision=hi)
    up = t.reshape(N, 2 * H, 2 * W, Cout) + params["up_b"]
    z = jnp.concatenate([up, skip], axis=-1)

    def conv3(z_in, w, b):
        out = jax.lax.conv_general_dilated(
            z_in, jnp.transpose(w, (2, 3, 1, 0)), window_strides=(1, 1),
            padding="SAME", dimension_numbers=("NHWC", "HWIO", "NHWC"),
            precision=hi)
        return jnp.maximum(out + b, 0.0)

    y = conv3(z, params["c1_w"], params["c1_b"])
    return conv3(y, params["c2_w"], params["c2_b"])


def init_params(key, in_channels, out_channels):
    ks = jax.random.split(key, 6)
    scale = 0.1
    return {
        # ConvTranspose2d weight: (in_channels, out_channels, 2, 2)
        "up_w": scale * jax.random.normal(
            ks[0], (in_channels, out_channels, 2, 2), jnp.float32),
        "up_b": scale * jax.random.normal(ks[1], (out_channels,), jnp.float32),
        # Conv2d weight: (out_channels, out_channels*2, 3, 3)
        "c1_w": scale * jax.random.normal(
            ks[2], (out_channels, out_channels * 2, 3, 3), jnp.float32),
        "c1_b": scale * jax.random.normal(ks[3], (out_channels,), jnp.float32),
        # Conv2d weight: (out_channels, out_channels, 3, 3)
        "c2_w": scale * jax.random.normal(
            ks[4], (out_channels, out_channels, 3, 3), jnp.float32),
        "c2_b": scale * jax.random.normal(ks[5], (out_channels,), jnp.float32),
    }


if __name__ == "__main__":
    in_channels, out_channels = 8, 4
    N, H, W = 2, 8, 8                         # x spatial 8x8 -> output 16x16

    key = jax.random.PRNGKey(0)
    kx, kskip, kp = jax.random.split(key, 3)

    # NHWC inputs (equivalent to PyTorch NCHW x:(2,8,8,8), skip:(2,4,16,16)).
    x = jax.random.normal(kx, (N, H, W, in_channels), jnp.float32)
    skip = jax.random.normal(kskip, (N, 2 * H, 2 * W, out_channels), jnp.float32)
    params = init_params(kp, in_channels, out_channels)

    out = decoder_block(x, skip, params)
    jax.block_until_ready(out)
    assert out.shape == (N, 2 * H, 2 * W, out_channels), out.shape

    ref = reference_decoder_block(x, skip, params)
    max_err = float(jnp.max(jnp.abs(out - ref)))
    assert max_err < 2e-2, f"mismatch vs pure-JAX reference: {max_err}"
    print("KERNEL_OK")
</pallas_src>

<mosaic_0001>
module attributes {stable_mosaic.version = 11 : i64} {
  func.func @_decoder_block_kernel(%arg0: i32, %arg1: memref<1x8x8x8xf32, #tpu.memory_space<vmem>>, %arg2: memref<1x16x16x4xf32, #tpu.memory_space<vmem>>, %arg3: memref<8x16xf32, #tpu.memory_space<vmem>>, %arg4: memref<1x16xf32, #tpu.memory_space<vmem>>, %arg5: memref<72x4xf32, #tpu.memory_space<vmem>>, %arg6: memref<1x4xf32, #tpu.memory_space<vmem>>, %arg7: memref<36x4xf32, #tpu.memory_space<vmem>>, %arg8: memref<1x4xf32, #tpu.memory_space<vmem>>, %arg9: memref<1x16x16x4xf32, #tpu.memory_space<vmem>>, %arg10: memref<18x18x8xf32, #tpu.memory_space<vmem>>, %arg11: memref<18x18x4xf32, #tpu.memory_space<vmem>>, %arg12: memref<256x72xf32, #tpu.memory_space<vmem>>, %arg13: memref<256x36xf32, #tpu.memory_space<vmem>>) attributes {dimension_semantics = [#tpu.dimension_semantics<parallel>], iteration_bounds = array<i64: 2>, scalar_prefetch = 0 : i64, scratch_operands = 4 : i64, tpu.core_type = #tpu.core_type<tc>, window_params = [{transform_indices = @transform_0, window_bounds = array<i64: 1, 8, 8, 8>}, {transform_indices = @transform_1, window_bounds = array<i64: 1, 16, 16, 4>}, {pipeline_mode = #tpu.pipeline_mode<synchronous>, transform_indices = @transform_2, window_bounds = array<i64: 8, 16>}, {pipeline_mode = #tpu.pipeline_mode<synchronous>, transform_indices = @transform_3, window_bounds = array<i64: 1, 16>}, {pipeline_mode = #tpu.pipeline_mode<synchronous>, transform_indices = @transform_4, window_bounds = array<i64: 72, 4>}, {pipeline_mode = #tpu.pipeline_mode<synchronous>, transform_indices = @transform_5, window_bounds = array<i64: 1, 4>}, {pipeline_mode = #tpu.pipeline_mode<synchronous>, transform_indices = @transform_6, window_bounds = array<i64: 36, 4>}, {pipeline_mode = #tpu.pipeline_mode<synchronous>, transform_indices = @transform_7, window_bounds = array<i64: 1, 4>}, {transform_indices = @transform_8, window_bounds = array<i64: 1, 16, 16, 4>}]} {
    %cst = arith.constant 0.000000e+00 : f32
    %0 = vector.broadcast %cst : f32 to vector<18x18x8xf32>
    %c0 = arith.constant 0 : index
    %c0_0 = arith.constant 0 : index
    %c0_1 = arith.constant 0 : index
    %1 = vector.load %arg10[%c0, %c0_0, %c0_1] : memref<18x18x8xf32, #tpu.memory_space<vmem>>, vector<18x18x8xf32>
    tpu.vector_store %arg10[%c0, %c0_0, %c0_1], %0 {strides = array<i32>} : memref<18x18x8xf32, #tpu.memory_space<vmem>>, vector<18x18x8xf32>,
    %cst_2 = arith.constant 0.000000e+00 : f32
    %2 = vector.broadcast %cst_2 : f32 to vector<18x18x4xf32>
    %c0_3 = arith.constant 0 : index
    %c0_4 = arith.constant 0 : index
    %c0_5 = arith.constant 0 : index
    %3 = vector.load %arg11[%c0_3, %c0_4, %c0_5] : memref<18x18x4xf32, #tpu.memory_space<vmem>>, vector<18x18x4xf32>
    tpu.vector_store %arg11[%c0_3, %c0_4, %c0_5], %2 {strides = array<i32>} : memref<18x18x4xf32, #tpu.memory_space<vmem>>, vector<18x18x4xf32>,
    %c0_6 = arith.constant 0 : index
    %c0_7 = arith.constant 0 : index
    %c0_8 = arith.constant 0 : index
    %c0_9 = arith.constant 0 : index
    %4 = vector.load %arg1[%c0_6, %c0_7, %c0_8, %c0_9] : memref<1x8x8x8xf32, #tpu.memory_space<vmem>>, vector<1x8x8x8xf32>
    %5 = vector.shape_cast %4 : vector<1x8x8x8xf32> to vector<8x8x8xf32>
    %6 = vector.shape_cast %5 : vector<8x8x8xf32> to vector<64x8xf32>
    %c0_10 = arith.constant 0 : index
    %c0_11 = arith.constant 0 : index
    %7 = vector.load %arg3[%c0_10, %c0_11] : memref<8x16xf32, #tpu.memory_space<vmem>>, vector<8x16xf32>
    %cst_12 = arith.constant dense<0.000000e+00> : vector<64x16xf32>
    %8 = tpu.matmul %6, %7, %cst_12 {dimension_numbers = #tpu.dot_dimension_numbers<[1], [0], [0], [1], [0, 0, 1, 1], [], []>} : vector<64x8xf32>, vector<8x16xf32>, vector<64x16xf32> -> vector<64x16xf32>
    %c0_13 = arith.constant 0 : index
    %c0_14 = arith.constant 0 : index
    %9 = vector.load %arg4[%c0_13, %c0_14] : memref<1x16xf32, #tpu.memory_space<vmem>>, vector<1x16xf32>
    %10 = vector.broadcast %9 : vector<1x16xf32> to vector<64x16xf32>
    %11 = arith.addf %8, %10 : vector<64x16xf32>
    %12 = tpu.iota {dimensions = array<i32: 2>} : vector<8x8x2x4xi32>
    %c0_i32 = arith.constant 0 : i32
    %13 = vector.broadcast %c0_i32 : i32 to vector<8x8x2x4xi32>
    %14 = arith.cmpi eq, %12, %13 : vector<8x8x2x4xi32>
    %15 = vector.extract_strided_slice %11 {offsets = [0, 0], sizes = [64, 4], strides = [1, 1]} : vector<64x16xf32> to vector<64x4xf32>
    %16 = vector.shape_cast %15 : vector<64x4xf32> to vector<8x8x1x4xf32>
    %17 = vector.extract_strided_slice %11 {offsets = [0, 4], sizes = [64, 4], strides = [1, 1]} : vector<64x16xf32> to vector<64x4xf32>
    %18 = vector.shape_cast %17 : vector<64x4xf32> to vector<8x8x1x4xf32>
    %19 = vector.shape_cast %16 : vector<8x8x1x4xf32> to vector<8x8x1x4xf32>
    %20 = vector.broadcast %19 : vector<8x8x1x4xf32> to vector<8x8x2x4xf32>
    %21 = vector.shape_cast %18 : vector<8x8x1x4xf32> to vector<8x8x1x4xf32>
    %22 = vector.broadcast %21 : vector<8x8x1x4xf32> to vector<8x8x2x4xf32>
    %23 = arith.select %14, %20, %22 : vector<8x8x2x4xi1>, vector<8x8x2x4xf32>
    %24 = vector.shape_cast %23 : vector<8x8x2x4xf32> to vector<8x1x16x4xf32>
    %25 = vector.extract_strided_slice %11 {offsets = [0, 8], sizes = [64, 4], strides = [1, 1]} : vector<64x16xf32> to vector<64x4xf32>
    %26 = vector.shape_cast %25 : vector<64x4xf32> to vector<8x8x1x4xf32>
    %27 = vector.extract_strided_slice %11 {offsets = [0, 12], sizes = [64, 4], strides = [1, 1]} : vector<64x16xf32> to vector<64x4xf32>
    %28 = vector.shape_cast %27 : vector<64x4xf32> to vector<8x8x1x4xf32>
    %29 = vector.shape_cast %26 : vector<8x8x1x4xf32> to vector<8x8x1x4xf32>
    %30 = vector.broadcast %29 : vector<8x8x1x4xf32> to vector<8x8x2x4xf32>
    %31 = vector.shape_cast %28 : vector<8x8x1x4xf32> to vector<8x8x1x4xf32>
    %32 = vector.broadcast %31 : vector<8x8x1x4xf32> to vector<8x8x2x4xf32>
    %33 = arith.select %14, %30, %32 : vector<8x8x2x4xi1>, vector<8x8x2x4xf32>
    %34 = vector.shape_cast %33 : vector<8x8x2x4xf32> to vector<8x1x16x4xf32>
    %35 = tpu.iota {dimensions = array<i32: 1>} : vector<8x2x16x4xi32>
    %c0_i32_15 = arith.constant 0 : i32
    %36 = vector.broadcast %c0_i32_15 : i32 to vector<8x2x16x4xi32>
    %37 = arith.cmpi eq, %35, %36 : vector<8x2x16x4xi32>
    %38 = vector.shape_cast %24 : vector<8x1x16x4xf32> to vector<8x1x16x4xf32>
    %39 = vector.broadcast %38 : vector<8x1x16x4xf32> to vector<8x2x16x4xf32>
    %40 = vector.shape_cast %34 : vector<8x1x16x4xf32> to vector<8x1x16x4xf32>
    %41 = vector.broadcast %40 : vector<8x1x16x4xf32> to vector<8x2x16x4xf32>
    %42 = arith.select %37, %39, %41 : vector<8x2x16x4xi1>, vector<8x2x16x4xf32>
    %43 = vector.shape_cast %42 : vector<8x2x16x4xf32> to vector<16x16x4xf32>
    %c1 = arith.constant 1 : index
    %c1_16 = arith.constant 1 : index
    %c0_17 = arith.constant 0 : index
    %44 = vector.load %arg10[%c1, %c1_16, %c0_17] : memref<18x18x8xf32, #tpu.memory_space<vmem>>, vector<16x16x4xf32>
    tpu.vector_store %arg10[%c1, %c1_16, %c0_17], %43 {strides = array<i32>} : memref<18x18x8xf32, #tpu.memory_space<vmem>>, vector<16x16x4xf32>,
    %c0_18 = arith.constant 0 : index
    %c0_19 = arith.constant 0 : index
    %c0_20 = arith.constant 0 : index
    %c0_21 = arith.constant 0 : index
    %45 = vector.load %arg2[%c0_18, %c0_19, %c0_20, %c0_21] : memref<1x16x16x4xf32, #tpu.memory_space<vmem>>, vector<1x16x16x4xf32>
    %46 = vector.shape_cast %45 : vector<1x16x16x4xf32> to vector<16x16x4xf32>
    %c1_22 = arith.constant 1 : index
    %c1_23 = arith.constant 1 : index
    %c4 = arith.constant 4 : index
    %47 = vector.load %arg10[%c1_22, %c1_23, %c4] : memref<18x18x8xf32, #tpu.memory_space<vmem>>, vector<16x16x4xf32>
    tpu.vector_store %arg10[%c1_22, %c1_23, %c4], %46 {strides = array<i32>} : memref<18x18x8xf32, #tpu.memory_space<vmem>>, vector<16x16x4xf32>,
    %c0_24 = arith.constant 0 : index
    %c0_25 = arith.constant 0 : index
    %c0_26 = arith.constant 0 : index
    %48 = vector.load %arg10[%c0_24, %c0_25, %c0_26] : memref<18x18x8xf32, #tpu.memory_space<vmem>>, vector<16x16x8xf32>
    %49 = vector.shape_cast %48 : vector<16x16x8xf32> to vector<256x8xf32>
    %c0_27 = arith.constant 0 : index
    %c0_28 = arith.constant 0 : index
    %50 = vector.load %arg12[%c0_27, %c0_28] : memref<256x72xf32, #tpu.memory_space<vmem>>, vector<256x8xf32>
    tpu.vector_store %arg12[%c0_27, %c0_28], %49 {strides = array<i32>} : memref<256x72xf32, #tpu.memory_space<vmem>>, vector<256x8xf32>,
    %c0_29 = arith.constant 0 : index
    %c1_30 = arith.constant 1 : index
    %c0_31 = arith.constant 0 : index
    %51 = vector.load %arg10[%c0_29, %c1_30, %c0_31] : memref<18x18x8xf32, #tpu.memory_space<vmem>>, vector<16x16x8xf32>
    %52 = vector.shape_cast %51 : vector<16x16x8xf32> to vector<256x8xf32>
    %c0_32 = arith.constant 0 : index
    %c8 = arith.constant 8 : index
    %53 = vector.load %arg12[%c0_32, %c8] : memref<256x72xf32, #tpu.memory_space<vmem>>, vector<256x8xf32>
    tpu.vector_store %arg12[%c0_32, %c8], %52 {strides = array<i32>} : memref<256x72xf32, #tpu.memory_space<vmem>>, vector<256x8xf32>,
    %c0_33 = arith.constant 0 : index
    %c2 = arith.constant 2 : index
    %c0_34 = arith.constant 0 : index
    %54 = vector.load %arg10[%c0_33, %c2, %c0_34] : memref<18x18x8xf32, #tpu.memory_space<vmem>>, vector<16x16x8xf32>
    %55 = vector.shape_cast %54 : vector<16x16x8xf32> to vector<256x8xf32>
    %c0_35 = arith.constant 0 : index
    %c16 = arith.constant 16 : index
    %56 = vector.load %arg12[%c0_35, %c16] : memref<256x72xf32, #tpu.memory_space<vmem>>, vector<256x8xf32>
    tpu.vector_store %arg12[%c0_35, %c16], %55 {strides = array<i32>} : memref<256x72xf32, #tpu.memory_space<vmem>>, vector<256x8xf32>,
    %c1_36 = arith.constant 1 : index
    %c0_37 = arith.constant 0 : index
    %c0_38 = arith.constant 0 : index
    %57 = vector.load %arg10[%c1_36, %c0_37, %c0_38] : memref<18x18x8xf32, #tpu.memory_space<vmem>>, vector<16x16x8xf32>
    %58 = vector.shape_cast %57 : vector<16x16x8xf32> to vector<256x8xf32>
    %c0_39 = arith.constant 0 : index
    %c24 = arith.constant 24 : index
    %59 = vector.load %arg12[%c0_39, %c24] : memref<256x72xf32, #tpu.memory_space<vmem>>, vector<256x8xf32>
    tpu.vector_store %arg12[%c0_39, %c24], %58 {strides = array<i32>} : memref<256x72xf32, #tpu.memory_space<vmem>>, vector<256x8xf32>,
    %c1_40 = arith.constant 1 : index
    %c1_41 = arith.constant 1 : index
    %c0_42 = arith.constant 0 : index
    %60 = vector.load %arg10[%c1_40, %c1_41, %c0_42] : memref<18x18x8xf32, #tpu.memory_space<vmem>>, vector<16x16x8xf32>
    %61 = vector.shape_cast %60 : vector<16x16x8xf32> to vector<256x8xf32>
    %c0_43 = arith.constant 0 : index
    %c32 = arith.constant 32 : index
    %62 = vector.load %arg12[%c0_43, %c32] : memref<256x72xf32, #tpu.memory_space<vmem>>, vector<256x8xf32>
    tpu.vector_store %arg12[%c0_43, %c32], %61 {strides = array<i32>} : memref<256x72xf32, #tpu.memory_space<vmem>>, vector<256x8xf32>,
    %c1_44 = arith.constant 1 : index
    %c2_45 = arith.constant 2 : index
    %c0_46 = arith.constant 0 : index
    %63 = vector.load %arg10[%c1_44, %c2_45, %c0_46] : memref<18x18x8xf32, #tpu.memory_space<vmem>>, vector<16x16x8xf32>
    %64 = vector.shape_cast %63 : vector<16x16x8xf32> to vector<256x8xf32>
    %c0_47 = arith.constant 0 : index
    %c40 = arith.constant 40 : index
    %65 = vector.load %arg12[%c0_47, %c40] : memref<256x72xf32, #tpu.memory_space<vmem>>, vector<256x8xf32>
    tpu.vector_store %arg12[%c0_47, %c40], %64 {strides = array<i32>} : memref<256x72xf32, #tpu.memory_space<vmem>>, vector<256x8xf32>,
    %c2_48 = arith.constant 2 : index
    %c0_49 = arith.constant 0 : index
    %c0_50 = arith.constant 0 : index
    %66 = vector.load %arg10[%c2_48, %c0_49, %c0_50] : memref<18x18x8xf32, #tpu.memory_space<vmem>>, vector<16x16x8xf32>
    %67 = vector.shape_cast %66 : vector<16x16x8xf32> to vector<256x8xf32>
    %c0_51 = arith.constant 0 : index
    %c48 = arith.constant 48 : index
    %68 = vector.load %arg12[%c0_51, %c48] : memref<256x72xf32, #tpu.memory_space<vmem>>, vector<256x8xf32>
    tpu.vector_store %arg12[%c0_51, %c48], %67 {strides = array<i32>} : memref<256x72xf32, #tpu.memory_space<vmem>>, vector<256x8xf32>,
    %c2_52 = arith.constant 2 : index
    %c1_53 = arith.constant 1 : index
    %c0_54 = arith.constant 0 : index
    %69 = vector.load %arg10[%c2_52, %c1_53, %c0_54] : memref<18x18x8xf32, #tpu.memory_space<vmem>>, vector<16x16x8xf32>
    %70 = vector.shape_cast %69 : vector<16x16x8xf32> to vector<256x8xf32>
    %c0_55 = arith.constant 0 : index
    %c56 = arith.constant 56 : index
    %71 = vector.load %arg12[%c0_55, %c56] : memref<256x72xf32, #tpu.memory_space<vmem>>, vector<256x8xf32>
    tpu.vector_store %arg12[%c0_55, %c56], %70 {strides = array<i32>} : memref<256x72xf32, #tpu.memory_space<vmem>>, vector<256x8xf32>,
    %c2_56 = arith.constant 2 : index
    %c2_57 = arith.constant 2 : index
    %c0_58 = arith.constant 0 : index
    %72 = vector.load %arg10[%c2_56, %c2_57, %c0_58] : memref<18x18x8xf32, #tpu.memory_space<vmem>>, vector<16x16x8xf32>
    %73 = vector.shape_cast %72 : vector<16x16x8xf32> to vector<256x8xf32>
    %c0_59 = arith.constant 0 : index
    %c64 = arith.constant 64 : index
    %74 = vector.load %arg12[%c0_59, %c64] : memref<256x72xf32, #tpu.memory_space<vmem>>, vector<256x8xf32>
    tpu.vector_store %arg12[%c0_59, %c64], %73 {strides = array<i32>} : memref<256x72xf32, #tpu.memory_space<vmem>>, vector<256x8xf32>,
    %c0_60 = arith.constant 0 : index
    %c0_61 = arith.constant 0 : index
    %75 = vector.load %arg12[%c0_60, %c0_61] : memref<256x72xf32, #tpu.memory_space<vmem>>, vector<256x72xf32>
    %c0_62 = arith.constant 0 : index
    %c0_63 = arith.constant 0 : index
    %76 = vector.load %arg5[%c0_62, %c0_63] : memref<72x4xf32, #tpu.memory_space<vmem>>, vector<72x4xf32>
    %cst_64 = arith.constant dense<0.000000e+00> : vector<256x4xf32>
    %77 = tpu.matmul %75, %76, %cst_64 {dimension_numbers = #tpu.dot_dimension_numbers<[1], [0], [0], [1], [0, 0, 1, 1], [], []>} : vector<256x72xf32>, vector<72x4xf32>, vector<256x4xf32> -> vector<256x4xf32>
    %c0_65 = arith.constant 0 : index
    %c0_66 = arith.constant 0 : index
    %78 = vector.load %arg6[%c0_65, %c0_66] : memref<1x4xf32, #tpu.memory_space<vmem>>, vector<1x4xf32>
    %79 = vector.broadcast %78 : vector<1x4xf32> to vector<256x4xf32>
    %80 = arith.addf %77, %79 : vector<256x4xf32>
    %cst_67 = arith.constant 0.000000e+00 : f32
    %81 = vector.broadcast %cst_67 : f32 to vector<256x4xf32>
    %82 = arith.maximumf %80, %81 : vector<256x4xf32>
    %83 = vector.shape_cast %82 : vector<256x4xf32> to vector<16x16x4xf32>
    %c1_68 = arith.constant 1 : index
    %c1_69 = arith.constant 1 : index
    %c0_70 = arith.constant 0 : index
    %84 = vector.load %arg11[%c1_68, %c1_69, %c0_70] : memref<18x18x4xf32, #tpu.memory_space<vmem>>, vector<16x16x4xf32>
    tpu.vector_store %arg11[%c1_68, %c1_69, %c0_70], %83 {strides = array<i32>} : memref<18x18x4xf32, #tpu.memory_space<vmem>>, vector<16x16x4xf32>,
    %c0_71 = arith.constant 0 : index
    %c0_72 = arith.constant 0 : index
    %c0_73 = arith.constant 0 : index
    %85 = vector.load %arg11[%c0_71, %c0_72, %c0_73] : memref<18x18x4xf32, #tpu.memory_space<vmem>>, vector<16x16x4xf32>
    %86 = vector.shape_cast %85 : vector<16x16x4xf32> to vector<256x4xf32>
    %c0_74 = arith.constant 0 : index
    %c0_75 = arith.constant 0 : index
    %87 = vector.load %arg13[%c0_74, %c0_75] : memref<256x36xf32, #tpu.memory_space<vmem>>, vector<256x4xf32>
    tpu.vector_store %arg13[%c0_74, %c0_75], %86 {strides = array<i32>} : memref<256x36xf32, #tpu.memory_space<vmem>>, vector<256x4xf32>,
    %c0_76 = arith.constant 0 : index
    %c1_77 = arith.constant 1 : index
    %c0_78 = arith.constant 0 : index
    %88 = vector.load %arg11[%c0_76, %c1_77, %c0_78] : memref<18x18x4xf32, #tpu.memory_space<vmem>>, vector<16x16x4xf32>
    %89 = vector.shape_cast %88 : vector<16x16x4xf32> to vector<256x4xf32>
    %c0_79 = arith.constant 0 : index
    %c4_80 = arith.constant 4 : index
    %90 = vector.load %arg13[%c0_79, %c4_80] : memref<256x36xf32, #tpu.memory_space<vmem>>, vector<256x4xf32>
    tpu.vector_store %arg13[%c0_79, %c4_80], %89 {strides = array<i32>} : memref<256x36xf32, #tpu.memory_space<vmem>>, vector<256x4xf32>,
    %c0_81 = arith.constant 0 : index
    %c2_82 = arith.constant 2 : index
    %c0_83 = arith.constant 0 : index
    %91 = vector.load %arg11[%c0_81, %c2_82, %c0_83] : memref<18x18x4xf32, #tpu.memory_space<vmem>>, vector<16x16x4xf32>
    %92 = vector.shape_cast %91 : vector<16x16x4xf32> to vector<256x4xf32>
    %c0_84 = arith.constant 0 : index
    %c8_85 = arith.constant 8 : index
    %93 = vector.load %arg13[%c0_84, %c8_85] : memref<256x36xf32, #tpu.memory_space<vmem>>, vector<256x4xf32>
    tpu.vector_store %arg13[%c0_84, %c8_85], %92 {strides = array<i32>} : memref<256x36xf32, #tpu.memory_space<vmem>>, vector<256x4xf32>,
    %c1_86 = arith.constant 1 : index
    %c0_87 = arith.constant 0 : index
    %c0_88 = arith.constant 0 : index
    %94 = vector.load %arg11[%c1_86, %c0_87, %c0_88] : memref<18x18x4xf32, #tpu.memory_space<vmem>>, vector<16x16x4xf32>
    %95 = vector.shape_cast %94 : vector<16x16x4xf32> to vector<256x4xf32>
    %c0_89 = arith.constant 0 : index
    %c12 = arith.constant 12 : index
    %96 = vector.load %arg13[%c0_89, %c12] : memref<256x36xf32, #tpu.memory_space<vmem>>, vector<256x4xf32>
    tpu.vector_store %arg13[%c0_89, %c12], %95 {strides = array<i32>} : memref<256x36xf32, #tpu.memory_space<vmem>>, vector<256x4xf32>,
    %c1_90 = arith.constant 1 : index
    %c1_91 = arith.constant 1 : index
    %c0_92 = arith.constant 0 : index
    %97 = vector.load %arg11[%c1_90, %c1_91, %c0_92] : memref<18x18x4xf32, #tpu.memory_space<vmem>>, vector<16x16x4xf32>
    %98 = vector.shape_cast %97 : vector<16x16x4xf32> to vector<256x4xf32>
    %c0_93 = arith.constant 0 : index
    %c16_94 = arith.constant 16 : index
    %99 = vector.load %arg13[%c0_93, %c16_94] : memref<256x36xf32, #tpu.memory_space<vmem>>, vector<256x4xf32>
    tpu.vector_store %arg13[%c0_93, %c16_94], %98 {strides = array<i32>} : memref<256x36xf32, #tpu.memory_space<vmem>>, vector<256x4xf32>,
    %c1_95 = arith.constant 1 : index
    %c2_96 = arith.constant 2 : index
    %c0_97 = arith.constant 0 : index
    %100 = vector.load %arg11[%c1_95, %c2_96, %c0_97] : memref<18x18x4xf32, #tpu.memory_space<vmem>>, vector<16x16x4xf32>
    %101 = vector.shape_cast %100 : vector<16x16x4xf32> to vector<256x4xf32>
    %c0_98 = arith.constant 0 : index
    %c20 = arith.constant 20 : index
    %102 = vector.load %arg13[%c0_98, %c20] : memref<256x36xf32, #tpu.memory_space<vmem>>, vector<256x4xf32>
    tpu.vector_store %arg13[%c0_98, %c20], %101 {strides = array<i32>} : memref<256x36xf32, #tpu.memory_space<vmem>>, vector<256x4xf32>,
    %c2_99 = arith.constant 2 : index
    %c0_100 = arith.constant 0 : index
    %c0_101 = arith.constant 0 : index
    %103 = vector.load %arg11[%c2_99, %c0_100, %c0_101] : memref<18x18x4xf32, #tpu.memory_space<vmem>>, vector<16x16x4xf32>
    %104 = vector.shape_cast %103 : vector<16x16x4xf32> to vector<256x4xf32>
    %c0_102 = arith.constant 0 : index
    %c24_103 = arith.constant 24 : index
    %105 = vector.load %arg13[%c0_102, %c24_103] : memref<256x36xf32, #tpu.memory_space<vmem>>, vector<256x4xf32>
    tpu.vector_store %arg13[%c0_102, %c24_103], %104 {strides = array<i32>} : memref<256x36xf32, #tpu.memory_space<vmem>>, vector<256x4xf32>,
    %c2_104 = arith.constant 2 : index
    %c1_105 = arith.constant 1 : index
    %c0_106 = arith.constant 0 : index
    %106 = vector.load %arg11[%c2_104, %c1_105, %c0_106] : memref<18x18x4xf32, #tpu.memory_space<vmem>>, vector<16x16x4xf32>
    %107 = vector.shape_cast %106 : vector<16x16x4xf32> to vector<256x4xf32>
    %c0_107 = arith.constant 0 : index
    %c28 = arith.constant 28 : index
    %108 = vector.load %arg13[%c0_107, %c28] : memref<256x36xf32, #tpu.memory_space<vmem>>, vector<256x4xf32>
    tpu.vector_store %arg13[%c0_107, %c28], %107 {strides = array<i32>} : memref<256x36xf32, #tpu.memory_space<vmem>>, vector<256x4xf32>,
    %c2_108 = arith.constant 2 : index
    %c2_109 = arith.constant 2 : index
    %c0_110 = arith.constant 0 : index
    %109 = vector.load %arg11[%c2_108, %c2_109, %c0_110] : memref<18x18x4xf32, #tpu.memory_space<vmem>>, vector<16x16x4xf32>
    %110 = vector.shape_cast %109 : vector<16x16x4xf32> to vector<256x4xf32>
    %c0_111 = arith.constant 0 : index
    %c32_112 = arith.constant 32 : index
    %111 = vector.load %arg13[%c0_111, %c32_112] : memref<256x36xf32, #tpu.memory_space<vmem>>, vector<256x4xf32>
    tpu.vector_store %arg13[%c0_111, %c32_112], %110 {strides = array<i32>} : memref<256x36xf32, #tpu.memory_space<vmem>>, vector<256x4xf32>,
    %c0_113 = arith.constant 0 : index
    %c0_114 = arith.constant 0 : index
    %112 = vector.load %arg13[%c0_113, %c0_114] : memref<256x36xf32, #tpu.memory_space<vmem>>, vector<256x36xf32>
    %c0_115 = arith.constant 0 : index
    %c0_116 = arith.constant 0 : index
    %113 = vector.load %arg7[%c0_115, %c0_116] : memref<36x4xf32, #tpu.memory_space<vmem>>, vector<36x4xf32>
    %cst_117 = arith.constant dense<0.000000e+00> : vector<256x4xf32>
    %114 = tpu.matmul %112, %113, %cst_117 {dimension_numbers = #tpu.dot_dimension_numbers<[1], [0], [0], [1], [0, 0, 1, 1], [], []>} : vector<256x36xf32>, vector<36x4xf32>, vector<256x4xf32> -> vector<256x4xf32>
    %c0_118 = arith.constant 0 : index
    %c0_119 = arith.constant 0 : index
    %115 = vector.load %arg8[%c0_118, %c0_119] : memref<1x4xf32, #tpu.memory_space<vmem>>, vector<1x4xf32>
    %116 = vector.broadcast %115 : vector<1x4xf32> to vector<256x4xf32>
    %117 = arith.addf %114, %116 : vector<256x4xf32>
    %cst_120 = arith.constant 0.000000e+00 : f32
    %118 = vector.broadcast %cst_120 : f32 to vector<256x4xf32>
    %119 = arith.maximumf %117, %118 : vector<256x4xf32>
    %120 = vector.shape_cast %119 : vector<256x4xf32> to vector<1x16x16x4xf32>
    %c0_121 = arith.constant 0 : index
    %c0_122 = arith.constant 0 : index
    %c0_123 = arith.constant 0 : index
    %c0_124 = arith.constant 0 : index
    %121 = vector.load %arg9[%c0_121, %c0_122, %c0_123, %c0_124] : memref<1x16x16x4xf32, #tpu.memory_space<vmem>>, vector<1x16x16x4xf32>
    tpu.vector_store %arg9[%c0_121, %c0_122, %c0_123, %c0_124], %120 {strides = array<i32>} : memref<1x16x16x4xf32, #tpu.memory_space<vmem>>, vector<1x16x16x4xf32>,
    return
  }
  func.func @transform_0(%arg0: i32) -> (i32, i32, i32, i32) {
    %c0_i32 = arith.constant 0 : i32
    %c0_i32_0 = arith.constant 0 : i32
    %c0_i32_1 = arith.constant 0 : i32
    %c0_i32_2 = arith.constant 0 : i32
    return %arg0, %c0_i32, %c0_i32_0, %c0_i32_1 : i32, i32, i32, i32
  }
  func.func @transform_1(%arg0: i32) -> (i32, i32, i32, i32) {
    %c0_i32 = arith.constant 0 : i32
    %c0_i32_0 = arith.constant 0 : i32
    %c0_i32_1 = arith.constant 0 : i32
    %c0_i32_2 = arith.constant 0 : i32
    return %arg0, %c0_i32, %c0_i32_0, %c0_i32_1 : i32, i32, i32, i32
  }
  func.func @transform_2(%arg0: i32) -> (i32, i32) {
    %c0_i32 = arith.constant 0 : i32
    %c0_i32_0 = arith.constant 0 : i32
    %c0_i32_1 = arith.constant 0 : i32
    return %c0_i32, %c0_i32_0 : i32, i32
  }
  func.func @transform_3(%arg0: i32) -> (i32, i32) {
    %c0_i32 = arith.constant 0 : i32
    %c0_i32_0 = arith.constant 0 : i32
    %c0_i32_1 = arith.constant 0 : i32
    return %c0_i32, %c0_i32_0 : i32, i32
  }
  func.func @transform_4(%arg0: i32) -> (i32, i32) {
    %c0_i32 = arith.constant 0 : i32
    %c0_i32_0 = arith.constant 0 : i32
    %c0_i32_1 = arith.constant 0 : i32
    return %c0_i32, %c0_i32_0 : i32, i32
  }
  func.func @transform_5(%arg0: i32) -> (i32, i32) {
    %c0_i32 = arith.constant 0 : i32
    %c0_i32_0 = arith.constant 0 : i32
    %c0_i32_1 = arith.constant 0 : i32
    return %c0_i32, %c0_i32_0 : i32, i32
  }
  func.func @transform_6(%arg0: i32) -> (i32, i32) {
    %c0_i32 = arith.constant 0 : i32
    %c0_i32_0 = arith.constant 0 : i32
    %c0_i32_1 = arith.constant 0 : i32
    return %c0_i32, %c0_i32_0 : i32, i32
  }
  func.func @transform_7(%arg0: i32) -> (i32, i32) {
    %c0_i32 = arith.constant 0 : i32
    %c0_i32_0 = arith.constant 0 : i32
    %c0_i32_1 = arith.constant 0 : i32
    return %c0_i32, %c0_i32_0 : i32, i32
  }
  func.func @transform_8(%arg0: i32) -> (i32, i32, i32, i32) {
    %c0_i32 = arith.constant 0 : i32
    %c0_i32_0 = arith.constant 0 : i32
    %c0_i32_1 = arith.constant 0 : i32
    %c0_i32_2 = arith.constant 0 : i32
    return %arg0, %c0_i32, %c0_i32_0, %c0_i32_1 : i32, i32, i32, i32
  }
}

</mosaic_0001>

<llo_original>
// kernel: tile.8
$region0: #{tile.8}
  #allocation0 [shape = 's32[1]{0}', space=sflag, size = 0x4, scoped, tag = 'scoped memory for tile.8']
  %s0 = inlined_call_operand.vmem [shape: f32[4], index: 0, kind: input, shape index: {}]
  %s1 = inlined_call_operand.vmem [shape: f32[4,4], index: 1, kind: output, shape index: {}]
  // Predicated region
  $region2: #{tile.8} parent=0 // pred_check
    _
  $region3: #{tile.8} parent=0 // pred_check_branch
    %3 = sbr.rel (0) target = $region5
  $region4: #{tile.8} parent=0 // pred_region
    _
  $region5: #{tile.8} parent=0 // pred_fallthru
    _
  %v4 = vld [vmem:[%s0] ss:$0 sm:$0xff]
  %5 = vst [vmem:[%s1] sm:$0xf] %v4

// kernel: tile.9
$region0: #{tile.9}
  %s0 = inlined_call_operand.vmem [shape: f32[4,4], index: 0, kind: input, shape index: {}]
  %s1 = inlined_call_operand.vmem [shape: f32[1,16], index: 1, kind: output, shape index: {}]
  $region1: #{tile.9} parent=0
    #allocation0 [shape = 'u8[4096]{0}', space=vmem, size = 0x1000, scoped, tag = 'scoped mem for output reshape']
    #allocation1 [shape = 'u8[4096]{0}', space=vmem, size = 0x1000, scoped, tag = 'scoped mem for input reshape']
    %s3 = sshllo.u32 0, 4
    %v4 = vld [vmem:[%s0] sm:%s3]
    %5 = vst [vmem:[#allocation1] sm:%s3] %v4
    %v6 = vld [vmem:[#allocation1] sm:$0x1]
    %vm7 = vcmask 31744
    %8 = vst.msk [vmem:[#allocation0] sm:$0x1] %vm7, %v6
    %s9 = scalar_lea.vmem [#allocation1], 3
    %v10 = vld [vmem:[%s9] sm:$0x1]
    %11 = vrot.lane.b32.xlu0 %v10, 12
    %v12 = vpop.permute.xlu0 %11
    %vm13 = vcmask 130144
    %14 = vst.msk [vmem:[#allocation0] sm:$0x1] %vm13, %v12
    %s15 = scalar_lea.vmem [#allocation1], 2
    %v16 = vld [vmem:[%s15] sm:$0x1]
    %17 = vrot.lane.b32.xlu0 %v16, 8
    %v18 = vpop.permute.xlu0 %17
    %vm19 = vcmask 97344
    %20 = vst.msk [vmem:[#allocation0] sm:$0x1] %vm19, %v18
    %s21 = scalar_lea.vmem [#allocation1], 1
    %v22 = vld [vmem:[%s21] sm:$0x1]
    %23 = vrot.lane.b32.xlu0 %v22, 4
    %v24 = vpop.permute.xlu0 %23
    %vm25 = vcmask 64544
    %26 = vst.msk [vmem:[#allocation0] sm:$0x1] %vm25, %v24
    %s28 = sshllo.u32 0, 1
    %v30 = vld [vmem:[#allocation0] sm:%s28]
    %s31 = sshllo.u32 0, 1
    %32 = vst [vmem:[%s1] sm:%s31] %v30

// kernel: decoder_block.1
$region0: #{decoder_block.1}
  #allocation0 [shape = 'u32[]', space=smem, size = 0x4, offset = 0x4, fixed_abs, tag = 'smem constant byte address 0x4 - core index']
  #allocation1 [shape = 'u32[144,128]{1,0:T(1,128)}', space=vmem, size = 0x12000, scoped, tag = 'internal scratch']
  #allocation2 [shape = 'f32[18,18,8]{2,1,0:T(8,128)}', space=vmem, size = 0x36000, scoped, tag = 'scratch operand']
  #allocation3 [shape = 'f32[18,18,4]{2,1,0:T(8,128)}', space=vmem, size = 0x36000, scoped, tag = 'scratch operand']
  #allocation4 [shape = 'f32[256,72]{1,0:T(8,128)}', space=vmem, size = 0x20000, scoped, tag = 'scratch operand']
  #allocation5 [shape = 'f32[256,36]{1,0:T(8,128)}', space=vmem, size = 0x20000, scoped, tag = 'scratch operand']
  %s0 = inlined_call_operand.vmem [shape: f32[2,8,8,8], index: 0, kind: input, shape index: {}]
  %s1 = inlined_call_operand.vmem [shape: f32[2,16,16,4], index: 1, kind: input, shape index: {}]
  %s2 = inlined_call_operand.vmem [shape: f32[8,16], index: 2, kind: input, shape index: {}]
  %s3 = inlined_call_operand.vmem [shape: f32[1,16], index: 3, kind: input, shape index: {}]
  %s4 = inlined_call_operand.vmem [shape: f32[72,4], index: 4, kind: input, shape index: {}]
  %s5 = inlined_call_operand.vmem [shape: f32[1,4], index: 5, kind: input, shape index: {}]
  %s6 = inlined_call_operand.vmem [shape: f32[36,4], index: 6, kind: input, shape index: {}]
  %s7 = inlined_call_operand.vmem [shape: f32[1,4], index: 7, kind: input, shape index: {}]
  %s8 = inlined_call_operand.vmem [shape: f32[2,16,16,4], index: 8, kind: output, shape index: {}]
  %s9 = sld [smem:[#allocation0]]
  $region65: #{decoder_block.1} parent=0
    _
  %s11 = ssub.s32 1, %s9
  %s12 = scalar_select 0, %s11, %s9
  loop: start=0, step=1, limit=4
  $region2: #{decoder_block.1} parent=0 // loop_pre_header
    _
  $region3: #{decoder_block.1} parent=0 // loop_header
    %s14 = sphi 0, %s18
    %p15 = scmp.ge.s32.totalorder %s14, 4
    %s24 = sphi 0, %s26
    %s27 = sphi 0, %s24
    %s28 = sphi 0, %s27
    %s44 = sphi 0, %s28
    %s50 = sphi 0, %s52
    %s53 = sphi 0, %s50
    %s54 = sphi 0, %s53
    %s70 = sphi 0, %s54
    %s74 = sphi 0, %s74
    %s76 = sphi 0, %s74
    %s77 = sphi 0, %s76
    %s91 = sphi 0, %s77
    %s95 = sphi 0, %s95
    %s97 = sphi 0, %s95
    %s98 = sphi 0, %s97
    %s112 = sphi 0, %s98
    %s116 = sphi 0, %s116
    %s118 = sphi 0, %s116
    %s119 = sphi 0, %s118
    %s133 = sphi 0, %s119
    %s137 = sphi 0, %s137
    %s139 = sphi 0, %s137
    %s140 = sphi 0, %s139
    %s154 = sphi 0, %s140
    %s158 = sphi 0, %s158
    %s160 = sphi 0, %s158
    %s161 = sphi 0, %s160
    %s175 = sphi 0, %s161
    %s179 = sphi 0, %s179
    %s181 = sphi 0, %s179
    %s182 = sphi 0, %s181
    %s196 = sphi 0, %s182
    %s202 = sphi 0, %s204
    %s205 = sphi 0, %s202
    %s206 = sphi 0, %s205
    %s222 = sphi 0, %s206
  $region4: #{decoder_block.1} parent=0 // loop_header_branch
    %17 = sbr.rel (%p15) target = $region8
  $region5: #{decoder_block.1} parent=0 // loop_body
    %s19 = ssub.s32 %s14, 1
    %s20 = ssub.s32 %s14, 2
    %s21 = sadd.s32 %s14, 1
    %s22 = ssub.s32 %s14, %s21
    %p23 = scmp.eq.s32.totalorder %s22, 0
    %s25 = sadd.s32 %s24, 1
    %s26 = scalar_select %p23, %s24, %s25
    %p29 = pneg %p23
    %p30 = scmp.eq.s32.totalorder %s14, 1
    %p31 = por %p29, %p30
    %p32 = scmp.ne.s32.totalorder %s24, %s27
    %p33 = scmp.eq.s32.totalorder %s14, 0
    %p34 = por %p32, %p33
    %p35 = scmp.ne.s32.totalorder %s24, %s27
    %p36 = scmp.eq.s32.totalorder %s19, 1
    %p37 = por %p35, %p36
    %p38 = scmp.ne.s32.totalorder %s27, %s28
    %p39 = scmp.eq.s32.totalorder %s19, 0
    %p40 = por %p38, %p39
    %p41 = scmp.ne.s32.totalorder %s27, %s28
    %p42 = scmp.eq.s32.totalorder %s20, 1
    %p43 = por %p41, %p42
    %p45 = scmp.ne.s32.totalorder %s28, %s44
    %p46 = scmp.eq.s32.totalorder %s20, 0
    %p47 = por %p45, %p46
    %s48 = ssub.s32 %s14, %s21
    %p49 = scmp.eq.s32.totalorder %s48, 0
    %s51 = sadd.s32 %s50, 1
    %s52 = scalar_select %p49, %s50, %s51
    %p55 = pneg %p49
    %p56 = scmp.eq.s32.totalorder %s14, 1
    %p57 = por %p55, %p56
    %p58 = scmp.ne.s32.totalorder %s50, %s53
    %p59 = scmp.eq.s32.totalorder %s14, 0
    %p60 = por %p58, %p59
    %p61 = scmp.ne.s32.totalorder %s50, %s53
    %p62 = scmp.eq.s32.totalorder %s19, 1
    %p63 = por %p61, %p62
    %p64 = scmp.ne.s32.totalorder %s53, %s54
    %p65 = scmp.eq.s32.totalorder %s19, 0
    %p66 = por %p64, %p65
    %p67 = scmp.ne.s32.totalorder %s53, %s54
    %p68 = scmp.eq.s32.totalorder %s20, 1
    %p69 = por %p67, %p68
    %p71 = scmp.ne.s32.totalorder %s54, %s70
    %p72 = scmp.eq.s32.totalorder %s20, 0
    %p73 = por %p71, %p72
    %s75 = sadd.s32 %s74, 1
    %p78 = scmp.eq.s32.totalorder %s14, 1
    %p79 = scmp.ne.s32.totalorder %s74, %s76
    %p80 = scmp.eq.s32.totalorder %s14, 0
    %p81 = por %p79, %p80
    %p82 = scmp.ne.s32.totalorder %s74, %s76
    %p83 = scmp.eq.s32.totalorder %s19, 1
    %p84 = por %p82, %p83
    %p85 = scmp.ne.s32.totalorder %s76, %s77
    %p86 = scmp.eq.s32.totalorder %s19, 0
    %p87 = por %p85, %p86
    %p88 = scmp.ne.s32.totalorder %s76, %s77
    %p89 = scmp.eq.s32.totalorder %s20, 1
    %p90 = por %p88, %p89
    %p92 = scmp.ne.s32.totalorder %s77, %s91
    %p93 = scmp.eq.s32.totalorder %s20, 0
    %p94 = por %p92, %p93
    %s96 = sadd.s32 %s95, 1
    %p99 = scmp.eq.s32.totalorder %s14, 1
    %p100 = scmp.ne.s32.totalorder %s95, %s97
    %p101 = scmp.eq.s32.totalorder %s14, 0
    %p102 = por %p100, %p101
    %p103 = scmp.ne.s32.totalorder %s95, %s97
    %p104 = scmp.eq.s32.totalorder %s19, 1
    %p105 = por %p103, %p104
    %p106 = scmp.ne.s32.totalorder %s97, %s98
    %p107 = scmp.eq.s32.totalorder %s19, 0
    %p108 = por %p106, %p107
    %p109 = scmp.ne.s32.totalorder %s97, %s98
    %p110 = scmp.eq.s32.totalorder %s20, 1
    %p111 = por %p109, %p110
    %p113 = scmp.ne.s32.totalorder %s98, %s112
    %p114 = scmp.eq.s32.totalorder %s20, 0
    %p115 = por %p113, %p114
    %s117 = sadd.s32 %s116, 1
    %p120 = scmp.eq.s32.totalorder %s14, 1
    %p121 = scmp.ne.s32.totalorder %s116, %s118
    %p122 = scmp.eq.s32.totalorder %s14, 0
    %p123 = por %p121, %p122
    %p124 = scmp.ne.s32.totalorder %s116, %s118
    %p125 = scmp.eq.s32.totalorder %s19, 1
    %p126 = por %p124, %p125
    %p127 = scmp.ne.s32.totalorder %s118, %s119
    %p128 = scmp.eq.s32.totalorder %s19, 0
    %p129 = por %p127, %p128
    %p130 = scmp.ne.s32.totalorder %s118, %s119
    %p131 = scmp.eq.s32.totalorder %s20, 1
    %p132 = por %p130, %p131
    %p134 = scmp.ne.s32.totalorder %s119, %s133
    %p135 = scmp.eq.s32.totalorder %s20, 0
    %p136 = por %p134, %p135
    %s138 = sadd.s32 %s137, 1
    %p141 = scmp.eq.s32.totalorder %s14, 1
    %p142 = scmp.ne.s32.totalorder %s137, %s139
    %p143 = scmp.eq.s32.totalorder %s14, 0
    %p144 = por %p142, %p143
    %p145 = scmp.ne.s32.totalorder %s137, %s139
    %p146 = scmp.eq.s32.totalorder %s19, 1
    %p147 = por %p145, %p146
    %p148 = scmp.ne.s32.totalorder %s139, %s140
    %p149 = scmp.eq.s32.totalorder %s19, 0
    %p150 = por %p148, %p149
    %p151 = scmp.ne.s32.totalorder %s139, %s140
    %p152 = scmp.eq.s32.totalorder %s20, 1
    %p153 = por %p151, %p152
    %p155 = scmp.ne.s32.totalorder %s140, %s154
    %p156 = scmp.eq.s32.totalorder %s20, 0
    %p157 = por %p155, %p156
    %s159 = sadd.s32 %s158, 1
    %p162 = scmp.eq.s32.totalorder %s14, 1
    %p163 = scmp.ne.s32.totalorder %s158, %s160
    %p164 = scmp.eq.s32.totalorder %s14, 0
    %p165 = por %p163, %p164
    %p166 = scmp.ne.s32.totalorder %s158, %s160
    %p167 = scmp.eq.s32.totalorder %s19, 1
    %p168 = por %p166, %p167
    %p169 = scmp.ne.s32.totalorder %s160, %s161
    %p170 = scmp.eq.s32.totalorder %s19, 0
    %p171 = por %p169, %p170
    %p172 = scmp.ne.s32.totalorder %s160, %s161
    %p173 = scmp.eq.s32.totalorder %s20, 1
    %p174 = por %p172, %p173
    %p176 = scmp.ne.s32.totalorder %s161, %s175
    %p177 = scmp.eq.s32.totalorder %s20, 0
    %p178 = por %p176, %p177
    %s180 = sadd.s32 %s179, 1
    %p183 = scmp.eq.s32.totalorder %s14, 1
    %p184 = scmp.ne.s32.totalorder %s179, %s181
    %p185 = scmp.eq.s32.totalorder %s14, 0
    %p186 = por %p184, %p185
    %p187 = scmp.ne.s32.totalorder %s179, %s181
    %p188 = scmp.eq.s32.totalorder %s19, 1
    %p189 = por %p187, %p188
    %p190 = scmp.ne.s32.totalorder %s181, %s182
    %p191 = scmp.eq.s32.totalorder %s19, 0
    %p192 = por %p190, %p191
    %p193 = scmp.ne.s32.totalorder %s181, %s182
    %p194 = scmp.eq.s32.totalorder %s20, 1
    %p195 = por %p193, %p194
    %p197 = scmp.ne.s32.totalorder %s182, %s196
    %p198 = scmp.eq.s32.totalorder %s20, 0
    %p199 = por %p197, %p198
    %s200 = ssub.s32 %s14, %s21
    %p201 = scmp.eq.s32.totalorder %s200, 0
    %s203 = sadd.s32 %s202, 1
    %s204 = scalar_select %p201, %s202, %s203
    %p207 = pneg %p201
    %p208 = scmp.eq.s32.totalorder %s14, 1
    %p209 = por %p207, %p208
    %p210 = scmp.ne.s32.totalorder %s202, %s205
    %p211 = scmp.eq.s32.totalorder %s14, 0
    %p212 = por %p210, %p211
    %p213 = scmp.ne.s32.totalorder %s202, %s205
    %p214 = scmp.eq.s32.totalorder %s19, 1
    %p215 = por %p213, %p214
    %p216 = scmp.ne.s32.totalorder %s205, %s206
    %p217 = scmp.eq.s32.totalorder %s19, 0
    %p218 = por %p216, %p217
    %p219 = scmp.ne.s32.totalorder %s205, %s206
    %p220 = scmp.eq.s32.totalorder %s20, 1
    %p221 = por %p219, %p220
    %p223 = scmp.ne.s32.totalorder %s206, %s222
    %p224 = scmp.eq.s32.totalorder %s20, 0
    %p225 = por %p223, %p224
    %p226 = scmp.le.s32.totalorder 1, %s14
    %p227 = scmp.lt.s32.totalorder %s14, 3
    %p228 = pnand %p226, %p227
    %p229 = pneg %p228
    // Predicated region
    $region9: #{decoder_block.1} parent=5 // pred_check
      _
    $region10: #{decoder_block.1} parent=5 // pred_check_branch
      %231 = sbr.rel (%p228) target = $region12
    $region11: #{decoder_block.1} parent=5 // pred_region
      %s232 = ssub.s32 %s14, 1
      // Predicated region
      $region13: #{decoder_block.1} parent=11 // pred_check
        %p233 = pneg %p87
      $region14: #{decoder_block.1} parent=11 // pred_check_branch
        %235 = sbr.rel (%p233) target = $region16
      $region15: #{decoder_block.1} parent=11 // pred_region
        _
      $region16: #{decoder_block.1} parent=11 // pred_fallthru
        _
      // Predicated region
      $region17: #{decoder_block.1} parent=11 // pred_check
        %p236 = pneg %p108
      $region18: #{decoder_block.1} parent=11 // pred_check_branch
        %238 = sbr.rel (%p236) target = $region20
      $region19: #{decoder_block.1} parent=11 // pred_region
        _
      $region20: #{decoder_block.1} parent=11 // pred_fallthru
        _
      // Predicated region
      $region21: #{decoder_block.1} parent=11 // pred_check
        %p239 = pneg %p129
      $region22: #{decoder_block.1} parent=11 // pred_check_branch
        %241 = sbr.rel (%p239) target = $region24
      $region23: #{decoder_block.1} parent=11 // pred_region
        _
      $region24: #{decoder_block.1} parent=11 // pred_fallthru
        _
      // Predicated region
      $region25: #{decoder_block.1} parent=11 // pred_check
        %p242 = pneg %p150
      $region26: #{decoder_block.1} parent=11 // pred_check_branch
        %244 = sbr.rel (%p242) target = $region28
      $region27: #{decoder_block.1} parent=11 // pred_region
        _
      $region28: #{decoder_block.1} parent=11 // pred_fallthru
        _
      // Predicated region
      $region29: #{decoder_block.1} parent=11 // pred_check
        %p245 = pneg %p171
      $region30: #{decoder_block.1} parent=11 // pred_check_branch
        %247 = sbr.rel (%p245) target = $region32
      $region31: #{decoder_block.1} parent=11 // pred_region
        _
      $region32: #{decoder_block.1} parent=11 // pred_fallthru
        _
      // Predicated region
      $region33: #{decoder_block.1} parent=11 // pred_check
        %p248 = pneg %p192
      $region34: #{decoder_block.1} parent=11 // pred_check_branch
        %250 = sbr.rel (%p248) target = $region36
      $region35: #{decoder_block.1} parent=11 // pred_region
        _
      $region36: #{decoder_block.1} parent=11 // pred_fallthru
        _
    $region12: #{decoder_block.1} parent=5 // pred_fallthru
      _
    %p251 = scmp.lt.s32.totalorder %s14, 2
    // Predicated region
    $region37: #{decoder_block.1} parent=5 // pred_check
      %p252 = pneg %p251
    $region38: #{decoder_block.1} parent=5 // pred_check_branch
      %254 = sbr.rel (%p252) target = $region40
    $region39: #{decoder_block.1} parent=5 // pred_region
      // Predicated region
      $region41: #{decoder_block.1} parent=39 // pred_check
        %p255 = pneg %p34
      $region42: #{decoder_block.1} parent=39 // pred_check_branch
        %257 = sbr.rel (%p255) target = $region44
      $region43: #{decoder_block.1} parent=39 // pred_region
        %p258 = scmp.lt.s32.totalorder %s14, 1
        %s259 = scalar_select %p258, %s14, 1
        %s260 = smul.addr %s259, 8
        %s261 = smul.addr %s260, 8
        %s262 = scalar_lea.vmem %s0, %s261
      $region44: #{decoder_block.1} parent=39 // pred_fallthru
        _
      // Predicated region
      $region45: #{decoder_block.1} parent=39 // pred_check
        %p263 = pneg %p60
      $region46: #{decoder_block.1} parent=39 // pred_check_branch
        %265 = sbr.rel (%p263) target = $region48
      $region47: #{decoder_block.1} parent=39 // pred_region
        %p266 = scmp.lt.s32.totalorder %s14, 1
        %s267 = scalar_select %p266, %s14, 1
        %s268 = smul.addr %s267, 32
        %s269 = smul.addr %s268, 8
        %s270 = scalar_lea.vmem %s1, %s269
      $region48: #{decoder_block.1} parent=39 // pred_fallthru
        _
    $region40: #{decoder_block.1} parent=5 // pred_fallthru
      _
    %p271 = scmp.le.s32.totalorder 1, %s14
    %p272 = scmp.lt.s32.totalorder %s14, 3
    %p273 = pnand %p271, %p272
    %p274 = pneg %p273
    // Predicated region
    $region49: #{decoder_block.1} parent=5 // pred_check
      _
    $region50: #{decoder_block.1} parent=5 // pred_check_branch
      %276 = sbr.rel (%p273) target = $region52
    $region51: #{decoder_block.1} parent=5 // pred_region
      %s277 = ssub.s32 %s14, 1
      %p278 = scmp.lt.s32.totalorder %s19, 1
      %s279 = scalar_select %p278, %s19, 1
      %s280 = smul.addr %s279, 8
      %s281 = smul.addr %s280, 8
      %s282 = scalar_lea.vmem %s0, %s281
      %p283 = pneg %p40
      %p284 = pneg %p37
      %p285 = scmp.lt.s32.totalorder %s19, 1
      %s286 = scalar_select %p285, %s19, 1
      %s287 = smul.addr %s286, 32
      %s288 = smul.addr %s287, 8
      %s289 = scalar_lea.vmem %s1, %s288
      %p290 = pneg %p66
      %p291 = pneg %p63
      %p292 = pneg %p87
      %p293 = pneg %p84
      %p294 = pneg %p108
      %p295 = pneg %p105
      %p296 = pneg %p129
      %p297 = pneg %p126
      %p298 = pneg %p150
      %p299 = pneg %p147
      %p300 = pneg %p171
      %p301 = pneg %p168
      %p302 = pneg %p192
      %p303 = pneg %p189
      %p304 = pneg %p218
      %p305 = pneg %p215
      %p306 = scmp.lt.s32.totalorder %s19, 1
      %s307 = scalar_select %p306, %s19, 1
      %s308 = smul.addr %s307, 32
      %s309 = smul.addr %s308, 8
      %s310 = scalar_lea.vmem %s8, %s309
      %p311 = scmp.lt.s32.totalorder %s19, 1
      %s312 = scalar_select %p311, %s19, 1
      %s313 = smul.addr %s312, 8
      %s314 = smul.addr %s313, 8
      %s315 = scalar_lea.vmem %s0, %s314
      %p316 = scmp.lt.s32.totalorder %s19, 1
      %s317 = scalar_select %p316, %s19, 1
      %s318 = smul.addr %s317, 32
      %s319 = smul.addr %s318, 8
      %s320 = scalar_lea.vmem %s1, %s319
      %p321 = scmp.lt.s32.totalorder %s19, 1
      %s322 = scalar_select %p321, %s19, 1
      %s323 = smul.addr %s322, 32
      %s324 = smul.addr %s323, 8
      %s325 = scalar_lea.vmem %s8, %s324
      %vm326 = vcmask 64512
      %327 = vst.msk [vmem:[#allocation2] sm:$0xff] %vm326, 0.0
      %328 = vst.msk [vmem:[#allocation2 + $0x8] sm:$0xff] %vm326, 0.0
      %vm329 = vcmask 58368
      %330 = vst.msk [vmem:[#allocation2 + $0x10] sm:$0x3] %vm329, 0.0
      %331 = vst.msk [vmem:[#allocation2 + $0x18] sm:$0xff] %vm326, 0.0
      %332 = vst.msk [vmem:[#allocation2 + $0x20] sm:$0xff] %vm326, 0.0
      %333 = vst.msk [vmem:[#allocation2 + $0x28] sm:$0x3] %vm329, 0.0
      %334 = vst.msk [vmem:[#allocation2 + $0x30] sm:$0xff] %vm326, 0.0
      %335 = vst.msk [vmem:[#allocation2 + $0x38] sm:$0xff] %vm326, 0.0
      %336 = vst.msk [vmem:[#allocation2 + $0x40] sm:$0x3] %vm329, 0.0
      %337 = vst.msk [vmem:[#allocation2 + $0x48] sm:$0xff] %vm326, 0.0
      %338 = vst.msk [vmem:[#allocation2 + $0x50] sm:$0xff] %vm326, 0.0
      %339 = vst.msk [vmem:[#allocation2 + $0x58] sm:$0x3] %vm329, 0.0
      %340 = vst.msk [vmem:[#allocation2 + $0x60] sm:$0xff] %vm326, 0.0
      %341 = vst.msk [vmem:[#allocation2 + $0x68] sm:$0xff] %vm326, 0.0
      %342 = vst.msk [vmem:[#allocation2 + $0x70] sm:$0x3] %vm329, 0.0
      %343 = vst.msk [vmem:[#allocation2 + $0x78] sm:$0xff] %vm326, 0.0
      %344 = vst.msk [vmem:[#allocation2 + $0x80] sm:$0xff] %vm326, 0.0
      %345 = vst.msk [vmem:[#allocation2 + $0x88] sm:$0x3] %vm329, 0.0
      %346 = vst.msk [vmem:[#allocation2 + $0x90] sm:$0xff] %vm326, 0.0
      %347 = vst.msk [vmem:[#allocation2 + $0x98] sm:$0xff] %vm326, 0.0
      %348 = vst.msk [vmem:[#allocation2 + $0xa0] sm:$0x3] %vm329, 0.0
      %349 = vst.msk [vmem:[#allocation2 + $0xa8] sm:$0xff] %vm326, 0.0
      %350 = vst.msk [vmem:[#allocation2 + $0xb0] sm:$0xff] %vm326, 0.0
      %351 = vst.msk [vmem:[#allocation2 + $0xb8] sm:$0x3] %vm329, 0.0
      %352 = vst.msk [vmem:[#allocation2 + $0xc0] sm:$0xff] %vm326, 0.0
      %353 = vst.msk [vmem:[#allocation2 + $0xc8] sm:$0xff] %vm326, 0.0
      %354 = vst.msk [vmem:[#allocation2 + $0xd0] sm:$0x3] %vm329, 0.0
      %355 = vst.msk [vmem:[#allocation2 + $0xd8] sm:$0xff] %vm326, 0.0
      %356 = vst.msk [vmem:[#allocation2 + $0xe0] sm:$0xff] %vm326, 0.0
      %357 = vst.msk [vmem:[#allocation2 + $0xe8] sm:$0x3] %vm329, 0.0
      %358 = vst.msk [vmem:[#allocation2 + $0xf0] sm:$0xff] %vm326, 0.0
      %359 = vst.msk [vmem:[#allocation2 + $0xf8] sm:$0xff] %vm326, 0.0
      %360 = vst.msk [vmem:[#allocation2 + $0x100] sm:$0x3] %vm329, 0.0
      %361 = vst.msk [vmem:[#allocation2 + $0x108] sm:$0xff] %vm326, 0.0
      %362 = vst.msk [vmem:[#allocation2 + $0x110] sm:$0xff] %vm326, 0.0
      %363 = vst.msk [vmem:[#allocation2 + $0x118] sm:$0x3] %vm329, 0.0
      %364 = vst.msk [vmem:[#allocation2 + $0x120] sm:$0xff] %vm326, 0.0
      %365 = vst.msk [vmem:[#allocation2 + $0x128] sm:$0xff] %vm326, 0.0
      %366 = vst.msk [vmem:[#allocation2 + $0x130] sm:$0x3] %vm329, 0.0
      %367 = vst.msk [vmem:[#allocation2 + $0x138] sm:$0xff] %vm326, 0.0
      %368 = vst.msk [vmem:[#allocation2 + $0x140] sm:$0xff] %vm326, 0.0
      %369 = vst.msk [vmem:[#allocation2 + $0x148] sm:$0x3] %vm329, 0.0
      %370 = vst.msk [vmem:[#allocation2 + $0x150] sm:$0xff] %vm326, 0.0
      %371 = vst.msk [vmem:[#allocation2 + $0x158] sm:$0xff] %vm326, 0.0
      %372 = vst.msk [vmem:[#allocation2 + $0x160] sm:$0x3] %vm329, 0.0
      %373 = vst.msk [vmem:[#allocation2 + $0x168] sm:$0xff] %vm326, 0.0
      %374 = vst.msk [vmem:[#allocation2 + $0x170] sm:$0xff] %vm326, 0.0
      %375 = vst.msk [vmem:[#allocation2 + $0x178] sm:$0x3] %vm329, 0.0
      %376 = vst.msk [vmem:[#allocation2 + $0x180] sm:$0xff] %vm326, 0.0
      %377 = vst.msk [vmem:[#allocation2 + $0x188] sm:$0xff] %vm326, 0.0
      %378 = vst.msk [vmem:[#allocation2 + $0x190] sm:$0x3] %vm329, 0.0
      %379 = vst.msk [vmem:[#allocation2 + $0x198] sm:$0xff] %vm326, 0.0
      %380 = vst.msk [vmem:[#allocation2 + $0x1a0] sm:$0xff] %vm326, 0.0
      %381 = vst.msk [vmem:[#allocation2 + $0x1a8] sm:$0x3] %vm329, 0.0
      %vm382 = vcmask 31744
      %383 = vst.msk [vmem:[#allocation3] sm:$0xff] %vm382, 0.0
      %384 = vst.msk [vmem:[#allocation3 + $0x8] sm:$0xff] %vm382, 0.0
      %vm385 = vcmask 25600
      %386 = vst.msk [vmem:[#allocation3 + $0x10] sm:$0x3] %vm385, 0.0
      %387 = vst.msk [vmem:[#allocation3 + $0x18] sm:$0xff] %vm382, 0.0
      %388 = vst.msk [vmem:[#allocation3 + $0x20] sm:$0xff] %vm382, 0.0
      %389 = vst.msk [vmem:[#allocation3 + $0x28] sm:$0x3] %vm385, 0.0
      %390 = vst.msk [vmem:[#allocation3 + $0x30] sm:$0xff] %vm382, 0.0
      %391 = vst.msk [vmem:[#allocation3 + $0x38] sm:$0xff] %vm382, 0.0
      %392 = vst.msk [vmem:[#allocation3 + $0x40] sm:$0x3] %vm385, 0.0
      %393 = vst.msk [vmem:[#allocation3 + $0x48] sm:$0xff] %vm382, 0.0
      %394 = vst.msk [vmem:[#allocation3 + $0x50] sm:$0xff] %vm382, 0.0
      %395 = vst.msk [vmem:[#allocation3 + $0x58] sm:$0x3] %vm385, 0.0
      %396 = vst.msk [vmem:[#allocation3 + $0x60] sm:$0xff] %vm382, 0.0
      %397 = vst.msk [vmem:[#allocation3 + $0x68] sm:$0xff] %vm382, 0.0
      %398 = vst.msk [vmem:[#allocation3 + $0x70] sm:$0x3] %vm385, 0.0
      %399 = vst.msk [vmem:[#allocation3 + $0x78] sm:$0xff] %vm382, 0.0
      %400 = vst.msk [vmem:[#allocation3 + $0x80] sm:$0xff] %vm382, 0.0
      %401 = vst.msk [vmem:[#allocation3 + $0x88] sm:$0x3] %vm385, 0.0
      %402 = vst.msk [vmem:[#allocation3 + $0x90] sm:$0xff] %vm382, 0.0
      %403 = vst.msk [vmem:[#allocation3 + $0x98] sm:$0xff] %vm382, 0.0
      %404 = vst.msk [vmem:[#allocation3 + $0xa0] sm:$0x3] %vm385, 0.0
      %405 = vst.msk [vmem:[#allocation3 + $0xa8] sm:$0xff] %vm382, 0.0
      %406 = vst.msk [vmem:[#allocation3 + $0xb0] sm:$0xff] %vm382, 0.0
      %407 = vst.msk [vmem:[#allocation3 + $0xb8] sm:$0x3] %vm385, 0.0
      %408 = vst.msk [vmem:[#allocation3 + $0xc0] sm:$0xff] %vm382, 0.0
      %409 = vst.msk [vmem:[#allocation3 + $0xc8] sm:$0xff] %vm382, 0.0
      %410 = vst.msk [vmem:[#allocation3 + $0xd0] sm:$0x3] %vm385, 0.0
      %411 = vst.msk [vmem:[#allocation3 + $0xd8] sm:$0xff] %vm382, 0.0
      %412 = vst.msk [vmem:[#allocation3 + $0xe0] sm:$0xff] %vm382, 0.0
      %413 = vst.msk [vmem:[#allocation3 + $0xe8] sm:$0x3] %vm385, 0.0
      %414 = vst.msk [vmem:[#allocation3 + $0xf0] sm:$0xff] %vm382, 0.0
      %415 = vst.msk [vmem:[#allocation3 + $0xf8] sm:$0xff] %vm382, 0.0
      %416 = vst.msk [vmem:[#allocation3 + $0x100] sm:$0x3] %vm385, 0.0
      %417 = vst.msk [vmem:[#allocation3 + $0x108] sm:$0xff] %vm382, 0.0
      %418 = vst.msk [vmem:[#allocation3 + $0x110] sm:$0xff] %vm382, 0.0
      %419 = vst.msk [vmem:[#allocation3 + $0x118] sm:$0x3] %vm385, 0.0
      %420 = vst.msk [vmem:[#allocation3 + $0x120] sm:$0xff] %vm382, 0.0
      %421 = vst.msk [vmem:[#allocation3 + $0x128] sm:$0xff] %vm382, 0.0
      %422 = vst.msk [vmem:[#allocation3 + $0x130] sm:$0x3] %vm385, 0.0
      %423 = vst.msk [vmem:[#allocation3 + $0x138] sm:$0xff] %vm382, 0.0
      %424 = vst.msk [vmem:[#allocation3 + $0x140] sm:$0xff] %vm382, 0.0
      %425 = vst.msk [vmem:[#allocation3 + $0x148] sm:$0x3] %vm385, 0.0
      %426 = vst.msk [vmem:[#allocation3 + $0x150] sm:$0xff] %vm382, 0.0
      %427 = vst.msk [vmem:[#allocation3 + $0x158] sm:$0xff] %vm382, 0.0
      %428 = vst.msk [vmem:[#allocation3 + $0x160] sm:$0x3] %vm385, 0.0
      %429 = vst.msk [vmem:[#allocation3 + $0x168] sm:$0xff] %vm382, 0.0
      %430 = vst.msk [vmem:[#allocation3 + $0x170] sm:$0xff] %vm382, 0.0
      %431 = vst.msk [vmem:[#allocation3 + $0x178] sm:$0x3] %vm385, 0.0
      %432 = vst.msk [vmem:[#allocation3 + $0x180] sm:$0xff] %vm382, 0.0
      %433 = vst.msk [vmem:[#allocation3 + $0x188] sm:$0xff] %vm382, 0.0
      %434 = vst.msk [vmem:[#allocation3 + $0x190] sm:$0x3] %vm385, 0.0
      %435 = vst.msk [vmem:[#allocation3 + $0x198] sm:$0xff] %vm382, 0.0
      %436 = vst.msk [vmem:[#allocation3 + $0x1a0] sm:$0xff] %vm382, 0.0
      %437 = vst.msk [vmem:[#allocation3 + $0x1a8] sm:$0x3] %vm385, 0.0
      %v438 = vld [vmem:[%s315] sm:$0xff]
      %v439 = vld [vmem:[%s315 + $0x8] sm:$0xff]
      %v440 = vld [vmem:[%s315 + $0x10] sm:$0xff]
      %v441 = vld [vmem:[%s315 + $0x18] sm:$0xff]
      %v442 = vld [vmem:[%s315 + $0x20] sm:$0xff]
      %v443 = vld [vmem:[%s315 + $0x28] sm:$0xff]
      %v444 = vld [vmem:[%s315 + $0x30] sm:$0xff]
      %v445 = vld [vmem:[%s315 + $0x38] sm:$0xff]
      %v446 = vld [vmem:[%s2] sm:$0xff]
      %v447 = vld [vmem:[%s3] sm:$0x1]
      %v449 = vlaneseq
      %v450 = vshrl.u32 %v449, 7
      %v451 = vsub.s32 0, %v450
      %v452 = vrot.slane %v447, %v451
      %v455 = vsel %vm326, %v438, 0
      %v458 = vsel %vm326, %v439, 0
      %v461 = vsel %vm326, %v440, 0
      %v464 = vsel %vm326, %v441, 0
      %v467 = vsel %vm326, %v442, 0
      %v470 = vsel %vm326, %v443, 0
      %v473 = vsel %vm326, %v444, 0
      %v476 = vsel %vm326, %v445, 0
      %478 = vmatprep.subr.mxu0 0.0
      %479 = vmatpush1.msra.mxu0 %v446
      %480 = vmatprep.subr.mxu0 0.0
      %481 = vmatpush1.msra.mxu0 0.0
      %482 = vmatprep.subr.mxu0 0.0
      %483 = vmatpush1.msra.mxu0 0.0
      %484 = vmatprep.subr.mxu0 0.0
      %485 = vmatpush1.msra.mxu0 0.0
      %486 = vmatprep.subr.mxu0 0.0
      %487 = vmatpush1.msra.mxu0 0.0
      %488 = vmatprep.subr.mxu0 0.0
      %489 = vmatpush1.msra.mxu0 0.0
      %490 = vmatprep.subr.mxu0 0.0
      %491 = vmatpush1.msra.mxu0 0.0
      %492 = vmatprep.subr.mxu0 0.0
      %493 = vmatpush1.msra.mxu0 0.0
      %494 = vmatprep.subr.mxu0 0.0
      %495 = vmatpush1.msra.mxu0 0.0
      %496 = vmatprep.subr.mxu0 0.0
      %497 = vmatpush1.msra.mxu0 0.0
      %498 = vmatprep.subr.mxu0 0.0
      %499 = vmatpush1.msra.mxu0 0.0
      %500 = vmatprep.subr.mxu0 0.0
      %501 = vmatpush1.msra.mxu0 0.0
      %502 = vmatprep.subr.mxu0 0.0
      %503 = vmatpush1.msra.mxu0 0.0
      %504 = vmatprep.subr.mxu0 0.0
      %505 = vmatpush1.msra.mxu0 0.0
      %506 = vmatprep.subr.mxu0 0.0
      %507 = vmatpush1.msra.mxu0 0.0
      %508 = vmatprep.subr.mxu0 0.0
      %509 = vmatpush1.msra.mxu0 0.0
      %510 = vmatprep.subr.mxu0 0.0
      %511 = vmatpush1.msra.mxu0 0.0
      %512 = vmatprep.subr.mxu0 0.0
      %513 = vmatpush1.msra.mxu0 0.0
      %514 = vmatprep.subr.mxu0 0.0
      %515 = vmatpush1.msra.mxu0 0.0
      %516 = vmatprep.subr.mxu0 0.0
      %517 = vmatpush1.msra.mxu0 0.0
      %518 = vmatprep.subr.mxu0 0.0
      %519 = vmatpush1.msra.mxu0 0.0
      %520 = vmatprep.subr.mxu0 0.0
      %521 = vmatpush1.msra.mxu0 0.0
      %522 = vmatprep.subr.mxu0 0.0
      %523 = vmatpush1.msra.mxu0 0.0
      %524 = vmatprep.subr.mxu0 0.0
      %525 = vmatpush1.msra.mxu0 0.0
      %526 = vmatprep.subr.mxu0 0.0
      %527 = vmatpush1.msra.mxu0 0.0
      %528 = vmatprep.subr.mxu0 0.0
      %529 = vmatpush1.msra.mxu0 0.0
      %530 = vmatprep.subr.mxu0 0.0
      %531 = vmatpush1.msra.mxu0 0.0
      %532 = vmatprep.subr.mxu0 0.0
      %533 = vmatpush1.msra.mxu0 0.0
      %534 = vmatprep.subr.mxu0 0.0
      %535 = vmatpush1.msra.mxu0 0.0
      %536 = vmatprep.subr.mxu0 0.0
      %537 = vmatpush1.msra.mxu0 0.0
      %538 = vmatprep.subr.mxu0 0.0
      %539 = vmatpush1.msra.mxu0 0.0
      %540 = vmatprep.subr.mxu0 0.0
      %541 = vmatpush1.msra.mxu0 0.0
      %542 = vmatprep.mubr.f32.mxu0 0.0
      %543 = vmatmul.mubr.f32.gmra.mrb[0].mxu0 %v455
      %v544 = vpop.f32.mrb[0].mxu0
      %v545 = vadd.f32 %v452, %v544
      %v546 = vpop.f32.mrb[0].mxu0
      %547 = vmatprep.mubr.f32.mxu0 0.0
      %548 = vmatmul.mubr.f32.gmra.mrb[0].mxu0 %v458
      %v549 = vpop.f32.mrb[0].mxu0
      %v550 = vadd.f32 %v452, %v549
      %v551 = vpop.f32.mrb[0].mxu0
      %552 = vmatprep.mubr.f32.mxu0 0.0
      %553 = vmatmul.mubr.f32.gmra.mrb[0].mxu0 %v461
      %v554 = vpop.f32.mrb[0].mxu0
      %v555 = vadd.f32 %v452, %v554
      %v556 = vpop.f32.mrb[0].mxu0
      %557 = vmatprep.mubr.f32.mxu0 0.0
      %558 = vmatmul.mubr.f32.gmra.mrb[0].mxu0 %v464
      %v559 = vpop.f32.mrb[0].mxu0
      %v560 = vadd.f32 %v452, %v559
      %v561 = vpop.f32.mrb[0].mxu0
      %562 = vmatprep.mubr.f32.mxu0 0.0
      %563 = vmatmul.mubr.f32.gmra.mrb[0].mxu0 %v467
      %v564 = vpop.f32.mrb[0].mxu0
      %v565 = vadd.f32 %v452, %v564
      %v566 = vpop.f32.mrb[0].mxu0
      %567 = vmatprep.mubr.f32.mxu0 0.0
      %568 = vmatmul.mubr.f32.gmra.mrb[0].mxu0 %v470
      %v569 = vpop.f32.mrb[0].mxu0
      %v570 = vadd.f32 %v452, %v569
      %v571 = vpop.f32.mrb[0].mxu0
      %572 = vmatprep.mubr.f32.mxu0 0.0
      %573 = vmatmul.mubr.f32.gmra.mrb[0].mxu0 %v473
      %v574 = vpop.f32.mrb[0].mxu0
      %v575 = vadd.f32 %v452, %v574
      %v576 = vpop.f32.mrb[0].mxu0
      %577 = vmatprep.mubr.f32.mxu0 0.0
      %578 = vmatmul.mubr.f32.gmra.mrb[0].mxu0 %v476
      %v579 = vpop.f32.mrb[0].mxu0
      %v580 = vadd.f32 %v452, %v579
      %v581 = vpop.f32.mrb[0].mxu0
      %582 = vdwg.mxu0
      %v583 = vlaneseq
      %v584 = vshrl.u32 %v583, 7
      %vm585 = vcmp.eq.s32.totalorder %v584, 0
      %v594 = vcombine.high %v545, %v545
      %v596 = vunpack.c.l.s4 1966171168
      %v597 = vunpack.c.0.s8 %v596
      %v598 = vlaneseq
      %v599 = vshrl.u32 %v598, 7
      %v600 = vsub.s32 %v597, %v599
      %v601 = vrot.slane %v545, %v600
      %v603 = vunpack.c.l.s4 1966171168
      %v604 = vunpack.c.0.s8 %v603
      %v605 = vlaneseq
      %v606 = vshrl.u32 %v605, 7
      %v607 = vsub.s32 %v604, %v606
      %v608 = vrot.slane %v594, %v607
      %v609 = vcombine.high %v601, %v601
      %v610 = vcombine.high %v608, %v608
      %v612 = vunpack.c.l.s4 1966171168
      %v613 = vunpack.c.0.s8 %v612
      %v614 = vlaneseq
      %v615 = vshrl.u32 %v614, 7
      %v616 = vsub.s32 %v613, %v615
      %v617 = vrot.slane %v601, %v616
      %v619 = vunpack.c.l.s4 1966171168
      %v620 = vunpack.c.0.s8 %v619
      %v621 = vlaneseq
      %v622 = vshrl.u32 %v621, 7
      %v623 = vsub.s32 %v620, %v622
      %v624 = vrot.slane %v608, %v623
      %v626 = vunpack.c.l.s4 1966171168
      %v627 = vunpack.c.0.s8 %v626
      %v628 = vlaneseq
      %v629 = vshrl.u32 %v628, 7
      %v630 = vsub.s32 %v627, %v629
      %v631 = vrot.slane %v609, %v630
      %v633 = vunpack.c.l.s4 1966171168
      %v634 = vunpack.c.0.s8 %v633
      %v635 = vlaneseq
      %v636 = vshrl.u32 %v635, 7
      %v637 = vsub.s32 %v634, %v636
      %v638 = vrot.slane %v610, %v637
      %v639 = vcombine.high %v617, %v617
      %v640 = vcombine.high %v624, %v624
      %v641 = vcombine.high %v631, %v631
      %v642 = vcombine.high %v638, %v638
      %v643 = vcombine.high %v550, %v550
      %v645 = vunpack.c.l.s4 1966171168
      %v646 = vunpack.c.0.s8 %v645
      %v647 = vlaneseq
      %v648 = vshrl.u32 %v647, 7
      %v649 = vsub.s32 %v646, %v648
      %v650 = vrot.slane %v550, %v649
      %v652 = vunpack.c.l.s4 1966171168
      %v653 = vunpack.c.0.s8 %v652
      %v654 = vlaneseq
      %v655 = vshrl.u32 %v654, 7
      %v656 = vsub.s32 %v653, %v655
      %v657 = vrot.slane %v643, %v656
      %v658 = vcombine.high %v650, %v650
      %v659 = vcombine.high %v657, %v657
      %v661 = vunpack.c.l.s4 1966171168
      %v662 = vunpack.c.0.s8 %v661
      %v663 = vlaneseq
      %v664 = vshrl.u32 %v663, 7
      %v665 = vsub.s32 %v662, %v664
      %v666 = vrot.slane %v650, %v665
      %v668 = vunpack.c.l.s4 1966171168
      %v669 = vunpack.c.0.s8 %v668
      %v670 = vlaneseq
      %v671 = vshrl.u32 %v670, 7
      %v672 = vsub.s32 %v669, %v671
      %v673 = vrot.slane %v657, %v672
      %v675 = vunpack.c.l.s4 1966171168
      %v676 = vunpack.c.0.s8 %v675
      %v677 = vlaneseq
      %v678 = vshrl.u32 %v677, 7
      %v679 = vsub.s32 %v676, %v678
      %v680 = vrot.slane %v658, %v679
      %v682 = vunpack.c.l.s4 1966171168
      %v683 = vunpack.c.0.s8 %v682
      %v684 = vlaneseq
      %v685 = vshrl.u32 %v684, 7
      %v686 = vsub.s32 %v683, %v685
      %v687 = vrot.slane %v659, %v686
      %v688 = vcombine.high %v666, %v666
      %v689 = vcombine.high %v673, %v673
      %v690 = vcombine.high %v680, %v680
      %v691 = vcombine.high %v687, %v687
      %v692 = vcombine.high %v555, %v555
      %v694 = vunpack.c.l.s4 1966171168
      %v695 = vunpack.c.0.s8 %v694
      %v696 = vlaneseq
      %v697 = vshrl.u32 %v696, 7
      %v698 = vsub.s32 %v695, %v697
      %v699 = vrot.slane %v555, %v698
      %v701 = vunpack.c.l.s4 1966171168
      %v702 = vunpack.c.0.s8 %v701
      %v703 = vlaneseq
      %v704 = vshrl.u32 %v703, 7
      %v705 = vsub.s32 %v702, %v704
      %v706 = vrot.slane %v692, %v705
      %v707 = vcombine.high %v699, %v699
      %v708 = vcombine.high %v706, %v706
      %v710 = vunpack.c.l.s4 1966171168
      %v711 = vunpack.c.0.s8 %v710
      %v712 = vlaneseq
      %v713 = vshrl.u32 %v712, 7
      %v714 = vsub.s32 %v711, %v713
      %v715 = vrot.slane %v699, %v714
      %v717 = vunpack.c.l.s4 1966171168
      %v718 = vunpack.c.0.s8 %v717
      %v719 = vlaneseq
      %v720 = vshrl.u32 %v719, 7
      %v721 = vsub.s32 %v718, %v720
      %v722 = vrot.slane %v706, %v721
      %v724 = vunpack.c.l.s4 1966171168
      %v725 = vunpack.c.0.s8 %v724
      %v726 = vlaneseq
      %v727 = vshrl.u32 %v726, 7
      %v728 = vsub.s32 %v725, %v727
      %v729 = vrot.slane %v707, %v728
      %v731 = vunpack.c.l.s4 1966171168
      %v732 = vunpack.c.0.s8 %v731
      %v733 = vlaneseq
      %v734 = vshrl.u32 %v733, 7
      %v735 = vsub.s32 %v732, %v734
      %v736 = vrot.slane %v708, %v735
      %v737 = vcombine.high %v715, %v715
      %v738 = vcombine.high %v722, %v722
      %v739 = vcombine.high %v729, %v729
      %v740 = vcombine.high %v736, %v736
      %v741 = vcombine.high %v560, %v560
      %v743 = vunpack.c.l.s4 1966171168
      %v744 = vunpack.c.0.s8 %v743
      %v745 = vlaneseq
      %v746 = vshrl.u32 %v745, 7
      %v747 = vsub.s32 %v744, %v746
      %v748 = vrot.slane %v560, %v747
      %v750 = vunpack.c.l.s4 1966171168
      %v751 = vunpack.c.0.s8 %v750
      %v752 = vlaneseq
      %v753 = vshrl.u32 %v752, 7
      %v754 = vsub.s32 %v751, %v753
      %v755 = vrot.slane %v741, %v754
      %v756 = vcombine.high %v748, %v748
      %v757 = vcombine.high %v755, %v755
      %v759 = vunpack.c.l.s4 1966171168
      %v760 = vunpack.c.0.s8 %v759
      %v761 = vlaneseq
      %v762 = vshrl.u32 %v761, 7
      %v763 = vsub.s32 %v760, %v762
      %v764 = vrot.slane %v748, %v763
      %v766 = vunpack.c.l.s4 1966171168
      %v767 = vunpack.c.0.s8 %v766
      %v768 = vlaneseq
      %v769 = vshrl.u32 %v768, 7
      %v770 = vsub.s32 %v767, %v769
      %v771 = vrot.slane %v755, %v770
      %v773 = vunpack.c.l.s4 1966171168
      %v774 = vunpack.c.0.s8 %v773
      %v775 = vlaneseq
      %v776 = vshrl.u32 %v775, 7
      %v777 = vsub.s32 %v774, %v776
      %v778 = vrot.slane %v756, %v777
      %v780 = vunpack.c.l.s4 1966171168
      %v781 = vunpack.c.0.s8 %v780
      %v782 = vlaneseq
      %v783 = vshrl.u32 %v782, 7
      %v784 = vsub.s32 %v781, %v783
      %v785 = vrot.slane %v757, %v784
      %v786 = vcombine.high %v764, %v764
      %v787 = vcombine.high %v771, %v771
      %v788 = vcombine.high %v778, %v778
      %v789 = vcombine.high %v785, %v785
      %v790 = vcombine.high %v565, %v565
      %v792 = vunpack.c.l.s4 1966171168
      %v793 = vunpack.c.0.s8 %v792
      %v794 = vlaneseq
      %v795 = vshrl.u32 %v794, 7
      %v796 = vsub.s32 %v793, %v795
      %v797 = vrot.slane %v565, %v796
      %v799 = vunpack.c.l.s4 1966171168
      %v800 = vunpack.c.0.s8 %v799
      %v801 = vlaneseq
      %v802 = vshrl.u32 %v801, 7
      %v803 = vsub.s32 %v800, %v802
      %v804 = vrot.slane %v790, %v803
      %v805 = vcombine.high %v797, %v797
      %v806 = vcombine.high %v804, %v804
      %v808 = vunpack.c.l.s4 1966171168
      %v809 = vunpack.c.0.s8 %v808
      %v810 = vlaneseq
      %v811 = vshrl.u32 %v810, 7
      %v812 = vsub.s32 %v809, %v811
      %v813 = vrot.slane %v797, %v812
      %v815 = vunpack.c.l.s4 1966171168
      %v816 = vunpack.c.0.s8 %v815
      %v817 = vlaneseq
      %v818 = vshrl.u32 %v817, 7
      %v819 = vsub.s32 %v816, %v818
      %v820 = vrot.slane %v804, %v819
      %v822 = vunpack.c.l.s4 1966171168
      %v823 = vunpack.c.0.s8 %v822
      %v824 = vlaneseq
      %v825 = vshrl.u32 %v824, 7
      %v826 = vsub.s32 %v823, %v825
      %v827 = vrot.slane %v805, %v826
      %v829 = vunpack.c.l.s4 1966171168
      %v830 = vunpack.c.0.s8 %v829
      %v831 = vlaneseq
      %v832 = vshrl.u32 %v831, 7
      %v833 = vsub.s32 %v830, %v832
      %v834 = vrot.slane %v806, %v833
      %v835 = vcombine.high %v813, %v813
      %v836 = vcombine.high %v820, %v820
      %v837 = vcombine.high %v827, %v827
      %v838 = vcombine.high %v834, %v834
      %v839 = vcombine.high %v570, %v570
      %v841 = vunpack.c.l.s4 1966171168
      %v842 = vunpack.c.0.s8 %v841
      %v843 = vlaneseq
      %v844 = vshrl.u32 %v843, 7
      %v845 = vsub.s32 %v842, %v844
      %v846 = vrot.slane %v570, %v845
      %v848 = vunpack.c.l.s4 1966171168
      %v849 = vunpack.c.0.s8 %v848
      %v850 = vlaneseq
      %v851 = vshrl.u32 %v850, 7
      %v852 = vsub.s32 %v849, %v851
      %v853 = vrot.slane %v839, %v852
      %v854 = vcombine.high %v846, %v846
      %v855 = vcombine.high %v853, %v853
      %v857 = vunpack.c.l.s4 1966171168
      %v858 = vunpack.c.0.s8 %v857
      %v859 = vlaneseq
      %v860 = vshrl.u32 %v859, 7
      %v861 = vsub.s32 %v858, %v860
      %v862 = vrot.slane %v846, %v861
      %v864 = vunpack.c.l.s4 1966171168
      %v865 = vunpack.c.0.s8 %v864
      %v866 = vlaneseq
      %v867 = vshrl.u32 %v866, 7
      %v868 = vsub.s32 %v865, %v867
      %v869 = vrot.slane %v853, %v868
      %v871 = vunpack.c.l.s4 1966171168
      %v872 = vunpack.c.0.s8 %v871
      %v873 = vlaneseq
      %v874 = vshrl.u32 %v873, 7
      %v875 = vsub.s32 %v872, %v874
      %v876 = vrot.slane %v854, %v875
      %v878 = vunpack.c.l.s4 1966171168
      %v879 = vunpack.c.0.s8 %v878
      %v880 = vlaneseq
      %v881 = vshrl.u32 %v880, 7
      %v882 = vsub.s32 %v879, %v881
      %v883 = vrot.slane %v855, %v882
      %v884 = vcombine.high %v862, %v862
      %v885 = vcombine.high %v869, %v869
      %v886 = vcombine.high %v876, %v876
      %v887 = vcombine.high %v883, %v883
      %v888 = vcombine.high %v575, %v575
      %v890 = vunpack.c.l.s4 1966171168
      %v891 = vunpack.c.0.s8 %v890
      %v892 = vlaneseq
      %v893 = vshrl.u32 %v892, 7
      %v894 = vsub.s32 %v891, %v893
      %v895 = vrot.slane %v575, %v894
      %v897 = vunpack.c.l.s4 1966171168
      %v898 = vunpack.c.0.s8 %v897
      %v899 = vlaneseq
      %v900 = vshrl.u32 %v899, 7
      %v901 = vsub.s32 %v898, %v900
      %v902 = vrot.slane %v888, %v901
      %v903 = vcombine.high %v895, %v895
      %v904 = vcombine.high %v902, %v902
      %v906 = vunpack.c.l.s4 1966171168
      %v907 = vunpack.c.0.s8 %v906
      %v908 = vlaneseq
      %v909 = vshrl.u32 %v908, 7
      %v910 = vsub.s32 %v907, %v909
      %v911 = vrot.slane %v895, %v910
      %v913 = vunpack.c.l.s4 1966171168
      %v914 = vunpack.c.0.s8 %v913
      %v915 = vlaneseq
      %v916 = vshrl.u32 %v915, 7
      %v917 = vsub.s32 %v914, %v916
      %v918 = vrot.slane %v902, %v917
      %v920 = vunpack.c.l.s4 1966171168
      %v921 = vunpack.c.0.s8 %v920
      %v922 = vlaneseq
      %v923 = vshrl.u32 %v922, 7
      %v924 = vsub.s32 %v921, %v923
      %v925 = vrot.slane %v903, %v924
      %v927 = vunpack.c.l.s4 1966171168
      %v928 = vunpack.c.0.s8 %v927
      %v929 = vlaneseq
      %v930 = vshrl.u32 %v929, 7
      %v931 = vsub.s32 %v928, %v930
      %v932 = vrot.slane %v904, %v931
      %v933 = vcombine.high %v911, %v911
      %v934 = vcombine.high %v918, %v918
      %v935 = vcombine.high %v925, %v925
      %v936 = vcombine.high %v932, %v932
      %v937 = vcombine.high %v580, %v580
      %v939 = vunpack.c.l.s4 1966171168
      %v940 = vunpack.c.0.s8 %v939
      %v941 = vlaneseq
      %v942 = vshrl.u32 %v941, 7
      %v943 = vsub.s32 %v940, %v942
      %v944 = vrot.slane %v580, %v943
      %v946 = vunpack.c.l.s4 1966171168
      %v947 = vunpack.c.0.s8 %v946
      %v948 = vlaneseq
      %v949 = vshrl.u32 %v948, 7
      %v950 = vsub.s32 %v947, %v949
      %v951 = vrot.slane %v937, %v950
      %v952 = vcombine.high %v944, %v944
      %v953 = vcombine.high %v951, %v951
      %v955 = vunpack.c.l.s4 1966171168
      %v956 = vunpack.c.0.s8 %v955
      %v957 = vlaneseq
      %v958 = vshrl.u32 %v957, 7
      %v959 = vsub.s32 %v956, %v958
      %v960 = vrot.slane %v944, %v959
      %v962 = vunpack.c.l.s4 1966171168
      %v963 = vunpack.c.0.s8 %v962
      %v964 = vlaneseq
      %v965 = vshrl.u32 %v964, 7
      %v966 = vsub.s32 %v963, %v965
      %v967 = vrot.slane %v951, %v966
      %v969 = vunpack.c.l.s4 1966171168
      %v970 = vunpack.c.0.s8 %v969
      %v971 = vlaneseq
      %v972 = vshrl.u32 %v971, 7
      %v973 = vsub.s32 %v970, %v972
      %v974 = vrot.slane %v952, %v973
      %v976 = vunpack.c.l.s4 1966171168
      %v977 = vunpack.c.0.s8 %v976
      %v978 = vlaneseq
      %v979 = vshrl.u32 %v978, 7
      %v980 = vsub.s32 %v977, %v979
      %v981 = vrot.slane %v953, %v980
      %v982 = vcombine.high %v960, %v960
      %v983 = vcombine.high %v967, %v967
      %v984 = vcombine.high %v974, %v974
      %v985 = vcombine.high %v981, %v981
      %v986 = vlaneseq
      %v987 = vshrl.u32 %v986, 7
      %v988 = vsub.s32 0, %v987
      %v989 = vrot.slane %v617, %v988
      %v990 = vlaneseq
      %v991 = vshrl.u32 %v990, 7
      %v992 = vsub.s32 0, %v991
      %v993 = vrot.slane %v631, %v992
      %v994 = vlaneseq
      %v995 = vshrl.u32 %v994, 7
      %v996 = vsub.s32 0, %v995
      %v997 = vrot.slane %v639, %v996
      %v998 = vlaneseq
      %v999 = vshrl.u32 %v998, 7
      %v1000 = vsub.s32 0, %v999
      %v1001 = vrot.slane %v641, %v1000
      %v1002 = vlaneseq
      %v1003 = vshrl.u32 %v1002, 7
      %v1004 = vsub.s32 0, %v1003
      %v1005 = vrot.slane %v624, %v1004
      %v1006 = vlaneseq
      %v1007 = vshrl.u32 %v1006, 7
      %v1008 = vsub.s32 0, %v1007
      %v1009 = vrot.slane %v638, %v1008
      %v1010 = vlaneseq
      %v1011 = vshrl.u32 %v1010, 7
      %v1012 = vsub.s32 0, %v1011
      %v1013 = vrot.slane %v640, %v1012
      %v1014 = vlaneseq
      %v1015 = vshrl.u32 %v1014, 7
      %v1016 = vsub.s32 0, %v1015
      %v1017 = vrot.slane %v642, %v1016
      %v1018 = vlaneseq
      %v1019 = vshrl.u32 %v1018, 7
      %v1020 = vsub.s32 0, %v1019
      %v1021 = vrot.slane %v666, %v1020
      %v1022 = vlaneseq
      %v1023 = vshrl.u32 %v1022, 7
      %v1024 = vsub.s32 0, %v1023
      %v1025 = vrot.slane %v680, %v1024
      %v1026 = vlaneseq
      %v1027 = vshrl.u32 %v1026, 7
      %v1028 = vsub.s32 0, %v1027
      %v1029 = vrot.slane %v688, %v1028
      %v1030 = vlaneseq
      %v1031 = vshrl.u32 %v1030, 7
      %v1032 = vsub.s32 0, %v1031
      %v1033 = vrot.slane %v690, %v1032
      %v1034 = vlaneseq
      %v1035 = vshrl.u32 %v1034, 7
      %v1036 = vsub.s32 0, %v1035
      %v1037 = vrot.slane %v673, %v1036
      %v1038 = vlaneseq
      %v1039 = vshrl.u32 %v1038, 7
      %v1040 = vsub.s32 0, %v1039
      %v1041 = vrot.slane %v687, %v1040
      %v1042 = vlaneseq
      %v1043 = vshrl.u32 %v1042, 7
      %v1044 = vsub.s32 0, %v1043
      %v1045 = vrot.slane %v689, %v1044
      %v1046 = vlaneseq
      %v1047 = vshrl.u32 %v1046, 7
      %v1048 = vsub.s32 0, %v1047
      %v1049 = vrot.slane %v691, %v1048
      %v1050 = vlaneseq
      %v1051 = vshrl.u32 %v1050, 7
      %v1052 = vsub.s32 0, %v1051
      %v1053 = vrot.slane %v715, %v1052
      %v1054 = vlaneseq
      %v1055 = vshrl.u32 %v1054, 7
      %v1056 = vsub.s32 0, %v1055
      %v1057 = vrot.slane %v729, %v1056
      %v1058 = vlaneseq
      %v1059 = vshrl.u32 %v1058, 7
      %v1060 = vsub.s32 0, %v1059
      %v1061 = vrot.slane %v737, %v1060
      %v1062 = vlaneseq
      %v1063 = vshrl.u32 %v1062, 7
      %v1064 = vsub.s32 0, %v1063
      %v1065 = vrot.slane %v739, %v1064
      %v1066 = vlaneseq
      %v1067 = vshrl.u32 %v1066, 7
      %v1068 = vsub.s32 0, %v1067
      %v1069 = vrot.slane %v722, %v1068
      %v1070 = vlaneseq
      %v1071 = vshrl.u32 %v1070, 7
      %v1072 = vsub.s32 0, %v1071
      %v1073 = vrot.slane %v736, %v1072
      %v1074 = vlaneseq
      %v1075 = vshrl.u32 %v1074, 7
      %v1076 = vsub.s32 0, %v1075
      %v1077 = vrot.slane %v738, %v1076
      %v1078 = vlaneseq
      %v1079 = vshrl.u32 %v1078, 7
      %v1080 = vsub.s32 0, %v1079
      %v1081 = vrot.slane %v740, %v1080
      %v1082 = vlaneseq
      %v1083 = vshrl.u32 %v1082, 7
      %v1084 = vsub.s32 0, %v1083
      %v1085 = vrot.slane %v764, %v1084
      %v1086 = vlaneseq
      %v1087 = vshrl.u32 %v1086, 7
      %v1088 = vsub.s32 0, %v1087
      %v1089 = vrot.slane %v778, %v1088
      %v1090 = vlaneseq
      %v1091 = vshrl.u32 %v1090, 7
      %v1092 = vsub.s32 0, %v1091
      %v1093 = vrot.slane %v786, %v1092
      %v1094 = vlaneseq
      %v1095 = vshrl.u32 %v1094, 7
      %v1096 = vsub.s32 0, %v1095
      %v1097 = vrot.slane %v788, %v1096
      %v1098 = vlaneseq
      %v1099 = vshrl.u32 %v1098, 7
      %v1100 = vsub.s32 0, %v1099
      %v1101 = vrot.slane %v771, %v1100
      %v1102 = vlaneseq
      %v1103 = vshrl.u32 %v1102, 7
      %v1104 = vsub.s32 0, %v1103
      %v1105 = vrot.slane %v785, %v1104
      %v1106 = vlaneseq
      %v1107 = vshrl.u32 %v1106, 7
      %v1108 = vsub.s32 0, %v1107
      %v1109 = vrot.slane %v787, %v1108
      %v1110 = vlaneseq
      %v1111 = vshrl.u32 %v1110, 7
      %v1112 = vsub.s32 0, %v1111
      %v1113 = vrot.slane %v789, %v1112
      %v1114 = vlaneseq
      %v1115 = vshrl.u32 %v1114, 7
      %v1116 = vsub.s32 0, %v1115
      %v1117 = vrot.slane %v813, %v1116
      %v1118 = vlaneseq
      %v1119 = vshrl.u32 %v1118, 7
      %v1120 = vsub.s32 0, %v1119
      %v1121 = vrot.slane %v827, %v1120
      %v1122 = vlaneseq
      %v1123 = vshrl.u32 %v1122, 7
      %v1124 = vsub.s32 0, %v1123
      %v1125 = vrot.slane %v835, %v1124
      %v1126 = vlaneseq
      %v1127 = vshrl.u32 %v1126, 7
      %v1128 = vsub.s32 0, %v1127
      %v1129 = vrot.slane %v837, %v1128
      %v1130 = vlaneseq
      %v1131 = vshrl.u32 %v1130, 7
      %v1132 = vsub.s32 0, %v1131
      %v1133 = vrot.slane %v820, %v1132
      %v1134 = vlaneseq
      %v1135 = vshrl.u32 %v1134, 7
      %v1136 = vsub.s32 0, %v1135
      %v1137 = vrot.slane %v834, %v1136
      %v1138 = vlaneseq
      %v1139 = vshrl.u32 %v1138, 7
      %v1140 = vsub.s32 0, %v1139
      %v1141 = vrot.slane %v836, %v1140
      %v1142 = vlaneseq
      %v1143 = vshrl.u32 %v1142, 7
      %v1144 = vsub.s32 0, %v1143
      %v1145 = vrot.slane %v838, %v1144
      %v1146 = vlaneseq
      %v1147 = vshrl.u32 %v1146, 7
      %v1148 = vsub.s32 0, %v1147
      %v1149 = vrot.slane %v862, %v1148
      %v1150 = vlaneseq
      %v1151 = vshrl.u32 %v1150, 7
      %v1152 = vsub.s32 0, %v1151
      %v1153 = vrot.slane %v876, %v1152
      %v1154 = vlaneseq
      %v1155 = vshrl.u32 %v1154, 7
      %v1156 = vsub.s32 0, %v1155
      %v1157 = vrot.slane %v884, %v1156
      %v1158 = vlaneseq
      %v1159 = vshrl.u32 %v1158, 7
      %v1160 = vsub.s32 0, %v1159
      %v1161 = vrot.slane %v886, %v1160
      %v1162 = vlaneseq
      %v1163 = vshrl.u32 %v1162, 7
      %v1164 = vsub.s32 0, %v1163
      %v1165 = vrot.slane %v869, %v1164
      %v1166 = vlaneseq
      %v1167 = vshrl.u32 %v1166, 7
      %v1168 = vsub.s32 0, %v1167
      %v1169 = vrot.slane %v883, %v1168
      %v1170 = vlaneseq
      %v1171 = vshrl.u32 %v1170, 7
      %v1172 = vsub.s32 0, %v1171
      %v1173 = vrot.slane %v885, %v1172
      %v1174 = vlaneseq
      %v1175 = vshrl.u32 %v1174, 7
      %v1176 = vsub.s32 0, %v1175
      %v1177 = vrot.slane %v887, %v1176
      %v1178 = vlaneseq
      %v1179 = vshrl.u32 %v1178, 7
      %v1180 = vsub.s32 0, %v1179
      %v1181 = vrot.slane %v911, %v1180
      %v1182 = vlaneseq
      %v1183 = vshrl.u32 %v1182, 7
      %v1184 = vsub.s32 0, %v1183
      %v1185 = vrot.slane %v925, %v1184
      %v1186 = vlaneseq
      %v1187 = vshrl.u32 %v1186, 7
      %v1188 = vsub.s32 0, %v1187
      %v1189 = vrot.slane %v933, %v1188
      %v1190 = vlaneseq
      %v1191 = vshrl.u32 %v1190, 7
      %v1192 = vsub.s32 0, %v1191
      %v1193 = vrot.slane %v935, %v1192
      %v1194 = vlaneseq
      %v1195 = vshrl.u32 %v1194, 7
      %v1196 = vsub.s32 0, %v1195
      %v1197 = vrot.slane %v918, %v1196
      %v1198 = vlaneseq
      %v1199 = vshrl.u32 %v1198, 7
      %v1200 = vsub.s32 0, %v1199
      %v1201 = vrot.slane %v932, %v1200
      %v1202 = vlaneseq
      %v1203 = vshrl.u32 %v1202, 7
      %v1204 = vsub.s32 0, %v1203
      %v1205 = vrot.slane %v934, %v1204
      %v1206 = vlaneseq
      %v1207 = vshrl.u32 %v1206, 7
      %v1208 = vsub.s32 0, %v1207
      %v1209 = vrot.slane %v936, %v1208
      %v1210 = vlaneseq
      %v1211 = vshrl.u32 %v1210, 7
      %v1212 = vsub.s32 0, %v1211
      %v1213 = vrot.slane %v960, %v1212
      %v1214 = vlaneseq
      %v1215 = vshrl.u32 %v1214, 7
      %v1216 = vsub.s32 0, %v1215
      %v1217 = vrot.slane %v974, %v1216
      %v1218 = vlaneseq
      %v1219 = vshrl.u32 %v1218, 7
      %v1220 = vsub.s32 0, %v1219
      %v1221 = vrot.slane %v982, %v1220
      %v1222 = vlaneseq
      %v1223 = vshrl.u32 %v1222, 7
      %v1224 = vsub.s32 0, %v1223
      %v1225 = vrot.slane %v984, %v1224
      %v1226 = vlaneseq
      %v1227 = vshrl.u32 %v1226, 7
      %v1228 = vsub.s32 0, %v1227
      %v1229 = vrot.slane %v967, %v1228
      %v1230 = vlaneseq
      %v1231 = vshrl.u32 %v1230, 7
      %v1232 = vsub.s32 0, %v1231
      %v1233 = vrot.slane %v981, %v1232
      %v1234 = vlaneseq
      %v1235 = vshrl.u32 %v1234, 7
      %v1236 = vsub.s32 0, %v1235
      %v1237 = vrot.slane %v983, %v1236
      %v1238 = vlaneseq
      %v1239 = vshrl.u32 %v1238, 7
      %v1240 = vsub.s32 0, %v1239
      %v1241 = vrot.slane %v985, %v1240
      %1306 = vrot.lane.b32.xlu0 %v989, 124
      %v1307 = vpop.permute.xlu0 %1306
      %1308 = vrot.lane.b32.xlu0 %v993, 124
      %v1309 = vpop.permute.xlu0 %1308
      %1310 = vrot.lane.b32.xlu0 %v997, 124
      %v1311 = vpop.permute.xlu0 %1310
      %1312 = vrot.lane.b32.xlu0 %v1001, 124
      %v1313 = vpop.permute.xlu0 %1312
      %1314 = vrot.lane.b32.xlu0 %v1005, 124
      %v1315 = vpop.permute.xlu0 %1314
      %1316 = vrot.lane.b32.xlu0 %v1009, 124
      %v1317 = vpop.permute.xlu0 %1316
      %1318 = vrot.lane.b32.xlu0 %v1013, 124
      %v1319 = vpop.permute.xlu0 %1318
      %1320 = vrot.lane.b32.xlu0 %v1017, 124
      %v1321 = vpop.permute.xlu0 %1320
      %1322 = vrot.lane.b32.xlu0 %v1021, 124
      %v1323 = vpop.permute.xlu0 %1322
      %1324 = vrot.lane.b32.xlu0 %v1025, 124
      %v1325 = vpop.permute.xlu0 %1324
      %1326 = vrot.lane.b32.xlu0 %v1029, 124
      %v1327 = vpop.permute.xlu0 %1326
      %1328 = vrot.lane.b32.xlu0 %v1033, 124
      %v1329 = vpop.permute.xlu0 %1328
      %1330 = vrot.lane.b32.xlu0 %v1037, 124
      %v1331 = vpop.permute.xlu0 %1330
      %1332 = vrot.lane.b32.xlu0 %v1041, 124
      %v1333 = vpop.permute.xlu0 %1332
      %1334 = vrot.lane.b32.xlu0 %v1045, 124
      %v1335 = vpop.permute.xlu0 %1334
      %1336 = vrot.lane.b32.xlu0 %v1049, 124
      %v1337 = vpop.permute.xlu0 %1336
      %1338 = vrot.lane.b32.xlu0 %v1053, 124
      %v1339 = vpop.permute.xlu0 %1338
      %1340 = vrot.lane.b32.xlu0 %v1057, 124
      %v1341 = vpop.permute.xlu0 %1340
      %1342 = vrot.lane.b32.xlu0 %v1061, 124
      %v1343 = vpop.permute.xlu0 %1342
      %1344 = vrot.lane.b32.xlu0 %v1065, 124
      %v1345 = vpop.permute.xlu0 %1344
      %1346 = vrot.lane.b32.xlu0 %v1069, 124
      %v1347 = vpop.permute.xlu0 %1346
      %1348 = vrot.lane.b32.xlu0 %v1073, 124
      %v1349 = vpop.permute.xlu0 %1348
      %1350 = vrot.lane.b32.xlu0 %v1077, 124
      %v1351 = vpop.permute.xlu0 %1350
      %1352 = vrot.lane.b32.xlu0 %v1081, 124
      %v1353 = vpop.permute.xlu0 %1352
      %1354 = vrot.lane.b32.xlu0 %v1085, 124
      %v1355 = vpop.permute.xlu0 %1354
      %1356 = vrot.lane.b32.xlu0 %v1089, 124
      %v1357 = vpop.permute.xlu0 %1356
      %1358 = vrot.lane.b32.xlu0 %v1093, 124
      %v1359 = vpop.permute.xlu0 %1358
      %1360 = vrot.lane.b32.xlu0 %v1097, 124
      %v1361 = vpop.permute.xlu0 %1360
      %1362 = vrot.lane.b32.xlu0 %v1101, 124
      %v1363 = vpop.permute.xlu0 %1362
      %1364 = vrot.lane.b32.xlu0 %v1105, 124
      %v1365 = vpop.permute.xlu0 %1364
      %1366 = vrot.lane.b32.xlu0 %v1109, 124
      %v1367 = vpop.permute.xlu0 %1366
      %1368 = vrot.lane.b32.xlu0 %v1113, 124
      %v1369 = vpop.permute.xlu0 %1368
      %1370 = vrot.lane.b32.xlu0 %v1117, 124
      %v1371 = vpop.permute.xlu0 %1370
      %1372 = vrot.lane.b32.xlu0 %v1121, 124
      %v1373 = vpop.permute.xlu0 %1372
      %1374 = vrot.lane.b32.xlu0 %v1125, 124
      %v1375 = vpop.permute.xlu0 %1374
      %1376 = vrot.lane.b32.xlu0 %v1129, 124
      %v1377 = vpop.permute.xlu0 %1376
      %1378 = vrot.lane.b32.xlu0 %v1133, 124
      %v1379 = vpop.permute.xlu0 %1378
      %1380 = vrot.lane.b32.xlu0 %v1137, 124
      %v1381 = vpop.permute.xlu0 %1380
      %1382 = vrot.lane.b32.xlu0 %v1141, 124
      %v1383 = vpop.permute.xlu0 %1382
      %1384 = vrot.lane.b32.xlu0 %v1145, 124
      %v1385 = vpop.permute.xlu0 %1384
      %1386 = vrot.lane.b32.xlu0 %v1149, 124
      %v1387 = vpop.permute.xlu0 %1386
      %1388 = vrot.lane.b32.xlu0 %v1153, 124
      %v1389 = vpop.permute.xlu0 %1388
      %1390 = vrot.lane.b32.xlu0 %v1157, 124
      %v1391 = vpop.permute.xlu0 %1390
      %1392 = vrot.lane.b32.xlu0 %v1161, 124
      %v1393 = vpop.permute.xlu0 %1392
      %1394 = vrot.lane.b32.xlu0 %v1165, 124
      %v1395 = vpop.permute.xlu0 %1394
      %1396 = vrot.lane.b32.xlu0 %v1169, 124
      %v1397 = vpop.permute.xlu0 %1396
      %1398 = vrot.lane.b32.xlu0 %v1173, 124
      %v1399 = vpop.permute.xlu0 %1398
      %1400 = vrot.lane.b32.xlu0 %v1177, 124
      %v1401 = vpop.permute.xlu0 %1400
      %1402 = vrot.lane.b32.xlu0 %v1181, 124
      %v1403 = vpop.permute.xlu0 %1402
      %1404 = vrot.lane.b32.xlu0 %v1185, 124
      %v1405 = vpop.permute.xlu0 %1404
      %1406 = vrot.lane.b32.xlu0 %v1189, 124
      %v1407 = vpop.permute.xlu0 %1406
      %1408 = vrot.lane.b32.xlu0 %v1193, 124
      %v1409 = vpop.permute.xlu0 %1408
      %1410 = vrot.lane.b32.xlu0 %v1197, 124
      %v1411 = vpop.permute.xlu0 %1410
      %1412 = vrot.lane.b32.xlu0 %v1201, 124
      %v1413 = vpop.permute.xlu0 %1412
      %1414 = vrot.lane.b32.xlu0 %v1205, 124
      %v1415 = vpop.permute.xlu0 %1414
      %1416 = vrot.lane.b32.xlu0 %v1209, 124
      %v1417 = vpop.permute.xlu0 %1416
      %1418 = vrot.lane.b32.xlu0 %v1213, 124
      %v1419 = vpop.permute.xlu0 %1418
      %1420 = vrot.lane.b32.xlu0 %v1217, 124
      %v1421 = vpop.permute.xlu0 %1420
      %1422 = vrot.lane.b32.xlu0 %v1221, 124
      %v1423 = vpop.permute.xlu0 %1422
      %1424 = vrot.lane.b32.xlu0 %v1225, 124
      %v1425 = vpop.permute.xlu0 %1424
      %1426 = vrot.lane.b32.xlu0 %v1229, 124
      %v1427 = vpop.permute.xlu0 %1426
      %1428 = vrot.lane.b32.xlu0 %v1233, 124
      %v1429 = vpop.permute.xlu0 %1428
      %1430 = vrot.lane.b32.xlu0 %v1237, 124
      %v1431 = vpop.permute.xlu0 %1430
      %1432 = vrot.lane.b32.xlu0 %v1241, 124
      %v1433 = vpop.permute.xlu0 %1432
      %v1498 = vsel %vm585, %v989, %v1307
      %v1499 = vsel %vm585, %v993, %v1309
      %v1500 = vsel %vm585, %v997, %v1311
      %v1501 = vsel %vm585, %v1001, %v1313
      %v1502 = vsel %vm585, %v1005, %v1315
      %v1503 = vsel %vm585, %v1009, %v1317
      %v1504 = vsel %vm585, %v1013, %v1319
      %v1505 = vsel %vm585, %v1017, %v1321
      %v1506 = vsel %vm585, %v1021, %v1323
      %v1507 = vsel %vm585, %v1025, %v1325
      %v1508 = vsel %vm585, %v1029, %v1327
      %v1509 = vsel %vm585, %v1033, %v1329
      %v1510 = vsel %vm585, %v1037, %v1331
      %v1511 = vsel %vm585, %v1041, %v1333
      %v1512 = vsel %vm585, %v1045, %v1335
      %v1513 = vsel %vm585, %v1049, %v1337
      %v1514 = vsel %vm585, %v1053, %v1339
      %v1515 = vsel %vm585, %v1057, %v1341
      %v1516 = vsel %vm585, %v1061, %v1343
      %v1517 = vsel %vm585, %v1065, %v1345
      %v1518 = vsel %vm585, %v1069, %v1347
      %v1519 = vsel %vm585, %v1073, %v1349
      %v1520 = vsel %vm585, %v1077, %v1351
      %v1521 = vsel %vm585, %v1081, %v1353
      %v1522 = vsel %vm585, %v1085, %v1355
      %v1523 = vsel %vm585, %v1089, %v1357
      %v1524 = vsel %vm585, %v1093, %v1359
      %v1525 = vsel %vm585, %v1097, %v1361
      %v1526 = vsel %vm585, %v1101, %v1363
      %v1527 = vsel %vm585, %v1105, %v1365
      %v1528 = vsel %vm585, %v1109, %v1367
      %v1529 = vsel %vm585, %v1113, %v1369
      %v1530 = vsel %vm585, %v1117, %v1371
      %v1531 = vsel %vm585, %v1121, %v1373
      %v1532 = vsel %vm585, %v1125, %v1375
      %v1533 = vsel %vm585, %v1129, %v1377
      %v1534 = vsel %vm585, %v1133, %v1379
      %v1535 = vsel %vm585, %v1137, %v1381
      %v1536 = vsel %vm585, %v1141, %v1383
      %v1537 = vsel %vm585, %v1145, %v1385
      %v1538 = vsel %vm585, %v1149, %v1387
      %v1539 = vsel %vm585, %v1153, %v1389
      %v1540 = vsel %vm585, %v1157, %v1391
      %v1541 = vsel %vm585, %v1161, %v1393
      %v1542 = vsel %vm585, %v1165, %v1395
      %v1543 = vsel %vm585, %v1169, %v1397
      %v1544 = vsel %vm585, %v1173, %v1399
      %v1545 = vsel %vm585, %v1177, %v1401
      %v1546 = vsel %vm585, %v1181, %v1403
      %v1547 = vsel %vm585, %v1185, %v1405
      %v1548 = vsel %vm585, %v1189, %v1407
      %v1549 = vsel %vm585, %v1193, %v1409
      %v1550 = vsel %vm585, %v1197, %v1411
      %v1551 = vsel %vm585, %v1201, %v1413
      %v1552 = vsel %vm585, %v1205, %v1415
      %v1553 = vsel %vm585, %v1209, %v1417
      %v1554 = vsel %vm585, %v1213, %v1419
      %v1555 = vsel %vm585, %v1217, %v1421
      %v1556 = vsel %vm585, %v1221, %v1423
      %v1557 = vsel %vm585, %v1225, %v1425
      %v1558 = vsel %vm585, %v1229, %v1427
      %v1559 = vsel %vm585, %v1233, %v1429
      %v1560 = vsel %vm585, %v1237, %v1431
      %v1561 = vsel %vm585, %v1241, %v1433
      %1626 = vrot.lane.b32.xlu0 %v1498, 120
      %v1627 = vpop.permute.xlu0 %1626
      %1628 = vrot.lane.b32.xlu0 %v1499, 120
      %v1629 = vpop.permute.xlu0 %1628
      %1630 = vrot.lane.b32.xlu0 %v1500, 120
      %v1631 = vpop.permute.xlu0 %1630
      %1632 = vrot.lane.b32.xlu0 %v1501, 120
      %v1633 = vpop.permute.xlu0 %1632
      %1634 = vrot.lane.b32.xlu0 %v1502, 120
      %v1635 = vpop.permute.xlu0 %1634
      %1636 = vrot.lane.b32.xlu0 %v1503, 120
      %v1637 = vpop.permute.xlu0 %1636
      %1638 = vrot.lane.b32.xlu0 %v1504, 120
      %v1639 = vpop.permute.xlu0 %1638
      %1640 = vrot.lane.b32.xlu0 %v1505, 120
      %v1641 = vpop.permute.xlu0 %1640
      %1642 = vrot.lane.b32.xlu0 %v1506, 120
      %v1643 = vpop.permute.xlu0 %1642
      %1644 = vrot.lane.b32.xlu0 %v1507, 120
      %v1645 = vpop.permute.xlu0 %1644
      %1646 = vrot.lane.b32.xlu0 %v1508, 120
      %v1647 = vpop.permute.xlu0 %1646
      %1648 = vrot.lane.b32.xlu0 %v1509, 120
      %v1649 = vpop.permute.xlu0 %1648
      %1650 = vrot.lane.b32.xlu0 %v1510, 120
      %v1651 = vpop.permute.xlu0 %1650
      %1652 = vrot.lane.b32.xlu0 %v1511, 120
      %v1653 = vpop.permute.xlu0 %1652
      %1654 = vrot.lane.b32.xlu0 %v1512, 120
      %v1655 = vpop.permute.xlu0 %1654
      %1656 = vrot.lane.b32.xlu0 %v1513, 120
      %v1657 = vpop.permute.xlu0 %1656
      %1658 = vrot.lane.b32.xlu0 %v1514, 120
      %v1659 = vpop.permute.xlu0 %1658
      %1660 = vrot.lane.b32.xlu0 %v1515, 120
      %v1661 = vpop.permute.xlu0 %1660
      %1662 = vrot.lane.b32.xlu0 %v1516, 120
      %v1663 = vpop.permute.xlu0 %1662
      %1664 = vrot.lane.b32.xlu0 %v1517, 120
      %v1665 = vpop.permute.xlu0 %1664
      %1666 = vrot.lane.b32.xlu0 %v1518, 120
      %v1667 = vpop.permute.xlu0 %1666
      %1668 = vrot.lane.b32.xlu0 %v1519, 120
      %v1669 = vpop.permute.xlu0 %1668
      %1670 = vrot.lane.b32.xlu0 %v1520, 120
      %v1671 = vpop.permute.xlu0 %1670
      %1672 = vrot.lane.b32.xlu0 %v1521, 120
      %v1673 = vpop.permute.xlu0 %1672
      %1674 = vrot.lane.b32.xlu0 %v1522, 120
      %v1675 = vpop.permute.xlu0 %1674
      %1676 = vrot.lane.b32.xlu0 %v1523, 120
      %v1677 = vpop.permute.xlu0 %1676
      %1678 = vrot.lane.b32.xlu0 %v1524, 120
      %v1679 = vpop.permute.xlu0 %1678
      %1680 = vrot.lane.b32.xlu0 %v1525, 120
      %v1681 = vpop.permute.xlu0 %1680
      %1682 = vrot.lane.b32.xlu0 %v1526, 120
      %v1683 = vpop.permute.xlu0 %1682
      %1684 = vrot.lane.b32.xlu0 %v1527, 120
      %v1685 = vpop.permute.xlu0 %1684
      %1686 = vrot.lane.b32.xlu0 %v1528, 120
      %v1687 = vpop.permute.xlu0 %1686
      %1688 = vrot.lane.b32.xlu0 %v1529, 120
      %v1689 = vpop.permute.xlu0 %1688
      %1690 = vrot.lane.b32.xlu0 %v1530, 120
      %v1691 = vpop.permute.xlu0 %1690
      %1692 = vrot.lane.b32.xlu0 %v1531, 120
      %v1693 = vpop.permute.xlu0 %1692
      %1694 = vrot.lane.b32.xlu0 %v1532, 120
      %v1695 = vpop.permute.xlu0 %1694
      %1696 = vrot.lane.b32.xlu0 %v1533, 120
      %v1697 = vpop.permute.xlu0 %1696
      %1698 = vrot.lane.b32.xlu0 %v1534, 120
      %v1699 = vpop.permute.xlu0 %1698
      %1700 = vrot.lane.b32.xlu0 %v1535, 120
      %v1701 = vpop.permute.xlu0 %1700
      %1702 = vrot.lane.b32.xlu0 %v1536, 120
      %v1703 = vpop.permute.xlu0 %1702
      %1704 = vrot.lane.b32.xlu0 %v1537, 120
      %v1705 = vpop.permute.xlu0 %1704
      %1706 = vrot.lane.b32.xlu0 %v1538, 120
      %v1707 = vpop.permute.xlu0 %1706
      %1708 = vrot.lane.b32.xlu0 %v1539, 120
      %v1709 = vpop.permute.xlu0 %1708
      %1710 = vrot.lane.b32.xlu0 %v1540, 120
      %v1711 = vpop.permute.xlu0 %1710
      %1712 = vrot.lane.b32.xlu0 %v1541, 120
      %v1713 = vpop.permute.xlu0 %1712
      %1714 = vrot.lane.b32.xlu0 %v1542, 120
      %v1715 = vpop.permute.xlu0 %1714
      %1716 = vrot.lane.b32.xlu0 %v1543, 120
      %v1717 = vpop.permute.xlu0 %1716
      %1718 = vrot.lane.b32.xlu0 %v1544, 120
      %v1719 = vpop.permute.xlu0 %1718
      %1720 = vrot.lane.b32.xlu0 %v1545, 120
      %v1721 = vpop.permute.xlu0 %1720
      %1722 = vrot.lane.b32.xlu0 %v1546, 120
      %v1723 = vpop.permute.xlu0 %1722
      %1724 = vrot.lane.b32.xlu0 %v1547, 120
      %v1725 = vpop.permute.xlu0 %1724
      %1726 = vrot.lane.b32.xlu0 %v1548, 120
      %v1727 = vpop.permute.xlu0 %1726
      %1728 = vrot.lane.b32.xlu0 %v1549, 120
      %v1729 = vpop.permute.xlu0 %1728
      %1730 = vrot.lane.b32.xlu0 %v1550, 120
      %v1731 = vpop.permute.xlu0 %1730
      %1732 = vrot.lane.b32.xlu0 %v1551, 120
      %v1733 = vpop.permute.xlu0 %1732
      %1734 = vrot.lane.b32.xlu0 %v1552, 120
      %v1735 = vpop.permute.xlu0 %1734
      %1736 = vrot.lane.b32.xlu0 %v1553, 120
      %v1737 = vpop.permute.xlu0 %1736
      %1738 = vrot.lane.b32.xlu0 %v1554, 120
      %v1739 = vpop.permute.xlu0 %1738
      %1740 = vrot.lane.b32.xlu0 %v1555, 120
      %v1741 = vpop.permute.xlu0 %1740
      %1742 = vrot.lane.b32.xlu0 %v1556, 120
      %v1743 = vpop.permute.xlu0 %1742
      %1744 = vrot.lane.b32.xlu0 %v1557, 120
      %v1745 = vpop.permute.xlu0 %1744
      %1746 = vrot.lane.b32.xlu0 %v1558, 120
      %v1747 = vpop.permute.xlu0 %1746
      %1748 = vrot.lane.b32.xlu0 %v1559, 120
      %v1749 = vpop.permute.xlu0 %1748
      %1750 = vrot.lane.b32.xlu0 %v1560, 120
      %v1751 = vpop.permute.xlu0 %1750
      %1752 = vrot.lane.b32.xlu0 %v1561, 120
      %v1753 = vpop.permute.xlu0 %1752
      %v1818 = vsel 1, %v1498, %v1627
      %v1819 = vsel 1, %v1499, %v1629
      %v1820 = vsel 1, %v1500, %v1631
      %v1821 = vsel 1, %v1501, %v1633
      %v1822 = vsel 1, %v1502, %v1635
      %v1823 = vsel 1, %v1503, %v1637
      %v1824 = vsel 1, %v1504, %v1639
      %v1825 = vsel 1, %v1505, %v1641
      %v1826 = vsel 0, %v1498, %v1627
      %v1827 = vsel 0, %v1499, %v1629
      %v1828 = vsel 0, %v1500, %v1631
      %v1829 = vsel 0, %v1501, %v1633
      %v1830 = vsel 0, %v1502, %v1635
      %v1831 = vsel 0, %v1503, %v1637
      %v1832 = vsel 0, %v1504, %v1639
      %v1833 = vsel 0, %v1505, %v1641
      %v1834 = vsel 1, %v1506, %v1643
      %v1835 = vsel 1, %v1507, %v1645
      %v1836 = vsel 1, %v1508, %v1647
      %v1837 = vsel 1, %v1509, %v1649
      %v1838 = vsel 1, %v1510, %v1651
      %v1839 = vsel 1, %v1511, %v1653
      %v1840 = vsel 1, %v1512, %v1655
      %v1841 = vsel 1, %v1513, %v1657
      %v1842 = vsel 0, %v1506, %v1643
      %v1843 = vsel 0, %v1507, %v1645
      %v1844 = vsel 0, %v1508, %v1647
      %v1845 = vsel 0, %v1509, %v1649
      %v1846 = vsel 0, %v1510, %v1651
      %v1847 = vsel 0, %v1511, %v1653
      %v1848 = vsel 0, %v1512, %v1655
      %v1849 = vsel 0, %v1513, %v1657
      %v1850 = vsel 1, %v1514, %v1659
      %v1851 = vsel 1, %v1515, %v1661
      %v1852 = vsel 1, %v1516, %v1663
      %v1853 = vsel 1, %v1517, %v1665
      %v1854 = vsel 1, %v1518, %v1667
      %v1855 = vsel 1, %v1519, %v1669
      %v1856 = vsel 1, %v1520, %v1671
      %v1857 = vsel 1, %v1521, %v1673
      %v1858 = vsel 0, %v1514, %v1659
      %v1859 = vsel 0, %v1515, %v1661
      %v1860 = vsel 0, %v1516, %v1663
      %v1861 = vsel 0, %v1517, %v1665
      %v1862 = vsel 0, %v1518, %v1667
      %v1863 = vsel 0, %v1519, %v1669
      %v1864 = vsel 0, %v1520, %v1671
      %v1865 = vsel 0, %v1521, %v1673
      %v1866 = vsel 1, %v1522, %v1675
      %v1867 = vsel 1, %v1523, %v1677
      %v1868 = vsel 1, %v1524, %v1679
      %v1869 = vsel 1, %v1525, %v1681
      %v1870 = vsel 1, %v1526, %v1683
      %v1871 = vsel 1, %v1527, %v1685
      %v1872 = vsel 1, %v1528, %v1687
      %v1873 = vsel 1, %v1529, %v1689
      %v1874 = vsel 0, %v1522, %v1675
      %v1875 = vsel 0, %v1523, %v1677
      %v1876 = vsel 0, %v1524, %v1679
      %v1877 = vsel 0, %v1525, %v1681
      %v1878 = vsel 0, %v1526, %v1683
      %v1879 = vsel 0, %v1527, %v1685
      %v1880 = vsel 0, %v1528, %v1687
      %v1881 = vsel 0, %v1529, %v1689
      %v1882 = vsel 1, %v1530, %v1691
      %v1883 = vsel 1, %v1531, %v1693
      %v1884 = vsel 1, %v1532, %v1695
      %v1885 = vsel 1, %v1533, %v1697
      %v1886 = vsel 1, %v1534, %v1699
      %v1887 = vsel 1, %v1535, %v1701
      %v1888 = vsel 1, %v1536, %v1703
      %v1889 = vsel 1, %v1537, %v1705
      %v1890 = vsel 0, %v1530, %v1691
      %v1891 = vsel 0, %v1531, %v1693
      %v1892 = vsel 0, %v1532, %v1695
      %v1893 = vsel 0, %v1533, %v1697
      %v1894 = vsel 0, %v1534, %v1699
      %v1895 = vsel 0, %v1535, %v1701
      %v1896 = vsel 0, %v1536, %v1703
      %v1897 = vsel 0, %v1537, %v1705
      %v1898 = vsel 1, %v1538, %v1707
      %v1899 = vsel 1, %v1539, %v1709
      %v1900 = vsel 1, %v1540, %v1711
      %v1901 = vsel 1, %v1541, %v1713
      %v1902 = vsel 1, %v1542, %v1715
      %v1903 = vsel 1, %v1543, %v1717
      %v1904 = vsel 1, %v1544, %v1719
      %v1905 = vsel 1, %v1545, %v1721
      %v1906 = vsel 0, %v1538, %v1707
      %v1907 = vsel 0, %v1539, %v1709
      %v1908 = vsel 0, %v1540, %v1711
      %v1909 = vsel 0, %v1541, %v1713
      %v1910 = vsel 0, %v1542, %v1715
      %v1911 = vsel 0, %v1543, %v1717
      %v1912 = vsel 0, %v1544, %v1719
      %v1913 = vsel 0, %v1545, %v1721
      %v1914 = vsel 1, %v1546, %v1723
      %v1915 = vsel 1, %v1547, %v1725
      %v1916 = vsel 1, %v1548, %v1727
      %v1917 = vsel 1, %v1549, %v1729
      %v1918 = vsel 1, %v1550, %v1731
      %v1919 = vsel 1, %v1551, %v1733
      %v1920 = vsel 1, %v1552, %v1735
      %v1921 = vsel 1, %v1553, %v1737
      %v1922 = vsel 0, %v1546, %v1723
      %v1923 = vsel 0, %v1547, %v1725
      %v1924 = vsel 0, %v1548, %v1727
      %v1925 = vsel 0, %v1549, %v1729
      %v1926 = vsel 0, %v1550, %v1731
      %v1927 = vsel 0, %v1551, %v1733
      %v1928 = vsel 0, %v1552, %v1735
      %v1929 = vsel 0, %v1553, %v1737
      %v1930 = vsel 1, %v1554, %v1739
      %v1931 = vsel 1, %v1555, %v1741
      %v1932 = vsel 1, %v1556, %v1743
      %v1933 = vsel 1, %v1557, %v1745
      %v1934 = vsel 1, %v1558, %v1747
      %v1935 = vsel 1, %v1559, %v1749
      %v1936 = vsel 1, %v1560, %v1751
      %v1937 = vsel 1, %v1561, %v1753
      %v1938 = vsel 0, %v1554, %v1739
      %v1939 = vsel 0, %v1555, %v1741
      %v1940 = vsel 0, %v1556, %v1743
      %v1941 = vsel 0, %v1557, %v1745
      %v1942 = vsel 0, %v1558, %v1747
      %v1943 = vsel 0, %v1559, %v1749
      %v1944 = vsel 0, %v1560, %v1751
      %v1945 = vsel 0, %v1561, %v1753
      %v2074 = vcombine.low %v1818, %v1819
      %v2075 = vcombine.low %v1820, %v1821
      %v2077 = vunpack.c.l.s4 1983009808
      %v2078 = vunpack.c.0.s8 %v2077
      %v2079 = vlaneseq
      %v2080 = vshrl.u32 %v2079, 7
      %v2081 = vsub.s32 %v2078, %v2080
      %v2082 = vrot.slane %v2074, %v2081
      %v2084 = vunpack.c.l.s4 1983009808
      %v2085 = vunpack.c.0.s8 %v2084
      %v2086 = vlaneseq
      %v2087 = vshrl.u32 %v2086, 7
      %v2088 = vsub.s32 %v2085, %v2087
      %v2089 = vrot.slane %v2075, %v2088
      %v2090 = vcombine.low %v2082, %v2089
      %v2091 = vcombine.low %v1822, %v1823
      %v2092 = vcombine.low %v1824, %v1825
      %v2094 = vunpack.c.l.s4 1983009808
      %v2095 = vunpack.c.0.s8 %v2094
      %v2096 = vlaneseq
      %v2097 = vshrl.u32 %v2096, 7
      %v2098 = vsub.s32 %v2095, %v2097
      %v2099 = vrot.slane %v2091, %v2098
      %v2101 = vunpack.c.l.s4 1983009808
      %v2102 = vunpack.c.0.s8 %v2101
      %v2103 = vlaneseq
      %v2104 = vshrl.u32 %v2103, 7
      %v2105 = vsub.s32 %v2102, %v2104
      %v2106 = vrot.slane %v2092, %v2105
      %v2107 = vcombine.low %v2099, %v2106
      %v2108 = vcombine.low %v1826, %v1827
      %v2109 = vcombine.low %v1828, %v1829
      %v2111 = vunpack.c.l.s4 1983009808
      %v2112 = vunpack.c.0.s8 %v2111
      %v2113 = vlaneseq
      %v2114 = vshrl.u32 %v2113, 7
      %v2115 = vsub.s32 %v2112, %v2114
      %v2116 = vrot.slane %v2108, %v2115
      %v2118 = vunpack.c.l.s4 1983009808
      %v2119 = vunpack.c.0.s8 %v2118
      %v2120 = vlaneseq
      %v2121 = vshrl.u32 %v2120, 7
      %v2122 = vsub.s32 %v2119, %v2121
      %v2123 = vrot.slane %v2109, %v2122
      %v2124 = vcombine.low %v2116, %v2123
      %v2125 = vcombine.low %v1830, %v1831
      %v2126 = vcombine.low %v1832, %v1833
      %v2128 = vunpack.c.l.s4 1983009808
      %v2129 = vunpack.c.0.s8 %v2128
      %v2130 = vlaneseq
      %v2131 = vshrl.u32 %v2130, 7
      %v2132 = vsub.s32 %v2129, %v2131
      %v2133 = vrot.slane %v2125, %v2132
      %v2135 = vunpack.c.l.s4 1983009808
      %v2136 = vunpack.c.0.s8 %v2135
      %v2137 = vlaneseq
      %v2138 = vshrl.u32 %v2137, 7
      %v2139 = vsub.s32 %v2136, %v2138
      %v2140 = vrot.slane %v2126, %v2139
      %v2141 = vcombine.low %v2133, %v2140
      %v2142 = vcombine.low %v1834, %v1835
      %v2143 = vcombine.low %v1836, %v1837
      %v2145 = vunpack.c.l.s4 1983009808
      %v2146 = vunpack.c.0.s8 %v2145
      %v2147 = vlaneseq
      %v2148 = vshrl.u32 %v2147, 7
      %v2149 = vsub.s32 %v2146, %v2148
      %v2150 = vrot.slane %v2142, %v2149
      %v2152 = vunpack.c.l.s4 1983009808
      %v2153 = vunpack.c.0.s8 %v2152
      %v2154 = vlaneseq
      %v2155 = vshrl.u32 %v2154, 7
      %v2156 = vsub.s32 %v2153, %v2155
      %v2157 = vrot.slane %v2143, %v2156
      %v2158 = vcombine.low %v2150, %v2157
      %v2159 = vcombine.low %v1838, %v1839
      %v2160 = vcombine.low %v1840, %v1841
      %v2162 = vunpack.c.l.s4 1983009808
      %v2163 = vunpack.c.0.s8 %v2162
      %v2164 = vlaneseq
      %v2165 = vshrl.u32 %v2164, 7
      %v2166 = vsub.s32 %v2163, %v2165
      %v2167 = vrot.slane %v2159, %v2166
      %v2169 = vunpack.c.l.s4 1983009808
      %v2170 = vunpack.c.0.s8 %v2169
      %v2171 = vlaneseq
      %v2172 = vshrl.u32 %v2171, 7
      %v2173 = vsub.s32 %v2170, %v2172
      %v2174 = vrot.slane %v2160, %v2173
      %v2175 = vcombine.low %v2167, %v2174
      %v2176 = vcombine.low %v1842, %v1843
      %v2177 = vcombine.low %v1844, %v1845
      %v2179 = vunpack.c.l.s4 1983009808
      %v2180 = vunpack.c.0.s8 %v2179
      %v2181 = vlaneseq
      %v2182 = vshrl.u32 %v2181, 7
      %v2183 = vsub.s32 %v2180, %v2182
      %v2184 = vrot.slane %v2176, %v2183
      %v2186 = vunpack.c.l.s4 1983009808
      %v2187 = vunpack.c.0.s8 %v2186
      %v2188 = vlaneseq
      %v2189 = vshrl.u32 %v2188, 7
      %v2190 = vsub.s32 %v2187, %v2189
      %v2191 = vrot.slane %v2177, %v2190
      %v2192 = vcombine.low %v2184, %v2191
      %v2193 = vcombine.low %v1846, %v1847
      %v2194 = vcombine.low %v1848, %v1849
      %v2196 = vunpack.c.l.s4 1983009808
      %v2197 = vunpack.c.0.s8 %v2196
      %v2198 = vlaneseq
      %v2199 = vshrl.u32 %v2198, 7
      %v2200 = vsub.s32 %v2197, %v2199
      %v2201 = vrot.slane %v2193, %v2200
      %v2203 = vunpack.c.l.s4 1983009808
      %v2204 = vunpack.c.0.s8 %v2203
      %v2205 = vlaneseq
      %v2206 = vshrl.u32 %v2205, 7
      %v2207 = vsub.s32 %v2204, %v2206
      %v2208 = vrot.slane %v2194, %v2207
      %v2209 = vcombine.low %v2201, %v2208
      %v2210 = vcombine.low %v1850, %v1851
      %v2211 = vcombine.low %v1852, %v1853
      %v2213 = vunpack.c.l.s4 1983009808
      %v2214 = vunpack.c.0.s8 %v2213
      %v2215 = vlaneseq
      %v2216 = vshrl.u32 %v2215, 7
      %v2217 = vsub.s32 %v2214, %v2216
      %v2218 = vrot.slane %v2210, %v2217
      %v2220 = vunpack.c.l.s4 1983009808
      %v2221 = vunpack.c.0.s8 %v2220
      %v2222 = vlaneseq
      %v2223 = vshrl.u32 %v2222, 7
      %v2224 = vsub.s32 %v2221, %v2223
      %v2225 = vrot.slane %v2211, %v2224
      %v2226 = vcombine.low %v2218, %v2225
      %v2227 = vcombine.low %v1854, %v1855
      %v2228 = vcombine.low %v1856, %v1857
      %v2230 = vunpack.c.l.s4 1983009808
      %v2231 = vunpack.c.0.s8 %v2230
      %v2232 = vlaneseq
      %v2233 = vshrl.u32 %v2232, 7
      %v2234 = vsub.s32 %v2231, %v2233
      %v2235 = vrot.slane %v2227, %v2234
      %v2237 = vunpack.c.l.s4 1983009808
      %v2238 = vunpack.c.0.s8 %v2237
      %v2239 = vlaneseq
      %v2240 = vshrl.u32 %v2239, 7
      %v2241 = vsub.s32 %v2238, %v2240
      %v2242 = vrot.slane %v2228, %v2241
      %v2243 = vcombine.low %v2235, %v2242
      %v2244 = vcombine.low %v1858, %v1859
      %v2245 = vcombine.low %v1860, %v1861
      %v2247 = vunpack.c.l.s4 1983009808
      %v2248 = vunpack.c.0.s8 %v2247
      %v2249 = vlaneseq
      %v2250 = vshrl.u32 %v2249, 7
      %v2251 = vsub.s32 %v2248, %v2250
      %v2252 = vrot.slane %v2244, %v2251
      %v2254 = vunpack.c.l.s4 1983009808
      %v2255 = vunpack.c.0.s8 %v2254
      %v2256 = vlaneseq
      %v2257 = vshrl.u32 %v2256, 7
      %v2258 = vsub.s32 %v2255, %v2257
      %v2259 = vrot.slane %v2245, %v2258
      %v2260 = vcombine.low %v2252, %v2259
      %v2261 = vcombine.low %v1862, %v1863
      %v2262 = vcombine.low %v1864, %v1865
      %v2264 = vunpack.c.l.s4 1983009808
      %v2265 = vunpack.c.0.s8 %v2264
      %v2266 = vlaneseq
      %v2267 = vshrl.u32 %v2266, 7
      %v2268 = vsub.s32 %v2265, %v2267
      %v2269 = vrot.slane %v2261, %v2268
      %v2271 = vunpack.c.l.s4 1983009808
      %v2272 = vunpack.c.0.s8 %v2271
      %v2273 = vlaneseq
      %v2274 = vshrl.u32 %v2273, 7
      %v2275 = vsub.s32 %v2272, %v2274
      %v2276 = vrot.slane %v2262, %v2275
      %v2277 = vcombine.low %v2269, %v2276
      %v2278 = vcombine.low %v1866, %v1867
      %v2279 = vcombine.low %v1868, %v1869
      %v2281 = vunpack.c.l.s4 1983009808
      %v2282 = vunpack.c.0.s8 %v2281
      %v2283 = vlaneseq
      %v2284 = vshrl.u32 %v2283, 7
      %v2285 = vsub.s32 %v2282, %v2284
      %v2286 = vrot.slane %v2278, %v2285
      %v2288 = vunpack.c.l.s4 1983009808
      %v2289 = vunpack.c.0.s8 %v2288
      %v2290 = vlaneseq
      %v2291 = vshrl.u32 %v2290, 7
      %v2292 = vsub.s32 %v2289, %v2291
      %v2293 = vrot.slane %v2279, %v2292
      %v2294 = vcombine.low %v2286, %v2293
      %v2295 = vcombine.low %v1870, %v1871
      %v2296 = vcombine.low %v1872, %v1873
      %v2298 = vunpack.c.l.s4 1983009808
      %v2299 = vunpack.c.0.s8 %v2298
      %v2300 = vlaneseq
      %v2301 = vshrl.u32 %v2300, 7
      %v2302 = vsub.s32 %v2299, %v2301
      %v2303 = vrot.slane %v2295, %v2302
      %v2305 = vunpack.c.l.s4 1983009808
      %v2306 = vunpack.c.0.s8 %v2305
      %v2307 = vlaneseq
      %v2308 = vshrl.u32 %v2307, 7
      %v2309 = vsub.s32 %v2306, %v2308
      %v2310 = vrot.slane %v2296, %v2309
      %v2311 = vcombine.low %v2303, %v2310
      %v2312 = vcombine.low %v1874, %v1875
      %v2313 = vcombine.low %v1876, %v1877
      %v2315 = vunpack.c.l.s4 1983009808
      %v2316 = vunpack.c.0.s8 %v2315
      %v2317 = vlaneseq
      %v2318 = vshrl.u32 %v2317, 7
      %v2319 = vsub.s32 %v2316, %v2318
      %v2320 = vrot.slane %v2312, %v2319
      %v2322 = vunpack.c.l.s4 1983009808
      %v2323 = vunpack.c.0.s8 %v2322
      %v2324 = vlaneseq
      %v2325 = vshrl.u32 %v2324, 7
      %v2326 = vsub.s32 %v2323, %v2325
      %v2327 = vrot.slane %v2313, %v2326
      %v2328 = vcombine.low %v2320, %v2327
      %v2329 = vcombine.low %v1878, %v1879
      %v2330 = vcombine.low %v1880, %v1881
      %v2332 = vunpack.c.l.s4 1983009808
      %v2333 = vunpack.c.0.s8 %v2332
      %v2334 = vlaneseq
      %v2335 = vshrl.u32 %v2334, 7
      %v2336 = vsub.s32 %v2333, %v2335
      %v2337 = vrot.slane %v2329, %v2336
      %v2339 = vunpack.c.l.s4 1983009808
      %v2340 = vunpack.c.0.s8 %v2339
      %v2341 = vlaneseq
      %v2342 = vshrl.u32 %v2341, 7
      %v2343 = vsub.s32 %v2340, %v2342
      %v2344 = vrot.slane %v2330, %v2343
      %v2345 = vcombine.low %v2337, %v2344
      %v2346 = vcombine.low %v1882, %v1883
      %v2347 = vcombine.low %v1884, %v1885
      %v2349 = vunpack.c.l.s4 1983009808
      %v2350 = vunpack.c.0.s8 %v2349
      %v2351 = vlaneseq
      %v2352 = vshrl.u32 %v2351, 7
      %v2353 = vsub.s32 %v2350, %v2352
      %v2354 = vrot.slane %v2346, %v2353
      %v2356 = vunpack.c.l.s4 1983009808
      %v2357 = vunpack.c.0.s8 %v2356
      %v2358 = vlaneseq
      %v2359 = vshrl.u32 %v2358, 7
      %v2360 = vsub.s32 %v2357, %v2359
      %v2361 = vrot.slane %v2347, %v2360
      %v2362 = vcombine.low %v2354, %v2361
      %v2363 = vcombine.low %v1886, %v1887
      %v2364 = vcombine.low %v1888, %v1889
      %v2366 = vunpack.c.l.s4 1983009808
      %v2367 = vunpack.c.0.s8 %v2366
      %v2368 = vlaneseq
      %v2369 = vshrl.u32 %v2368, 7
      %v2370 = vsub.s32 %v2367, %v2369
      %v2371 = vrot.slane %v2363, %v2370
      %v2373 = vunpack.c.l.s4 1983009808
      %v2374 = vunpack.c.0.s8 %v2373
      %v2375 = vlaneseq
      %v2376 = vshrl.u32 %v2375, 7
      %v2377 = vsub.s32 %v2374, %v2376
      %v2378 = vrot.slane %v2364, %v2377
      %v2379 = vcombine.low %v2371, %v2378
      %v2380 = vcombine.low %v1890, %v1891
      %v2381 = vcombine.low %v1892, %v1893
      %v2383 = vunpack.c.l.s4 1983009808
      %v2384 = vunpack.c.0.s8 %v2383
      %v2385 = vlaneseq
      %v2386 = vshrl.u32 %v2385, 7
      %v2387 = vsub.s32 %v2384, %v2386
      %v2388 = vrot.slane %v2380, %v2387
      %v2390 = vunpack.c.l.s4 1983009808
      %v2391 = vunpack.c.0.s8 %v2390
      %v2392 = vlaneseq
      %v2393 = vshrl.u32 %v2392, 7
      %v2394 = vsub.s32 %v2391, %v2393
      %v2395 = vrot.slane %v2381, %v2394
      %v2396 = vcombine.low %v2388, %v2395
      %v2397 = vcombine.low %v1894, %v1895
      %v2398 = vcombine.low %v1896, %v1897
      %v2400 = vunpack.c.l.s4 1983009808
      %v2401 = vunpack.c.0.s8 %v2400
      %v2402 = vlaneseq
      %v2403 = vshrl.u32 %v2402, 7
      %v2404 = vsub.s32 %v2401, %v2403
      %v2405 = vrot.slane %v2397, %v2404
      %v2407 = vunpack.c.l.s4 1983009808
      %v2408 = vunpack.c.0.s8 %v2407
      %v2409 = vlaneseq
      %v2410 = vshrl.u32 %v2409, 7
      %v2411 = vsub.s32 %v2408, %v2410
      %v2412 = vrot.slane %v2398, %v2411
      %v2413 = vcombine.low %v2405, %v2412
      %v2414 = vcombine.low %v1898, %v1899
      %v2415 = vcombine.low %v1900, %v1901
      %v2417 = vunpack.c.l.s4 1983009808
      %v2418 = vunpack.c.0.s8 %v2417
      %v2419 = vlaneseq
      %v2420 = vshrl.u32 %v2419, 7
      %v2421 = vsub.s32 %v2418, %v2420
      %v2422 = vrot.slane %v2414, %v2421
      %v2424 = vunpack.c.l.s4 1983009808
      %v2425 = vunpack.c.0.s8 %v2424
      %v2426 = vlaneseq
      %v2427 = vshrl.u32 %v2426, 7
      %v2428 = vsub.s32 %v2425, %v2427
      %v2429 = vrot.slane %v2415, %v2428
      %v2430 = vcombine.low %v2422, %v2429
      %v2431 = vcombine.low %v1902, %v1903
      %v2432 = vcombine.low %v1904, %v1905
      %v2434 = vunpack.c.l.s4 1983009808
      %v2435 = vunpack.c.0.s8 %v2434
      %v2436 = vlaneseq
      %v2437 = vshrl.u32 %v2436, 7
      %v2438 = vsub.s32 %v2435, %v2437
      %v2439 = vrot.slane %v2431, %v2438
      %v2441 = vunpack.c.l.s4 1983009808
      %v2442 = vunpack.c.0.s8 %v2441
      %v2443 = vlaneseq
      %v2444 = vshrl.u32 %v2443, 7
      %v2445 = vsub.s32 %v2442, %v2444
      %v2446 = vrot.slane %v2432, %v2445
      %v2447 = vcombine.low %v2439, %v2446
      %v2448 = vcombine.low %v1906, %v1907
      %v2449 = vcombine.low %v1908, %v1909
      %v2451 = vunpack.c.l.s4 1983009808
      %v2452 = vunpack.c.0.s8 %v2451
      %v2453 = vlaneseq
      %v2454 = vshrl.u32 %v2453, 7
      %v2455 = vsub.s32 %v2452, %v2454
      %v2456 = vrot.slane %v2448, %v2455
      %v2458 = vunpack.c.l.s4 1983009808
      %v2459 = vunpack.c.0.s8 %v2458
      %v2460 = vlaneseq
      %v2461 = vshrl.u32 %v2460, 7
      %v2462 = vsub.s32 %v2459, %v2461
      %v2463 = vrot.slane %v2449, %v2462
      %v2464 = vcombine.low %v2456, %v2463
      %v2465 = vcombine.low %v1910, %v1911
      %v2466 = vcombine.low %v1912, %v1913
      %v2468 = vunpack.c.l.s4 1983009808
      %v2469 = vunpack.c.0.s8 %v2468
      %v2470 = vlaneseq
      %v2471 = vshrl.u32 %v2470, 7
      %v2472 = vsub.s32 %v2469, %v2471
      %v2473 = vrot.slane %v2465, %v2472
      %v2475 = vunpack.c.l.s4 1983009808
      %v2476 = vunpack.c.0.s8 %v2475
      %v2477 = vlaneseq
      %v2478 = vshrl.u32 %v2477, 7
      %v2479 = vsub.s32 %v2476, %v2478
      %v2480 = vrot.slane %v2466, %v2479
      %v2481 = vcombine.low %v2473, %v2480
      %v2482 = vcombine.low %v1914, %v1915
      %v2483 = vcombine.low %v1916, %v1917
      %v2485 = vunpack.c.l.s4 1983009808
      %v2486 = vunpack.c.0.s8 %v2485
      %v2487 = vlaneseq
      %v2488 = vshrl.u32 %v2487, 7
      %v2489 = vsub.s32 %v2486, %v2488
      %v2490 = vrot.slane %v2482, %v2489
      %v2492 = vunpack.c.l.s4 1983009808
      %v2493 = vunpack.c.0.s8 %v2492
      %v2494 = vlaneseq
      %v2495 = vshrl.u32 %v2494, 7
      %v2496 = vsub.s32 %v2493, %v2495
      %v2497 = vrot.slane %v2483, %v2496
      %v2498 = vcombine.low %v2490, %v2497
      %v2499 = vcombine.low %v1918, %v1919
      %v2500 = vcombine.low %v1920, %v1921
      %v2502 = vunpack.c.l.s4 1983009808
      %v2503 = vunpack.c.0.s8 %v2502
      %v2504 = vlaneseq
      %v2505 = vshrl.u32 %v2504, 7
      %v2506 = vsub.s32 %v2503, %v2505
      %v2507 = vrot.slane %v2499, %v2506
      %v2509 = vunpack.c.l.s4 1983009808
      %v2510 = vunpack.c.0.s8 %v2509
      %v2511 = vlaneseq
      %v2512 = vshrl.u32 %v2511, 7
      %v2513 = vsub.s32 %v2510, %v2512
      %v2514 = vrot.slane %v2500, %v2513
      %v2515 = vcombine.low %v2507, %v2514
      %v2516 = vcombine.low %v1922, %v1923
      %v2517 = vcombine.low %v1924, %v1925
      %v2519 = vunpack.c.l.s4 1983009808
      %v2520 = vunpack.c.0.s8 %v2519
      %v2521 = vlaneseq
      %v2522 = vshrl.u32 %v2521, 7
      %v2523 = vsub.s32 %v2520, %v2522
      %v2524 = vrot.slane %v2516, %v2523
      %v2526 = vunpack.c.l.s4 1983009808
      %v2527 = vunpack.c.0.s8 %v2526
      %v2528 = vlaneseq
      %v2529 = vshrl.u32 %v2528, 7
      %v2530 = vsub.s32 %v2527, %v2529
      %v2531 = vrot.slane %v2517, %v2530
      %v2532 = vcombine.low %v2524, %v2531
      %v2533 = vcombine.low %v1926, %v1927
      %v2534 = vcombine.low %v1928, %v1929
      %v2536 = vunpack.c.l.s4 1983009808
      %v2537 = vunpack.c.0.s8 %v2536
      %v2538 = vlaneseq
      %v2539 = vshrl.u32 %v2538, 7
      %v2540 = vsub.s32 %v2537, %v2539
      %v2541 = vrot.slane %v2533, %v2540
      %v2543 = vunpack.c.l.s4 1983009808
      %v2544 = vunpack.c.0.s8 %v2543
      %v2545 = vlaneseq
      %v2546 = vshrl.u32 %v2545, 7
      %v2547 = vsub.s32 %v2544, %v2546
      %v2548 = vrot.slane %v2534, %v2547
      %v2549 = vcombine.low %v2541, %v2548
      %v2550 = vcombine.low %v1930, %v1931
      %v2551 = vcombine.low %v1932, %v1933
      %v2553 = vunpack.c.l.s4 1983009808
      %v2554 = vunpack.c.0.s8 %v2553
      %v2555 = vlaneseq
      %v2556 = vshrl.u32 %v2555, 7
      %v2557 = vsub.s32 %v2554, %v2556
      %v2558 = vrot.slane %v2550, %v2557
      %v2560 = vunpack.c.l.s4 1983009808
      %v2561 = vunpack.c.0.s8 %v2560
      %v2562 = vlaneseq
      %v2563 = vshrl.u32 %v2562, 7
      %v2564 = vsub.s32 %v2561, %v2563
      %v2565 = vrot.slane %v2551, %v2564
      %v2566 = vcombine.low %v2558, %v2565
      %v2567 = vcombine.low %v1934, %v1935
      %v2568 = vcombine.low %v1936, %v1937
      %v2570 = vunpack.c.l.s4 1983009808
      %v2571 = vunpack.c.0.s8 %v2570
      %v2572 = vlaneseq
      %v2573 = vshrl.u32 %v2572, 7
      %v2574 = vsub.s32 %v2571, %v2573
      %v2575 = vrot.slane %v2567, %v2574
      %v2577 = vunpack.c.l.s4 1983009808
      %v2578 = vunpack.c.0.s8 %v2577
      %v2579 = vlaneseq
      %v2580 = vshrl.u32 %v2579, 7
      %v2581 = vsub.s32 %v2578, %v2580
      %v2582 = vrot.slane %v2568, %v2581
      %v2583 = vcombine.low %v2575, %v2582
      %v2584 = vcombine.low %v1938, %v1939
      %v2585 = vcombine.low %v1940, %v1941
      %v2587 = vunpack.c.l.s4 1983009808
      %v2588 = vunpack.c.0.s8 %v2587
      %v2589 = vlaneseq
      %v2590 = vshrl.u32 %v2589, 7
      %v2591 = vsub.s32 %v2588, %v2590
      %v2592 = vrot.slane %v2584, %v2591
      %v2594 = vunpack.c.l.s4 1983009808
      %v2595 = vunpack.c.0.s8 %v2594
      %v2596 = vlaneseq
      %v2597 = vshrl.u32 %v2596, 7
      %v2598 = vsub.s32 %v2595, %v2597
      %v2599 = vrot.slane %v2585, %v2598
      %v2600 = vcombine.low %v2592, %v2599
      %v2601 = vcombine.low %v1942, %v1943
      %v2602 = vcombine.low %v1944, %v1945
      %v2604 = vunpack.c.l.s4 1983009808
      %v2605 = vunpack.c.0.s8 %v2604
      %v2606 = vlaneseq
      %v2607 = vshrl.u32 %v2606, 7
      %v2608 = vsub.s32 %v2605, %v2607
      %v2609 = vrot.slane %v2601, %v2608
      %v2611 = vunpack.c.l.s4 1983009808
      %v2612 = vunpack.c.0.s8 %v2611
      %v2613 = vlaneseq
      %v2614 = vshrl.u32 %v2613, 7
      %v2615 = vsub.s32 %v2612, %v2614
      %v2616 = vrot.slane %v2602, %v2615
      %v2617 = vcombine.low %v2609, %v2616
      %s2650 = scalar_lea.vmem [#allocation2], 24
      %2651 = vst.msk [vmem:[%s2650 + $0x1] sm:$0xff] %vm382, %v2090
      %2652 = vst.msk [vmem:[%s2650 + $0x9] sm:$0xff] %vm382, %v2107
      %2653 = vst.msk [vmem:[%s2650 + $0x19] sm:$0xff] %vm382, %v2124
      %2654 = vst.msk [vmem:[%s2650 + $0x21] sm:$0xff] %vm382, %v2141
      %2655 = vst.msk [vmem:[%s2650 + $0x31] sm:$0xff] %vm382, %v2158
      %2656 = vst.msk [vmem:[%s2650 + $0x39] sm:$0xff] %vm382, %v2175
      %2657 = vst.msk [vmem:[%s2650 + $0x49] sm:$0xff] %vm382, %v2192
      %2658 = vst.msk [vmem:[%s2650 + $0x51] sm:$0xff] %vm382, %v2209
      %2659 = vst.msk [vmem:[%s2650 + $0x61] sm:$0xff] %vm382, %v2226
      %2660 = vst.msk [vmem:[%s2650 + $0x69] sm:$0xff] %vm382, %v2243
      %2661 = vst.msk [vmem:[%s2650 + $0x79] sm:$0xff] %vm382, %v2260
      %2662 = vst.msk [vmem:[%s2650 + $0x81] sm:$0xff] %vm382, %v2277
      %2663 = vst.msk [vmem:[%s2650 + $0x91] sm:$0xff] %vm382, %v2294
      %2664 = vst.msk [vmem:[%s2650 + $0x99] sm:$0xff] %vm382, %v2311
      %2665 = vst.msk [vmem:[%s2650 + $0xa9] sm:$0xff] %vm382, %v2328
      %2666 = vst.msk [vmem:[%s2650 + $0xb1] sm:$0xff] %vm382, %v2345
      %2667 = vst.msk [vmem:[%s2650 + $0xc1] sm:$0xff] %vm382, %v2362
      %2668 = vst.msk [vmem:[%s2650 + $0xc9] sm:$0xff] %vm382, %v2379
      %2669 = vst.msk [vmem:[%s2650 + $0xd9] sm:$0xff] %vm382, %v2396
      %2670 = vst.msk [vmem:[%s2650 + $0xe1] sm:$0xff] %vm382, %v2413
      %2671 = vst.msk [vmem:[%s2650 + $0xf1] sm:$0xff] %vm382, %v2430
      %2672 = vst.msk [vmem:[%s2650 + $0xf9] sm:$0xff] %vm382, %v2447
      %2673 = vst.msk [vmem:[%s2650 + $0x109] sm:$0xff] %vm382, %v2464
      %2674 = vst.msk [vmem:[%s2650 + $0x111] sm:$0xff] %vm382, %v2481
      %2675 = vst.msk [vmem:[%s2650 + $0x121] sm:$0xff] %vm382, %v2498
      %2676 = vst.msk [vmem:[%s2650 + $0x129] sm:$0xff] %vm382, %v2515
      %2677 = vst.msk [vmem:[%s2650 + $0x139] sm:$0xff] %vm382, %v2532
      %2678 = vst.msk [vmem:[%s2650 + $0x141] sm:$0xff] %vm382, %v2549
      %2679 = vst.msk [vmem:[%s2650 + $0x151] sm:$0xff] %vm382, %v2566
      %2680 = vst.msk [vmem:[%s2650 + $0x159] sm:$0xff] %vm382, %v2583
      %2681 = vst.msk [vmem:[%s2650 + $0x169] sm:$0xff] %vm382, %v2600
      %2682 = vst.msk [vmem:[%s2650 + $0x171] sm:$0xff] %vm382, %v2617
      %v2683 = vld [vmem:[%s320] sm:$0xff]
      %v2684 = vld [vmem:[%s320 + $0x8] sm:$0xff]
      %v2685 = vld [vmem:[%s320 + $0x10] sm:$0xff]
      %v2686 = vld [vmem:[%s320 + $0x18] sm:$0xff]
      %v2687 = vld [vmem:[%s320 + $0x20] sm:$0xff]
      %v2688 = vld [vmem:[%s320 + $0x28] sm:$0xff]
      %v2689 = vld [vmem:[%s320 + $0x30] sm:$0xff]
      %v2690 = vld [vmem:[%s320 + $0x38] sm:$0xff]
      %v2691 = vld [vmem:[%s320 + $0x40] sm:$0xff]
      %v2692 = vld [vmem:[%s320 + $0x48] sm:$0xff]
      %v2693 = vld [vmem:[%s320 + $0x50] sm:$0xff]
      %v2694 = vld [vmem:[%s320 + $0x58] sm:$0xff]
      %v2695 = vld [vmem:[%s320 + $0x60] sm:$0xff]
      %v2696 = vld [vmem:[%s320 + $0x68] sm:$0xff]
      %v2697 = vld [vmem:[%s320 + $0x70] sm:$0xff]
      %v2698 = vld [vmem:[%s320 + $0x78] sm:$0xff]
      %v2699 = vld [vmem:[%s320 + $0x80] sm:$0xff]
      %v2700 = vld [vmem:[%s320 + $0x88] sm:$0xff]
      %v2701 = vld [vmem:[%s320 + $0x90] sm:$0xff]
      %v2702 = vld [vmem:[%s320 + $0x98] sm:$0xff]
      %v2703 = vld [vmem:[%s320 + $0xa0] sm:$0xff]
      %v2704 = vld [vmem:[%s320 + $0xa8] sm:$0xff]
      %v2705 = vld [vmem:[%s320 + $0xb0] sm:$0xff]
      %v2706 = vld [vmem:[%s320 + $0xb8] sm:$0xff]
      %v2707 = vld [vmem:[%s320 + $0xc0] sm:$0xff]
      %v2708 = vld [vmem:[%s320 + $0xc8] sm:$0xff]
      %v2709 = vld [vmem:[%s320 + $0xd0] sm:$0xff]
      %v2710 = vld [vmem:[%s320 + $0xd8] sm:$0xff]
      %v2711 = vld [vmem:[%s320 + $0xe0] sm:$0xff]
      %v2712 = vld [vmem:[%s320 + $0xe8] sm:$0xff]
      %v2713 = vld [vmem:[%s320 + $0xf0] sm:$0xff]
      %v2714 = vld [vmem:[%s320 + $0xf8] sm:$0xff]
      %2747 = vrot.lane.b32.xlu0 %v2683, 4
      %v2748 = vpop.permute.xlu0 %2747
      %2749 = vrot.lane.b32.xlu0 %v2684, 4
      %v2750 = vpop.permute.xlu0 %2749
      %2751 = vrot.lane.b32.xlu0 %v2685, 4
      %v2752 = vpop.permute.xlu0 %2751
      %2753 = vrot.lane.b32.xlu0 %v2686, 4
      %v2754 = vpop.permute.xlu0 %2753
      %2755 = vrot.lane.b32.xlu0 %v2687, 4
      %v2756 = vpop.permute.xlu0 %2755
      %2757 = vrot.lane.b32.xlu0 %v2688, 4
      %v2758 = vpop.permute.xlu0 %2757
      %2759 = vrot.lane.b32.xlu0 %v2689, 4
      %v2760 = vpop.permute.xlu0 %2759
      %2761 = vrot.lane.b32.xlu0 %v2690, 4
      %v2762 = vpop.permute.xlu0 %2761
      %2763 = vrot.lane.b32.xlu0 %v2691, 4
      %v2764 = vpop.permute.xlu0 %2763
      %2765 = vrot.lane.b32.xlu0 %v2692, 4
      %v2766 = vpop.permute.xlu0 %2765
      %2767 = vrot.lane.b32.xlu0 %v2693, 4
      %v2768 = vpop.permute.xlu0 %2767
      %2769 = vrot.lane.b32.xlu0 %v2694, 4
      %v2770 = vpop.permute.xlu0 %2769
      %2771 = vrot.lane.b32.xlu0 %v2695, 4
      %v2772 = vpop.permute.xlu0 %2771
      %2773 = vrot.lane.b32.xlu0 %v2696, 4
      %v2774 = vpop.permute.xlu0 %2773
      %2775 = vrot.lane.b32.xlu0 %v2697, 4
      %v2776 = vpop.permute.xlu0 %2775
      %2777 = vrot.lane.b32.xlu0 %v2698, 4
      %v2778 = vpop.permute.xlu0 %2777
      %2779 = vrot.lane.b32.xlu0 %v2699, 4
      %v2780 = vpop.permute.xlu0 %2779
      %2781 = vrot.lane.b32.xlu0 %v2700, 4
      %v2782 = vpop.permute.xlu0 %2781
      %2783 = vrot.lane.b32.xlu0 %v2701, 4
      %v2784 = vpop.permute.xlu0 %2783
      %2785 = vrot.lane.b32.xlu0 %v2702, 4
      %v2786 = vpop.permute.xlu0 %2785
      %2787 = vrot.lane.b32.xlu0 %v2703, 4
      %v2788 = vpop.permute.xlu0 %2787
      %2789 = vrot.lane.b32.xlu0 %v2704, 4
      %v2790 = vpop.permute.xlu0 %2789
      %2791 = vrot.lane.b32.xlu0 %v2705, 4
      %v2792 = vpop.permute.xlu0 %2791
      %2793 = vrot.lane.b32.xlu0 %v2706, 4
      %v2794 = vpop.permute.xlu0 %2793
      %2795 = vrot.lane.b32.xlu0 %v2707, 4
      %v2796 = vpop.permute.xlu0 %2795
      %2797 = vrot.lane.b32.xlu0 %v2708, 4
      %v2798 = vpop.permute.xlu0 %2797
      %2799 = vrot.lane.b32.xlu0 %v2709, 4
      %v2800 = vpop.permute.xlu0 %2799
      %2801 = vrot.lane.b32.xlu0 %v2710, 4
      %v2802 = vpop.permute.xlu0 %2801
      %2803 = vrot.lane.b32.xlu0 %v2711, 4
      %v2804 = vpop.permute.xlu0 %2803
      %2805 = vrot.lane.b32.xlu0 %v2712, 4
      %v2806 = vpop.permute.xlu0 %2805
      %2807 = vrot.lane.b32.xlu0 %v2713, 4
      %v2808 = vpop.permute.xlu0 %2807
      %2809 = vrot.lane.b32.xlu0 %v2714, 4
      %v2810 = vpop.permute.xlu0 %2809
      %vm2843 = vcmask 64544
      %2844 = vst.msk [vmem:[%s2650 + $0x1] sm:$0xff] %vm2843, %v2748
      %2845 = vst.msk [vmem:[%s2650 + $0x9] sm:$0xff] %vm2843, %v2750
      %2846 = vst.msk [vmem:[%s2650 + $0x19] sm:$0xff] %vm2843, %v2752
      %2847 = vst.msk [vmem:[%s2650 + $0x21] sm:$0xff] %vm2843, %v2754
      %2848 = vst.msk [vmem:[%s2650 + $0x31] sm:$0xff] %vm2843, %v2756
      %2849 = vst.msk [vmem:[%s2650 + $0x39] sm:$0xff] %vm2843, %v2758
      %2850 = vst.msk [vmem:[%s2650 + $0x49] sm:$0xff] %vm2843, %v2760
      %2851 = vst.msk [vmem:[%s2650 + $0x51] sm:$0xff] %vm2843, %v2762
      %2852 = vst.msk [vmem:[%s2650 + $0x61] sm:$0xff] %vm2843, %v2764
      %2853 = vst.msk [vmem:[%s2650 + $0x69] sm:$0xff] %vm2843, %v2766
      %2854 = vst.msk [vmem:[%s2650 + $0x79] sm:$0xff] %vm2843, %v2768
      %2855 = vst.msk [vmem:[%s2650 + $0x81] sm:$0xff] %vm2843, %v2770
      %2856 = vst.msk [vmem:[%s2650 + $0x91] sm:$0xff] %vm2843, %v2772
      %2857 = vst.msk [vmem:[%s2650 + $0x99] sm:$0xff] %vm2843, %v2774
      %2858 = vst.msk [vmem:[%s2650 + $0xa9] sm:$0xff] %vm2843, %v2776
      %2859 = vst.msk [vmem:[%s2650 + $0xb1] sm:$0xff] %vm2843, %v2778
      %2860 = vst.msk [vmem:[%s2650 + $0xc1] sm:$0xff] %vm2843, %v2780
      %2861 = vst.msk [vmem:[%s2650 + $0xc9] sm:$0xff] %vm2843, %v2782
      %2862 = vst.msk [vmem:[%s2650 + $0xd9] sm:$0xff] %vm2843, %v2784
      %2863 = vst.msk [vmem:[%s2650 + $0xe1] sm:$0xff] %vm2843, %v2786
      %2864 = vst.msk [vmem:[%s2650 + $0xf1] sm:$0xff] %vm2843, %v2788
      %2865 = vst.msk [vmem:[%s2650 + $0xf9] sm:$0xff] %vm2843, %v2790
      %2866 = vst.msk [vmem:[%s2650 + $0x109] sm:$0xff] %vm2843, %v2792
      %2867 = vst.msk [vmem:[%s2650 + $0x111] sm:$0xff] %vm2843, %v2794
      %2868 = vst.msk [vmem:[%s2650 + $0x121] sm:$0xff] %vm2843, %v2796
      %2869 = vst.msk [vmem:[%s2650 + $0x129] sm:$0xff] %vm2843, %v2798
      %2870 = vst.msk [vmem:[%s2650 + $0x139] sm:$0xff] %vm2843, %v2800
      %2871 = vst.msk [vmem:[%s2650 + $0x141] sm:$0xff] %vm2843, %v2802
      %2872 = vst.msk [vmem:[%s2650 + $0x151] sm:$0xff] %vm2843, %v2804
      %2873 = vst.msk [vmem:[%s2650 + $0x159] sm:$0xff] %vm2843, %v2806
      %2874 = vst.msk [vmem:[%s2650 + $0x169] sm:$0xff] %vm2843, %v2808
      %2875 = vst.msk [vmem:[%s2650 + $0x171] sm:$0xff] %vm2843, %v2810
      %v2876 = vld [vmem:[#allocation2] sm:$0xff]
      %v2877 = vld [vmem:[#allocation2 + $0x8] sm:$0xff]
      %v2878 = vld [vmem:[#allocation2 + $0x18] sm:$0xff]
      %v2879 = vld [vmem:[#allocation2 + $0x20] sm:$0xff]
      %v2880 = vld [vmem:[#allocation2 + $0x30] sm:$0xff]
      %v2881 = vld [vmem:[#allocation2 + $0x38] sm:$0xff]
      %v2882 = vld [vmem:[#allocation2 + $0x48] sm:$0xff]
      %v2883 = vld [vmem:[#allocation2 + $0x50] sm:$0xff]
      %v2884 = vld [vmem:[#allocation2 + $0x60] sm:$0xff]
      %v2885 = vld [vmem:[#allocation2 + $0x68] sm:$0xff]
      %v2886 = vld [vmem:[#allocation2 + $0x78] sm:$0xff]
      %v2887 = vld [vmem:[#allocation2 + $0x80] sm:$0xff]
      %v2888 = vld [vmem:[#allocation2 + $0x90] sm:$0xff]
      %v2889 = vld [vmem:[#allocation2 + $0x98] sm:$0xff]
      %v2890 = vld [vmem:[#allocation2 + $0xa8] sm:$0xff]
      %v2891 = vld [vmem:[#allocation2 + $0xb0] sm:$0xff]
      %v2892 = vld [vmem:[#allocation2 + $0xc0] sm:$0xff]
      %v2893 = vld [vmem:[#allocation2 + $0xc8] sm:$0xff]
      %v2894 = vld [vmem:[#allocation2 + $0xd8] sm:$0xff]
      %v2895 = vld [vmem:[#allocation2 + $0xe0] sm:$0xff]
      %v2896 = vld [vmem:[#allocation2 + $0xf0] sm:$0xff]
      %v2897 = vld [vmem:[#allocation2 + $0xf8] sm:$0xff]
      %v2898 = vld [vmem:[#allocation2 + $0x108] sm:$0xff]
      %v2899 = vld [vmem:[#allocation2 + $0x110] sm:$0xff]
      %v2900 = vld [vmem:[#allocation2 + $0x120] sm:$0xff]
      %v2901 = vld [vmem:[#allocation2 + $0x128] sm:$0xff]
      %v2902 = vld [vmem:[#allocation2 + $0x138] sm:$0xff]
      %v2903 = vld [vmem:[#allocation2 + $0x140] sm:$0xff]
      %v2904 = vld [vmem:[#allocation2 + $0x150] sm:$0xff]
      %v2905 = vld [vmem:[#allocation2 + $0x158] sm:$0xff]
      %v2906 = vld [vmem:[#allocation2 + $0x168] sm:$0xff]
      %v2907 = vld [vmem:[#allocation2 + $0x170] sm:$0xff]
      %2908 = vst.msk [vmem:[#allocation4] sm:$0xff] %vm326, %v2876
      %2909 = vst.msk [vmem:[#allocation4 + $0x8] sm:$0xff] %vm326, %v2877
      %2910 = vst.msk [vmem:[#allocation4 + $0x10] sm:$0xff] %vm326, %v2878
      %2911 = vst.msk [vmem:[#allocation4 + $0x18] sm:$0xff] %vm326, %v2879
      %2912 = vst.msk [vmem:[#allocation4 + $0x20] sm:$0xff] %vm326, %v2880
      %2913 = vst.msk [vmem:[#allocation4 + $0x28] sm:$0xff] %vm326, %v2881
      %2914 = vst.msk [vmem:[#allocation4 + $0x30] sm:$0xff] %vm326, %v2882
      %2915 = vst.msk [vmem:[#allocation4 + $0x38] sm:$0xff] %vm326, %v2883
      %2916 = vst.msk [vmem:[#allocation4 + $0x40] sm:$0xff] %vm326, %v2884
      %2917 = vst.msk [vmem:[#allocation4 + $0x48] sm:$0xff] %vm326, %v2885
      %2918 = vst.msk [vmem:[#allocation4 + $0x50] sm:$0xff] %vm326, %v2886
      %2919 = vst.msk [vmem:[#allocation4 + $0x58] sm:$0xff] %vm326, %v2887
      %2920 = vst.msk [vmem:[#allocation4 + $0x60] sm:$0xff] %vm326, %v2888
      %2921 = vst.msk [vmem:[#allocation4 + $0x68] sm:$0xff] %vm326, %v2889
      %2922 = vst.msk [vmem:[#allocation4 + $0x70] sm:$0xff] %vm326, %v2890
      %2923 = vst.msk [vmem:[#allocation4 + $0x78] sm:$0xff] %vm326, %v2891
      %2924 = vst.msk [vmem:[#allocation4 + $0x80] sm:$0xff] %vm326, %v2892
      %2925 = vst.msk [vmem:[#allocation4 + $0x88] sm:$0xff] %vm326, %v2893
      %2926 = vst.msk [vmem:[#allocation4 + $0x90] sm:$0xff] %vm326, %v2894
      %2927 = vst.msk [vmem:[#allocation4 + $0x98] sm:$0xff] %vm326, %v2895
      %2928 = vst.msk [vmem:[#allocation4 + $0xa0] sm:$0xff] %vm326, %v2896
      %2929 = vst.msk [vmem:[#allocation4 + $0xa8] sm:$0xff] %vm326, %v2897
      %2930 = vst.msk [vmem:[#allocation4 + $0xb0] sm:$0xff] %vm326, %v2898
      %2931 = vst.msk [vmem:[#allocation4 + $0xb8] sm:$0xff] %vm326, %v2899
      %2932 = vst.msk [vmem:[#allocation4 + $0xc0] sm:$0xff] %vm326, %v2900
      %2933 = vst.msk [vmem:[#allocation4 + $0xc8] sm:$0xff] %vm326, %v2901
      %2934 = vst.msk [vmem:[#allocation4 + $0xd0] sm:$0xff] %vm326, %v2902
      %2935 = vst.msk [vmem:[#allocation4 + $0xd8] sm:$0xff] %vm326, %v2903
      %2936 = vst.msk [vmem:[#allocation4 + $0xe0] sm:$0xff] %vm326, %v2904
      %2937 = vst.msk [vmem:[#allocation4 + $0xe8] sm:$0xff] %vm326, %v2905
      %2938 = vst.msk [vmem:[#allocation4 + $0xf0] sm:$0xff] %vm326, %v2906
      %2939 = vst.msk [vmem:[#allocation4 + $0xf8] sm:$0xff] %vm326, %v2907
      %v2940 = vld [vmem:[#allocation2 + $0x1] sm:$0xff]
      %v2941 = vld [vmem:[#allocation2 + $0x9] sm:$0xff]
      %v2942 = vld [vmem:[#allocation2 + $0x19] sm:$0xff]
      %v2943 = vld [vmem:[#allocation2 + $0x21] sm:$0xff]
      %v2944 = vld [vmem:[#allocation2 + $0x31] sm:$0xff]
      %v2945 = vld [vmem:[#allocation2 + $0x39] sm:$0xff]
      %v2946 = vld [vmem:[#allocation2 + $0x49] sm:$0xff]
      %v2947 = vld [vmem:[#allocation2 + $0x51] sm:$0xff]
      %v2948 = vld [vmem:[#allocation2 + $0x61] sm:$0xff]
      %v2949 = vld [vmem:[#allocation2 + $0x69] sm:$0xff]
      %v2950 = vld [vmem:[#allocation2 + $0x79] sm:$0xff]
      %v2951 = vld [vmem:[#allocation2 + $0x81] sm:$0xff]
      %v2952 = vld [vmem:[#allocation2 + $0x91] sm:$0xff]
      %v2953 = vld [vmem:[#allocation2 + $0x99] sm:$0xff]
      %v2954 = vld [vmem:[#allocation2 + $0xa9] sm:$0xff]
      %v2955 = vld [vmem:[#allocation2 + $0xb1] sm:$0xff]
      %v2956 = vld [vmem:[#allocation2 + $0xc1] sm:$0xff]
      %v2957 = vld [vmem:[#allocation2 + $0xc9] sm:$0xff]
      %v2958 = vld [vmem:[#allocation2 + $0xd9] sm:$0xff]
      %v2959 = vld [vmem:[#allocation2 + $0xe1] sm:$0xff]
      %v2960 = vld [vmem:[#allocation2 + $0xf1] sm:$0xff]
      %v2961 = vld [vmem:[#allocation2 + $0xf9] sm:$0xff]
      %v2962 = vld [vmem:[#allocation2 + $0x109] sm:$0xff]
      %v2963 = vld [vmem:[#allocation2 + $0x111] sm:$0xff]
      %v2964 = vld [vmem:[#allocation2 + $0x121] sm:$0xff]
      %v2965 = vld [vmem:[#allocation2 + $0x129] sm:$0xff]
      %v2966 = vld [vmem:[#allocation2 + $0x139] sm:$0xff]
      %v2967 = vld [vmem:[#allocation2 + $0x141] sm:$0xff]
      %v2968 = vld [vmem:[#allocation2 + $0x151] sm:$0xff]
      %v2969 = vld [vmem:[#allocation2 + $0x159] sm:$0xff]
      %v2970 = vld [vmem:[#allocation2 + $0x169] sm:$0xff]
      %v2971 = vld [vmem:[#allocation2 + $0x171] sm:$0xff]
      %3004 = vrot.lane.b32.xlu0 %v2940, 8
      %v3005 = vpop.permute.xlu0 %3004
      %3006 = vrot.lane.b32.xlu0 %v2941, 8
      %v3007 = vpop.permute.xlu0 %3006
      %3008 = vrot.lane.b32.xlu0 %v2942, 8
      %v3009 = vpop.permute.xlu0 %3008
      %3010 = vrot.lane.b32.xlu0 %v2943, 8
      %v3011 = vpop.permute.xlu0 %3010
      %3012 = vrot.lane.b32.xlu0 %v2944, 8
      %v3013 = vpop.permute.xlu0 %3012
      %3014 = vrot.lane.b32.xlu0 %v2945, 8
      %v3015 = vpop.permute.xlu0 %3014
      %3016 = vrot.lane.b32.xlu0 %v2946, 8
      %v3017 = vpop.permute.xlu0 %3016
      %3018 = vrot.lane.b32.xlu0 %v2947, 8
      %v3019 = vpop.permute.xlu0 %3018
      %3020 = vrot.lane.b32.xlu0 %v2948, 8
      %v3021 = vpop.permute.xlu0 %3020
      %3022 = vrot.lane.b32.xlu0 %v2949, 8
      %v3023 = vpop.permute.xlu0 %3022
      %3024 = vrot.lane.b32.xlu0 %v2950, 8
      %v3025 = vpop.permute.xlu0 %3024
      %3026 = vrot.lane.b32.xlu0 %v2951, 8
      %v3027 = vpop.permute.xlu0 %3026
      %3028 = vrot.lane.b32.xlu0 %v2952, 8
      %v3029 = vpop.permute.xlu0 %3028
      %3030 = vrot.lane.b32.xlu0 %v2953, 8
      %v3031 = vpop.permute.xlu0 %3030
      %3032 = vrot.lane.b32.xlu0 %v2954, 8
      %v3033 = vpop.permute.xlu0 %3032
      %3034 = vrot.lane.b32.xlu0 %v2955, 8
      %v3035 = vpop.permute.xlu0 %3034
      %3036 = vrot.lane.b32.xlu0 %v2956, 8
      %v3037 = vpop.permute.xlu0 %3036
      %3038 = vrot.lane.b32.xlu0 %v2957, 8
      %v3039 = vpop.permute.xlu0 %3038
      %3040 = vrot.lane.b32.xlu0 %v2958, 8
      %v3041 = vpop.permute.xlu0 %3040
      %3042 = vrot.lane.b32.xlu0 %v2959, 8
      %v3043 = vpop.permute.xlu0 %3042
      %3044 = vrot.lane.b32.xlu0 %v2960, 8
      %v3045 = vpop.permute.xlu0 %3044
      %3046 = vrot.lane.b32.xlu0 %v2961, 8
      %v3047 = vpop.permute.xlu0 %3046
      %3048 = vrot.lane.b32.xlu0 %v2962, 8
      %v3049 = vpop.permute.xlu0 %3048
      %3050 = vrot.lane.b32.xlu0 %v2963, 8
      %v3051 = vpop.permute.xlu0 %3050
      %3052 = vrot.lane.b32.xlu0 %v2964, 8
      %v3053 = vpop.permute.xlu0 %3052
      %3054 = vrot.lane.b32.xlu0 %v2965, 8
      %v3055 = vpop.permute.xlu0 %3054
      %3056 = vrot.lane.b32.xlu0 %v2966, 8
      %v3057 = vpop.permute.xlu0 %3056
      %3058 = vrot.lane.b32.xlu0 %v2967, 8
      %v3059 = vpop.permute.xlu0 %3058
      %3060 = vrot.lane.b32.xlu0 %v2968, 8
      %v3061 = vpop.permute.xlu0 %3060
      %3062 = vrot.lane.b32.xlu0 %v2969, 8
      %v3063 = vpop.permute.xlu0 %3062
      %3064 = vrot.lane.b32.xlu0 %v2970, 8
      %v3065 = vpop.permute.xlu0 %3064
      %3066 = vrot.lane.b32.xlu0 %v2971, 8
      %v3067 = vpop.permute.xlu0 %3066
      %vm3100 = vcmask 130112
      %3101 = vst.msk [vmem:[#allocation4] sm:$0xff] %vm3100, %v3005
      %3102 = vst.msk [vmem:[#allocation4 + $0x8] sm:$0xff] %vm3100, %v3007
      %3103 = vst.msk [vmem:[#allocation4 + $0x10] sm:$0xff] %vm3100, %v3009
      %3104 = vst.msk [vmem:[#allocation4 + $0x18] sm:$0xff] %vm3100, %v3011
      %3105 = vst.msk [vmem:[#allocation4 + $0x20] sm:$0xff] %vm3100, %v3013
      %3106 = vst.msk [vmem:[#allocation4 + $0x28] sm:$0xff] %vm3100, %v3015
      %3107 = vst.msk [vmem:[#allocation4 + $0x30] sm:$0xff] %vm3100, %v3017
      %3108 = vst.msk [vmem:[#allocation4 + $0x38] sm:$0xff] %vm3100, %v3019
      %3109 = vst.msk [vmem:[#allocation4 + $0x40] sm:$0xff] %vm3100, %v3021
      %3110 = vst.msk [vmem:[#allocation4 + $0x48] sm:$0xff] %vm3100, %v3023
      %3111 = vst.msk [vmem:[#allocation4 + $0x50] sm:$0xff] %vm3100, %v3025
      %3112 = vst.msk [vmem:[#allocation4 + $0x58] sm:$0xff] %vm3100, %v3027
      %3113 = vst.msk [vmem:[#allocation4 + $0x60] sm:$0xff] %vm3100, %v3029
      %3114 = vst.msk [vmem:[#allocation4 + $0x68] sm:$0xff] %vm3100, %v3031
      %3115 = vst.msk [vmem:[#allocation4 + $0x70] sm:$0xff] %vm3100, %v3033
      %3116 = vst.msk [vmem:[#allocation4 + $0x78] sm:$0xff] %vm3100, %v3035
      %3117 = vst.msk [vmem:[#allocation4 + $0x80] sm:$0xff] %vm3100, %v3037
      %3118 = vst.msk [vmem:[#allocation4 + $0x88] sm:$0xff] %vm3100, %v3039
      %3119 = vst.msk [vmem:[#allocation4 + $0x90] sm:$0xff] %vm3100, %v3041
      %3120 = vst.msk [vmem:[#allocation4 + $0x98] sm:$0xff] %vm3100, %v3043
      %3121 = vst.msk [vmem:[#allocation4 + $0xa0] sm:$0xff] %vm3100, %v3045
      %3122 = vst.msk [vmem:[#allocation4 + $0xa8] sm:$0xff] %vm3100, %v3047
      %3123 = vst.msk [vmem:[#allocation4 + $0xb0] sm:$0xff] %vm3100, %v3049
      %3124 = vst.msk [vmem:[#allocation4 + $0xb8] sm:$0xff] %vm3100, %v3051
      %3125 = vst.msk [vmem:[#allocation4 + $0xc0] sm:$0xff] %vm3100, %v3053
      %3126 = vst.msk [vmem:[#allocation4 + $0xc8] sm:$0xff] %vm3100, %v3055
      %3127 = vst.msk [vmem:[#allocation4 + $0xd0] sm:$0xff] %vm3100, %v3057
      %3128 = vst.msk [vmem:[#allocation4 + $0xd8] sm:$0xff] %vm3100, %v3059
      %3129 = vst.msk [vmem:[#allocation4 + $0xe0] sm:$0xff] %vm3100, %v3061
      %3130 = vst.msk [vmem:[#allocation4 + $0xe8] sm:$0xff] %vm3100, %v3063
      %3131 = vst.msk [vmem:[#allocation4 + $0xf0] sm:$0xff] %vm3100, %v3065
      %3132 = vst.msk [vmem:[#allocation4 + $0xf8] sm:$0xff] %vm3100, %v3067
      %v3133 = vld [vmem:[#allocation2 + $0x2] sm:$0xff]
      %v3134 = vld [vmem:[#allocation2 + $0xa] sm:$0xff]
      %v3135 = vld [vmem:[#allocation2 + $0x1a] sm:$0xff]
      %v3136 = vld [vmem:[#allocation2 + $0x22] sm:$0xff]
      %v3137 = vld [vmem:[#allocation2 + $0x32] sm:$0xff]
      %v3138 = vld [vmem:[#allocation2 + $0x3a] sm:$0xff]
      %v3139 = vld [vmem:[#allocation2 + $0x4a] sm:$0xff]
      %v3140 = vld [vmem:[#allocation2 + $0x52] sm:$0xff]
      %v3141 = vld [vmem:[#allocation2 + $0x62] sm:$0xff]
      %v3142 = vld [vmem:[#allocation2 + $0x6a] sm:$0xff]
      %v3143 = vld [vmem:[#allocation2 + $0x7a] sm:$0xff]
      %v3144 = vld [vmem:[#allocation2 + $0x82] sm:$0xff]
      %v3145 = vld [vmem:[#allocation2 + $0x92] sm:$0xff]
      %v3146 = vld [vmem:[#allocation2 + $0x9a] sm:$0xff]
      %v3147 = vld [vmem:[#allocation2 + $0xaa] sm:$0xff]
      %v3148 = vld [vmem:[#allocation2 + $0xb2] sm:$0xff]
      %v3149 = vld [vmem:[#allocation2 + $0xc2] sm:$0xff]
      %v3150 = vld [vmem:[#allocation2 + $0xca] sm:$0xff]
      %v3151 = vld [vmem:[#allocation2 + $0xda] sm:$0xff]
      %v3152 = vld [vmem:[#allocation2 + $0xe2] sm:$0xff]
      %v3153 = vld [vmem:[#allocation2 + $0xf2] sm:$0xff]
      %v3154 = vld [vmem:[#allocation2 + $0xfa] sm:$0xff]
      %v3155 = vld [vmem:[#allocation2 + $0x10a] sm:$0xff]
      %v3156 = vld [vmem:[#allocation2 + $0x112] sm:$0xff]
      %v3157 = vld [vmem:[#allocation2 + $0x122] sm:$0xff]
      %v3158 = vld [vmem:[#allocation2 + $0x12a] sm:$0xff]
      %v3159 = vld [vmem:[#allocation2 + $0x13a] sm:$0xff]
      %v3160 = vld [vmem:[#allocation2 + $0x142] sm:$0xff]
      %v3161 = vld [vmem:[#allocation2 + $0x152] sm:$0xff]
      %v3162 = vld [vmem:[#allocation2 + $0x15a] sm:$0xff]
      %v3163 = vld [vmem:[#allocation2 + $0x16a] sm:$0xff]
      %v3164 = vld [vmem:[#allocation2 + $0x172] sm:$0xff]
      %3197 = vrot.lane.b32.xlu0 %v3133, 16
      %v3198 = vpop.permute.xlu0 %3197
      %3199 = vrot.lane.b32.xlu0 %v3134, 16
      %v3200 = vpop.permute.xlu0 %3199
      %3201 = vrot.lane.b32.xlu0 %v3135, 16
      %v3202 = vpop.permute.xlu0 %3201
      %3203 = vrot.lane.b32.xlu0 %v3136, 16
      %v3204 = vpop.permute.xlu0 %3203
      %3205 = vrot.lane.b32.xlu0 %v3137, 16
      %v3206 = vpop.permute.xlu0 %3205
      %3207 = vrot.lane.b32.xlu0 %v3138, 16
      %v3208 = vpop.permute.xlu0 %3207
      %3209 = vrot.lane.b32.xlu0 %v3139, 16
      %v3210 = vpop.permute.xlu0 %3209
      %3211 = vrot.lane.b32.xlu0 %v3140, 16
      %v3212 = vpop.permute.xlu0 %3211
      %3213 = vrot.lane.b32.xlu0 %v3141, 16
      %v3214 = vpop.permute.xlu0 %3213
      %3215 = vrot.lane.b32.xlu0 %v3142, 16
      %v3216 = vpop.permute.xlu0 %3215
      %3217 = vrot.lane.b32.xlu0 %v3143, 16
      %v3218 = vpop.permute.xlu0 %3217
      %3219 = vrot.lane.b32.xlu0 %v3144, 16
      %v3220 = vpop.permute.xlu0 %3219
      %3221 = vrot.lane.b32.xlu0 %v3145, 16
      %v3222 = vpop.permute.xlu0 %3221
      %3223 = vrot.lane.b32.xlu0 %v3146, 16
      %v3224 = vpop.permute.xlu0 %3223
      %3225 = vrot.lane.b32.xlu0 %v3147, 16
      %v3226 = vpop.permute.xlu0 %3225
      %3227 = vrot.lane.b32.xlu0 %v3148, 16
      %v3228 = vpop.permute.xlu0 %3227
      %3229 = vrot.lane.b32.xlu0 %v3149, 16
      %v3230 = vpop.permute.xlu0 %3229
      %3231 = vrot.lane.b32.xlu0 %v3150, 16
      %v3232 = vpop.permute.xlu0 %3231
      %3233 = vrot.lane.b32.xlu0 %v3151, 16
      %v3234 = vpop.permute.xlu0 %3233
      %3235 = vrot.lane.b32.xlu0 %v3152, 16
      %v3236 = vpop.permute.xlu0 %3235
      %3237 = vrot.lane.b32.xlu0 %v3153, 16
      %v3238 = vpop.permute.xlu0 %3237
      %3239 = vrot.lane.b32.xlu0 %v3154, 16
      %v3240 = vpop.permute.xlu0 %3239
      %3241 = vrot.lane.b32.xlu0 %v3155, 16
      %v3242 = vpop.permute.xlu0 %3241
      %3243 = vrot.lane.b32.xlu0 %v3156, 16
      %v3244 = vpop.permute.xlu0 %3243
      %3245 = vrot.lane.b32.xlu0 %v3157, 16
      %v3246 = vpop.permute.xlu0 %3245
      %3247 = vrot.lane.b32.xlu0 %v3158, 16
      %v3248 = vpop.permute.xlu0 %3247
      %3249 = vrot.lane.b32.xlu0 %v3159, 16
      %v3250 = vpop.permute.xlu0 %3249
      %3251 = vrot.lane.b32.xlu0 %v3160, 16
      %v3252 = vpop.permute.xlu0 %3251
      %3253 = vrot.lane.b32.xlu0 %v3161, 16
      %v3254 = vpop.permute.xlu0 %3253
      %3255 = vrot.lane.b32.xlu0 %v3162, 16
      %v3256 = vpop.permute.xlu0 %3255
      %3257 = vrot.lane.b32.xlu0 %v3163, 16
      %v3258 = vpop.permute.xlu0 %3257
      %3259 = vrot.lane.b32.xlu0 %v3164, 16
      %v3260 = vpop.permute.xlu0 %3259
      %vm3293 = vcmask 195712
      %3294 = vst.msk [vmem:[#allocation4] sm:$0xff] %vm3293, %v3198
      %3295 = vst.msk [vmem:[#allocation4 + $0x8] sm:$0xff] %vm3293, %v3200
      %3296 = vst.msk [vmem:[#allocation4 + $0x10] sm:$0xff] %vm3293, %v3202
      %3297 = vst.msk [vmem:[#allocation4 + $0x18] sm:$0xff] %vm3293, %v3204
      %3298 = vst.msk [vmem:[#allocation4 + $0x20] sm:$0xff] %vm3293, %v3206
      %3299 = vst.msk [vmem:[#allocation4 + $0x28] sm:$0xff] %vm3293, %v3208
      %3300 = vst.msk [vmem:[#allocation4 + $0x30] sm:$0xff] %vm3293, %v3210
      %3301 = vst.msk [vmem:[#allocation4 + $0x38] sm:$0xff] %vm3293, %v3212
      %3302 = vst.msk [vmem:[#allocation4 + $0x40] sm:$0xff] %vm3293, %v3214
      %3303 = vst.msk [vmem:[#allocation4 + $0x48] sm:$0xff] %vm3293, %v3216
      %3304 = vst.msk [vmem:[#allocation4 + $0x50] sm:$0xff] %vm3293, %v3218
      %3305 = vst.msk [vmem:[#allocation4 + $0x58] sm:$0xff] %vm3293, %v3220
      %3306 = vst.msk [vmem:[#allocation4 + $0x60] sm:$0xff] %vm3293, %v3222
      %3307 = vst.msk [vmem:[#allocation4 + $0x68] sm:$0xff] %vm3293, %v3224
      %3308 = vst.msk [vmem:[#allocation4 + $0x70] sm:$0xff] %vm3293, %v3226
      %3309 = vst.msk [vmem:[#allocation4 + $0x78] sm:$0xff] %vm3293, %v3228
      %3310 = vst.msk [vmem:[#allocation4 + $0x80] sm:$0xff] %vm3293, %v3230
      %3311 = vst.msk [vmem:[#allocation4 + $0x88] sm:$0xff] %vm3293, %v3232
      %3312 = vst.msk [vmem:[#allocation4 + $0x90] sm:$0xff] %vm3293, %v3234
      %3313 = vst.msk [vmem:[#allocation4 + $0x98] sm:$0xff] %vm3293, %v3236
      %3314 = vst.msk [vmem:[#allocation4 + $0xa0] sm:$0xff] %vm3293, %v3238
      %3315 = vst.msk [vmem:[#allocation4 + $0xa8] sm:$0xff] %vm3293, %v3240
      %3316 = vst.msk [vmem:[#allocation4 + $0xb0] sm:$0xff] %vm3293, %v3242
      %3317 = vst.msk [vmem:[#allocation4 + $0xb8] sm:$0xff] %vm3293, %v3244
      %3318 = vst.msk [vmem:[#allocation4 + $0xc0] sm:$0xff] %vm3293, %v3246
      %3319 = vst.msk [vmem:[#allocation4 + $0xc8] sm:$0xff] %vm3293, %v3248
      %3320 = vst.msk [vmem:[#allocation4 + $0xd0] sm:$0xff] %vm3293, %v3250
      %3321 = vst.msk [vmem:[#allocation4 + $0xd8] sm:$0xff] %vm3293, %v3252
      %3322 = vst.msk [vmem:[#allocation4 + $0xe0] sm:$0xff] %vm3293, %v3254
      %3323 = vst.msk [vmem:[#allocation4 + $0xe8] sm:$0xff] %vm3293, %v3256
      %3324 = vst.msk [vmem:[#allocation4 + $0xf0] sm:$0xff] %vm3293, %v3258
      %3325 = vst.msk [vmem:[#allocation4 + $0xf8] sm:$0xff] %vm3293, %v3260
      %v3326 = vld [vmem:[%s2650] sm:$0xff]
      %v3327 = vld [vmem:[%s2650 + $0x8] sm:$0xff]
      %v3328 = vld [vmem:[%s2650 + $0x18] sm:$0xff]
      %v3329 = vld [vmem:[%s2650 + $0x20] sm:$0xff]
      %v3330 = vld [vmem:[%s2650 + $0x30] sm:$0xff]
      %v3331 = vld [vmem:[%s2650 + $0x38] sm:$0xff]
      %v3332 = vld [vmem:[%s2650 + $0x48] sm:$0xff]
      %v3333 = vld [vmem:[%s2650 + $0x50] sm:$0xff]
      %v3334 = vld [vmem:[%s2650 + $0x60] sm:$0xff]
      %v3335 = vld [vmem:[%s2650 + $0x68] sm:$0xff]
      %v3336 = vld [vmem:[%s2650 + $0x78] sm:$0xff]
      %v3337 = vld [vmem:[%s2650 + $0x80] sm:$0xff]
      %v3338 = vld [vmem:[%s2650 + $0x90] sm:$0xff]
      %v3339 = vld [vmem:[%s2650 + $0x98] sm:$0xff]
      %v3340 = vld [vmem:[%s2650 + $0xa8] sm:$0xff]
      %v3341 = vld [vmem:[%s2650 + $0xb0] sm:$0xff]
      %v3342 = vld [vmem:[%s2650 + $0xc0] sm:$0xff]
      %v3343 = vld [vmem:[%s2650 + $0xc8] sm:$0xff]
      %v3344 = vld [vmem:[%s2650 + $0xd8] sm:$0xff]
      %v3345 = vld [vmem:[%s2650 + $0xe0] sm:$0xff]
      %v3346 = vld [vmem:[%s2650 + $0xf0] sm:$0xff]
      %v3347 = vld [vmem:[%s2650 + $0xf8] sm:$0xff]
      %v3348 = vld [vmem:[%s2650 + $0x108] sm:$0xff]
      %v3349 = vld [vmem:[%s2650 + $0x110] sm:$0xff]
      %v3350 = vld [vmem:[%s2650 + $0x120] sm:$0xff]
      %v3351 = vld [vmem:[%s2650 + $0x128] sm:$0xff]
      %v3352 = vld [vmem:[%s2650 + $0x138] sm:$0xff]
      %v3353 = vld [vmem:[%s2650 + $0x140] sm:$0xff]
      %v3354 = vld [vmem:[%s2650 + $0x150] sm:$0xff]
      %v3355 = vld [vmem:[%s2650 + $0x158] sm:$0xff]
      %v3356 = vld [vmem:[%s2650 + $0x168] sm:$0xff]
      %v3357 = vld [vmem:[%s2650 + $0x170] sm:$0xff]
      %3390 = vrot.lane.b32.xlu0 %v3326, 24
      %v3391 = vpop.permute.xlu0 %3390
      %3392 = vrot.lane.b32.xlu0 %v3327, 24
      %v3393 = vpop.permute.xlu0 %3392
      %3394 = vrot.lane.b32.xlu0 %v3328, 24
      %v3395 = vpop.permute.xlu0 %3394
      %3396 = vrot.lane.b32.xlu0 %v3329, 24
      %v3397 = vpop.permute.xlu0 %3396
      %3398 = vrot.lane.b32.xlu0 %v3330, 24
      %v3399 = vpop.permute.xlu0 %3398
      %3400 = vrot.lane.b32.xlu0 %v3331, 24
      %v3401 = vpop.permute.xlu0 %3400
      %3402 = vrot.lane.b32.xlu0 %v3332, 24
      %v3403 = vpop.permute.xlu0 %3402
      %3404 = vrot.lane.b32.xlu0 %v3333, 24
      %v3405 = vpop.permute.xlu0 %3404
      %3406 = vrot.lane.b32.xlu0 %v3334, 24
      %v3407 = vpop.permute.xlu0 %3406
      %3408 = vrot.lane.b32.xlu0 %v3335, 24
      %v3409 = vpop.permute.xlu0 %3408
      %3410 = vrot.lane.b32.xlu0 %v3336, 24
      %v3411 = vpop.permute.xlu0 %3410
      %3412 = vrot.lane.b32.xlu0 %v3337, 24
      %v3413 = vpop.permute.xlu0 %3412
      %3414 = vrot.lane.b32.xlu0 %v3338, 24
      %v3415 = vpop.permute.xlu0 %3414
      %3416 = vrot.lane.b32.xlu0 %v3339, 24
      %v3417 = vpop.permute.xlu0 %3416
      %3418 = vrot.lane.b32.xlu0 %v3340, 24
      %v3419 = vpop.permute.xlu0 %3418
      %3420 = vrot.lane.b32.xlu0 %v3341, 24
      %v3421 = vpop.permute.xlu0 %3420
      %3422 = vrot.lane.b32.xlu0 %v3342, 24
      %v3423 = vpop.permute.xlu0 %3422
      %3424 = vrot.lane.b32.xlu0 %v3343, 24
      %v3425 = vpop.permute.xlu0 %3424
      %3426 = vrot.lane.b32.xlu0 %v3344, 24
      %v3427 = vpop.permute.xlu0 %3426
      %3428 = vrot.lane.b32.xlu0 %v3345, 24
      %v3429 = vpop.permute.xlu0 %3428
      %3430 = vrot.lane.b32.xlu0 %v3346, 24
      %v3431 = vpop.permute.xlu0 %3430
      %3432 = vrot.lane.b32.xlu0 %v3347, 24
      %v3433 = vpop.permute.xlu0 %3432
      %3434 = vrot.lane.b32.xlu0 %v3348, 24
      %v3435 = vpop.permute.xlu0 %3434
      %3436 = vrot.lane.b32.xlu0 %v3349, 24
      %v3437 = vpop.permute.xlu0 %3436
      %3438 = vrot.lane.b32.xlu0 %v3350, 24
      %v3439 = vpop.permute.xlu0 %3438
      %3440 = vrot.lane.b32.xlu0 %v3351, 24
      %v3441 = vpop.permute.xlu0 %3440
      %3442 = vrot.lane.b32.xlu0 %v3352, 24
      %v3443 = vpop.permute.xlu0 %3442
      %3444 = vrot.lane.b32.xlu0 %v3353, 24
      %v3445 = vpop.permute.xlu0 %3444
      %3446 = vrot.lane.b32.xlu0 %v3354, 24
      %v3447 = vpop.permute.xlu0 %3446
      %3448 = vrot.lane.b32.xlu0 %v3355, 24
      %v3449 = vpop.permute.xlu0 %3448
      %3450 = vrot.lane.b32.xlu0 %v3356, 24
      %v3451 = vpop.permute.xlu0 %3450
      %3452 = vrot.lane.b32.xlu0 %v3357, 24
      %v3453 = vpop.permute.xlu0 %3452
      %vm3486 = vcmask 261312
      %3487 = vst.msk [vmem:[#allocation4] sm:$0xff] %vm3486, %v3391
      %3488 = vst.msk [vmem:[#allocation4 + $0x8] sm:$0xff] %vm3486, %v3393
      %3489 = vst.msk [vmem:[#allocation4 + $0x10] sm:$0xff] %vm3486, %v3395
      %3490 = vst.msk [vmem:[#allocation4 + $0x18] sm:$0xff] %vm3486, %v3397
      %3491 = vst.msk [vmem:[#allocation4 + $0x20] sm:$0xff] %vm3486, %v3399
      %3492 = vst.msk [vmem:[#allocation4 + $0x28] sm:$0xff] %vm3486, %v3401
      %3493 = vst.msk [vmem:[#allocation4 + $0x30] sm:$0xff] %vm3486, %v3403
      %3494 = vst.msk [vmem:[#allocation4 + $0x38] sm:$0xff] %vm3486, %v3405
      %3495 = vst.msk [vmem:[#allocation4 + $0x40] sm:$0xff] %vm3486, %v3407
      %3496 = vst.msk [vmem:[#allocation4 + $0x48] sm:$0xff] %vm3486, %v3409
      %3497 = vst.msk [vmem:[#allocation4 + $0x50] sm:$0xff] %vm3486, %v3411
      %3498 = vst.msk [vmem:[#allocation4 + $0x58] sm:$0xff] %vm3486, %v3413
      %3499 = vst.msk [vmem:[#allocation4 + $0x60] sm:$0xff] %vm3486, %v3415
      %3500 = vst.msk [vmem:[#allocation4 + $0x68] sm:$0xff] %vm3486, %v3417
      %3501 = vst.msk [vmem:[#allocation4 + $0x70] sm:$0xff] %vm3486, %v3419
      %3502 = vst.msk [vmem:[#allocation4 + $0x78] sm:$0xff] %vm3486, %v3421
      %3503 = vst.msk [vmem:[#allocation4 + $0x80] sm:$0xff] %vm3486, %v3423
      %3504 = vst.msk [vmem:[#allocation4 + $0x88] sm:$0xff] %vm3486, %v3425
      %3505 = vst.msk [vmem:[#allocation4 + $0x90] sm:$0xff] %vm3486, %v3427
      %3506 = vst.msk [vmem:[#allocation4 + $0x98] sm:$0xff] %vm3486, %v3429
      %3507 = vst.msk [vmem:[#allocation4 + $0xa0] sm:$0xff] %vm3486, %v3431
      %3508 = vst.msk [vmem:[#allocation4 + $0xa8] sm:$0xff] %vm3486, %v3433
      %3509 = vst.msk [vmem:[#allocation4 + $0xb0] sm:$0xff] %vm3486, %v3435
      %3510 = vst.msk [vmem:[#allocation4 + $0xb8] sm:$0xff] %vm3486, %v3437
      %3511 = vst.msk [vmem:[#allocation4 + $0xc0] sm:$0xff] %vm3486, %v3439
      %3512 = vst.msk [vmem:[#allocation4 + $0xc8] sm:$0xff] %vm3486, %v3441
      %3513 = vst.msk [vmem:[#allocation4 + $0xd0] sm:$0xff] %vm3486, %v3443
      %3514 = vst.msk [vmem:[#allocation4 + $0xd8] sm:$0xff] %vm3486, %v3445
      %3515 = vst.msk [vmem:[#allocation4 + $0xe0] sm:$0xff] %vm3486, %v3447
      %3516 = vst.msk [vmem:[#allocation4 + $0xe8] sm:$0xff] %vm3486, %v3449
      %3517 = vst.msk [vmem:[#allocation4 + $0xf0] sm:$0xff] %vm3486, %v3451
      %3518 = vst.msk [vmem:[#allocation4 + $0xf8] sm:$0xff] %vm3486, %v3453
      %v3519 = vld [vmem:[%s2650 + $0x1] sm:$0xff]
      %v3520 = vld [vmem:[%s2650 + $0x9] sm:$0xff]
      %v3521 = vld [vmem:[%s2650 + $0x19] sm:$0xff]
      %v3522 = vld [vmem:[%s2650 + $0x21] sm:$0xff]
      %v3523 = vld [vmem:[%s2650 + $0x31] sm:$0xff]
      %v3524 = vld [vmem:[%s2650 + $0x39] sm:$0xff]
      %v3525 = vld [vmem:[%s2650 + $0x49] sm:$0xff]
      %v3526 = vld [vmem:[%s2650 + $0x51] sm:$0xff]
      %v3527 = vld [vmem:[%s2650 + $0x61] sm:$0xff]
      %v3528 = vld [vmem:[%s2650 + $0x69] sm:$0xff]
      %v3529 = vld [vmem:[%s2650 + $0x79] sm:$0xff]
      %v3530 = vld [vmem:[%s2650 + $0x81] sm:$0xff]
      %v3531 = vld [vmem:[%s2650 + $0x91] sm:$0xff]
      %v3532 = vld [vmem:[%s2650 + $0x99] sm:$0xff]
      %v3533 = vld [vmem:[%s2650 + $0xa9] sm:$0xff]
      %v3534 = vld [vmem:[%s2650 + $0xb1] sm:$0xff]
      %v3535 = vld [vmem:[%s2650 + $0xc1] sm:$0xff]
      %v3536 = vld [vmem:[%s2650 + $0xc9] sm:$0xff]
      %v3537 = vld [vmem:[%s2650 + $0xd9] sm:$0xff]
      %v3538 = vld [vmem:[%s2650 + $0xe1] sm:$0xff]
      %v3539 = vld [vmem:[%s2650 + $0xf1] sm:$0xff]
      %v3540 = vld [vmem:[%s2650 + $0xf9] sm:$0xff]
      %v3541 = vld [vmem:[%s2650 + $0x109] sm:$0xff]
      %v3542 = vld [vmem:[%s2650 + $0x111] sm:$0xff]
      %v3543 = vld [vmem:[%s2650 + $0x121] sm:$0xff]
      %v3544 = vld [vmem:[%s2650 + $0x129] sm:$0xff]
      %v3545 = vld [vmem:[%s2650 + $0x139] sm:$0xff]
      %v3546 = vld [vmem:[%s2650 + $0x141] sm:$0xff]
      %v3547 = vld [vmem:[%s2650 + $0x151] sm:$0xff]
      %v3548 = vld [vmem:[%s2650 + $0x159] sm:$0xff]
      %v3549 = vld [vmem:[%s2650 + $0x169] sm:$0xff]
      %v3550 = vld [vmem:[%s2650 + $0x171] sm:$0xff]
      %3583 = vrot.lane.b32.xlu0 %v3519, 32
      %v3584 = vpop.permute.xlu0 %3583
      %3585 = vrot.lane.b32.xlu0 %v3520, 32
      %v3586 = vpop.permute.xlu0 %3585
      %3587 = vrot.lane.b32.xlu0 %v3521, 32
      %v3588 = vpop.permute.xlu0 %3587
      %3589 = vrot.lane.b32.xlu0 %v3522, 32
      %v3590 = vpop.permute.xlu0 %3589
      %3591 = vrot.lane.b32.xlu0 %v3523, 32
      %v3592 = vpop.permute.xlu0 %3591
      %3593 = vrot.lane.b32.xlu0 %v3524, 32
      %v3594 = vpop.permute.xlu0 %3593
      %3595 = vrot.lane.b32.xlu0 %v3525, 32
      %v3596 = vpop.permute.xlu0 %3595
      %3597 = vrot.lane.b32.xlu0 %v3526, 32
      %v3598 = vpop.permute.xlu0 %3597
      %3599 = vrot.lane.b32.xlu0 %v3527, 32
      %v3600 = vpop.permute.xlu0 %3599
      %3601 = vrot.lane.b32.xlu0 %v3528, 32
      %v3602 = vpop.permute.xlu0 %3601
      %3603 = vrot.lane.b32.xlu0 %v3529, 32
      %v3604 = vpop.permute.xlu0 %3603
      %3605 = vrot.lane.b32.xlu0 %v3530, 32
      %v3606 = vpop.permute.xlu0 %3605
      %3607 = vrot.lane.b32.xlu0 %v3531, 32
      %v3608 = vpop.permute.xlu0 %3607
      %3609 = vrot.lane.b32.xlu0 %v3532, 32
      %v3610 = vpop.permute.xlu0 %3609
      %3611 = vrot.lane.b32.xlu0 %v3533, 32
      %v3612 = vpop.permute.xlu0 %3611
      %3613 = vrot.lane.b32.xlu0 %v3534, 32
      %v3614 = vpop.permute.xlu0 %3613
      %3615 = vrot.lane.b32.xlu0 %v3535, 32
      %v3616 = vpop.permute.xlu0 %3615
      %3617 = vrot.lane.b32.xlu0 %v3536, 32
      %v3618 = vpop.permute.xlu0 %3617
      %3619 = vrot.lane.b32.xlu0 %v3537, 32
      %v3620 = vpop.permute.xlu0 %3619
      %3621 = vrot.lane.b32.xlu0 %v3538, 32
      %v3622 = vpop.permute.xlu0 %3621
      %3623 = vrot.lane.b32.xlu0 %v3539, 32
      %v3624 = vpop.permute.xlu0 %3623
      %3625 = vrot.lane.b32.xlu0 %v3540, 32
      %v3626 = vpop.permute.xlu0 %3625
      %3627 = vrot.lane.b32.xlu0 %v3541, 32
      %v3628 = vpop.permute.xlu0 %3627
      %3629 = vrot.lane.b32.xlu0 %v3542, 32
      %v3630 = vpop.permute.xlu0 %3629
      %3631 = vrot.lane.b32.xlu0 %v3543, 32
      %v3632 = vpop.permute.xlu0 %3631
      %3633 = vrot.lane.b32.xlu0 %v3544, 32
      %v3634 = vpop.permute.xlu0 %3633
      %3635 = vrot.lane.b32.xlu0 %v3545, 32
      %v3636 = vpop.permute.xlu0 %3635
      %3637 = vrot.lane.b32.xlu0 %v3546, 32
      %v3638 = vpop.permute.xlu0 %3637
      %3639 = vrot.lane.b32.xlu0 %v3547, 32
      %v3640 = vpop.permute.xlu0 %3639
      %3641 = vrot.lane.b32.xlu0 %v3548, 32
      %v3642 = vpop.permute.xlu0 %3641
      %3643 = vrot.lane.b32.xlu0 %v3549, 32
      %v3644 = vpop.permute.xlu0 %3643
      %3645 = vrot.lane.b32.xlu0 %v3550, 32
      %v3646 = vpop.permute.xlu0 %3645
      %vm3679 = vcmask 326912
      %3680 = vst.msk [vmem:[#allocation4] sm:$0xff] %vm3679, %v3584
      %3681 = vst.msk [vmem:[#allocation4 + $0x8] sm:$0xff] %vm3679, %v3586
      %3682 = vst.msk [vmem:[#allocation4 + $0x10] sm:$0xff] %vm3679, %v3588
      %3683 = vst.msk [vmem:[#allocation4 + $0x18] sm:$0xff] %vm3679, %v3590
      %3684 = vst.msk [vmem:[#allocation4 + $0x20] sm:$0xff] %vm3679, %v3592
      %3685 = vst.msk [vmem:[#allocation4 + $0x28] sm:$0xff] %vm3679, %v3594
      %3686 = vst.msk [vmem:[#allocation4 + $0x30] sm:$0xff] %vm3679, %v3596
      %3687 = vst.msk [vmem:[#allocation4 + $0x38] sm:$0xff] %vm3679, %v3598
      %3688 = vst.msk [vmem:[#allocation4 + $0x40] sm:$0xff] %vm3679, %v3600
      %3689 = vst.msk [vmem:[#allocation4 + $0x48] sm:$0xff] %vm3679, %v3602
      %3690 = vst.msk [vmem:[#allocation4 + $0x50] sm:$0xff] %vm3679, %v3604
      %3691 = vst.msk [vmem:[#allocation4 + $0x58] sm:$0xff] %vm3679, %v3606
      %3692 = vst.msk [vmem:[#allocation4 + $0x60] sm:$0xff] %vm3679, %v3608
      %3693 = vst.msk [vmem:[#allocation4 + $0x68] sm:$0xff] %vm3679, %v3610
      %3694 = vst.msk [vmem:[#allocation4 + $0x70] sm:$0xff] %vm3679, %v3612
      %3695 = vst.msk [vmem:[#allocation4 + $0x78] sm:$0xff] %vm3679, %v3614
      %3696 = vst.msk [vmem:[#allocation4 + $0x80] sm:$0xff] %vm3679, %v3616
      %3697 = vst.msk [vmem:[#allocation4 + $0x88] sm:$0xff] %vm3679, %v3618
      %3698 = vst.msk [vmem:[#allocation4 + $0x90] sm:$0xff] %vm3679, %v3620
      %3699 = vst.msk [vmem:[#allocation4 + $0x98] sm:$0xff] %vm3679, %v3622
      %3700 = vst.msk [vmem:[#allocation4 + $0xa0] sm:$0xff] %vm3679, %v3624
      %3701 = vst.msk [vmem:[#allocation4 + $0xa8] sm:$0xff] %vm3679, %v3626
      %3702 = vst.msk [vmem:[#allocation4 + $0xb0] sm:$0xff] %vm3679, %v3628
      %3703 = vst.msk [vmem:[#allocation4 + $0xb8] sm:$0xff] %vm3679, %v3630
      %3704 = vst.msk [vmem:[#allocation4 + $0xc0] sm:$0xff] %vm3679, %v3632
      %3705 = vst.msk [vmem:[#allocation4 + $0xc8] sm:$0xff] %vm3679, %v3634
      %3706 = vst.msk [vmem:[#allocation4 + $0xd0] sm:$0xff] %vm3679, %v3636
      %3707 = vst.msk [vmem:[#allocation4 + $0xd8] sm:$0xff] %vm3679, %v3638
      %3708 = vst.msk [vmem:[#allocation4 + $0xe0] sm:$0xff] %vm3679, %v3640
      %3709 = vst.msk [vmem:[#allocation4 + $0xe8] sm:$0xff] %vm3679, %v3642
      %3710 = vst.msk [vmem:[#allocation4 + $0xf0] sm:$0xff] %vm3679, %v3644
      %3711 = vst.msk [vmem:[#allocation4 + $0xf8] sm:$0xff] %vm3679, %v3646
      %v3712 = vld [vmem:[%s2650 + $0x2] sm:$0xff]
      %v3713 = vld [vmem:[%s2650 + $0xa] sm:$0xff]
      %v3714 = vld [vmem:[%s2650 + $0x1a] sm:$0xff]
      %v3715 = vld [vmem:[%s2650 + $0x22] sm:$0xff]
      %v3716 = vld [vmem:[%s2650 + $0x32] sm:$0xff]
      %v3717 = vld [vmem:[%s2650 + $0x3a] sm:$0xff]
      %v3718 = vld [vmem:[%s2650 + $0x4a] sm:$0xff]
      %v3719 = vld [vmem:[%s2650 + $0x52] sm:$0xff]
      %v3720 = vld [vmem:[%s2650 + $0x62] sm:$0xff]
      %v3721 = vld [vmem:[%s2650 + $0x6a] sm:$0xff]
      %v3722 = vld [vmem:[%s2650 + $0x7a] sm:$0xff]
      %v3723 = vld [vmem:[%s2650 + $0x82] sm:$0xff]
      %v3724 = vld [vmem:[%s2650 + $0x92] sm:$0xff]
      %v3725 = vld [vmem:[%s2650 + $0x9a] sm:$0xff]
      %v3726 = vld [vmem:[%s2650 + $0xaa] sm:$0xff]
      %v3727 = vld [vmem:[%s2650 + $0xb2] sm:$0xff]
      %v3728 = vld [vmem:[%s2650 + $0xc2] sm:$0xff]
      %v3729 = vld [vmem:[%s2650 + $0xca] sm:$0xff]
      %v3730 = vld [vmem:[%s2650 + $0xda] sm:$0xff]
      %v3731 = vld [vmem:[%s2650 + $0xe2] sm:$0xff]
      %v3732 = vld [vmem:[%s2650 + $0xf2] sm:$0xff]
      %v3733 = vld [vmem:[%s2650 + $0xfa] sm:$0xff]
      %v3734 = vld [vmem:[%s2650 + $0x10a] sm:$0xff]
      %v3735 = vld [vmem:[%s2650 + $0x112] sm:$0xff]
      %v3736 = vld [vmem:[%s2650 + $0x122] sm:$0xff]
      %v3737 = vld [vmem:[%s2650 + $0x12a] sm:$0xff]
      %v3738 = vld [vmem:[%s2650 + $0x13a] sm:$0xff]
      %v3739 = vld [vmem:[%s2650 + $0x142] sm:$0xff]
      %v3740 = vld [vmem:[%s2650 + $0x152] sm:$0xff]
      %v3741 = vld [vmem:[%s2650 + $0x15a] sm:$0xff]
      %v3742 = vld [vmem:[%s2650 + $0x16a] sm:$0xff]
      %v3743 = vld [vmem:[%s2650 + $0x172] sm:$0xff]
      %3776 = vrot.lane.b32.xlu0 %v3712, 40
      %v3777 = vpop.permute.xlu0 %3776
      %3778 = vrot.lane.b32.xlu0 %v3713, 40
      %v3779 = vpop.permute.xlu0 %3778
      %3780 = vrot.lane.b32.xlu0 %v3714, 40
      %v3781 = vpop.permute.xlu0 %3780
      %3782 = vrot.lane.b32.xlu0 %v3715, 40
      %v3783 = vpop.permute.xlu0 %3782
      %3784 = vrot.lane.b32.xlu0 %v3716, 40
      %v3785 = vpop.permute.xlu0 %3784
      %3786 = vrot.lane.b32.xlu0 %v3717, 40
      %v3787 = vpop.permute.xlu0 %3786
      %3788 = vrot.lane.b32.xlu0 %v3718, 40
      %v3789 = vpop.permute.xlu0 %3788
      %3790 = vrot.lane.b32.xlu0 %v3719, 40
      %v3791 = vpop.permute.xlu0 %3790
      %3792 = vrot.lane.b32.xlu0 %v3720, 40
      %v3793 = vpop.permute.xlu0 %3792
      %3794 = vrot.lane.b32.xlu0 %v3721, 40
      %v3795 = vpop.permute.xlu0 %3794
      %3796 = vrot.lane.b32.xlu0 %v3722, 40
      %v3797 = vpop.permute.xlu0 %3796
      %3798 = vrot.lane.b32.xlu0 %v3723, 40
      %v3799 = vpop.permute.xlu0 %3798
      %3800 = vrot.lane.b32.xlu0 %v3724, 40
      %v3801 = vpop.permute.xlu0 %3800
      %3802 = vrot.lane.b32.xlu0 %v3725, 40
      %v3803 = vpop.permute.xlu0 %3802
      %3804 = vrot.lane.b32.xlu0 %v3726, 40
      %v3805 = vpop.permute.xlu0 %3804
      %3806 = vrot.lane.b32.xlu0 %v3727, 40
      %v3807 = vpop.permute.xlu0 %3806
      %3808 = vrot.lane.b32.xlu0 %v3728, 40
      %v3809 = vpop.permute.xlu0 %3808
      %3810 = vrot.lane.b32.xlu0 %v3729, 40
      %v3811 = vpop.permute.xlu0 %3810
      %3812 = vrot.lane.b32.xlu0 %v3730, 40
      %v3813 = vpop.permute.xlu0 %3812
      %3814 = vrot.lane.b32.xlu0 %v3731, 40
      %v3815 = vpop.permute.xlu0 %3814
      %3816 = vrot.lane.b32.xlu0 %v3732, 40
      %v3817 = vpop.permute.xlu0 %3816
      %3818 = vrot.lane.b32.xlu0 %v3733, 40
      %v3819 = vpop.permute.xlu0 %3818
      %3820 = vrot.lane.b32.xlu0 %v3734, 40
      %v3821 = vpop.permute.xlu0 %3820
      %3822 = vrot.lane.b32.xlu0 %v3735, 40
      %v3823 = vpop.permute.xlu0 %3822
      %3824 = vrot.lane.b32.xlu0 %v3736, 40
      %v3825 = vpop.permute.xlu0 %3824
      %3826 = vrot.lane.b32.xlu0 %v3737, 40
      %v3827 = vpop.permute.xlu0 %3826
      %3828 = vrot.lane.b32.xlu0 %v3738, 40
      %v3829 = vpop.permute.xlu0 %3828
      %3830 = vrot.lane.b32.xlu0 %v3739, 40
      %v3831 = vpop.permute.xlu0 %3830
      %3832 = vrot.lane.b32.xlu0 %v3740, 40
      %v3833 = vpop.permute.xlu0 %3832
      %3834 = vrot.lane.b32.xlu0 %v3741, 40
      %v3835 = vpop.permute.xlu0 %3834
      %3836 = vrot.lane.b32.xlu0 %v3742, 40
      %v3837 = vpop.permute.xlu0 %3836
      %3838 = vrot.lane.b32.xlu0 %v3743, 40
      %v3839 = vpop.permute.xlu0 %3838
      %vm3872 = vcmask 392512
      %3873 = vst.msk [vmem:[#allocation4] sm:$0xff] %vm3872, %v3777
      %3874 = vst.msk [vmem:[#allocation4 + $0x8] sm:$0xff] %vm3872, %v3779
      %3875 = vst.msk [vmem:[#allocation4 + $0x10] sm:$0xff] %vm3872, %v3781
      %3876 = vst.msk [vmem:[#allocation4 + $0x18] sm:$0xff] %vm3872, %v3783
      %3877 = vst.msk [vmem:[#allocation4 + $0x20] sm:$0xff] %vm3872, %v3785
      %3878 = vst.msk [vmem:[#allocation4 + $0x28] sm:$0xff] %vm3872, %v3787
      %3879 = vst.msk [vmem:[#allocation4 + $0x30] sm:$0xff] %vm3872, %v3789
      %3880 = vst.msk [vmem:[#allocation4 + $0x38] sm:$0xff] %vm3872, %v3791
      %3881 = vst.msk [vmem:[#allocation4 + $0x40] sm:$0xff] %vm3872, %v3793
      %3882 = vst.msk [vmem:[#allocation4 + $0x48] sm:$0xff] %vm3872, %v3795
      %3883 = vst.msk [vmem:[#allocation4 + $0x50] sm:$0xff] %vm3872, %v3797
      %3884 = vst.msk [vmem:[#allocation4 + $0x58] sm:$0xff] %vm3872, %v3799
      %3885 = vst.msk [vmem:[#allocation4 + $0x60] sm:$0xff] %vm3872, %v3801
      %3886 = vst.msk [vmem:[#allocation4 + $0x68] sm:$0xff] %vm3872, %v3803
      %3887 = vst.msk [vmem:[#allocation4 + $0x70] sm:$0xff] %vm3872, %v3805
      %3888 = vst.msk [vmem:[#allocation4 + $0x78] sm:$0xff] %vm3872, %v3807
      %3889 = vst.msk [vmem:[#allocation4 + $0x80] sm:$0xff] %vm3872, %v3809
      %3890 = vst.msk [vmem:[#allocation4 + $0x88] sm:$0xff] %vm3872, %v3811
      %3891 = vst.msk [vmem:[#allocation4 + $0x90] sm:$0xff] %vm3872, %v3813
      %3892 = vst.msk [vmem:[#allocation4 + $0x98] sm:$0xff] %vm3872, %v3815
      %3893 = vst.msk [vmem:[#allocation4 + $0xa0] sm:$0xff] %vm3872, %v3817
      %3894 = vst.msk [vmem:[#allocation4 + $0xa8] sm:$0xff] %vm3872, %v3819
      %3895 = vst.msk [vmem:[#allocation4 + $0xb0] sm:$0xff] %vm3872, %v3821
      %3896 = vst.msk [vmem:[#allocation4 + $0xb8] sm:$0xff] %vm3872, %v3823
      %3897 = vst.msk [vmem:[#allocation4 + $0xc0] sm:$0xff] %vm3872, %v3825
      %3898 = vst.msk [vmem:[#allocation4 + $0xc8] sm:$0xff] %vm3872, %v3827
      %3899 = vst.msk [vmem:[#allocation4 + $0xd0] sm:$0xff] %vm3872, %v3829
      %3900 = vst.msk [vmem:[#allocation4 + $0xd8] sm:$0xff] %vm3872, %v3831
      %3901 = vst.msk [vmem:[#allocation4 + $0xe0] sm:$0xff] %vm3872, %v3833
      %3902 = vst.msk [vmem:[#allocation4 + $0xe8] sm:$0xff] %vm3872, %v3835
      %3903 = vst.msk [vmem:[#allocation4 + $0xf0] sm:$0xff] %vm3872, %v3837
      %3904 = vst.msk [vmem:[#allocation4 + $0xf8] sm:$0xff] %vm3872, %v3839
      %s3905 = scalar_lea.vmem [#allocation2], 48
      %v3906 = vld [vmem:[%s3905] sm:$0xff]
      %v3907 = vld [vmem:[%s3905 + $0x8] sm:$0xff]
      %v3908 = vld [vmem:[%s3905 + $0x18] sm:$0xff]
      %v3909 = vld [vmem:[%s3905 + $0x20] sm:$0xff]
      %v3910 = vld [vmem:[%s3905 + $0x30] sm:$0xff]
      %v3911 = vld [vmem:[%s3905 + $0x38] sm:$0xff]
      %v3912 = vld [vmem:[%s3905 + $0x48] sm:$0xff]
      %v3913 = vld [vmem:[%s3905 + $0x50] sm:$0xff]
      %v3914 = vld [vmem:[%s3905 + $0x60] sm:$0xff]
      %v3915 = vld [vmem:[%s3905 + $0x68] sm:$0xff]
      %v3916 = vld [vmem:[%s3905 + $0x78] sm:$0xff]
      %v3917 = vld [vmem:[%s3905 + $0x80] sm:$0xff]
      %v3918 = vld [vmem:[%s3905 + $0x90] sm:$0xff]
      %v3919 = vld [vmem:[%s3905 + $0x98] sm:$0xff]
      %v3920 = vld [vmem:[%s3905 + $0xa8] sm:$0xff]
      %v3921 = vld [vmem:[%s3905 + $0xb0] sm:$0xff]
      %v3922 = vld [vmem:[%s3905 + $0xc0] sm:$0xff]
      %v3923 = vld [vmem:[%s3905 + $0xc8] sm:$0xff]
      %v3924 = vld [vmem:[%s3905 + $0xd8] sm:$0xff]
      %v3925 = vld [vmem:[%s3905 + $0xe0] sm:$0xff]
      %v3926 = vld [vmem:[%s3905 + $0xf0] sm:$0xff]
      %v3927 = vld [vmem:[%s3905 + $0xf8] sm:$0xff]
      %v3928 = vld [vmem:[%s3905 + $0x108] sm:$0xff]
      %v3929 = vld [vmem:[%s3905 + $0x110] sm:$0xff]
      %v3930 = vld [vmem:[%s3905 + $0x120] sm:$0xff]
      %v3931 = vld [vmem:[%s3905 + $0x128] sm:$0xff]
      %v3932 = vld [vmem:[%s3905 + $0x138] sm:$0xff]
      %v3933 = vld [vmem:[%s3905 + $0x140] sm:$0xff]
      %v3934 = vld [vmem:[%s3905 + $0x150] sm:$0xff]
      %v3935 = vld [vmem:[%s3905 + $0x158] sm:$0xff]
      %v3936 = vld [vmem:[%s3905 + $0x168] sm:$0xff]
      %v3937 = vld [vmem:[%s3905 + $0x170] sm:$0xff]
      %3970 = vrot.lane.b32.xlu0 %v3906, 48
      %v3971 = vpop.permute.xlu0 %3970
      %3972 = vrot.lane.b32.xlu0 %v3907, 48
      %v3973 = vpop.permute.xlu0 %3972
      %3974 = vrot.lane.b32.xlu0 %v3908, 48
      %v3975 = vpop.permute.xlu0 %3974
      %3976 = vrot.lane.b32.xlu0 %v3909, 48
      %v3977 = vpop.permute.xlu0 %3976
      %3978 = vrot.lane.b32.xlu0 %v3910, 48
      %v3979 = vpop.permute.xlu0 %3978
      %3980 = vrot.lane.b32.xlu0 %v3911, 48
      %v3981 = vpop.permute.xlu0 %3980
      %3982 = vrot.lane.b32.xlu0 %v3912, 48
      %v3983 = vpop.permute.xlu0 %3982
      %3984 = vrot.lane.b32.xlu0 %v3913, 48
      %v3985 = vpop.permute.xlu0 %3984
      %3986 = vrot.lane.b32.xlu0 %v3914, 48
      %v3987 = vpop.permute.xlu0 %3986
      %3988 = vrot.lane.b32.xlu0 %v3915, 48
      %v3989 = vpop.permute.xlu0 %3988
      %3990 = vrot.lane.b32.xlu0 %v3916, 48
      %v3991 = vpop.permute.xlu0 %3990
      %3992 = vrot.lane.b32.xlu0 %v3917, 48
      %v3993 = vpop.permute.xlu0 %3992
      %3994 = vrot.lane.b32.xlu0 %v3918, 48
      %v3995 = vpop.permute.xlu0 %3994
      %3996 = vrot.lane.b32.xlu0 %v3919, 48
      %v3997 = vpop.permute.xlu0 %3996
      %3998 = vrot.lane.b32.xlu0 %v3920, 48
      %v3999 = vpop.permute.xlu0 %3998
      %4000 = vrot.lane.b32.xlu0 %v3921, 48
      %v4001 = vpop.permute.xlu0 %4000
      %4002 = vrot.lane.b32.xlu0 %v3922, 48
      %v4003 = vpop.permute.xlu0 %4002
      %4004 = vrot.lane.b32.xlu0 %v3923, 48
      %v4005 = vpop.permute.xlu0 %4004
      %4006 = vrot.lane.b32.xlu0 %v3924, 48
      %v4007 = vpop.permute.xlu0 %4006
      %4008 = vrot.lane.b32.xlu0 %v3925, 48
      %v4009 = vpop.permute.xlu0 %4008
      %4010 = vrot.lane.b32.xlu0 %v3926, 48
      %v4011 = vpop.permute.xlu0 %4010
      %4012 = vrot.lane.b32.xlu0 %v3927, 48
      %v4013 = vpop.permute.xlu0 %4012
      %4014 = vrot.lane.b32.xlu0 %v3928, 48
      %v4015 = vpop.permute.xlu0 %4014
      %4016 = vrot.lane.b32.xlu0 %v3929, 48
      %v4017 = vpop.permute.xlu0 %4016
      %4018 = vrot.lane.b32.xlu0 %v3930, 48
      %v4019 = vpop.permute.xlu0 %4018
      %4020 = vrot.lane.b32.xlu0 %v3931, 48
      %v4021 = vpop.permute.xlu0 %4020
      %4022 = vrot.lane.b32.xlu0 %v3932, 48
      %v4023 = vpop.permute.xlu0 %4022
      %4024 = vrot.lane.b32.xlu0 %v3933, 48
      %v4025 = vpop.permute.xlu0 %4024
      %4026 = vrot.lane.b32.xlu0 %v3934, 48
      %v4027 = vpop.permute.xlu0 %4026
      %4028 = vrot.lane.b32.xlu0 %v3935, 48
      %v4029 = vpop.permute.xlu0 %4028
      %4030 = vrot.lane.b32.xlu0 %v3936, 48
      %v4031 = vpop.permute.xlu0 %4030
      %4032 = vrot.lane.b32.xlu0 %v3937, 48
      %v4033 = vpop.permute.xlu0 %4032
      %vm4066 = vcmask 458112
      %4067 = vst.msk [vmem:[#allocation4] sm:$0xff] %vm4066, %v3971
      %4068 = vst.msk [vmem:[#allocation4 + $0x8] sm:$0xff] %vm4066, %v3973
      %4069 = vst.msk [vmem:[#allocation4 + $0x10] sm:$0xff] %vm4066, %v3975
      %4070 = vst.msk [vmem:[#allocation4 + $0x18] sm:$0xff] %vm4066, %v3977
      %4071 = vst.msk [vmem:[#allocation4 + $0x20] sm:$0xff] %vm4066, %v3979
      %4072 = vst.msk [vmem:[#allocation4 + $0x28] sm:$0xff] %vm4066, %v3981
      %4073 = vst.msk [vmem:[#allocation4 + $0x30] sm:$0xff] %vm4066, %v3983
      %4074 = vst.msk [vmem:[#allocation4 + $0x38] sm:$0xff] %vm4066, %v3985
      %4075 = vst.msk [vmem:[#allocation4 + $0x40] sm:$0xff] %vm4066, %v3987
      %4076 = vst.msk [vmem:[#allocation4 + $0x48] sm:$0xff] %vm4066, %v3989
      %4077 = vst.msk [vmem:[#allocation4 + $0x50] sm:$0xff] %vm4066, %v3991
      %4078 = vst.msk [vmem:[#allocation4 + $0x58] sm:$0xff] %vm4066, %v3993
      %4079 = vst.msk [vmem:[#allocation4 + $0x60] sm:$0xff] %vm4066, %v3995
      %4080 = vst.msk [vmem:[#allocation4 + $0x68] sm:$0xff] %vm4066, %v3997
      %4081 = vst.msk [vmem:[#allocation4 + $0x70] sm:$0xff] %vm4066, %v3999
      %4082 = vst.msk [vmem:[#allocation4 + $0x78] sm:$0xff] %vm4066, %v4001
      %4083 = vst.msk [vmem:[#allocation4 + $0x80] sm:$0xff] %vm4066, %v4003
      %4084 = vst.msk [vmem:[#allocation4 + $0x88] sm:$0xff] %vm4066, %v4005
      %4085 = vst.msk [vmem:[#allocation4 + $0x90] sm:$0xff] %vm4066, %v4007
      %4086 = vst.msk [vmem:[#allocation4 + $0x98] sm:$0xff] %vm4066, %v4009
      %4087 = vst.msk [vmem:[#allocation4 + $0xa0] sm:$0xff] %vm4066, %v4011
      %4088 = vst.msk [vmem:[#allocation4 + $0xa8] sm:$0xff] %vm4066, %v4013
      %4089 = vst.msk [vmem:[#allocation4 + $0xb0] sm:$0xff] %vm4066, %v4015
      %4090 = vst.msk [vmem:[#allocation4 + $0xb8] sm:$0xff] %vm4066, %v4017
      %4091 = vst.msk [vmem:[#allocation4 + $0xc0] sm:$0xff] %vm4066, %v4019
      %4092 = vst.msk [vmem:[#allocation4 + $0xc8] sm:$0xff] %vm4066, %v4021
      %4093 = vst.msk [vmem:[#allocation4 + $0xd0] sm:$0xff] %vm4066, %v4023
      %4094 = vst.msk [vmem:[#allocation4 + $0xd8] sm:$0xff] %vm4066, %v4025
      %4095 = vst.msk [vmem:[#allocation4 + $0xe0] sm:$0xff] %vm4066, %v4027
      %4096 = vst.msk [vmem:[#allocation4 + $0xe8] sm:$0xff] %vm4066, %v4029
      %4097 = vst.msk [vmem:[#allocation4 + $0xf0] sm:$0xff] %vm4066, %v4031
      %4098 = vst.msk [vmem:[#allocation4 + $0xf8] sm:$0xff] %vm4066, %v4033
      %v4099 = vld [vmem:[%s3905 + $0x1] sm:$0xff]
      %v4100 = vld [vmem:[%s3905 + $0x9] sm:$0xff]
      %v4101 = vld [vmem:[%s3905 + $0x19] sm:$0xff]
      %v4102 = vld [vmem:[%s3905 + $0x21] sm:$0xff]
      %v4103 = vld [vmem:[%s3905 + $0x31] sm:$0xff]
      %v4104 = vld [vmem:[%s3905 + $0x39] sm:$0xff]
      %v4105 = vld [vmem:[%s3905 + $0x49] sm:$0xff]
      %v4106 = vld [vmem:[%s3905 + $0x51] sm:$0xff]
      %v4107 = vld [vmem:[%s3905 + $0x61] sm:$0xff]
      %v4108 = vld [vmem:[%s3905 + $0x69] sm:$0xff]
      %v4109 = vld [vmem:[%s3905 + $0x79] sm:$0xff]
      %v4110 = vld [vmem:[%s3905 + $0x81] sm:$0xff]
      %v4111 = vld [vmem:[%s3905 + $0x91] sm:$0xff]
      %v4112 = vld [vmem:[%s3905 + $0x99] sm:$0xff]
      %v4113 = vld [vmem:[%s3905 + $0xa9] sm:$0xff]
      %v4114 = vld [vmem:[%s3905 + $0xb1] sm:$0xff]
      %v4115 = vld [vmem:[%s3905 + $0xc1] sm:$0xff]
      %v4116 = vld [vmem:[%s3905 + $0xc9] sm:$0xff]
      %v4117 = vld [vmem:[%s3905 + $0xd9] sm:$0xff]
      %v4118 = vld [vmem:[%s3905 + $0xe1] sm:$0xff]
      %v4119 = vld [vmem:[%s3905 + $0xf1] sm:$0xff]
      %v4120 = vld [vmem:[%s3905 + $0xf9] sm:$0xff]
      %v4121 = vld [vmem:[%s3905 + $0x109] sm:$0xff]
      %v4122 = vld [vmem:[%s3905 + $0x111] sm:$0xff]
      %v4123 = vld [vmem:[%s3905 + $0x121] sm:$0xff]
      %v4124 = vld [vmem:[%s3905 + $0x129] sm:$0xff]
      %v4125 = vld [vmem:[%s3905 + $0x139] sm:$0xff]
      %v4126 = vld [vmem:[%s3905 + $0x141] sm:$0xff]
      %v4127 = vld [vmem:[%s3905 + $0x151] sm:$0xff]
      %v4128 = vld [vmem:[%s3905 + $0x159] sm:$0xff]
      %v4129 = vld [vmem:[%s3905 + $0x169] sm:$0xff]
      %v4130 = vld [vmem:[%s3905 + $0x171] sm:$0xff]
      %4163 = vrot.lane.b32.xlu0 %v4099, 56
      %v4164 = vpop.permute.xlu0 %4163
      %4165 = vrot.lane.b32.xlu0 %v4100, 56
      %v4166 = vpop.permute.xlu0 %4165
      %4167 = vrot.lane.b32.xlu0 %v4101, 56
      %v4168 = vpop.permute.xlu0 %4167
      %4169 = vrot.lane.b32.xlu0 %v4102, 56
      %v4170 = vpop.permute.xlu0 %4169
      %4171 = vrot.lane.b32.xlu0 %v4103, 56
      %v4172 = vpop.permute.xlu0 %4171
      %4173 = vrot.lane.b32.xlu0 %v4104, 56
      %v4174 = vpop.permute.xlu0 %4173
      %4175 = vrot.lane.b32.xlu0 %v4105, 56
      %v4176 = vpop.permute.xlu0 %4175
      %4177 = vrot.lane.b32.xlu0 %v4106, 56
      %v4178 = vpop.permute.xlu0 %4177
      %4179 = vrot.lane.b32.xlu0 %v4107, 56
      %v4180 = vpop.permute.xlu0 %4179
      %4181 = vrot.lane.b32.xlu0 %v4108, 56
      %v4182 = vpop.permute.xlu0 %4181
      %4183 = vrot.lane.b32.xlu0 %v4109, 56
      %v4184 = vpop.permute.xlu0 %4183
      %4185 = vrot.lane.b32.xlu0 %v4110, 56
      %v4186 = vpop.permute.xlu0 %4185
      %4187 = vrot.lane.b32.xlu0 %v4111, 56
      %v4188 = vpop.permute.xlu0 %4187
      %4189 = vrot.lane.b32.xlu0 %v4112, 56
      %v4190 = vpop.permute.xlu0 %4189
      %4191 = vrot.lane.b32.xlu0 %v4113, 56
      %v4192 = vpop.permute.xlu0 %4191
      %4193 = vrot.lane.b32.xlu0 %v4114, 56
      %v4194 = vpop.permute.xlu0 %4193
      %4195 = vrot.lane.b32.xlu0 %v4115, 56
      %v4196 = vpop.permute.xlu0 %4195
      %4197 = vrot.lane.b32.xlu0 %v4116, 56
      %v4198 = vpop.permute.xlu0 %4197
      %4199 = vrot.lane.b32.xlu0 %v4117, 56
      %v4200 = vpop.permute.xlu0 %4199
      %4201 = vrot.lane.b32.xlu0 %v4118, 56
      %v4202 = vpop.permute.xlu0 %4201
      %4203 = vrot.lane.b32.xlu0 %v4119, 56
      %v4204 = vpop.permute.xlu0 %4203
      %4205 = vrot.lane.b32.xlu0 %v4120, 56
      %v4206 = vpop.permute.xlu0 %4205
      %4207 = vrot.lane.b32.xlu0 %v4121, 56
      %v4208 = vpop.permute.xlu0 %4207
      %4209 = vrot.lane.b32.xlu0 %v4122, 56
      %v4210 = vpop.permute.xlu0 %4209
      %4211 = vrot.lane.b32.xlu0 %v4123, 56
      %v4212 = vpop.permute.xlu0 %4211
      %4213 = vrot.lane.b32.xlu0 %v4124, 56
      %v4214 = vpop.permute.xlu0 %4213
      %4215 = vrot.lane.b32.xlu0 %v4125, 56
      %v4216 = vpop.permute.xlu0 %4215
      %4217 = vrot.lane.b32.xlu0 %v4126, 56
      %v4218 = vpop.permute.xlu0 %4217
      %4219 = vrot.lane.b32.xlu0 %v4127, 56
      %v4220 = vpop.permute.xlu0 %4219
      %4221 = vrot.lane.b32.xlu0 %v4128, 56
      %v4222 = vpop.permute.xlu0 %4221
      %4223 = vrot.lane.b32.xlu0 %v4129, 56
      %v4224 = vpop.permute.xlu0 %4223
      %4225 = vrot.lane.b32.xlu0 %v4130, 56
      %v4226 = vpop.permute.xlu0 %4225
      %vm4259 = vcmask 523712
      %4260 = vst.msk [vmem:[#allocation4] sm:$0xff] %vm4259, %v4164
      %4261 = vst.msk [vmem:[#allocation4 + $0x8] sm:$0xff] %vm4259, %v4166
      %4262 = vst.msk [vmem:[#allocation4 + $0x10] sm:$0xff] %vm4259, %v4168
      %4263 = vst.msk [vmem:[#allocation4 + $0x18] sm:$0xff] %vm4259, %v4170
      %4264 = vst.msk [vmem:[#allocation4 + $0x20] sm:$0xff] %vm4259, %v4172
      %4265 = vst.msk [vmem:[#allocation4 + $0x28] sm:$0xff] %vm4259, %v4174
      %4266 = vst.msk [vmem:[#allocation4 + $0x30] sm:$0xff] %vm4259, %v4176
      %4267 = vst.msk [vmem:[#allocation4 + $0x38] sm:$0xff] %vm4259, %v4178
      %4268 = vst.msk [vmem:[#allocation4 + $0x40] sm:$0xff] %vm4259, %v4180
      %4269 = vst.msk [vmem:[#allocation4 + $0x48] sm:$0xff] %vm4259, %v4182
      %4270 = vst.msk [vmem:[#allocation4 + $0x50] sm:$0xff] %vm4259, %v4184
      %4271 = vst.msk [vmem:[#allocation4 + $0x58] sm:$0xff] %vm4259, %v4186
      %4272 = vst.msk [vmem:[#allocation4 + $0x60] sm:$0xff] %vm4259, %v4188
      %4273 = vst.msk [vmem:[#allocation4 + $0x68] sm:$0xff] %vm4259, %v4190
      %4274 = vst.msk [vmem:[#allocation4 + $0x70] sm:$0xff] %vm4259, %v4192
      %4275 = vst.msk [vmem:[#allocation4 + $0x78] sm:$0xff] %vm4259, %v4194
      %4276 = vst.msk [vmem:[#allocation4 + $0x80] sm:$0xff] %vm4259, %v4196
      %4277 = vst.msk [vmem:[#allocation4 + $0x88] sm:$0xff] %vm4259, %v4198
      %4278 = vst.msk [vmem:[#allocation4 + $0x90] sm:$0xff] %vm4259, %v4200
      %4279 = vst.msk [vmem:[#allocation4 + $0x98] sm:$0xff] %vm4259, %v4202
      %4280 = vst.msk [vmem:[#allocation4 + $0xa0] sm:$0xff] %vm4259, %v4204
      %4281 = vst.msk [vmem:[#allocation4 + $0xa8] sm:$0xff] %vm4259, %v4206
      %4282 = vst.msk [vmem:[#allocation4 + $0xb0] sm:$0xff] %vm4259, %v4208
      %4283 = vst.msk [vmem:[#allocation4 + $0xb8] sm:$0xff] %vm4259, %v4210
      %4284 = vst.msk [vmem:[#allocation4 + $0xc0] sm:$0xff] %vm4259, %v4212
      %4285 = vst.msk [vmem:[#allocation4 + $0xc8] sm:$0xff] %vm4259, %v4214
      %4286 = vst.msk [vmem:[#allocation4 + $0xd0] sm:$0xff] %vm4259, %v4216
      %4287 = vst.msk [vmem:[#allocation4 + $0xd8] sm:$0xff] %vm4259, %v4218
      %4288 = vst.msk [vmem:[#allocation4 + $0xe0] sm:$0xff] %vm4259, %v4220
      %4289 = vst.msk [vmem:[#allocation4 + $0xe8] sm:$0xff] %vm4259, %v4222
      %4290 = vst.msk [vmem:[#allocation4 + $0xf0] sm:$0xff] %vm4259, %v4224
      %4291 = vst.msk [vmem:[#allocation4 + $0xf8] sm:$0xff] %vm4259, %v4226
      %v4292 = vld [vmem:[%s3905 + $0x2] sm:$0xff]
      %v4293 = vld [vmem:[%s3905 + $0xa] sm:$0xff]
      %v4294 = vld [vmem:[%s3905 + $0x1a] sm:$0xff]
      %v4295 = vld [vmem:[%s3905 + $0x22] sm:$0xff]
      %v4296 = vld [vmem:[%s3905 + $0x32] sm:$0xff]
      %v4297 = vld [vmem:[%s3905 + $0x3a] sm:$0xff]
      %v4298 = vld [vmem:[%s3905 + $0x4a] sm:$0xff]
      %v4299 = vld [vmem:[%s3905 + $0x52] sm:$0xff]
      %v4300 = vld [vmem:[%s3905 + $0x62] sm:$0xff]
      %v4301 = vld [vmem:[%s3905 + $0x6a] sm:$0xff]
      %v4302 = vld [vmem:[%s3905 + $0x7a] sm:$0xff]
      %v4303 = vld [vmem:[%s3905 + $0x82] sm:$0xff]
      %v4304 = vld [vmem:[%s3905 + $0x92] sm:$0xff]
      %v4305 = vld [vmem:[%s3905 + $0x9a] sm:$0xff]
      %v4306 = vld [vmem:[%s3905 + $0xaa] sm:$0xff]
      %v4307 = vld [vmem:[%s3905 + $0xb2] sm:$0xff]
      %v4308 = vld [vmem:[%s3905 + $0xc2] sm:$0xff]
      %v4309 = vld [vmem:[%s3905 + $0xca] sm:$0xff]
      %v4310 = vld [vmem:[%s3905 + $0xda] sm:$0xff]
      %v4311 = vld [vmem:[%s3905 + $0xe2] sm:$0xff]
      %v4312 = vld [vmem:[%s3905 + $0xf2] sm:$0xff]
      %v4313 = vld [vmem:[%s3905 + $0xfa] sm:$0xff]
      %v4314 = vld [vmem:[%s3905 + $0x10a] sm:$0xff]
      %v4315 = vld [vmem:[%s3905 + $0x112] sm:$0xff]
      %v4316 = vld [vmem:[%s3905 + $0x122] sm:$0xff]
      %v4317 = vld [vmem:[%s3905 + $0x12a] sm:$0xff]
      %v4318 = vld [vmem:[%s3905 + $0x13a] sm:$0xff]
      %v4319 = vld [vmem:[%s3905 + $0x142] sm:$0xff]
      %v4320 = vld [vmem:[%s3905 + $0x152] sm:$0xff]
      %v4321 = vld [vmem:[%s3905 + $0x15a] sm:$0xff]
      %v4322 = vld [vmem:[%s3905 + $0x16a] sm:$0xff]
      %v4323 = vld [vmem:[%s3905 + $0x172] sm:$0xff]
      %4356 = vrot.lane.b32.xlu0 %v4292, 64
      %v4357 = vpop.permute.xlu0 %4356
      %4358 = vrot.lane.b32.xlu0 %v4293, 64
      %v4359 = vpop.permute.xlu0 %4358
      %4360 = vrot.lane.b32.xlu0 %v4294, 64
      %v4361 = vpop.permute.xlu0 %4360
      %4362 = vrot.lane.b32.xlu0 %v4295, 64
      %v4363 = vpop.permute.xlu0 %4362
      %4364 = vrot.lane.b32.xlu0 %v4296, 64
      %v4365 = vpop.permute.xlu0 %4364
      %4366 = vrot.lane.b32.xlu0 %v4297, 64
      %v4367 = vpop.permute.xlu0 %4366
      %4368 = vrot.lane.b32.xlu0 %v4298, 64
      %v4369 = vpop.permute.xlu0 %4368
      %4370 = vrot.lane.b32.xlu0 %v4299, 64
      %v4371 = vpop.permute.xlu0 %4370
      %4372 = vrot.lane.b32.xlu0 %v4300, 64
      %v4373 = vpop.permute.xlu0 %4372
      %4374 = vrot.lane.b32.xlu0 %v4301, 64
      %v4375 = vpop.permute.xlu0 %4374
      %4376 = vrot.lane.b32.xlu0 %v4302, 64
      %v4377 = vpop.permute.xlu0 %4376
      %4378 = vrot.lane.b32.xlu0 %v4303, 64
      %v4379 = vpop.permute.xlu0 %4378
      %4380 = vrot.lane.b32.xlu0 %v4304, 64
      %v4381 = vpop.permute.xlu0 %4380
      %4382 = vrot.lane.b32.xlu0 %v4305, 64
      %v4383 = vpop.permute.xlu0 %4382
      %4384 = vrot.lane.b32.xlu0 %v4306, 64
      %v4385 = vpop.permute.xlu0 %4384
      %4386 = vrot.lane.b32.xlu0 %v4307, 64
      %v4387 = vpop.permute.xlu0 %4386
      %4388 = vrot.lane.b32.xlu0 %v4308, 64
      %v4389 = vpop.permute.xlu0 %4388
      %4390 = vrot.lane.b32.xlu0 %v4309, 64
      %v4391 = vpop.permute.xlu0 %4390
      %4392 = vrot.lane.b32.xlu0 %v4310, 64
      %v4393 = vpop.permute.xlu0 %4392
      %4394 = vrot.lane.b32.xlu0 %v4311, 64
      %v4395 = vpop.permute.xlu0 %4394
      %4396 = vrot.lane.b32.xlu0 %v4312, 64
      %v4397 = vpop.permute.xlu0 %4396
      %4398 = vrot.lane.b32.xlu0 %v4313, 64
      %v4399 = vpop.permute.xlu0 %4398
      %4400 = vrot.lane.b32.xlu0 %v4314, 64
      %v4401 = vpop.permute.xlu0 %4400
      %4402 = vrot.lane.b32.xlu0 %v4315, 64
      %v4403 = vpop.permute.xlu0 %4402
      %4404 = vrot.lane.b32.xlu0 %v4316, 64
      %v4405 = vpop.permute.xlu0 %4404
      %4406 = vrot.lane.b32.xlu0 %v4317, 64
      %v4407 = vpop.permute.xlu0 %4406
      %4408 = vrot.lane.b32.xlu0 %v4318, 64
      %v4409 = vpop.permute.xlu0 %4408
      %4410 = vrot.lane.b32.xlu0 %v4319, 64
      %v4411 = vpop.permute.xlu0 %4410
      %4412 = vrot.lane.b32.xlu0 %v4320, 64
      %v4413 = vpop.permute.xlu0 %4412
      %4414 = vrot.lane.b32.xlu0 %v4321, 64
      %v4415 = vpop.permute.xlu0 %4414
      %4416 = vrot.lane.b32.xlu0 %v4322, 64
      %v4417 = vpop.permute.xlu0 %4416
      %4418 = vrot.lane.b32.xlu0 %v4323, 64
      %v4419 = vpop.permute.xlu0 %4418
      %vm4452 = vcmask 589312
      %4453 = vst.msk [vmem:[#allocation4] sm:$0xff] %vm4452, %v4357
      %4454 = vst.msk [vmem:[#allocation4 + $0x8] sm:$0xff] %vm4452, %v4359
      %4455 = vst.msk [vmem:[#allocation4 + $0x10] sm:$0xff] %vm4452, %v4361
      %4456 = vst.msk [vmem:[#allocation4 + $0x18] sm:$0xff] %vm4452, %v4363
      %4457 = vst.msk [vmem:[#allocation4 + $0x20] sm:$0xff] %vm4452, %v4365
      %4458 = vst.msk [vmem:[#allocation4 + $0x28] sm:$0xff] %vm4452, %v4367
      %4459 = vst.msk [vmem:[#allocation4 + $0x30] sm:$0xff] %vm4452, %v4369
      %4460 = vst.msk [vmem:[#allocation4 + $0x38] sm:$0xff] %vm4452, %v4371
      %4461 = vst.msk [vmem:[#allocation4 + $0x40] sm:$0xff] %vm4452, %v4373
      %4462 = vst.msk [vmem:[#allocation4 + $0x48] sm:$0xff] %vm4452, %v4375
      %4463 = vst.msk [vmem:[#allocation4 + $0x50] sm:$0xff] %vm4452, %v4377
      %4464 = vst.msk [vmem:[#allocation4 + $0x58] sm:$0xff] %vm4452, %v4379
      %4465 = vst.msk [vmem:[#allocation4 + $0x60] sm:$0xff] %vm4452, %v4381
      %4466 = vst.msk [vmem:[#allocation4 + $0x68] sm:$0xff] %vm4452, %v4383
      %4467 = vst.msk [vmem:[#allocation4 + $0x70] sm:$0xff] %vm4452, %v4385
      %4468 = vst.msk [vmem:[#allocation4 + $0x78] sm:$0xff] %vm4452, %v4387
      %4469 = vst.msk [vmem:[#allocation4 + $0x80] sm:$0xff] %vm4452, %v4389
      %4470 = vst.msk [vmem:[#allocation4 + $0x88] sm:$0xff] %vm4452, %v4391
      %4471 = vst.msk [vmem:[#allocation4 + $0x90] sm:$0xff] %vm4452, %v4393
      %4472 = vst.msk [vmem:[#allocation4 + $0x98] sm:$0xff] %vm4452, %v4395
      %4473 = vst.msk [vmem:[#allocation4 + $0xa0] sm:$0xff] %vm4452, %v4397
      %4474 = vst.msk [vmem:[#allocation4 + $0xa8] sm:$0xff] %vm4452, %v4399
      %4475 = vst.msk [vmem:[#allocation4 + $0xb0] sm:$0xff] %vm4452, %v4401
      %4476 = vst.msk [vmem:[#allocation4 + $0xb8] sm:$0xff] %vm4452, %v4403
      %4477 = vst.msk [vmem:[#allocation4 + $0xc0] sm:$0xff] %vm4452, %v4405
      %4478 = vst.msk [vmem:[#allocation4 + $0xc8] sm:$0xff] %vm4452, %v4407
      %4479 = vst.msk [vmem:[#allocation4 + $0xd0] sm:$0xff] %vm4452, %v4409
      %4480 = vst.msk [vmem:[#allocation4 + $0xd8] sm:$0xff] %vm4452, %v4411
      %4481 = vst.msk [vmem:[#allocation4 + $0xe0] sm:$0xff] %vm4452, %v4413
      %4482 = vst.msk [vmem:[#allocation4 + $0xe8] sm:$0xff] %vm4452, %v4415
      %4483 = vst.msk [vmem:[#allocation4 + $0xf0] sm:$0xff] %vm4452, %v4417
      %4484 = vst.msk [vmem:[#allocation4 + $0xf8] sm:$0xff] %vm4452, %v4419
      %v4485 = vld [vmem:[#allocation4] sm:$0xff]
      %v4486 = vld [vmem:[#allocation4 + $0x8] sm:$0xff]
      %v4487 = vld [vmem:[#allocation4 + $0x10] sm:$0xff]
      %v4488 = vld [vmem:[#allocation4 + $0x18] sm:$0xff]
      %v4489 = vld [vmem:[#allocation4 + $0x20] sm:$0xff]
      %v4490 = vld [vmem:[#allocation4 + $0x28] sm:$0xff]
      %v4491 = vld [vmem:[#allocation4 + $0x30] sm:$0xff]
      %v4492 = vld [vmem:[#allocation4 + $0x38] sm:$0xff]
      %v4493 = vld [vmem:[#allocation4 + $0x40] sm:$0xff]
      %v4494 = vld [vmem:[#allocation4 + $0x48] sm:$0xff]
      %v4495 = vld [vmem:[#allocation4 + $0x50] sm:$0xff]
      %v4496 = vld [vmem:[#allocation4 + $0x58] sm:$0xff]
      %v4497 = vld [vmem:[#allocation4 + $0x60] sm:$0xff]
      %v4498 = vld [vmem:[#allocation4 + $0x68] sm:$0xff]
      %v4499 = vld [vmem:[#allocation4 + $0x70] sm:$0xff]
      %v4500 = vld [vmem:[#allocation4 + $0x78] sm:$0xff]
      %v4501 = vld [vmem:[#allocation4 + $0x80] sm:$0xff]
      %v4502 = vld [vmem:[#allocation4 + $0x88] sm:$0xff]
      %v4503 = vld [vmem:[#allocation4 + $0x90] sm:$0xff]
      %v4504 = vld [vmem:[#allocation4 + $0x98] sm:$0xff]
      %v4505 = vld [vmem:[#allocation4 + $0xa0] sm:$0xff]
      %v4506 = vld [vmem:[#allocation4 + $0xa8] sm:$0xff]
      %v4507 = vld [vmem:[#allocation4 + $0xb0] sm:$0xff]
      %v4508 = vld [vmem:[#allocation4 + $0xb8] sm:$0xff]
      %v4509 = vld [vmem:[#allocation4 + $0xc0] sm:$0xff]
      %v4510 = vld [vmem:[#allocation4 + $0xc8] sm:$0xff]
      %v4511 = vld [vmem:[#allocation4 + $0xd0] sm:$0xff]
      %v4512 = vld [vmem:[#allocation4 + $0xd8] sm:$0xff]
      %v4513 = vld [vmem:[#allocation4 + $0xe0] sm:$0xff]
      %v4514 = vld [vmem:[#allocation4 + $0xe8] sm:$0xff]
      %v4515 = vld [vmem:[#allocation4 + $0xf0] sm:$0xff]
      %v4516 = vld [vmem:[#allocation4 + $0xf8] sm:$0xff]
      %v4517 = vld [vmem:[%s4] sm:$0xff]
      %v4518 = vld [vmem:[%s4 + $0x8] sm:$0xff]
      %v4519 = vld [vmem:[%s4 + $0x10] sm:$0xff]
      %v4520 = vld [vmem:[%s4 + $0x18] sm:$0xff]
      %v4521 = vld [vmem:[%s4 + $0x20] sm:$0xff]
      %v4522 = vld [vmem:[%s4 + $0x28] sm:$0xff]
      %v4523 = vld [vmem:[%s4 + $0x30] sm:$0xff]
      %v4524 = vld [vmem:[%s4 + $0x38] sm:$0xff]
      %v4525 = vld [vmem:[%s4 + $0x40] sm:$0xff]
      %v4526 = vld [vmem:[%s5] sm:$0x1]
      %v4528 = vlaneseq
      %v4529 = vshrl.u32 %v4528, 7
      %v4530 = vsub.s32 0, %v4529
      %v4531 = vrot.slane %v4526, %v4530
      %vm4533 = vcmask 588800
      %v4535 = vsel %vm4533, %v4485, 0
      %v4538 = vsel %vm4533, %v4486, 0
      %v4541 = vsel %vm4533, %v4487, 0
      %v4544 = vsel %vm4533, %v4488, 0
      %v4547 = vsel %vm4533, %v4489, 0
      %v4550 = vsel %vm4533, %v4490, 0
      %v4553 = vsel %vm4533, %v4491, 0
      %v4556 = vsel %vm4533, %v4492, 0
      %v4559 = vsel %vm4533, %v4493, 0
      %v4562 = vsel %vm4533, %v4494, 0
      %v4565 = vsel %vm4533, %v4495, 0
      %v4568 = vsel %vm4533, %v4496, 0
      %v4571 = vsel %vm4533, %v4497, 0
      %v4574 = vsel %vm4533, %v4498, 0
      %v4577 = vsel %vm4533, %v4499, 0
      %v4580 = vsel %vm4533, %v4500, 0
      %v4583 = vsel %vm4533, %v4501, 0
      %v4586 = vsel %vm4533, %v4502, 0
      %v4589 = vsel %vm4533, %v4503, 0
      %v4592 = vsel %vm4533, %v4504, 0
      %v4595 = vsel %vm4533, %v4505, 0
      %v4598 = vsel %vm4533, %v4506, 0
      %v4601 = vsel %vm4533, %v4507, 0
      %v4604 = vsel %vm4533, %v4508, 0
      %v4607 = vsel %vm4533, %v4509, 0
      %v4610 = vsel %vm4533, %v4510, 0
      %v4613 = vsel %vm4533, %v4511, 0
      %v4616 = vsel %vm4533, %v4512, 0
      %v4619 = vsel %vm4533, %v4513, 0
      %v4622 = vsel %vm4533, %v4514, 0
      %v4625 = vsel %vm4533, %v4515, 0
      %v4628 = vsel %vm4533, %v4516, 0
      %4630 = vmatprep.subr.mxu0 0.0
      %4631 = vmatpush1.msra.mxu0 %v4517
      %4632 = vmatprep.subr.mxu0 0.0
      %4633 = vmatpush1.msra.mxu0 %v4518
      %4634 = vmatprep.subr.mxu0 0.0
      %4635 = vmatpush1.msra.mxu0 %v4519
      %4636 = vmatprep.subr.mxu0 0.0
      %4637 = vmatpush1.msra.mxu0 %v4520
      %4638 = vmatprep.subr.mxu0 0.0
      %4639 = vmatpush1.msra.mxu0 %v4521
      %4640 = vmatprep.subr.mxu0 0.0
      %4641 = vmatpush1.msra.mxu0 %v4522
      %4642 = vmatprep.subr.mxu0 0.0
      %4643 = vmatpush1.msra.mxu0 %v4523
      %4644 = vmatprep.subr.mxu0 0.0
      %4645 = vmatpush1.msra.mxu0 %v4524
      %4646 = vmatprep.subr.mxu0 0.0
      %4647 = vmatpush1.msra.mxu0 %v4525
      %4648 = vmatprep.subr.mxu0 0.0
      %4649 = vmatpush1.msra.mxu0 0.0
      %4650 = vmatprep.subr.mxu0 0.0
      %4651 = vmatpush1.msra.mxu0 0.0
      %4652 = vmatprep.subr.mxu0 0.0
      %4653 = vmatpush1.msra.mxu0 0.0
      %4654 = vmatprep.subr.mxu0 0.0
      %4655 = vmatpush1.msra.mxu0 0.0
      %4656 = vmatprep.subr.mxu0 0.0
      %4657 = vmatpush1.msra.mxu0 0.0
      %4658 = vmatprep.subr.mxu0 0.0
      %4659 = vmatpush1.msra.mxu0 0.0
      %4660 = vmatprep.subr.mxu0 0.0
      %4661 = vmatpush1.msra.mxu0 0.0
      %4662 = vmatprep.subr.mxu0 0.0
      %4663 = vmatpush1.msra.mxu0 0.0
      %4664 = vmatprep.subr.mxu0 0.0
      %4665 = vmatpush1.msra.mxu0 0.0
      %4666 = vmatprep.subr.mxu0 0.0
      %4667 = vmatpush1.msra.mxu0 0.0
      %4668 = vmatprep.subr.mxu0 0.0
      %4669 = vmatpush1.msra.mxu0 0.0
      %4670 = vmatprep.subr.mxu0 0.0
      %4671 = vmatpush1.msra.mxu0 0.0
      %4672 = vmatprep.subr.mxu0 0.0
      %4673 = vmatpush1.msra.mxu0 0.0
      %4674 = vmatprep.subr.mxu0 0.0
      %4675 = vmatpush1.msra.mxu0 0.0
      %4676 = vmatprep.subr.mxu0 0.0
      %4677 = vmatpush1.msra.mxu0 0.0
      %4678 = vmatprep.subr.mxu0 0.0
      %4679 = vmatpush1.msra.mxu0 0.0
      %4680 = vmatprep.subr.mxu0 0.0
      %4681 = vmatpush1.msra.mxu0 0.0
      %4682 = vmatprep.subr.mxu0 0.0
      %4683 = vmatpush1.msra.mxu0 0.0
      %4684 = vmatprep.subr.mxu0 0.0
      %4685 = vmatpush1.msra.mxu0 0.0
      %4686 = vmatprep.subr.mxu0 0.0
      %4687 = vmatpush1.msra.mxu0 0.0
      %4688 = vmatprep.subr.mxu0 0.0
      %4689 = vmatpush1.msra.mxu0 0.0
      %4690 = vmatprep.subr.mxu0 0.0
      %4691 = vmatpush1.msra.mxu0 0.0
      %4692 = vmatprep.subr.mxu0 0.0
      %4693 = vmatpush1.msra.mxu0 0.0
      %4694 = vmatprep.mubr.f32.mxu0 0.0
      %4695 = vmatmul.mubr.f32.gmra.mrb[0].mxu0 %v4535
      %v4696 = vpop.f32.mrb[0].mxu0
      %v4697 = vadd.f32 %v4531, %v4696
      %v4698 = vpop.f32.mrb[0].mxu0
      %4699 = vmatprep.mubr.f32.mxu0 0.0
      %4700 = vmatmul.mubr.f32.gmra.mrb[0].mxu0 %v4538
      %v4701 = vpop.f32.mrb[0].mxu0
      %v4702 = vadd.f32 %v4531, %v4701
      %v4703 = vpop.f32.mrb[0].mxu0
      %4704 = vmatprep.mubr.f32.mxu0 0.0
      %4705 = vmatmul.mubr.f32.gmra.mrb[0].mxu0 %v4541
      %v4706 = vpop.f32.mrb[0].mxu0
      %v4707 = vadd.f32 %v4531, %v4706
      %v4708 = vpop.f32.mrb[0].mxu0
      %4709 = vmatprep.mubr.f32.mxu0 0.0
      %4710 = vmatmul.mubr.f32.gmra.mrb[0].mxu0 %v4544
      %v4711 = vpop.f32.mrb[0].mxu0
      %v4712 = vadd.f32 %v4531, %v4711
      %v4713 = vpop.f32.mrb[0].mxu0
      %4714 = vmatprep.mubr.f32.mxu0 0.0
      %4715 = vmatmul.mubr.f32.gmra.mrb[0].mxu0 %v4547
      %v4716 = vpop.f32.mrb[0].mxu0
      %v4717 = vadd.f32 %v4531, %v4716
      %v4718 = vpop.f32.mrb[0].mxu0
      %4719 = vmatprep.mubr.f32.mxu0 0.0
      %4720 = vmatmul.mubr.f32.gmra.mrb[0].mxu0 %v4550
      %v4721 = vpop.f32.mrb[0].mxu0
      %v4722 = vadd.f32 %v4531, %v4721
      %v4723 = vpop.f32.mrb[0].mxu0
      %4724 = vmatprep.mubr.f32.mxu0 0.0
      %4725 = vmatmul.mubr.f32.gmra.mrb[0].mxu0 %v4553
      %v4726 = vpop.f32.mrb[0].mxu0
      %v4727 = vadd.f32 %v4531, %v4726
      %v4728 = vpop.f32.mrb[0].mxu0
      %4729 = vmatprep.mubr.f32.mxu0 0.0
      %4730 = vmatmul.mubr.f32.gmra.mrb[0].mxu0 %v4556
      %v4731 = vpop.f32.mrb[0].mxu0
      %v4732 = vadd.f32 %v4531, %v4731
      %v4733 = vpop.f32.mrb[0].mxu0
      %4734 = vmatprep.mubr.f32.mxu0 0.0
      %4735 = vmatmul.mubr.f32.gmra.mrb[0].mxu0 %v4559
      %v4736 = vpop.f32.mrb[0].mxu0
      %v4737 = vadd.f32 %v4531, %v4736
      %v4738 = vpop.f32.mrb[0].mxu0
      %4739 = vmatprep.mubr.f32.mxu0 0.0
      %4740 = vmatmul.mubr.f32.gmra.mrb[0].mxu0 %v4562
      %v4741 = vpop.f32.mrb[0].mxu0
      %v4742 = vadd.f32 %v4531, %v4741
      %v4743 = vpop.f32.mrb[0].mxu0
      %4744 = vmatprep.mubr.f32.mxu0 0.0
      %4745 = vmatmul.mubr.f32.gmra.mrb[0].mxu0 %v4565
      %v4746 = vpop.f32.mrb[0].mxu0
      %v4747 = vadd.f32 %v4531, %v4746
      %v4748 = vpop.f32.mrb[0].mxu0
      %4749 = vmatprep.mubr.f32.mxu0 0.0
      %4750 = vmatmul.mubr.f32.gmra.mrb[0].mxu0 %v4568
      %v4751 = vpop.f32.mrb[0].mxu0
      %v4752 = vadd.f32 %v4531, %v4751
      %v4753 = vpop.f32.mrb[0].mxu0
      %4754 = vmatprep.mubr.f32.mxu0 0.0
      %4755 = vmatmul.mubr.f32.gmra.mrb[0].mxu0 %v4571
      %v4756 = vpop.f32.mrb[0].mxu0
      %v4757 = vadd.f32 %v4531, %v4756
      %v4758 = vpop.f32.mrb[0].mxu0
      %4759 = vmatprep.mubr.f32.mxu0 0.0
      %4760 = vmatmul.mubr.f32.gmra.mrb[0].mxu0 %v4574
      %v4761 = vpop.f32.mrb[0].mxu0
      %v4762 = vadd.f32 %v4531, %v4761
      %v4763 = vpop.f32.mrb[0].mxu0
      %4764 = vmatprep.mubr.f32.mxu0 0.0
      %4765 = vmatmul.mubr.f32.gmra.mrb[0].mxu0 %v4577
      %v4766 = vpop.f32.mrb[0].mxu0
      %v4767 = vadd.f32 %v4531, %v4766
      %v4768 = vpop.f32.mrb[0].mxu0
      %4769 = vmatprep.mubr.f32.mxu0 0.0
      %4770 = vmatmul.mubr.f32.gmra.mrb[0].mxu0 %v4580
      %v4771 = vpop.f32.mrb[0].mxu0
      %v4772 = vadd.f32 %v4531, %v4771
      %v4773 = vpop.f32.mrb[0].mxu0
      %4774 = vmatprep.mubr.f32.mxu0 0.0
      %4775 = vmatmul.mubr.f32.gmra.mrb[0].mxu0 %v4583
      %v4776 = vpop.f32.mrb[0].mxu0
      %v4777 = vadd.f32 %v4531, %v4776
      %v4778 = vpop.f32.mrb[0].mxu0
      %4779 = vmatprep.mubr.f32.mxu0 0.0
      %4780 = vmatmul.mubr.f32.gmra.mrb[0].mxu0 %v4586
      %v4781 = vpop.f32.mrb[0].mxu0
      %v4782 = vadd.f32 %v4531, %v4781
      %v4783 = vpop.f32.mrb[0].mxu0
      %4784 = vmatprep.mubr.f32.mxu0 0.0
      %4785 = vmatmul.mubr.f32.gmra.mrb[0].mxu0 %v4589
      %v4786 = vpop.f32.mrb[0].mxu0
      %v4787 = vadd.f32 %v4531, %v4786
      %v4788 = vpop.f32.mrb[0].mxu0
      %4789 = vmatprep.mubr.f32.mxu0 0.0
      %4790 = vmatmul.mubr.f32.gmra.mrb[0].mxu0 %v4592
      %v4791 = vpop.f32.mrb[0].mxu0
      %v4792 = vadd.f32 %v4531, %v4791
      %v4793 = vpop.f32.mrb[0].mxu0
      %4794 = vmatprep.mubr.f32.mxu0 0.0
      %4795 = vmatmul.mubr.f32.gmra.mrb[0].mxu0 %v4595
      %v4796 = vpop.f32.mrb[0].mxu0
      %v4797 = vadd.f32 %v4531, %v4796
      %v4798 = vpop.f32.mrb[0].mxu0
      %4799 = vmatprep.mubr.f32.mxu0 0.0
      %4800 = vmatmul.mubr.f32.gmra.mrb[0].mxu0 %v4598
      %v4801 = vpop.f32.mrb[0].mxu0
      %v4802 = vadd.f32 %v4531, %v4801
      %v4803 = vpop.f32.mrb[0].mxu0
      %4804 = vmatprep.mubr.f32.mxu0 0.0
      %4805 = vmatmul.mubr.f32.gmra.mrb[0].mxu0 %v4601
      %v4806 = vpop.f32.mrb[0].mxu0
      %v4807 = vadd.f32 %v4531, %v4806
      %v4808 = vpop.f32.mrb[0].mxu0
      %4809 = vmatprep.mubr.f32.mxu0 0.0
      %4810 = vmatmul.mubr.f32.gmra.mrb[0].mxu0 %v4604
      %v4811 = vpop.f32.mrb[0].mxu0
      %v4812 = vadd.f32 %v4531, %v4811
      %v4813 = vpop.f32.mrb[0].mxu0
      %4814 = vmatprep.mubr.f32.mxu0 0.0
      %4815 = vmatmul.mubr.f32.gmra.mrb[0].mxu0 %v4607
      %v4816 = vpop.f32.mrb[0].mxu0
      %v4817 = vadd.f32 %v4531, %v4816
      %v4818 = vpop.f32.mrb[0].mxu0
      %4819 = vmatprep.mubr.f32.mxu0 0.0
      %4820 = vmatmul.mubr.f32.gmra.mrb[0].mxu0 %v4610
      %v4821 = vpop.f32.mrb[0].mxu0
      %v4822 = vadd.f32 %v4531, %v4821
      %v4823 = vpop.f32.mrb[0].mxu0
      %4824 = vmatprep.mubr.f32.mxu0 0.0
      %4825 = vmatmul.mubr.f32.gmra.mrb[0].mxu0 %v4613
      %v4826 = vpop.f32.mrb[0].mxu0
      %v4827 = vadd.f32 %v4531, %v4826
      %v4828 = vpop.f32.mrb[0].mxu0
      %4829 = vmatprep.mubr.f32.mxu0 0.0
      %4830 = vmatmul.mubr.f32.gmra.mrb[0].mxu0 %v4616
      %v4831 = vpop.f32.mrb[0].mxu0
      %v4832 = vadd.f32 %v4531, %v4831
      %v4833 = vpop.f32.mrb[0].mxu0
      %4834 = vmatprep.mubr.f32.mxu0 0.0
      %4835 = vmatmul.mubr.f32.gmra.mrb[0].mxu0 %v4619
      %v4836 = vpop.f32.mrb[0].mxu0
      %v4837 = vadd.f32 %v4531, %v4836
      %v4838 = vpop.f32.mrb[0].mxu0
      %4839 = vmatprep.mubr.f32.mxu0 0.0
      %4840 = vmatmul.mubr.f32.gmra.mrb[0].mxu0 %v4622
      %v4841 = vpop.f32.mrb[0].mxu0
      %v4842 = vadd.f32 %v4531, %v4841
      %v4843 = vpop.f32.mrb[0].mxu0
      %4844 = vmatprep.mubr.f32.mxu0 0.0
      %4845 = vmatmul.mubr.f32.gmra.mrb[0].mxu0 %v4625
      %v4846 = vpop.f32.mrb[0].mxu0
      %v4847 = vadd.f32 %v4531, %v4846
      %v4848 = vpop.f32.mrb[0].mxu0
      %4849 = vmatprep.mubr.f32.mxu0 0.0
      %4850 = vmatmul.mubr.f32.gmra.mrb[0].mxu0 %v4628
      %v4851 = vpop.f32.mrb[0].mxu0
      %v4852 = vadd.f32 %v4531, %v4851
      %v4853 = vpop.f32.mrb[0].mxu0
      %4854 = vdwg.mxu0
      %v4855 = vmax.f32 %v4697, 0.0
      %v4856 = vmax.f32 %v4702, 0.0
      %v4857 = vmax.f32 %v4707, 0.0
      %v4858 = vmax.f32 %v4712, 0.0
      %v4859 = vmax.f32 %v4717, 0.0
      %v4860 = vmax.f32 %v4722, 0.0
      %v4861 = vmax.f32 %v4727, 0.0
      %v4862 = vmax.f32 %v4732, 0.0
      %v4863 = vmax.f32 %v4737, 0.0
      %v4864 = vmax.f32 %v4742, 0.0
      %v4865 = vmax.f32 %v4747, 0.0
      %v4866 = vmax.f32 %v4752, 0.0
      %v4867 = vmax.f32 %v4757, 0.0
      %v4868 = vmax.f32 %v4762, 0.0
      %v4869 = vmax.f32 %v4767, 0.0
      %v4870 = vmax.f32 %v4772, 0.0
      %v4871 = vmax.f32 %v4777, 0.0
      %v4872 = vmax.f32 %v4782, 0.0
      %v4873 = vmax.f32 %v4787, 0.0
      %v4874 = vmax.f32 %v4792, 0.0
      %v4875 = vmax.f32 %v4797, 0.0
      %v4876 = vmax.f32 %v4802, 0.0
      %v4877 = vmax.f32 %v4807, 0.0
      %v4878 = vmax.f32 %v4812, 0.0
      %v4879 = vmax.f32 %v4817, 0.0
      %v4880 = vmax.f32 %v4822, 0.0
      %v4881 = vmax.f32 %v4827, 0.0
      %v4882 = vmax.f32 %v4832, 0.0
      %v4883 = vmax.f32 %v4837, 0.0
      %v4884 = vmax.f32 %v4842, 0.0
      %v4885 = vmax.f32 %v4847, 0.0
      %v4886 = vmax.f32 %v4852, 0.0
      %s4887 = scalar_lea.vmem [#allocation3], 24
      %4888 = vst.msk [vmem:[%s4887 + $0x1] sm:$0xff] %vm382, %v4855
      %4889 = vst.msk [vmem:[%s4887 + $0x9] sm:$0xff] %vm382, %v4856
      %4890 = vst.msk [vmem:[%s4887 + $0x19] sm:$0xff] %vm382, %v4857
      %4891 = vst.msk [vmem:[%s4887 + $0x21] sm:$0xff] %vm382, %v4858
      %4892 = vst.msk [vmem:[%s4887 + $0x31] sm:$0xff] %vm382, %v4859
      %4893 = vst.msk [vmem:[%s4887 + $0x39] sm:$0xff] %vm382, %v4860
      %4894 = vst.msk [vmem:[%s4887 + $0x49] sm:$0xff] %vm382, %v4861
      %4895 = vst.msk [vmem:[%s4887 + $0x51] sm:$0xff] %vm382, %v4862
      %4896 = vst.msk [vmem:[%s4887 + $0x61] sm:$0xff] %vm382, %v4863
      %4897 = vst.msk [vmem:[%s4887 + $0x69] sm:$0xff] %vm382, %v4864
      %4898 = vst.msk [vmem:[%s4887 + $0x79] sm:$0xff] %vm382, %v4865
      %4899 = vst.msk [vmem:[%s4887 + $0x81] sm:$0xff] %vm382, %v4866
      %4900 = vst.msk [vmem:[%s4887 + $0x91] sm:$0xff] %vm382, %v4867
      %4901 = vst.msk [vmem:[%s4887 + $0x99] sm:$0xff] %vm382, %v4868
      %4902 = vst.msk [vmem:[%s4887 + $0xa9] sm:$0xff] %vm382, %v4869
      %4903 = vst.msk [vmem:[%s4887 + $0xb1] sm:$0xff] %vm382, %v4870
      %4904 = vst.msk [vmem:[%s4887 + $0xc1] sm:$0xff] %vm382, %v4871
      %4905 = vst.msk [vmem:[%s4887 + $0xc9] sm:$0xff] %vm382, %v4872
      %4906 = vst.msk [vmem:[%s4887 + $0xd9] sm:$0xff] %vm382, %v4873
      %4907 = vst.msk [vmem:[%s4887 + $0xe1] sm:$0xff] %vm382, %v4874
      %4908 = vst.msk [vmem:[%s4887 + $0xf1] sm:$0xff] %vm382, %v4875
      %4909 = vst.msk [vmem:[%s4887 + $0xf9] sm:$0xff] %vm382, %v4876
      %4910 = vst.msk [vmem:[%s4887 + $0x109] sm:$0xff] %vm382, %v4877
      %4911 = vst.msk [vmem:[%s4887 + $0x111] sm:$0xff] %vm382, %v4878
      %4912 = vst.msk [vmem:[%s4887 + $0x121] sm:$0xff] %vm382, %v4879
      %4913 = vst.msk [vmem:[%s4887 + $0x129] sm:$0xff] %vm382, %v4880
      %4914 = vst.msk [vmem:[%s4887 + $0x139] sm:$0xff] %vm382, %v4881
      %4915 = vst.msk [vmem:[%s4887 + $0x141] sm:$0xff] %vm382, %v4882
      %4916 = vst.msk [vmem:[%s4887 + $0x151] sm:$0xff] %vm382, %v4883
      %4917 = vst.msk [vmem:[%s4887 + $0x159] sm:$0xff] %vm382, %v4884
      %4918 = vst.msk [vmem:[%s4887 + $0x169] sm:$0xff] %vm382, %v4885
      %4919 = vst.msk [vmem:[%s4887 + $0x171] sm:$0xff] %vm382, %v4886
      %v4920 = vld [vmem:[#allocation3] sm:$0xff]
      %v4921 = vld [vmem:[#allocation3 + $0x8] sm:$0xff]
      %v4922 = vld [vmem:[#allocation3 + $0x18] sm:$0xff]
      %v4923 = vld [vmem:[#allocation3 + $0x20] sm:$0xff]
      %v4924 = vld [vmem:[#allocation3 + $0x30] sm:$0xff]
      %v4925 = vld [vmem:[#allocation3 + $0x38] sm:$0xff]
      %v4926 = vld [vmem:[#allocation3 + $0x48] sm:$0xff]
      %v4927 = vld [vmem:[#allocation3 + $0x50] sm:$0xff]
      %v4928 = vld [vmem:[#allocation3 + $0x60] sm:$0xff]
      %v4929 = vld [vmem:[#allocation3 + $0x68] sm:$0xff]
      %v4930 = vld [vmem:[#allocation3 + $0x78] sm:$0xff]
      %v4931 = vld [vmem:[#allocation3 + $0x80] sm:$0xff]
      %v4932 = vld [vmem:[#allocation3 + $0x90] sm:$0xff]
      %v4933 = vld [vmem:[#allocation3 + $0x98] sm:$0xff]
      %v4934 = vld [vmem:[#allocation3 + $0xa8] sm:$0xff]
      %v4935 = vld [vmem:[#allocation3 + $0xb0] sm:$0xff]
      %v4936 = vld [vmem:[#allocation3 + $0xc0] sm:$0xff]
      %v4937 = vld [vmem:[#allocation3 + $0xc8] sm:$0xff]
      %v4938 = vld [vmem:[#allocation3 + $0xd8] sm:$0xff]
      %v4939 = vld [vmem:[#allocation3 + $0xe0] sm:$0xff]
      %v4940 = vld [vmem:[#allocation3 + $0xf0] sm:$0xff]
      %v4941 = vld [vmem:[#allocation3 + $0xf8] sm:$0xff]
      %v4942 = vld [vmem:[#allocation3 + $0x108] sm:$0xff]
      %v4943 = vld [vmem:[#allocation3 + $0x110] sm:$0xff]
      %v4944 = vld [vmem:[#allocation3 + $0x120] sm:$0xff]
      %v4945 = vld [vmem:[#allocation3 + $0x128] sm:$0xff]
      %v4946 = vld [vmem:[#allocation3 + $0x138] sm:$0xff]
      %v4947 = vld [vmem:[#allocation3 + $0x140] sm:$0xff]
      %v4948 = vld [vmem:[#allocation3 + $0x150] sm:$0xff]
      %v4949 = vld [vmem:[#allocation3 + $0x158] sm:$0xff]
      %v4950 = vld [vmem:[#allocation3 + $0x168] sm:$0xff]
      %v4951 = vld [vmem:[#allocation3 + $0x170] sm:$0xff]
      %4952 = vst.msk [vmem:[#allocation5] sm:$0xff] %vm382, %v4920
      %4953 = vst.msk [vmem:[#allocation5 + $0x8] sm:$0xff] %vm382, %v4921
      %4954 = vst.msk [vmem:[#allocation5 + $0x10] sm:$0xff] %vm382, %v4922
      %4955 = vst.msk [vmem:[#allocation5 + $0x18] sm:$0xff] %vm382, %v4923
      %4956 = vst.msk [vmem:[#allocation5 + $0x20] sm:$0xff] %vm382, %v4924
      %4957 = vst.msk [vmem:[#allocation5 + $0x28] sm:$0xff] %vm382, %v4925
      %4958 = vst.msk [vmem:[#allocation5 + $0x30] sm:$0xff] %vm382, %v4926
      %4959 = vst.msk [vmem:[#allocation5 + $0x38] sm:$0xff] %vm382, %v4927
      %4960 = vst.msk [vmem:[#allocation5 + $0x40] sm:$0xff] %vm382, %v4928
      %4961 = vst.msk [vmem:[#allocation5 + $0x48] sm:$0xff] %vm382, %v4929
      %4962 = vst.msk [vmem:[#allocation5 + $0x50] sm:$0xff] %vm382, %v4930
      %4963 = vst.msk [vmem:[#allocation5 + $0x58] sm:$0xff] %vm382, %v4931
      %4964 = vst.msk [vmem:[#allocation5 + $0x60] sm:$0xff] %vm382, %v4932
      %4965 = vst.msk [vmem:[#allocation5 + $0x68] sm:$0xff] %vm382, %v4933
      %4966 = vst.msk [vmem:[#allocation5 + $0x70] sm:$0xff] %vm382, %v4934
      %4967 = vst.msk [vmem:[#allocation5 + $0x78] sm:$0xff] %vm382, %v4935
      %4968 = vst.msk [vmem:[#allocation5 + $0x80] sm:$0xff] %vm382, %v4936
      %4969 = vst.msk [vmem:[#allocation5 + $0x88] sm:$0xff] %vm382, %v4937
      %4970 = vst.msk [vmem:[#allocation5 + $0x90] sm:$0xff] %vm382, %v4938
      %4971 = vst.msk [vmem:[#allocation5 + $0x98] sm:$0xff] %vm382, %v4939
      %4972 = vst.msk [vmem:[#allocation5 + $0xa0] sm:$0xff] %vm382, %v4940
      %4973 = vst.msk [vmem:[#allocation5 + $0xa8] sm:$0xff] %vm382, %v4941
      %4974 = vst.msk [vmem:[#allocation5 + $0xb0] sm:$0xff] %vm382, %v4942
      %4975 = vst.msk [vmem:[#allocation5 + $0xb8] sm:$0xff] %vm382, %v4943
      %4976 = vst.msk [vmem:[#allocation5 + $0xc0] sm:$0xff] %vm382, %v4944
      %4977 = vst.msk [vmem:[#allocation5 + $0xc8] sm:$0xff] %vm382, %v4945
      %4978 = vst.msk [vmem:[#allocation5 + $0xd0] sm:$0xff] %vm382, %v4946
      %4979 = vst.msk [vmem:[#allocation5 + $0xd8] sm:$0xff] %vm382, %v4947
      %4980 = vst.msk [vmem:[#allocation5 + $0xe0] sm:$0xff] %vm382, %v4948
      %4981 = vst.msk [vmem:[#allocation5 + $0xe8] sm:$0xff] %vm382, %v4949
      %4982 = vst.msk [vmem:[#allocation5 + $0xf0] sm:$0xff] %vm382, %v4950
      %4983 = vst.msk [vmem:[#allocation5 + $0xf8] sm:$0xff] %vm382, %v4951
      %v4984 = vld [vmem:[#allocation3 + $0x1] sm:$0xff]
      %v4985 = vld [vmem:[#allocation3 + $0x9] sm:$0xff]
      %v4986 = vld [vmem:[#allocation3 + $0x19] sm:$0xff]
      %v4987 = vld [vmem:[#allocation3 + $0x21] sm:$0xff]
      %v4988 = vld [vmem:[#allocation3 + $0x31] sm:$0xff]
      %v4989 = vld [vmem:[#allocation3 + $0x39] sm:$0xff]
      %v4990 = vld [vmem:[#allocation3 + $0x49] sm:$0xff]
      %v4991 = vld [vmem:[#allocation3 + $0x51] sm:$0xff]
      %v4992 = vld [vmem:[#allocation3 + $0x61] sm:$0xff]
      %v4993 = vld [vmem:[#allocation3 + $0x69] sm:$0xff]
      %v4994 = vld [vmem:[#allocation3 + $0x79] sm:$0xff]
      %v4995 = vld [vmem:[#allocation3 + $0x81] sm:$0xff]
      %v4996 = vld [vmem:[#allocation3 + $0x91] sm:$0xff]
      %v4997 = vld [vmem:[#allocation3 + $0x99] sm:$0xff]
      %v4998 = vld [vmem:[#allocation3 + $0xa9] sm:$0xff]
      %v4999 = vld [vmem:[#allocation3 + $0xb1] sm:$0xff]
      %v5000 = vld [vmem:[#allocation3 + $0xc1] sm:$0xff]
      %v5001 = vld [vmem:[#allocation3 + $0xc9] sm:$0xff]
      %v5002 = vld [vmem:[#allocation3 + $0xd9] sm:$0xff]
      %v5003 = vld [vmem:[#allocation3 + $0xe1] sm:$0xff]
      %v5004 = vld [vmem:[#allocation3 + $0xf1] sm:$0xff]
      %v5005 = vld [vmem:[#allocation3 + $0xf9] sm:$0xff]
      %v5006 = vld [vmem:[#allocation3 + $0x109] sm:$0xff]
      %v5007 = vld [vmem:[#allocation3 + $0x111] sm:$0xff]
      %v5008 = vld [vmem:[#allocation3 + $0x121] sm:$0xff]
      %v5009 = vld [vmem:[#allocation3 + $0x129] sm:$0xff]
      %v5010 = vld [vmem:[#allocation3 + $0x139] sm:$0xff]
      %v5011 = vld [vmem:[#allocation3 + $0x141] sm:$0xff]
      %v5012 = vld [vmem:[#allocation3 + $0x151] sm:$0xff]
      %v5013 = vld [vmem:[#allocation3 + $0x159] sm:$0xff]
      %v5014 = vld [vmem:[#allocation3 + $0x169] sm:$0xff]
      %v5015 = vld [vmem:[#allocation3 + $0x171] sm:$0xff]
      %5048 = vrot.lane.b32.xlu0 %v4984, 4
      %v5049 = vpop.permute.xlu0 %5048
      %5050 = vrot.lane.b32.xlu0 %v4985, 4
      %v5051 = vpop.permute.xlu0 %5050
      %5052 = vrot.lane.b32.xlu0 %v4986, 4
      %v5053 = vpop.permute.xlu0 %5052
      %5054 = vrot.lane.b32.xlu0 %v4987, 4
      %v5055 = vpop.permute.xlu0 %5054
      %5056 = vrot.lane.b32.xlu0 %v4988, 4
      %v5057 = vpop.permute.xlu0 %5056
      %5058 = vrot.lane.b32.xlu0 %v4989, 4
      %v5059 = vpop.permute.xlu0 %5058
      %5060 = vrot.lane.b32.xlu0 %v4990, 4
      %v5061 = vpop.permute.xlu0 %5060
      %5062 = vrot.lane.b32.xlu0 %v4991, 4
      %v5063 = vpop.permute.xlu0 %5062
      %5064 = vrot.lane.b32.xlu0 %v4992, 4
      %v5065 = vpop.permute.xlu0 %5064
      %5066 = vrot.lane.b32.xlu0 %v4993, 4
      %v5067 = vpop.permute.xlu0 %5066
      %5068 = vrot.lane.b32.xlu0 %v4994, 4
      %v5069 = vpop.permute.xlu0 %5068
      %5070 = vrot.lane.b32.xlu0 %v4995, 4
      %v5071 = vpop.permute.xlu0 %5070
      %5072 = vrot.lane.b32.xlu0 %v4996, 4
      %v5073 = vpop.permute.xlu0 %5072
      %5074 = vrot.lane.b32.xlu0 %v4997, 4
      %v5075 = vpop.permute.xlu0 %5074
      %5076 = vrot.lane.b32.xlu0 %v4998, 4
      %v5077 = vpop.permute.xlu0 %5076
      %5078 = vrot.lane.b32.xlu0 %v4999, 4
      %v5079 = vpop.permute.xlu0 %5078
      %5080 = vrot.lane.b32.xlu0 %v5000, 4
      %v5081 = vpop.permute.xlu0 %5080
      %5082 = vrot.lane.b32.xlu0 %v5001, 4
      %v5083 = vpop.permute.xlu0 %5082
      %5084 = vrot.lane.b32.xlu0 %v5002, 4
      %v5085 = vpop.permute.xlu0 %5084
      %5086 = vrot.lane.b32.xlu0 %v5003, 4
      %v5087 = vpop.permute.xlu0 %5086
      %5088 = vrot.lane.b32.xlu0 %v5004, 4
      %v5089 = vpop.permute.xlu0 %5088
      %5090 = vrot.lane.b32.xlu0 %v5005, 4
      %v5091 = vpop.permute.xlu0 %5090
      %5092 = vrot.lane.b32.xlu0 %v5006, 4
      %v5093 = vpop.permute.xlu0 %5092
      %5094 = vrot.lane.b32.xlu0 %v5007, 4
      %v5095 = vpop.permute.xlu0 %5094
      %5096 = vrot.lane.b32.xlu0 %v5008, 4
      %v5097 = vpop.permute.xlu0 %5096
      %5098 = vrot.lane.b32.xlu0 %v5009, 4
      %v5099 = vpop.permute.xlu0 %5098
      %5100 = vrot.lane.b32.xlu0 %v5010, 4
      %v5101 = vpop.permute.xlu0 %5100
      %5102 = vrot.lane.b32.xlu0 %v5011, 4
      %v5103 = vpop.permute.xlu0 %5102
      %5104 = vrot.lane.b32.xlu0 %v5012, 4
      %v5105 = vpop.permute.xlu0 %5104
      %5106 = vrot.lane.b32.xlu0 %v5013, 4
      %v5107 = vpop.permute.xlu0 %5106
      %5108 = vrot.lane.b32.xlu0 %v5014, 4
      %v5109 = vpop.permute.xlu0 %5108
      %5110 = vrot.lane.b32.xlu0 %v5015, 4
      %v5111 = vpop.permute.xlu0 %5110
      %5144 = vst.msk [vmem:[#allocation5] sm:$0xff] %vm2843, %v5049
      %5145 = vst.msk [vmem:[#allocation5 + $0x8] sm:$0xff] %vm2843, %v5051
      %5146 = vst.msk [vmem:[#allocation5 + $0x10] sm:$0xff] %vm2843, %v5053
      %5147 = vst.msk [vmem:[#allocation5 + $0x18] sm:$0xff] %vm2843, %v5055
      %5148 = vst.msk [vmem:[#allocation5 + $0x20] sm:$0xff] %vm2843, %v5057
      %5149 = vst.msk [vmem:[#allocation5 + $0x28] sm:$0xff] %vm2843, %v5059
      %5150 = vst.msk [vmem:[#allocation5 + $0x30] sm:$0xff] %vm2843, %v5061
      %5151 = vst.msk [vmem:[#allocation5 + $0x38] sm:$0xff] %vm2843, %v5063
      %5152 = vst.msk [vmem:[#allocation5 + $0x40] sm:$0xff] %vm2843, %v5065
      %5153 = vst.msk [vmem:[#allocation5 + $0x48] sm:$0xff] %vm2843, %v5067
      %5154 = vst.msk [vmem:[#allocation5 + $0x50] sm:$0xff] %vm2843, %v5069
      %5155 = vst.msk [vmem:[#allocation5 + $0x58] sm:$0xff] %vm2843, %v5071
      %5156 = vst.msk [vmem:[#allocation5 + $0x60] sm:$0xff] %vm2843, %v5073
      %5157 = vst.msk [vmem:[#allocation5 + $0x68] sm:$0xff] %vm2843, %v5075
      %5158 = vst.msk [vmem:[#allocation5 + $0x70] sm:$0xff] %vm2843, %v5077
      %5159 = vst.msk [vmem:[#allocation5 + $0x78] sm:$0xff] %vm2843, %v5079
      %5160 = vst.msk [vmem:[#allocation5 + $0x80] sm:$0xff] %vm2843, %v5081
      %5161 = vst.msk [vmem:[#allocation5 + $0x88] sm:$0xff] %vm2843, %v5083
      %5162 = vst.msk [vmem:[#allocation5 + $0x90] sm:$0xff] %vm2843, %v5085
      %5163 = vst.msk [vmem:[#allocation5 + $0x98] sm:$0xff] %vm2843, %v5087
      %5164 = vst.msk [vmem:[#allocation5 + $0xa0] sm:$0xff] %vm2843, %v5089
      %5165 = vst.msk [vmem:[#allocation5 + $0xa8] sm:$0xff] %vm2843, %v5091
      %5166 = vst.msk [vmem:[#allocation5 + $0xb0] sm:$0xff] %vm2843, %v5093
      %5167 = vst.msk [vmem:[#allocation5 + $0xb8] sm:$0xff] %vm2843, %v5095
      %5168 = vst.msk [vmem:[#allocation5 + $0xc0] sm:$0xff] %vm2843, %v5097
      %5169 = vst.msk [vmem:[#allocation5 + $0xc8] sm:$0xff] %vm2843, %v5099
      %5170 = vst.msk [vmem:[#allocation5 + $0xd0] sm:$0xff] %vm2843, %v5101
      %5171 = vst.msk [vmem:[#allocation5 + $0xd8] sm:$0xff] %vm2843, %v5103
      %5172 = vst.msk [vmem:[#allocation5 + $0xe0] sm:$0xff] %vm2843, %v5105
      %5173 = vst.msk [vmem:[#allocation5 + $0xe8] sm:$0xff] %vm2843, %v5107
      %5174 = vst.msk [vmem:[#allocation5 + $0xf0] sm:$0xff] %vm2843, %v5109
      %5175 = vst.msk [vmem:[#allocation5 + $0xf8] sm:$0xff] %vm2843, %v5111
      %v5176 = vld [vmem:[#allocation3 + $0x2] sm:$0xff]
      %v5177 = vld [vmem:[#allocation3 + $0xa] sm:$0xff]
      %v5178 = vld [vmem:[#allocation3 + $0x1a] sm:$0xff]
      %v5179 = vld [vmem:[#allocation3 + $0x22] sm:$0xff]
      %v5180 = vld [vmem:[#allocation3 + $0x32] sm:$0xff]
      %v5181 = vld [vmem:[#allocation3 + $0x3a] sm:$0xff]
      %v5182 = vld [vmem:[#allocation3 + $0x4a] sm:$0xff]
      %v5183 = vld [vmem:[#allocation3 + $0x52] sm:$0xff]
      %v5184 = vld [vmem:[#allocation3 + $0x62] sm:$0xff]
      %v5185 = vld [vmem:[#allocation3 + $0x6a] sm:$0xff]
      %v5186 = vld [vmem:[#allocation3 + $0x7a] sm:$0xff]
      %v5187 = vld [vmem:[#allocation3 + $0x82] sm:$0xff]
      %v5188 = vld [vmem:[#allocation3 + $0x92] sm:$0xff]
      %v5189 = vld [vmem:[#allocation3 + $0x9a] sm:$0xff]
      %v5190 = vld [vmem:[#allocation3 + $0xaa] sm:$0xff]
      %v5191 = vld [vmem:[#allocation3 + $0xb2] sm:$0xff]
      %v5192 = vld [vmem:[#allocation3 + $0xc2] sm:$0xff]
      %v5193 = vld [vmem:[#allocation3 + $0xca] sm:$0xff]
      %v5194 = vld [vmem:[#allocation3 + $0xda] sm:$0xff]
      %v5195 = vld [vmem:[#allocation3 + $0xe2] sm:$0xff]
      %v5196 = vld [vmem:[#allocation3 + $0xf2] sm:$0xff]
      %v5197 = vld [vmem:[#allocation3 + $0xfa] sm:$0xff]
      %v5198 = vld [vmem:[#allocation3 + $0x10a] sm:$0xff]
      %v5199 = vld [vmem:[#allocation3 + $0x112] sm:$0xff]
      %v5200 = vld [vmem:[#allocation3 + $0x122] sm:$0xff]
      %v5201 = vld [vmem:[#allocation3 + $0x12a] sm:$0xff]
      %v5202 = vld [vmem:[#allocation3 + $0x13a] sm:$0xff]
      %v5203 = vld [vmem:[#allocation3 + $0x142] sm:$0xff]
      %v5204 = vld [vmem:[#allocation3 + $0x152] sm:$0xff]
      %v5205 = vld [vmem:[#allocation3 + $0x15a] sm:$0xff]
      %v5206 = vld [vmem:[#allocation3 + $0x16a] sm:$0xff]
      %v5207 = vld [vmem:[#allocation3 + $0x172] sm:$0xff]
      %5240 = vrot.lane.b32.xlu0 %v5176, 8
      %v5241 = vpop.permute.xlu0 %5240
      %5242 = vrot.lane.b32.xlu0 %v5177, 8
      %v5243 = vpop.permute.xlu0 %5242
      %5244 = vrot.lane.b32.xlu0 %v5178, 8
      %v5245 = vpop.permute.xlu0 %5244
      %5246 = vrot.lane.b32.xlu0 %v5179, 8
      %v5247 = vpop.permute.xlu0 %5246
      %5248 = vrot.lane.b32.xlu0 %v5180, 8
      %v5249 = vpop.permute.xlu0 %5248
      %5250 = vrot.lane.b32.xlu0 %v5181, 8
      %v5251 = vpop.permute.xlu0 %5250
      %5252 = vrot.lane.b32.xlu0 %v5182, 8
      %v5253 = vpop.permute.xlu0 %5252
      %5254 = vrot.lane.b32.xlu0 %v5183, 8
      %v5255 = vpop.permute.xlu0 %5254
      %5256 = vrot.lane.b32.xlu0 %v5184, 8
      %v5257 = vpop.permute.xlu0 %5256
      %5258 = vrot.lane.b32.xlu0 %v5185, 8
      %v5259 = vpop.permute.xlu0 %5258
      %5260 = vrot.lane.b32.xlu0 %v5186, 8
      %v5261 = vpop.permute.xlu0 %5260
      %5262 = vrot.lane.b32.xlu0 %v5187, 8
      %v5263 = vpop.permute.xlu0 %5262
      %5264 = vrot.lane.b32.xlu0 %v5188, 8
      %v5265 = vpop.permute.xlu0 %5264
      %5266 = vrot.lane.b32.xlu0 %v5189, 8
      %v5267 = vpop.permute.xlu0 %5266
      %5268 = vrot.lane.b32.xlu0 %v5190, 8
      %v5269 = vpop.permute.xlu0 %5268
      %5270 = vrot.lane.b32.xlu0 %v5191, 8
      %v5271 = vpop.permute.xlu0 %5270
      %5272 = vrot.lane.b32.xlu0 %v5192, 8
      %v5273 = vpop.permute.xlu0 %5272
      %5274 = vrot.lane.b32.xlu0 %v5193, 8
      %v5275 = vpop.permute.xlu0 %5274
      %5276 = vrot.lane.b32.xlu0 %v5194, 8
      %v5277 = vpop.permute.xlu0 %5276
      %5278 = vrot.lane.b32.xlu0 %v5195, 8
      %v5279 = vpop.permute.xlu0 %5278
      %5280 = vrot.lane.b32.xlu0 %v5196, 8
      %v5281 = vpop.permute.xlu0 %5280
      %5282 = vrot.lane.b32.xlu0 %v5197, 8
      %v5283 = vpop.permute.xlu0 %5282
      %5284 = vrot.lane.b32.xlu0 %v5198, 8
      %v5285 = vpop.permute.xlu0 %5284
      %5286 = vrot.lane.b32.xlu0 %v5199, 8
      %v5287 = vpop.permute.xlu0 %5286
      %5288 = vrot.lane.b32.xlu0 %v5200, 8
      %v5289 = vpop.permute.xlu0 %5288
      %5290 = vrot.lane.b32.xlu0 %v5201, 8
      %v5291 = vpop.permute.xlu0 %5290
      %5292 = vrot.lane.b32.xlu0 %v5202, 8
      %v5293 = vpop.permute.xlu0 %5292
      %5294 = vrot.lane.b32.xlu0 %v5203, 8
      %v5295 = vpop.permute.xlu0 %5294
      %5296 = vrot.lane.b32.xlu0 %v5204, 8
      %v5297 = vpop.permute.xlu0 %5296
      %5298 = vrot.lane.b32.xlu0 %v5205, 8
      %v5299 = vpop.permute.xlu0 %5298
      %5300 = vrot.lane.b32.xlu0 %v5206, 8
      %v5301 = vpop.permute.xlu0 %5300
      %5302 = vrot.lane.b32.xlu0 %v5207, 8
      %v5303 = vpop.permute.xlu0 %5302
      %vm5336 = vcmask 97344
      %5337 = vst.msk [vmem:[#allocation5] sm:$0xff] %vm5336, %v5241
      %5338 = vst.msk [vmem:[#allocation5 + $0x8] sm:$0xff] %vm5336, %v5243
      %5339 = vst.msk [vmem:[#allocation5 + $0x10] sm:$0xff] %vm5336, %v5245
      %5340 = vst.msk [vmem:[#allocation5 + $0x18] sm:$0xff] %vm5336, %v5247
      %5341 = vst.msk [vmem:[#allocation5 + $0x20] sm:$0xff] %vm5336, %v5249
      %5342 = vst.msk [vmem:[#allocation5 + $0x28] sm:$0xff] %vm5336, %v5251
      %5343 = vst.msk [vmem:[#allocation5 + $0x30] sm:$0xff] %vm5336, %v5253
      %5344 = vst.msk [vmem:[#allocation5 + $0x38] sm:$0xff] %vm5336, %v5255
      %5345 = vst.msk [vmem:[#allocation5 + $0x40] sm:$0xff] %vm5336, %v5257
      %5346 = vst.msk [vmem:[#allocation5 + $0x48] sm:$0xff] %vm5336, %v5259
      %5347 = vst.msk [vmem:[#allocation5 + $0x50] sm:$0xff] %vm5336, %v5261
      %5348 = vst.msk [vmem:[#allocation5 + $0x58] sm:$0xff] %vm5336, %v5263
      %5349 = vst.msk [vmem:[#allocation5 + $0x60] sm:$0xff] %vm5336, %v5265
      %5350 = vst.msk [vmem:[#allocation5 + $0x68] sm:$0xff] %vm5336, %v5267
      %5351 = vst.msk [vmem:[#allocation5 + $0x70] sm:$0xff] %vm5336, %v5269
      %5352 = vst.msk [vmem:[#allocation5 + $0x78] sm:$0xff] %vm5336, %v5271
      %5353 = vst.msk [vmem:[#allocation5 + $0x80] sm:$0xff] %vm5336, %v5273
      %5354 = vst.msk [vmem:[#allocation5 + $0x88] sm:$0xff] %vm5336, %v5275
      %5355 = vst.msk [vmem:[#allocation5 + $0x90] sm:$0xff] %vm5336, %v5277
      %5356 = vst.msk [vmem:[#allocation5 + $0x98] sm:$0xff] %vm5336, %v5279
      %5357 = vst.msk [vmem:[#allocation5 + $0xa0] sm:$0xff] %vm5336, %v5281
      %5358 = vst.msk [vmem:[#allocation5 + $0xa8] sm:$0xff] %vm5336, %v5283
      %5359 = vst.msk [vmem:[#allocation5 + $0xb0] sm:$0xff] %vm5336, %v5285
      %5360 = vst.msk [vmem:[#allocation5 + $0xb8] sm:$0xff] %vm5336, %v5287
      %5361 = vst.msk [vmem:[#allocation5 + $0xc0] sm:$0xff] %vm5336, %v5289
      %5362 = vst.msk [vmem:[#allocation5 + $0xc8] sm:$0xff] %vm5336, %v5291
      %5363 = vst.msk [vmem:[#allocation5 + $0xd0] sm:$0xff] %vm5336, %v5293
      %5364 = vst.msk [vmem:[#allocation5 + $0xd8] sm:$0xff] %vm5336, %v5295
      %5365 = vst.msk [vmem:[#allocation5 + $0xe0] sm:$0xff] %vm5336, %v5297
      %5366 = vst.msk [vmem:[#allocation5 + $0xe8] sm:$0xff] %vm5336, %v5299
      %5367 = vst.msk [vmem:[#allocation5 + $0xf0] sm:$0xff] %vm5336, %v5301
      %5368 = vst.msk [vmem:[#allocation5 + $0xf8] sm:$0xff] %vm5336, %v5303
      %v5369 = vld [vmem:[%s4887] sm:$0xff]
      %v5370 = vld [vmem:[%s4887 + $0x8] sm:$0xff]
      %v5371 = vld [vmem:[%s4887 + $0x18] sm:$0xff]
      %v5372 = vld [vmem:[%s4887 + $0x20] sm:$0xff]
      %v5373 = vld [vmem:[%s4887 + $0x30] sm:$0xff]
      %v5374 = vld [vmem:[%s4887 + $0x38] sm:$0xff]
      %v5375 = vld [vmem:[%s4887 + $0x48] sm:$0xff]
      %v5376 = vld [vmem:[%s4887 + $0x50] sm:$0xff]
      %v5377 = vld [vmem:[%s4887 + $0x60] sm:$0xff]
      %v5378 = vld [vmem:[%s4887 + $0x68] sm:$0xff]
      %v5379 = vld [vmem:[%s4887 + $0x78] sm:$0xff]
      %v5380 = vld [vmem:[%s4887 + $0x80] sm:$0xff]
      %v5381 = vld [vmem:[%s4887 + $0x90] sm:$0xff]
      %v5382 = vld [vmem:[%s4887 + $0x98] sm:$0xff]
      %v5383 = vld [vmem:[%s4887 + $0xa8] sm:$0xff]
      %v5384 = vld [vmem:[%s4887 + $0xb0] sm:$0xff]
      %v5385 = vld [vmem:[%s4887 + $0xc0] sm:$0xff]
      %v5386 = vld [vmem:[%s4887 + $0xc8] sm:$0xff]
      %v5387 = vld [vmem:[%s4887 + $0xd8] sm:$0xff]
      %v5388 = vld [vmem:[%s4887 + $0xe0] sm:$0xff]
      %v5389 = vld [vmem:[%s4887 + $0xf0] sm:$0xff]
      %v5390 = vld [vmem:[%s4887 + $0xf8] sm:$0xff]
      %v5391 = vld [vmem:[%s4887 + $0x108] sm:$0xff]
      %v5392 = vld [vmem:[%s4887 + $0x110] sm:$0xff]
      %v5393 = vld [vmem:[%s4887 + $0x120] sm:$0xff]
      %v5394 = vld [vmem:[%s4887 + $0x128] sm:$0xff]
      %v5395 = vld [vmem:[%s4887 + $0x138] sm:$0xff]
      %v5396 = vld [vmem:[%s4887 + $0x140] sm:$0xff]
      %v5397 = vld [vmem:[%s4887 + $0x150] sm:$0xff]
      %v5398 = vld [vmem:[%s4887 + $0x158] sm:$0xff]
      %v5399 = vld [vmem:[%s4887 + $0x168] sm:$0xff]
      %v5400 = vld [vmem:[%s4887 + $0x170] sm:$0xff]
      %5433 = vrot.lane.b32.xlu0 %v5369, 12
      %v5434 = vpop.permute.xlu0 %5433
      %5435 = vrot.lane.b32.xlu0 %v5370, 12
      %v5436 = vpop.permute.xlu0 %5435
      %5437 = vrot.lane.b32.xlu0 %v5371, 12
      %v5438 = vpop.permute.xlu0 %5437
      %5439 = vrot.lane.b32.xlu0 %v5372, 12
      %v5440 = vpop.permute.xlu0 %5439
      %5441 = vrot.lane.b32.xlu0 %v5373, 12
      %v5442 = vpop.permute.xlu0 %5441
      %5443 = vrot.lane.b32.xlu0 %v5374, 12
      %v5444 = vpop.permute.xlu0 %5443
      %5445 = vrot.lane.b32.xlu0 %v5375, 12
      %v5446 = vpop.permute.xlu0 %5445
      %5447 = vrot.lane.b32.xlu0 %v5376, 12
      %v5448 = vpop.permute.xlu0 %5447
      %5449 = vrot.lane.b32.xlu0 %v5377, 12
      %v5450 = vpop.permute.xlu0 %5449
      %5451 = vrot.lane.b32.xlu0 %v5378, 12
      %v5452 = vpop.permute.xlu0 %5451
      %5453 = vrot.lane.b32.xlu0 %v5379, 12
      %v5454 = vpop.permute.xlu0 %5453
      %5455 = vrot.lane.b32.xlu0 %v5380, 12
      %v5456 = vpop.permute.xlu0 %5455
      %5457 = vrot.lane.b32.xlu0 %v5381, 12
      %v5458 = vpop.permute.xlu0 %5457
      %5459 = vrot.lane.b32.xlu0 %v5382, 12
      %v5460 = vpop.permute.xlu0 %5459
      %5461 = vrot.lane.b32.xlu0 %v5383, 12
      %v5462 = vpop.permute.xlu0 %5461
      %5463 = vrot.lane.b32.xlu0 %v5384, 12
      %v5464 = vpop.permute.xlu0 %5463
      %5465 = vrot.lane.b32.xlu0 %v5385, 12
      %v5466 = vpop.permute.xlu0 %5465
      %5467 = vrot.lane.b32.xlu0 %v5386, 12
      %v5468 = vpop.permute.xlu0 %5467
      %5469 = vrot.lane.b32.xlu0 %v5387, 12
      %v5470 = vpop.permute.xlu0 %5469
      %5471 = vrot.lane.b32.xlu0 %v5388, 12
      %v5472 = vpop.permute.xlu0 %5471
      %5473 = vrot.lane.b32.xlu0 %v5389, 12
      %v5474 = vpop.permute.xlu0 %5473
      %5475 = vrot.lane.b32.xlu0 %v5390, 12
      %v5476 = vpop.permute.xlu0 %5475
      %5477 = vrot.lane.b32.xlu0 %v5391, 12
      %v5478 = vpop.permute.xlu0 %5477
      %5479 = vrot.lane.b32.xlu0 %v5392, 12
      %v5480 = vpop.permute.xlu0 %5479
      %5481 = vrot.lane.b32.xlu0 %v5393, 12
      %v5482 = vpop.permute.xlu0 %5481
      %5483 = vrot.lane.b32.xlu0 %v5394, 12
      %v5484 = vpop.permute.xlu0 %5483
      %5485 = vrot.lane.b32.xlu0 %v5395, 12
      %v5486 = vpop.permute.xlu0 %5485
      %5487 = vrot.lane.b32.xlu0 %v5396, 12
      %v5488 = vpop.permute.xlu0 %5487
      %5489 = vrot.lane.b32.xlu0 %v5397, 12
      %v5490 = vpop.permute.xlu0 %5489
      %5491 = vrot.lane.b32.xlu0 %v5398, 12
      %v5492 = vpop.permute.xlu0 %5491
      %5493 = vrot.lane.b32.xlu0 %v5399, 12
      %v5494 = vpop.permute.xlu0 %5493
      %5495 = vrot.lane.b32.xlu0 %v5400, 12
      %v5496 = vpop.permute.xlu0 %5495
      %vm5529 = vcmask 130144
      %5530 = vst.msk [vmem:[#allocation5] sm:$0xff] %vm5529, %v5434
      %5531 = vst.msk [vmem:[#allocation5 + $0x8] sm:$0xff] %vm5529, %v5436
      %5532 = vst.msk [vmem:[#allocation5 + $0x10] sm:$0xff] %vm5529, %v5438
      %5533 = vst.msk [vmem:[#allocation5 + $0x18] sm:$0xff] %vm5529, %v5440
      %5534 = vst.msk [vmem:[#allocation5 + $0x20] sm:$0xff] %vm5529, %v5442
      %5535 = vst.msk [vmem:[#allocation5 + $0x28] sm:$0xff] %vm5529, %v5444
      %5536 = vst.msk [vmem:[#allocation5 + $0x30] sm:$0xff] %vm5529, %v5446
      %5537 = vst.msk [vmem:[#allocation5 + $0x38] sm:$0xff] %vm5529, %v5448
      %5538 = vst.msk [vmem:[#allocation5 + $0x40] sm:$0xff] %vm5529, %v5450
      %5539 = vst.msk [vmem:[#allocation5 + $0x48] sm:$0xff] %vm5529, %v5452
      %5540 = vst.msk [vmem:[#allocation5 + $0x50] sm:$0xff] %vm5529, %v5454
      %5541 = vst.msk [vmem:[#allocation5 + $0x58] sm:$0xff] %vm5529, %v5456
      %5542 = vst.msk [vmem:[#allocation5 + $0x60] sm:$0xff] %vm5529, %v5458
      %5543 = vst.msk [vmem:[#allocation5 + $0x68] sm:$0xff] %vm5529, %v5460
      %5544 = vst.msk [vmem:[#allocation5 + $0x70] sm:$0xff] %vm5529, %v5462
      %5545 = vst.msk [vmem:[#allocation5 + $0x78] sm:$0xff] %vm5529, %v5464
      %5546 = vst.msk [vmem:[#allocation5 + $0x80] sm:$0xff] %vm5529, %v5466
      %5547 = vst.msk [vmem:[#allocation5 + $0x88] sm:$0xff] %vm5529, %v5468
      %5548 = vst.msk [vmem:[#allocation5 + $0x90] sm:$0xff] %vm5529, %v5470
      %5549 = vst.msk [vmem:[#allocation5 + $0x98] sm:$0xff] %vm5529, %v5472
      %5550 = vst.msk [vmem:[#allocation5 + $0xa0] sm:$0xff] %vm5529, %v5474
      %5551 = vst.msk [vmem:[#allocation5 + $0xa8] sm:$0xff] %vm5529, %v5476
      %5552 = vst.msk [vmem:[#allocation5 + $0xb0] sm:$0xff] %vm5529, %v5478
      %5553 = vst.msk [vmem:[#allocation5 + $0xb8] sm:$0xff] %vm5529, %v5480
      %5554 = vst.msk [vmem:[#allocation5 + $0xc0] sm:$0xff] %vm5529, %v5482
      %5555 = vst.msk [vmem:[#allocation5 + $0xc8] sm:$0xff] %vm5529, %v5484
      %5556 = vst.msk [vmem:[#allocation5 + $0xd0] sm:$0xff] %vm5529, %v5486
      %5557 = vst.msk [vmem:[#allocation5 + $0xd8] sm:$0xff] %vm5529, %v5488
      %5558 = vst.msk [vmem:[#allocation5 + $0xe0] sm:$0xff] %vm5529, %v5490
      %5559 = vst.msk [vmem:[#allocation5 + $0xe8] sm:$0xff] %vm5529, %v5492
      %5560 = vst.msk [vmem:[#allocation5 + $0xf0] sm:$0xff] %vm5529, %v5494
      %5561 = vst.msk [vmem:[#allocation5 + $0xf8] sm:$0xff] %vm5529, %v5496
      %v5562 = vld [vmem:[%s4887 + $0x1] sm:$0xff]
      %v5563 = vld [vmem:[%s4887 + $0x9] sm:$0xff]
      %v5564 = vld [vmem:[%s4887 + $0x19] sm:$0xff]
      %v5565 = vld [vmem:[%s4887 + $0x21] sm:$0xff]
      %v5566 = vld [vmem:[%s4887 + $0x31] sm:$0xff]
      %v5567 = vld [vmem:[%s4887 + $0x39] sm:$0xff]
      %v5568 = vld [vmem:[%s4887 + $0x49] sm:$0xff]
      %v5569 = vld [vmem:[%s4887 + $0x51] sm:$0xff]
      %v5570 = vld [vmem:[%s4887 + $0x61] sm:$0xff]
      %v5571 = vld [vmem:[%s4887 + $0x69] sm:$0xff]
      %v5572 = vld [vmem:[%s4887 + $0x79] sm:$0xff]
      %v5573 = vld [vmem:[%s4887 + $0x81] sm:$0xff]
      %v5574 = vld [vmem:[%s4887 + $0x91] sm:$0xff]
      %v5575 = vld [vmem:[%s4887 + $0x99] sm:$0xff]
      %v5576 = vld [vmem:[%s4887 + $0xa9] sm:$0xff]
      %v5577 = vld [vmem:[%s4887 + $0xb1] sm:$0xff]
      %v5578 = vld [vmem:[%s4887 + $0xc1] sm:$0xff]
      %v5579 = vld [vmem:[%s4887 + $0xc9] sm:$0xff]
      %v5580 = vld [vmem:[%s4887 + $0xd9] sm:$0xff]
      %v5581 = vld [vmem:[%s4887 + $0xe1] sm:$0xff]
      %v5582 = vld [vmem:[%s4887 + $0xf1] sm:$0xff]
      %v5583 = vld [vmem:[%s4887 + $0xf9] sm:$0xff]
      %v5584 = vld [vmem:[%s4887 + $0x109] sm:$0xff]
      %v5585 = vld [vmem:[%s4887 + $0x111] sm:$0xff]
      %v5586 = vld [vmem:[%s4887 + $0x121] sm:$0xff]
      %v5587 = vld [vmem:[%s4887 + $0x129] sm:$0xff]
      %v5588 = vld [vmem:[%s4887 + $0x139] sm:$0xff]
      %v5589 = vld [vmem:[%s4887 + $0x141] sm:$0xff]
      %v5590 = vld [vmem:[%s4887 + $0x151] sm:$0xff]
      %v5591 = vld [vmem:[%s4887 + $0x159] sm:$0xff]
      %v5592 = vld [vmem:[%s4887 + $0x169] sm:$0xff]
      %v5593 = vld [vmem:[%s4887 + $0x171] sm:$0xff]
      %5626 = vrot.lane.b32.xlu0 %v5562, 16
      %v5627 = vpop.permute.xlu0 %5626
      %5628 = vrot.lane.b32.xlu0 %v5563, 16
      %v5629 = vpop.permute.xlu0 %5628
      %5630 = vrot.lane.b32.xlu0 %v5564, 16
      %v5631 = vpop.permute.xlu0 %5630
      %5632 = vrot.lane.b32.xlu0 %v5565, 16
      %v5633 = vpop.permute.xlu0 %5632
      %5634 = vrot.lane.b32.xlu0 %v5566, 16
      %v5635 = vpop.permute.xlu0 %5634
      %5636 = vrot.lane.b32.xlu0 %v5567, 16
      %v5637 = vpop.permute.xlu0 %5636
      %5638 = vrot.lane.b32.xlu0 %v5568, 16
      %v5639 = vpop.permute.xlu0 %5638
      %5640 = vrot.lane.b32.xlu0 %v5569, 16
      %v5641 = vpop.permute.xlu0 %5640
      %5642 = vrot.lane.b32.xlu0 %v5570, 16
      %v5643 = vpop.permute.xlu0 %5642
      %5644 = vrot.lane.b32.xlu0 %v5571, 16
      %v5645 = vpop.permute.xlu0 %5644
      %5646 = vrot.lane.b32.xlu0 %v5572, 16
      %v5647 = vpop.permute.xlu0 %5646
      %5648 = vrot.lane.b32.xlu0 %v5573, 16
      %v5649 = vpop.permute.xlu0 %5648
      %5650 = vrot.lane.b32.xlu0 %v5574, 16
      %v5651 = vpop.permute.xlu0 %5650
      %5652 = vrot.lane.b32.xlu0 %v5575, 16
      %v5653 = vpop.permute.xlu0 %5652
      %5654 = vrot.lane.b32.xlu0 %v5576, 16
      %v5655 = vpop.permute.xlu0 %5654
      %5656 = vrot.lane.b32.xlu0 %v5577, 16
      %v5657 = vpop.permute.xlu0 %5656
      %5658 = vrot.lane.b32.xlu0 %v5578, 16
      %v5659 = vpop.permute.xlu0 %5658
      %5660 = vrot.lane.b32.xlu0 %v5579, 16
      %v5661 = vpop.permute.xlu0 %5660
      %5662 = vrot.lane.b32.xlu0 %v5580, 16
      %v5663 = vpop.permute.xlu0 %5662
      %5664 = vrot.lane.b32.xlu0 %v5581, 16
      %v5665 = vpop.permute.xlu0 %5664
      %5666 = vrot.lane.b32.xlu0 %v5582, 16
      %v5667 = vpop.permute.xlu0 %5666
      %5668 = vrot.lane.b32.xlu0 %v5583, 16
      %v5669 = vpop.permute.xlu0 %5668
      %5670 = vrot.lane.b32.xlu0 %v5584, 16
      %v5671 = vpop.permute.xlu0 %5670
      %5672 = vrot.lane.b32.xlu0 %v5585, 16
      %v5673 = vpop.permute.xlu0 %5672
      %5674 = vrot.lane.b32.xlu0 %v5586, 16
      %v5675 = vpop.permute.xlu0 %5674
      %5676 = vrot.lane.b32.xlu0 %v5587, 16
      %v5677 = vpop.permute.xlu0 %5676
      %5678 = vrot.lane.b32.xlu0 %v5588, 16
      %v5679 = vpop.permute.xlu0 %5678
      %5680 = vrot.lane.b32.xlu0 %v5589, 16
      %v5681 = vpop.permute.xlu0 %5680
      %5682 = vrot.lane.b32.xlu0 %v5590, 16
      %v5683 = vpop.permute.xlu0 %5682
      %5684 = vrot.lane.b32.xlu0 %v5591, 16
      %v5685 = vpop.permute.xlu0 %5684
      %5686 = vrot.lane.b32.xlu0 %v5592, 16
      %v5687 = vpop.permute.xlu0 %5686
      %5688 = vrot.lane.b32.xlu0 %v5593, 16
      %v5689 = vpop.permute.xlu0 %5688
      %vm5722 = vcmask 162944
      %5723 = vst.msk [vmem:[#allocation5] sm:$0xff] %vm5722, %v5627
      %5724 = vst.msk [vmem:[#allocation5 + $0x8] sm:$0xff] %vm5722, %v5629
      %5725 = vst.msk [vmem:[#allocation5 + $0x10] sm:$0xff] %vm5722, %v5631
      %5726 = vst.msk [vmem:[#allocation5 + $0x18] sm:$0xff] %vm5722, %v5633
      %5727 = vst.msk [vmem:[#allocation5 + $0x20] sm:$0xff] %vm5722, %v5635
      %5728 = vst.msk [vmem:[#allocation5 + $0x28] sm:$0xff] %vm5722, %v5637
      %5729 = vst.msk [vmem:[#allocation5 + $0x30] sm:$0xff] %vm5722, %v5639
      %5730 = vst.msk [vmem:[#allocation5 + $0x38] sm:$0xff] %vm5722, %v5641
      %5731 = vst.msk [vmem:[#allocation5 + $0x40] sm:$0xff] %vm5722, %v5643
      %5732 = vst.msk [vmem:[#allocation5 + $0x48] sm:$0xff] %vm5722, %v5645
      %5733 = vst.msk [vmem:[#allocation5 + $0x50] sm:$0xff] %vm5722, %v5647
      %5734 = vst.msk [vmem:[#allocation5 + $0x58] sm:$0xff] %vm5722, %v5649
      %5735 = vst.msk [vmem:[#allocation5 + $0x60] sm:$0xff] %vm5722, %v5651
      %5736 = vst.msk [vmem:[#allocation5 + $0x68] sm:$0xff] %vm5722, %v5653
      %5737 = vst.msk [vmem:[#allocation5 + $0x70] sm:$0xff] %vm5722, %v5655
      %5738 = vst.msk [vmem:[#allocation5 + $0x78] sm:$0xff] %vm5722, %v5657
      %5739 = vst.msk [vmem:[#allocation5 + $0x80] sm:$0xff] %vm5722, %v5659
      %5740 = vst.msk [vmem:[#allocation5 + $0x88] sm:$0xff] %vm5722, %v5661
      %5741 = vst.msk [vmem:[#allocation5 + $0x90] sm:$0xff] %vm5722, %v5663
      %5742 = vst.msk [vmem:[#allocation5 + $0x98] sm:$0xff] %vm5722, %v5665
      %5743 = vst.msk [vmem:[#allocation5 + $0xa0] sm:$0xff] %vm5722, %v5667
      %5744 = vst.msk [vmem:[#allocation5 + $0xa8] sm:$0xff] %vm5722, %v5669
      %5745 = vst.msk [vmem:[#allocation5 + $0xb0] sm:$0xff] %vm5722, %v5671
      %5746 = vst.msk [vmem:[#allocation5 + $0xb8] sm:$0xff] %vm5722, %v5673
      %5747 = vst.msk [vmem:[#allocation5 + $0xc0] sm:$0xff] %vm5722, %v5675
      %5748 = vst.msk [vmem:[#allocation5 + $0xc8] sm:$0xff] %vm5722, %v5677
      %5749 = vst.msk [vmem:[#allocation5 + $0xd0] sm:$0xff] %vm5722, %v5679
      %5750 = vst.msk [vmem:[#allocation5 + $0xd8] sm:$0xff] %vm5722, %v5681
      %5751 = vst.msk [vmem:[#allocation5 + $0xe0] sm:$0xff] %vm5722, %v5683
      %5752 = vst.msk [vmem:[#allocation5 + $0xe8] sm:$0xff] %vm5722, %v5685
      %5753 = vst.msk [vmem:[#allocation5 + $0xf0] sm:$0xff] %vm5722, %v5687
      %5754 = vst.msk [vmem:[#allocation5 + $0xf8] sm:$0xff] %vm5722, %v5689
      %v5755 = vld [vmem:[%s4887 + $0x2] sm:$0xff]
      %v5756 = vld [vmem:[%s4887 + $0xa] sm:$0xff]
      %v5757 = vld [vmem:[%s4887 + $0x1a] sm:$0xff]
      %v5758 = vld [vmem:[%s4887 + $0x22] sm:$0xff]
      %v5759 = vld [vmem:[%s4887 + $0x32] sm:$0xff]
      %v5760 = vld [vmem:[%s4887 + $0x3a] sm:$0xff]
      %v5761 = vld [vmem:[%s4887 + $0x4a] sm:$0xff]
      %v5762 = vld [vmem:[%s4887 + $0x52] sm:$0xff]
      %v5763 = vld [vmem:[%s4887 + $0x62] sm:$0xff]
      %v5764 = vld [vmem:[%s4887 + $0x6a] sm:$0xff]
      %v5765 = vld [vmem:[%s4887 + $0x7a] sm:$0xff]
      %v5766 = vld [vmem:[%s4887 + $0x82] sm:$0xff]
      %v5767 = vld [vmem:[%s4887 + $0x92] sm:$0xff]
      %v5768 = vld [vmem:[%s4887 + $0x9a] sm:$0xff]
      %v5769 = vld [vmem:[%s4887 + $0xaa] sm:$0xff]
      %v5770 = vld [vmem:[%s4887 + $0xb2] sm:$0xff]
      %v5771 = vld [vmem:[%s4887 + $0xc2] sm:$0xff]
      %v5772 = vld [vmem:[%s4887 + $0xca] sm:$0xff]
      %v5773 = vld [vmem:[%s4887 + $0xda] sm:$0xff]
      %v5774 = vld [vmem:[%s4887 + $0xe2] sm:$0xff]
      %v5775 = vld [vmem:[%s4887 + $0xf2] sm:$0xff]
      %v5776 = vld [vmem:[%s4887 + $0xfa] sm:$0xff]
      %v5777 = vld [vmem:[%s4887 + $0x10a] sm:$0xff]
      %v5778 = vld [vmem:[%s4887 + $0x112] sm:$0xff]
      %v5779 = vld [vmem:[%s4887 + $0x122] sm:$0xff]
      %v5780 = vld [vmem:[%s4887 + $0x12a] sm:$0xff]
      %v5781 = vld [vmem:[%s4887 + $0x13a] sm:$0xff]
      %v5782 = vld [vmem:[%s4887 + $0x142] sm:$0xff]
      %v5783 = vld [vmem:[%s4887 + $0x152] sm:$0xff]
      %v5784 = vld [vmem:[%s4887 + $0x15a] sm:$0xff]
      %v5785 = vld [vmem:[%s4887 + $0x16a] sm:$0xff]
      %v5786 = vld [vmem:[%s4887 + $0x172] sm:$0xff]
      %5819 = vrot.lane.b32.xlu0 %v5755, 20
      %v5820 = vpop.permute.xlu0 %5819
      %5821 = vrot.lane.b32.xlu0 %v5756, 20
      %v5822 = vpop.permute.xlu0 %5821
      %5823 = vrot.lane.b32.xlu0 %v5757, 20
      %v5824 = vpop.permute.xlu0 %5823
      %5825 = vrot.lane.b32.xlu0 %v5758, 20
      %v5826 = vpop.permute.xlu0 %5825
      %5827 = vrot.lane.b32.xlu0 %v5759, 20
      %v5828 = vpop.permute.xlu0 %5827
      %5829 = vrot.lane.b32.xlu0 %v5760, 20
      %v5830 = vpop.permute.xlu0 %5829
      %5831 = vrot.lane.b32.xlu0 %v5761, 20
      %v5832 = vpop.permute.xlu0 %5831
      %5833 = vrot.lane.b32.xlu0 %v5762, 20
      %v5834 = vpop.permute.xlu0 %5833
      %5835 = vrot.lane.b32.xlu0 %v5763, 20
      %v5836 = vpop.permute.xlu0 %5835
      %5837 = vrot.lane.b32.xlu0 %v5764, 20
      %v5838 = vpop.permute.xlu0 %5837
      %5839 = vrot.lane.b32.xlu0 %v5765, 20
      %v5840 = vpop.permute.xlu0 %5839
      %5841 = vrot.lane.b32.xlu0 %v5766, 20
      %v5842 = vpop.permute.xlu0 %5841
      %5843 = vrot.lane.b32.xlu0 %v5767, 20
      %v5844 = vpop.permute.xlu0 %5843
      %5845 = vrot.lane.b32.xlu0 %v5768, 20
      %v5846 = vpop.permute.xlu0 %5845
      %5847 = vrot.lane.b32.xlu0 %v5769, 20
      %v5848 = vpop.permute.xlu0 %5847
      %5849 = vrot.lane.b32.xlu0 %v5770, 20
      %v5850 = vpop.permute.xlu0 %5849
      %5851 = vrot.lane.b32.xlu0 %v5771, 20
      %v5852 = vpop.permute.xlu0 %5851
      %5853 = vrot.lane.b32.xlu0 %v5772, 20
      %v5854 = vpop.permute.xlu0 %5853
      %5855 = vrot.lane.b32.xlu0 %v5773, 20
      %v5856 = vpop.permute.xlu0 %5855
      %5857 = vrot.lane.b32.xlu0 %v5774, 20
      %v5858 = vpop.permute.xlu0 %5857
      %5859 = vrot.lane.b32.xlu0 %v5775, 20
      %v5860 = vpop.permute.xlu0 %5859
      %5861 = vrot.lane.b32.xlu0 %v5776, 20
      %v5862 = vpop.permute.xlu0 %5861
      %5863 = vrot.lane.b32.xlu0 %v5777, 20
      %v5864 = vpop.permute.xlu0 %5863
      %5865 = vrot.lane.b32.xlu0 %v5778, 20
      %v5866 = vpop.permute.xlu0 %5865
      %5867 = vrot.lane.b32.xlu0 %v5779, 20
      %v5868 = vpop.permute.xlu0 %5867
      %5869 = vrot.lane.b32.xlu0 %v5780, 20
      %v5870 = vpop.permute.xlu0 %5869
      %5871 = vrot.lane.b32.xlu0 %v5781, 20
      %v5872 = vpop.permute.xlu0 %5871
      %5873 = vrot.lane.b32.xlu0 %v5782, 20
      %v5874 = vpop.permute.xlu0 %5873
      %5875 = vrot.lane.b32.xlu0 %v5783, 20
      %v5876 = vpop.permute.xlu0 %5875
      %5877 = vrot.lane.b32.xlu0 %v5784, 20
      %v5878 = vpop.permute.xlu0 %5877
      %5879 = vrot.lane.b32.xlu0 %v5785, 20
      %v5880 = vpop.permute.xlu0 %5879
      %5881 = vrot.lane.b32.xlu0 %v5786, 20
      %v5882 = vpop.permute.xlu0 %5881
      %vm5915 = vcmask 195744
      %5916 = vst.msk [vmem:[#allocation5] sm:$0xff] %vm5915, %v5820
      %5917 = vst.msk [vmem:[#allocation5 + $0x8] sm:$0xff] %vm5915, %v5822
      %5918 = vst.msk [vmem:[#allocation5 + $0x10] sm:$0xff] %vm5915, %v5824
      %5919 = vst.msk [vmem:[#allocation5 + $0x18] sm:$0xff] %vm5915, %v5826
      %5920 = vst.msk [vmem:[#allocation5 + $0x20] sm:$0xff] %vm5915, %v5828
      %5921 = vst.msk [vmem:[#allocation5 + $0x28] sm:$0xff] %vm5915, %v5830
      %5922 = vst.msk [vmem:[#allocation5 + $0x30] sm:$0xff] %vm5915, %v5832
      %5923 = vst.msk [vmem:[#allocation5 + $0x38] sm:$0xff] %vm5915, %v5834
      %5924 = vst.msk [vmem:[#allocation5 + $0x40] sm:$0xff] %vm5915, %v5836
      %5925 = vst.msk [vmem:[#allocation5 + $0x48] sm:$0xff] %vm5915, %v5838
      %5926 = vst.msk [vmem:[#allocation5 + $0x50] sm:$0xff] %vm5915, %v5840
      %5927 = vst.msk [vmem:[#allocation5 + $0x58] sm:$0xff] %vm5915, %v5842
      %5928 = vst.msk [vmem:[#allocation5 + $0x60] sm:$0xff] %vm5915, %v5844
      %5929 = vst.msk [vmem:[#allocation5 + $0x68] sm:$0xff] %vm5915, %v5846
      %5930 = vst.msk [vmem:[#allocation5 + $0x70] sm:$0xff] %vm5915, %v5848
      %5931 = vst.msk [vmem:[#allocation5 + $0x78] sm:$0xff] %vm5915, %v5850
      %5932 = vst.msk [vmem:[#allocation5 + $0x80] sm:$0xff] %vm5915, %v5852
      %5933 = vst.msk [vmem:[#allocation5 + $0x88] sm:$0xff] %vm5915, %v5854
      %5934 = vst.msk [vmem:[#allocation5 + $0x90] sm:$0xff] %vm5915, %v5856
      %5935 = vst.msk [vmem:[#allocation5 + $0x98] sm:$0xff] %vm5915, %v5858
      %5936 = vst.msk [vmem:[#allocation5 + $0xa0] sm:$0xff] %vm5915, %v5860
      %5937 = vst.msk [vmem:[#allocation5 + $0xa8] sm:$0xff] %vm5915, %v5862
      %5938 = vst.msk [vmem:[#allocation5 + $0xb0] sm:$0xff] %vm5915, %v5864
      %5939 = vst.msk [vmem:[#allocation5 + $0xb8] sm:$0xff] %vm5915, %v5866
      %5940 = vst.msk [vmem:[#allocation5 + $0xc0] sm:$0xff] %vm5915, %v5868
      %5941 = vst.msk [vmem:[#allocation5 + $0xc8] sm:$0xff] %vm5915, %v5870
      %5942 = vst.msk [vmem:[#allocation5 + $0xd0] sm:$0xff] %vm5915, %v5872
      %5943 = vst.msk [vmem:[#allocation5 + $0xd8] sm:$0xff] %vm5915, %v5874
      %5944 = vst.msk [vmem:[#allocation5 + $0xe0] sm:$0xff] %vm5915, %v5876
      %5945 = vst.msk [vmem:[#allocation5 + $0xe8] sm:$0xff] %vm5915, %v5878
      %5946 = vst.msk [vmem:[#allocation5 + $0xf0] sm:$0xff] %vm5915, %v5880
      %5947 = vst.msk [vmem:[#allocation5 + $0xf8] sm:$0xff] %vm5915, %v5882
      %s5948 = scalar_lea.vmem [#allocation3], 48
      %v5949 = vld [vmem:[%s5948] sm:$0xff]
      %v5950 = vld [vmem:[%s5948 + $0x8] sm:$0xff]
      %v5951 = vld [vmem:[%s5948 + $0x18] sm:$0xff]
      %v5952 = vld [vmem:[%s5948 + $0x20] sm:$0xff]
      %v5953 = vld [vmem:[%s5948 + $0x30] sm:$0xff]
      %v5954 = vld [vmem:[%s5948 + $0x38] sm:$0xff]
      %v5955 = vld [vmem:[%s5948 + $0x48] sm:$0xff]
      %v5956 = vld [vmem:[%s5948 + $0x50] sm:$0xff]
      %v5957 = vld [vmem:[%s5948 + $0x60] sm:$0xff]
      %v5958 = vld [vmem:[%s5948 + $0x68] sm:$0xff]
      %v5959 = vld [vmem:[%s5948 + $0x78] sm:$0xff]
      %v5960 = vld [vmem:[%s5948 + $0x80] sm:$0xff]
      %v5961 = vld [vmem:[%s5948 + $0x90] sm:$0xff]
      %v5962 = vld [vmem:[%s5948 + $0x98] sm:$0xff]
      %v5963 = vld [vmem:[%s5948 + $0xa8] sm:$0xff]
      %v5964 = vld [vmem:[%s5948 + $0xb0] sm:$0xff]
      %v5965 = vld [vmem:[%s5948 + $0xc0] sm:$0xff]
      %v5966 = vld [vmem:[%s5948 + $0xc8] sm:$0xff]
      %v5967 = vld [vmem:[%s5948 + $0xd8] sm:$0xff]
      %v5968 = vld [vmem:[%s5948 + $0xe0] sm:$0xff]
      %v5969 = vld [vmem:[%s5948 + $0xf0] sm:$0xff]
      %v5970 = vld [vmem:[%s5948 + $0xf8] sm:$0xff]
      %v5971 = vld [vmem:[%s5948 + $0x108] sm:$0xff]
      %v5972 = vld [vmem:[%s5948 + $0x110] sm:$0xff]
      %v5973 = vld [vmem:[%s5948 + $0x120] sm:$0xff]
      %v5974 = vld [vmem:[%s5948 + $0x128] sm:$0xff]
      %v5975 = vld [vmem:[%s5948 + $0x138] sm:$0xff]
      %v5976 = vld [vmem:[%s5948 + $0x140] sm:$0xff]
      %v5977 = vld [vmem:[%s5948 + $0x150] sm:$0xff]
      %v5978 = vld [vmem:[%s5948 + $0x158] sm:$0xff]
      %v5979 = vld [vmem:[%s5948 + $0x168] sm:$0xff]
      %v5980 = vld [vmem:[%s5948 + $0x170] sm:$0xff]
      %6013 = vrot.lane.b32.xlu0 %v5949, 24
      %v6014 = vpop.permute.xlu0 %6013
      %6015 = vrot.lane.b32.xlu0 %v5950, 24
      %v6016 = vpop.permute.xlu0 %6015
      %6017 = vrot.lane.b32.xlu0 %v5951, 24
      %v6018 = vpop.permute.xlu0 %6017
      %6019 = vrot.lane.b32.xlu0 %v5952, 24
      %v6020 = vpop.permute.xlu0 %6019
      %6021 = vrot.lane.b32.xlu0 %v5953, 24
      %v6022 = vpop.permute.xlu0 %6021
      %6023 = vrot.lane.b32.xlu0 %v5954, 24
      %v6024 = vpop.permute.xlu0 %6023
      %6025 = vrot.lane.b32.xlu0 %v5955, 24
      %v6026 = vpop.permute.xlu0 %6025
      %6027 = vrot.lane.b32.xlu0 %v5956, 24
      %v6028 = vpop.permute.xlu0 %6027
      %6029 = vrot.lane.b32.xlu0 %v5957, 24
      %v6030 = vpop.permute.xlu0 %6029
      %6031 = vrot.lane.b32.xlu0 %v5958, 24
      %v6032 = vpop.permute.xlu0 %6031
      %6033 = vrot.lane.b32.xlu0 %v5959, 24
      %v6034 = vpop.permute.xlu0 %6033
      %6035 = vrot.lane.b32.xlu0 %v5960, 24
      %v6036 = vpop.permute.xlu0 %6035
      %6037 = vrot.lane.b32.xlu0 %v5961, 24
      %v6038 = vpop.permute.xlu0 %6037
      %6039 = vrot.lane.b32.xlu0 %v5962, 24
      %v6040 = vpop.permute.xlu0 %6039
      %6041 = vrot.lane.b32.xlu0 %v5963, 24
      %v6042 = vpop.permute.xlu0 %6041
      %6043 = vrot.lane.b32.xlu0 %v5964, 24
      %v6044 = vpop.permute.xlu0 %6043
      %6045 = vrot.lane.b32.xlu0 %v5965, 24
      %v6046 = vpop.permute.xlu0 %6045
      %6047 = vrot.lane.b32.xlu0 %v5966, 24
      %v6048 = vpop.permute.xlu0 %6047
      %6049 = vrot.lane.b32.xlu0 %v5967, 24
      %v6050 = vpop.permute.xlu0 %6049
      %6051 = vrot.lane.b32.xlu0 %v5968, 24
      %v6052 = vpop.permute.xlu0 %6051
      %6053 = vrot.lane.b32.xlu0 %v5969, 24
      %v6054 = vpop.permute.xlu0 %6053
      %6055 = vrot.lane.b32.xlu0 %v5970, 24
      %v6056 = vpop.permute.xlu0 %6055
      %6057 = vrot.lane.b32.xlu0 %v5971, 24
      %v6058 = vpop.permute.xlu0 %6057
      %6059 = vrot.lane.b32.xlu0 %v5972, 24
      %v6060 = vpop.permute.xlu0 %6059
      %6061 = vrot.lane.b32.xlu0 %v5973, 24
      %v6062 = vpop.permute.xlu0 %6061
      %6063 = vrot.lane.b32.xlu0 %v5974, 24
      %v6064 = vpop.permute.xlu0 %6063
      %6065 = vrot.lane.b32.xlu0 %v5975, 24
      %v6066 = vpop.permute.xlu0 %6065
      %6067 = vrot.lane.b32.xlu0 %v5976, 24
      %v6068 = vpop.permute.xlu0 %6067
      %6069 = vrot.lane.b32.xlu0 %v5977, 24
      %v6070 = vpop.permute.xlu0 %6069
      %6071 = vrot.lane.b32.xlu0 %v5978, 24
      %v6072 = vpop.permute.xlu0 %6071
      %6073 = vrot.lane.b32.xlu0 %v5979, 24
      %v6074 = vpop.permute.xlu0 %6073
      %6075 = vrot.lane.b32.xlu0 %v5980, 24
      %v6076 = vpop.permute.xlu0 %6075
      %vm6109 = vcmask 228544
      %6110 = vst.msk [vmem:[#allocation5] sm:$0xff] %vm6109, %v6014
      %6111 = vst.msk [vmem:[#allocation5 + $0x8] sm:$0xff] %vm6109, %v6016
      %6112 = vst.msk [vmem:[#allocation5 + $0x10] sm:$0xff] %vm6109, %v6018
      %6113 = vst.msk [vmem:[#allocation5 + $0x18] sm:$0xff] %vm6109, %v6020
      %6114 = vst.msk [vmem:[#allocation5 + $0x20] sm:$0xff] %vm6109, %v6022
      %6115 = vst.msk [vmem:[#allocation5 + $0x28] sm:$0xff] %vm6109, %v6024
      %6116 = vst.msk [vmem:[#allocation5 + $0x30] sm:$0xff] %vm6109, %v6026
      %6117 = vst.msk [vmem:[#allocation5 + $0x38] sm:$0xff] %vm6109, %v6028
      %6118 = vst.msk [vmem:[#allocation5 + $0x40] sm:$0xff] %vm6109, %v6030
      %6119 = vst.msk [vmem:[#allocation5 + $0x48] sm:$0xff] %vm6109, %v6032
      %6120 = vst.msk [vmem:[#allocation5 + $0x50] sm:$0xff] %vm6109, %v6034
      %6121 = vst.msk [vmem:[#allocation5 + $0x58] sm:$0xff] %vm6109, %v6036
      %6122 = vst.msk [vmem:[#allocation5 + $0x60] sm:$0xff] %vm6109, %v6038
      %6123 = vst.msk [vmem:[#allocation5 + $0x68] sm:$0xff] %vm6109, %v6040
      %6124 = vst.msk [vmem:[#allocation5 + $0x70] sm:$0xff] %vm6109, %v6042
      %6125 = vst.msk [vmem:[#allocation5 + $0x78] sm:$0xff] %vm6109, %v6044
      %6126 = vst.msk [vmem:[#allocation5 + $0x80] sm:$0xff] %vm6109, %v6046
      %6127 = vst.msk [vmem:[#allocation5 + $0x88] sm:$0xff] %vm6109, %v6048
      %6128 = vst.msk [vmem:[#allocation5 + $0x90] sm:$0xff] %vm6109, %v6050
      %6129 = vst.msk [vmem:[#allocation5 + $0x98] sm:$0xff] %vm6109, %v6052
      %6130 = vst.msk [vmem:[#allocation5 + $0xa0] sm:$0xff] %vm6109, %v6054
      %6131 = vst.msk [vmem:[#allocation5 + $0xa8] sm:$0xff] %vm6109, %v6056
      %6132 = vst.msk [vmem:[#allocation5 + $0xb0] sm:$0xff] %vm6109, %v6058
      %6133 = vst.msk [vmem:[#allocation5 + $0xb8] sm:$0xff] %vm6109, %v6060
      %6134 = vst.msk [vmem:[#allocation5 + $0xc0] sm:$0xff] %vm6109, %v6062
      %6135 = vst.msk [vmem:[#allocation5 + $0xc8] sm:$0xff] %vm6109, %v6064
      %6136 = vst.msk [vmem:[#allocation5 + $0xd0] sm:$0xff] %vm6109, %v6066
      %6137 = vst.msk [vmem:[#allocation5 + $0xd8] sm:$0xff] %vm6109, %v6068
      %6138 = vst.msk [vmem:[#allocation5 + $0xe0] sm:$0xff] %vm6109, %v6070
      %6139 = vst.msk [vmem:[#allocation5 + $0xe8] sm:$0xff] %vm6109, %v6072
      %6140 = vst.msk [vmem:[#allocation5 + $0xf0] sm:$0xff] %vm6109, %v6074
      %6141 = vst.msk [vmem:[#allocation5 + $0xf8] sm:$0xff] %vm6109, %v6076
      %v6142 = vld [vmem:[%s5948 + $0x1] sm:$0xff]
      %v6143 = vld [vmem:[%s5948 + $0x9] sm:$0xff]
      %v6144 = vld [vmem:[%s5948 + $0x19] sm:$0xff]
      %v6145 = vld [vmem:[%s5948 + $0x21] sm:$0xff]
      %v6146 = vld [vmem:[%s5948 + $0x31] sm:$0xff]
      %v6147 = vld [vmem:[%s5948 + $0x39] sm:$0xff]
      %v6148 = vld [vmem:[%s5948 + $0x49] sm:$0xff]
      %v6149 = vld [vmem:[%s5948 + $0x51] sm:$0xff]
      %v6150 = vld [vmem:[%s5948 + $0x61] sm:$0xff]
      %v6151 = vld [vmem:[%s5948 + $0x69] sm:$0xff]
      %v6152 = vld [vmem:[%s5948 + $0x79] sm:$0xff]
      %v6153 = vld [vmem:[%s5948 + $0x81] sm:$0xff]
      %v6154 = vld [vmem:[%s5948 + $0x91] sm:$0xff]
      %v6155 = vld [vmem:[%s5948 + $0x99] sm:$0xff]
      %v6156 = vld [vmem:[%s5948 + $0xa9] sm:$0xff]
      %v6157 = vld [vmem:[%s5948 + $0xb1] sm:$0xff]
      %v6158 = vld [vmem:[%s5948 + $0xc1] sm:$0xff]
      %v6159 = vld [vmem:[%s5948 + $0xc9] sm:$0xff]
      %v6160 = vld [vmem:[%s5948 + $0xd9] sm:$0xff]
      %v6161 = vld [vmem:[%s5948 + $0xe1] sm:$0xff]
      %v6162 = vld [vmem:[%s5948 + $0xf1] sm:$0xff]
      %v6163 = vld [vmem:[%s5948 + $0xf9] sm:$0xff]
      %v6164 = vld [vmem:[%s5948 + $0x109] sm:$0xff]
      %v6165 = vld [vmem:[%s5948 + $0x111] sm:$0xff]
      %v6166 = vld [vmem:[%s5948 + $0x121] sm:$0xff]
      %v6167 = vld [vmem:[%s5948 + $0x129] sm:$0xff]
      %v6168 = vld [vmem:[%s5948 + $0x139] sm:$0xff]
      %v6169 = vld [vmem:[%s5948 + $0x141] sm:$0xff]
      %v6170 = vld [vmem:[%s5948 + $0x151] sm:$0xff]
      %v6171 = vld [vmem:[%s5948 + $0x159] sm:$0xff]
      %v6172 = vld [vmem:[%s5948 + $0x169] sm:$0xff]
      %v6173 = vld [vmem:[%s5948 + $0x171] sm:$0xff]
      %6206 = vrot.lane.b32.xlu0 %v6142, 28
      %v6207 = vpop.permute.xlu0 %6206
      %6208 = vrot.lane.b32.xlu0 %v6143, 28
      %v6209 = vpop.permute.xlu0 %6208
      %6210 = vrot.lane.b32.xlu0 %v6144, 28
      %v6211 = vpop.permute.xlu0 %6210
      %6212 = vrot.lane.b32.xlu0 %v6145, 28
      %v6213 = vpop.permute.xlu0 %6212
      %6214 = vrot.lane.b32.xlu0 %v6146, 28
      %v6215 = vpop.permute.xlu0 %6214
      %6216 = vrot.lane.b32.xlu0 %v6147, 28
      %v6217 = vpop.permute.xlu0 %6216
      %6218 = vrot.lane.b32.xlu0 %v6148, 28
      %v6219 = vpop.permute.xlu0 %6218
      %6220 = vrot.lane.b32.xlu0 %v6149, 28
      %v6221 = vpop.permute.xlu0 %6220
      %6222 = vrot.lane.b32.xlu0 %v6150, 28
      %v6223 = vpop.permute.xlu0 %6222
      %6224 = vrot.lane.b32.xlu0 %v6151, 28
      %v6225 = vpop.permute.xlu0 %6224
      %6226 = vrot.lane.b32.xlu0 %v6152, 28
      %v6227 = vpop.permute.xlu0 %6226
      %6228 = vrot.lane.b32.xlu0 %v6153, 28
      %v6229 = vpop.permute.xlu0 %6228
      %6230 = vrot.lane.b32.xlu0 %v6154, 28
      %v6231 = vpop.permute.xlu0 %6230
      %6232 = vrot.lane.b32.xlu0 %v6155, 28
      %v6233 = vpop.permute.xlu0 %6232
      %6234 = vrot.lane.b32.xlu0 %v6156, 28
      %v6235 = vpop.permute.xlu0 %6234
      %6236 = vrot.lane.b32.xlu0 %v6157, 28
      %v6237 = vpop.permute.xlu0 %6236
      %6238 = vrot.lane.b32.xlu0 %v6158, 28
      %v6239 = vpop.permute.xlu0 %6238
      %6240 = vrot.lane.b32.xlu0 %v6159, 28
      %v6241 = vpop.permute.xlu0 %6240
      %6242 = vrot.lane.b32.xlu0 %v6160, 28
      %v6243 = vpop.permute.xlu0 %6242
      %6244 = vrot.lane.b32.xlu0 %v6161, 28
      %v6245 = vpop.permute.xlu0 %6244
      %6246 = vrot.lane.b32.xlu0 %v6162, 28
      %v6247 = vpop.permute.xlu0 %6246
      %6248 = vrot.lane.b32.xlu0 %v6163, 28
      %v6249 = vpop.permute.xlu0 %6248
      %6250 = vrot.lane.b32.xlu0 %v6164, 28
      %v6251 = vpop.permute.xlu0 %6250
      %6252 = vrot.lane.b32.xlu0 %v6165, 28
      %v6253 = vpop.permute.xlu0 %6252
      %6254 = vrot.lane.b32.xlu0 %v6166, 28
      %v6255 = vpop.permute.xlu0 %6254
      %6256 = vrot.lane.b32.xlu0 %v6167, 28
      %v6257 = vpop.permute.xlu0 %6256
      %6258 = vrot.lane.b32.xlu0 %v6168, 28
      %v6259 = vpop.permute.xlu0 %6258
      %6260 = vrot.lane.b32.xlu0 %v6169, 28
      %v6261 = vpop.permute.xlu0 %6260
      %6262 = vrot.lane.b32.xlu0 %v6170, 28
      %v6263 = vpop.permute.xlu0 %6262
      %6264 = vrot.lane.b32.xlu0 %v6171, 28
      %v6265 = vpop.permute.xlu0 %6264
      %6266 = vrot.lane.b32.xlu0 %v6172, 28
      %v6267 = vpop.permute.xlu0 %6266
      %6268 = vrot.lane.b32.xlu0 %v6173, 28
      %v6269 = vpop.permute.xlu0 %6268
      %vm6302 = vcmask 261344
      %6303 = vst.msk [vmem:[#allocation5] sm:$0xff] %vm6302, %v6207
      %6304 = vst.msk [vmem:[#allocation5 + $0x8] sm:$0xff] %vm6302, %v6209
      %6305 = vst.msk [vmem:[#allocation5 + $0x10] sm:$0xff] %vm6302, %v6211
      %6306 = vst.msk [vmem:[#allocation5 + $0x18] sm:$0xff] %vm6302, %v6213
      %6307 = vst.msk [vmem:[#allocation5 + $0x20] sm:$0xff] %vm6302, %v6215
      %6308 = vst.msk [vmem:[#allocation5 + $0x28] sm:$0xff] %vm6302, %v6217
      %6309 = vst.msk [vmem:[#allocation5 + $0x30] sm:$0xff] %vm6302, %v6219
      %6310 = vst.msk [vmem:[#allocation5 + $0x38] sm:$0xff] %vm6302, %v6221
      %6311 = vst.msk [vmem:[#allocation5 + $0x40] sm:$0xff] %vm6302, %v6223
      %6312 = vst.msk [vmem:[#allocation5 + $0x48] sm:$0xff] %vm6302, %v6225
      %6313 = vst.msk [vmem:[#allocation5 + $0x50] sm:$0xff] %vm6302, %v6227
      %6314 = vst.msk [vmem:[#allocation5 + $0x58] sm:$0xff] %vm6302, %v6229
      %6315 = vst.msk [vmem:[#allocation5 + $0x60] sm:$0xff] %vm6302, %v6231
      %6316 = vst.msk [vmem:[#allocation5 + $0x68] sm:$0xff] %vm6302, %v6233
      %6317 = vst.msk [vmem:[#allocation5 + $0x70] sm:$0xff] %vm6302, %v6235
      %6318 = vst.msk [vmem:[#allocation5 + $0x78] sm:$0xff] %vm6302, %v6237
      %6319 = vst.msk [vmem:[#allocation5 + $0x80] sm:$0xff] %vm6302, %v6239
      %6320 = vst.msk [vmem:[#allocation5 + $0x88] sm:$0xff] %vm6302, %v6241
      %6321 = vst.msk [vmem:[#allocation5 + $0x90] sm:$0xff] %vm6302, %v6243
      %6322 = vst.msk [vmem:[#allocation5 + $0x98] sm:$0xff] %vm6302, %v6245
      %6323 = vst.msk [vmem:[#allocation5 + $0xa0] sm:$0xff] %vm6302, %v6247
      %6324 = vst.msk [vmem:[#allocation5 + $0xa8] sm:$0xff] %vm6302, %v6249
      %6325 = vst.msk [vmem:[#allocation5 + $0xb0] sm:$0xff] %vm6302, %v6251
      %6326 = vst.msk [vmem:[#allocation5 + $0xb8] sm:$0xff] %vm6302, %v6253
      %6327 = vst.msk [vmem:[#allocation5 + $0xc0] sm:$0xff] %vm6302, %v6255
      %6328 = vst.msk [vmem:[#allocation5 + $0xc8] sm:$0xff] %vm6302, %v6257
      %6329 = vst.msk [vmem:[#allocation5 + $0xd0] sm:$0xff] %vm6302, %v6259
      %6330 = vst.msk [vmem:[#allocation5 + $0xd8] sm:$0xff] %vm6302, %v6261
      %6331 = vst.msk [vmem:[#allocation5 + $0xe0] sm:$0xff] %vm6302, %v6263
      %6332 = vst.msk [vmem:[#allocation5 + $0xe8] sm:$0xff] %vm6302, %v6265
      %6333 = vst.msk [vmem:[#allocation5 + $0xf0] sm:$0xff] %vm6302, %v6267
      %6334 = vst.msk [vmem:[#allocation5 + $0xf8] sm:$0xff] %vm6302, %v6269
      %v6335 = vld [vmem:[%s5948 + $0x2] sm:$0xff]
      %v6336 = vld [vmem:[%s5948 + $0xa] sm:$0xff]
      %v6337 = vld [vmem:[%s5948 + $0x1a] sm:$0xff]
      %v6338 = vld [vmem:[%s5948 + $0x22] sm:$0xff]
      %v6339 = vld [vmem:[%s5948 + $0x32] sm:$0xff]
      %v6340 = vld [vmem:[%s5948 + $0x3a] sm:$0xff]
      %v6341 = vld [vmem:[%s5948 + $0x4a] sm:$0xff]
      %v6342 = vld [vmem:[%s5948 + $0x52] sm:$0xff]
      %v6343 = vld [vmem:[%s5948 + $0x62] sm:$0xff]
      %v6344 = vld [vmem:[%s5948 + $0x6a] sm:$0xff]
      %v6345 = vld [vmem:[%s5948 + $0x7a] sm:$0xff]
      %v6346 = vld [vmem:[%s5948 + $0x82] sm:$0xff]
      %v6347 = vld [vmem:[%s5948 + $0x92] sm:$0xff]
      %v6348 = vld [vmem:[%s5948 + $0x9a] sm:$0xff]
      %v6349 = vld [vmem:[%s5948 + $0xaa] sm:$0xff]
      %v6350 = vld [vmem:[%s5948 + $0xb2] sm:$0xff]
      %v6351 = vld [vmem:[%s5948 + $0xc2] sm:$0xff]
      %v6352 = vld [vmem:[%s5948 + $0xca] sm:$0xff]
      %v6353 = vld [vmem:[%s5948 + $0xda] sm:$0xff]
      %v6354 = vld [vmem:[%s5948 + $0xe2] sm:$0xff]
      %v6355 = vld [vmem:[%s5948 + $0xf2] sm:$0xff]
      %v6356 = vld [vmem:[%s5948 + $0xfa] sm:$0xff]
      %v6357 = vld [vmem:[%s5948 + $0x10a] sm:$0xff]
      %v6358 = vld [vmem:[%s5948 + $0x112] sm:$0xff]
      %v6359 = vld [vmem:[%s5948 + $0x122] sm:$0xff]
      %v6360 = vld [vmem:[%s5948 + $0x12a] sm:$0xff]
      %v6361 = vld [vmem:[%s5948 + $0x13a] sm:$0xff]
      %v6362 = vld [vmem:[%s5948 + $0x142] sm:$0xff]
      %v6363 = vld [vmem:[%s5948 + $0x152] sm:$0xff]
      %v6364 = vld [vmem:[%s5948 + $0x15a] sm:$0xff]
      %v6365 = vld [vmem:[%s5948 + $0x16a] sm:$0xff]
      %v6366 = vld [vmem:[%s5948 + $0x172] sm:$0xff]
      %6399 = vrot.lane.b32.xlu0 %v6335, 32
      %v6400 = vpop.permute.xlu0 %6399
      %6401 = vrot.lane.b32.xlu0 %v6336, 32
      %v6402 = vpop.permute.xlu0 %6401
      %6403 = vrot.lane.b32.xlu0 %v6337, 32
      %v6404 = vpop.permute.xlu0 %6403
      %6405 = vrot.lane.b32.xlu0 %v6338, 32
      %v6406 = vpop.permute.xlu0 %6405
      %6407 = vrot.lane.b32.xlu0 %v6339, 32
      %v6408 = vpop.permute.xlu0 %6407
      %6409 = vrot.lane.b32.xlu0 %v6340, 32
      %v6410 = vpop.permute.xlu0 %6409
      %6411 = vrot.lane.b32.xlu0 %v6341, 32
      %v6412 = vpop.permute.xlu0 %6411
      %6413 = vrot.lane.b32.xlu0 %v6342, 32
      %v6414 = vpop.permute.xlu0 %6413
      %6415 = vrot.lane.b32.xlu0 %v6343, 32
      %v6416 = vpop.permute.xlu0 %6415
      %6417 = vrot.lane.b32.xlu0 %v6344, 32
      %v6418 = vpop.permute.xlu0 %6417
      %6419 = vrot.lane.b32.xlu0 %v6345, 32
      %v6420 = vpop.permute.xlu0 %6419
      %6421 = vrot.lane.b32.xlu0 %v6346, 32
      %v6422 = vpop.permute.xlu0 %6421
      %6423 = vrot.lane.b32.xlu0 %v6347, 32
      %v6424 = vpop.permute.xlu0 %6423
      %6425 = vrot.lane.b32.xlu0 %v6348, 32
      %v6426 = vpop.permute.xlu0 %6425
      %6427 = vrot.lane.b32.xlu0 %v6349, 32
      %v6428 = vpop.permute.xlu0 %6427
      %6429 = vrot.lane.b32.xlu0 %v6350, 32
      %v6430 = vpop.permute.xlu0 %6429
      %6431 = vrot.lane.b32.xlu0 %v6351, 32
      %v6432 = vpop.permute.xlu0 %6431
      %6433 = vrot.lane.b32.xlu0 %v6352, 32
      %v6434 = vpop.permute.xlu0 %6433
      %6435 = vrot.lane.b32.xlu0 %v6353, 32
      %v6436 = vpop.permute.xlu0 %6435
      %6437 = vrot.lane.b32.xlu0 %v6354, 32
      %v6438 = vpop.permute.xlu0 %6437
      %6439 = vrot.lane.b32.xlu0 %v6355, 32
      %v6440 = vpop.permute.xlu0 %6439
      %6441 = vrot.lane.b32.xlu0 %v6356, 32
      %v6442 = vpop.permute.xlu0 %6441
      %6443 = vrot.lane.b32.xlu0 %v6357, 32
      %v6444 = vpop.permute.xlu0 %6443
      %6445 = vrot.lane.b32.xlu0 %v6358, 32
      %v6446 = vpop.permute.xlu0 %6445
      %6447 = vrot.lane.b32.xlu0 %v6359, 32
      %v6448 = vpop.permute.xlu0 %6447
      %6449 = vrot.lane.b32.xlu0 %v6360, 32
      %v6450 = vpop.permute.xlu0 %6449
      %6451 = vrot.lane.b32.xlu0 %v6361, 32
      %v6452 = vpop.permute.xlu0 %6451
      %6453 = vrot.lane.b32.xlu0 %v6362, 32
      %v6454 = vpop.permute.xlu0 %6453
      %6455 = vrot.lane.b32.xlu0 %v6363, 32
      %v6456 = vpop.permute.xlu0 %6455
      %6457 = vrot.lane.b32.xlu0 %v6364, 32
      %v6458 = vpop.permute.xlu0 %6457
      %6459 = vrot.lane.b32.xlu0 %v6365, 32
      %v6460 = vpop.permute.xlu0 %6459
      %6461 = vrot.lane.b32.xlu0 %v6366, 32
      %v6462 = vpop.permute.xlu0 %6461
      %vm6495 = vcmask 294144
      %6496 = vst.msk [vmem:[#allocation5] sm:$0xff] %vm6495, %v6400
      %6497 = vst.msk [vmem:[#allocation5 + $0x8] sm:$0xff] %vm6495, %v6402
      %6498 = vst.msk [vmem:[#allocation5 + $0x10] sm:$0xff] %vm6495, %v6404
      %6499 = vst.msk [vmem:[#allocation5 + $0x18] sm:$0xff] %vm6495, %v6406
      %6500 = vst.msk [vmem:[#allocation5 + $0x20] sm:$0xff] %vm6495, %v6408
      %6501 = vst.msk [vmem:[#allocation5 + $0x28] sm:$0xff] %vm6495, %v6410
      %6502 = vst.msk [vmem:[#allocation5 + $0x30] sm:$0xff] %vm6495, %v6412
      %6503 = vst.msk [vmem:[#allocation5 + $0x38] sm:$0xff] %vm6495, %v6414
      %6504 = vst.msk [vmem:[#allocation5 + $0x40] sm:$0xff] %vm6495, %v6416
      %6505 = vst.msk [vmem:[#allocation5 + $0x48] sm:$0xff] %vm6495, %v6418
      %6506 = vst.msk [vmem:[#allocation5 + $0x50] sm:$0xff] %vm6495, %v6420
      %6507 = vst.msk [vmem:[#allocation5 + $0x58] sm:$0xff] %vm6495, %v6422
      %6508 = vst.msk [vmem:[#allocation5 + $0x60] sm:$0xff] %vm6495, %v6424
      %6509 = vst.msk [vmem:[#allocation5 + $0x68] sm:$0xff] %vm6495, %v6426
      %6510 = vst.msk [vmem:[#allocation5 + $0x70] sm:$0xff] %vm6495, %v6428
      %6511 = vst.msk [vmem:[#allocation5 + $0x78] sm:$0xff] %vm6495, %v6430
      %6512 = vst.msk [vmem:[#allocation5 + $0x80] sm:$0xff] %vm6495, %v6432
      %6513 = vst.msk [vmem:[#allocation5 + $0x88] sm:$0xff] %vm6495, %v6434
      %6514 = vst.msk [vmem:[#allocation5 + $0x90] sm:$0xff] %vm6495, %v6436
      %6515 = vst.msk [vmem:[#allocation5 + $0x98] sm:$0xff] %vm6495, %v6438
      %6516 = vst.msk [vmem:[#allocation5 + $0xa0] sm:$0xff] %vm6495, %v6440
      %6517 = vst.msk [vmem:[#allocation5 + $0xa8] sm:$0xff] %vm6495, %v6442
      %6518 = vst.msk [vmem:[#allocation5 + $0xb0] sm:$0xff] %vm6495, %v6444
      %6519 = vst.msk [vmem:[#allocation5 + $0xb8] sm:$0xff] %vm6495, %v6446
      %6520 = vst.msk [vmem:[#allocation5 + $0xc0] sm:$0xff] %vm6495, %v6448
      %6521 = vst.msk [vmem:[#allocation5 + $0xc8] sm:$0xff] %vm6495, %v6450
      %6522 = vst.msk [vmem:[#allocation5 + $0xd0] sm:$0xff] %vm6495, %v6452
      %6523 = vst.msk [vmem:[#allocation5 + $0xd8] sm:$0xff] %vm6495, %v6454
      %6524 = vst.msk [vmem:[#allocation5 + $0xe0] sm:$0xff] %vm6495, %v6456
      %6525 = vst.msk [vmem:[#allocation5 + $0xe8] sm:$0xff] %vm6495, %v6458
      %6526 = vst.msk [vmem:[#allocation5 + $0xf0] sm:$0xff] %vm6495, %v6460
      %6527 = vst.msk [vmem:[#allocation5 + $0xf8] sm:$0xff] %vm6495, %v6462
      %v6528 = vld [vmem:[#allocation5] sm:$0xff]
      %v6529 = vld [vmem:[#allocation5 + $0x8] sm:$0xff]
      %v6530 = vld [vmem:[#allocation5 + $0x10] sm:$0xff]
      %v6531 = vld [vmem:[#allocation5 + $0x18] sm:$0xff]
      %v6532 = vld [vmem:[#allocation5 + $0x20] sm:$0xff]
      %v6533 = vld [vmem:[#allocation5 + $0x28] sm:$0xff]
      %v6534 = vld [vmem:[#allocation5 + $0x30] sm:$0xff]
      %v6535 = vld [vmem:[#allocation5 + $0x38] sm:$0xff]
      %v6536 = vld [vmem:[#allocation5 + $0x40] sm:$0xff]
      %v6537 = vld [vmem:[#allocation5 + $0x48] sm:$0xff]
      %v6538 = vld [vmem:[#allocation5 + $0x50] sm:$0xff]
      %v6539 = vld [vmem:[#allocation5 + $0x58] sm:$0xff]
      %v6540 = vld [vmem:[#allocation5 + $0x60] sm:$0xff]
      %v6541 = vld [vmem:[#allocation5 + $0x68] sm:$0xff]
      %v6542 = vld [vmem:[#allocation5 + $0x70] sm:$0xff]
      %v6543 = vld [vmem:[#allocation5 + $0x78] sm:$0xff]
      %v6544 = vld [vmem:[#allocation5 + $0x80] sm:$0xff]
      %v6545 = vld [vmem:[#allocation5 + $0x88] sm:$0xff]
      %v6546 = vld [vmem:[#allocation5 + $0x90] sm:$0xff]
      %v6547 = vld [vmem:[#allocation5 + $0x98] sm:$0xff]
      %v6548 = vld [vmem:[#allocation5 + $0xa0] sm:$0xff]
      %v6549 = vld [vmem:[#allocation5 + $0xa8] sm:$0xff]
      %v6550 = vld [vmem:[#allocation5 + $0xb0] sm:$0xff]
      %v6551 = vld [vmem:[#allocation5 + $0xb8] sm:$0xff]
      %v6552 = vld [vmem:[#allocation5 + $0xc0] sm:$0xff]
      %v6553 = vld [vmem:[#allocation5 + $0xc8] sm:$0xff]
      %v6554 = vld [vmem:[#allocation5 + $0xd0] sm:$0xff]
      %v6555 = vld [vmem:[#allocation5 + $0xd8] sm:$0xff]
      %v6556 = vld [vmem:[#allocation5 + $0xe0] sm:$0xff]
      %v6557 = vld [vmem:[#allocation5 + $0xe8] sm:$0xff]
      %v6558 = vld [vmem:[#allocation5 + $0xf0] sm:$0xff]
      %v6559 = vld [vmem:[#allocation5 + $0xf8] sm:$0xff]
      %v6560 = vld [vmem:[%s6] sm:$0xff]
      %v6561 = vld [vmem:[%s6 + $0x8] sm:$0xff]
      %v6562 = vld [vmem:[%s6 + $0x10] sm:$0xff]
      %v6563 = vld [vmem:[%s6 + $0x18] sm:$0xff]
      %v6564 = vld [vmem:[%s6 + $0x20] sm:$0xf]
      %v6565 = vld [vmem:[%s7] sm:$0x1]
      %v6567 = vlaneseq
      %v6568 = vshrl.u32 %v6567, 7
      %v6569 = vsub.s32 0, %v6568
      %v6570 = vrot.slane %v6565, %v6569
      %vm6572 = vcmask 293888
      %v6574 = vsel %vm6572, %v6528, 0
      %v6577 = vsel %vm6572, %v6529, 0
      %v6580 = vsel %vm6572, %v6530, 0
      %v6583 = vsel %vm6572, %v6531, 0
      %v6586 = vsel %vm6572, %v6532, 0
      %v6589 = vsel %vm6572, %v6533, 0
      %v6592 = vsel %vm6572, %v6534, 0
      %v6595 = vsel %vm6572, %v6535, 0
      %v6598 = vsel %vm6572, %v6536, 0
      %v6601 = vsel %vm6572, %v6537, 0
      %v6604 = vsel %vm6572, %v6538, 0
      %v6607 = vsel %vm6572, %v6539, 0
      %v6610 = vsel %vm6572, %v6540, 0
      %v6613 = vsel %vm6572, %v6541, 0
      %v6616 = vsel %vm6572, %v6542, 0
      %v6619 = vsel %vm6572, %v6543, 0
      %v6622 = vsel %vm6572, %v6544, 0
      %v6625 = vsel %vm6572, %v6545, 0
      %v6628 = vsel %vm6572, %v6546, 0
      %v6631 = vsel %vm6572, %v6547, 0
      %v6634 = vsel %vm6572, %v6548, 0
      %v6637 = vsel %vm6572, %v6549, 0
      %v6640 = vsel %vm6572, %v6550, 0
      %v6643 = vsel %vm6572, %v6551, 0
      %v6646 = vsel %vm6572, %v6552, 0
      %v6649 = vsel %vm6572, %v6553, 0
      %v6652 = vsel %vm6572, %v6554, 0
      %v6655 = vsel %vm6572, %v6555, 0
      %v6658 = vsel %vm6572, %v6556, 0
      %v6661 = vsel %vm6572, %v6557, 0
      %v6664 = vsel %vm6572, %v6558, 0
      %v6667 = vsel %vm6572, %v6559, 0
      %vm6669 = vcmask 1043456
      %v6671 = vsel %vm6669, %v6564, 0
      %6673 = vmatprep.subr.mxu0 0.0
      %6674 = vmatpush1.msra.mxu0 %v6560
      %6675 = vmatprep.subr.mxu0 0.0
      %6676 = vmatpush1.msra.mxu0 %v6561
      %6677 = vmatprep.subr.mxu0 0.0
      %6678 = vmatpush1.msra.mxu0 %v6562
      %6679 = vmatprep.subr.mxu0 0.0
      %6680 = vmatpush1.msra.mxu0 %v6563
      %6681 = vmatprep.subr.mxu0 0.0
      %6682 = vmatpush1.msra.mxu0 %v6671
      %6683 = vmatprep.subr.mxu0 0.0
      %6684 = vmatpush1.msra.mxu0 0.0
      %6685 = vmatprep.subr.mxu0 0.0
      %6686 = vmatpush1.msra.mxu0 0.0
      %6687 = vmatprep.subr.mxu0 0.0
      %6688 = vmatpush1.msra.mxu0 0.0
      %6689 = vmatprep.subr.mxu0 0.0
      %6690 = vmatpush1.msra.mxu0 0.0
      %6691 = vmatprep.subr.mxu0 0.0
      %6692 = vmatpush1.msra.mxu0 0.0
      %6693 = vmatprep.subr.mxu0 0.0
      %6694 = vmatpush1.msra.mxu0 0.0
      %6695 = vmatprep.subr.mxu0 0.0
      %6696 = vmatpush1.msra.mxu0 0.0
      %6697 = vmatprep.subr.mxu0 0.0
      %6698 = vmatpush1.msra.mxu0 0.0
      %6699 = vmatprep.subr.mxu0 0.0
      %6700 = vmatpush1.msra.mxu0 0.0
      %6701 = vmatprep.subr.mxu0 0.0
      %6702 = vmatpush1.msra.mxu0 0.0
      %6703 = vmatprep.subr.mxu0 0.0
      %6704 = vmatpush1.msra.mxu0 0.0
      %6705 = vmatprep.subr.mxu0 0.0
      %6706 = vmatpush1.msra.mxu0 0.0
      %6707 = vmatprep.subr.mxu0 0.0
      %6708 = vmatpush1.msra.mxu0 0.0
      %6709 = vmatprep.subr.mxu0 0.0
      %6710 = vmatpush1.msra.mxu0 0.0
      %6711 = vmatprep.subr.mxu0 0.0
      %6712 = vmatpush1.msra.mxu0 0.0
      %6713 = vmatprep.subr.mxu0 0.0
      %6714 = vmatpush1.msra.mxu0 0.0
      %6715 = vmatprep.subr.mxu0 0.0
      %6716 = vmatpush1.msra.mxu0 0.0
      %6717 = vmatprep.subr.mxu0 0.0
      %6718 = vmatpush1.msra.mxu0 0.0
      %6719 = vmatprep.subr.mxu0 0.0
      %6720 = vmatpush1.msra.mxu0 0.0
      %6721 = vmatprep.subr.mxu0 0.0
      %6722 = vmatpush1.msra.mxu0 0.0
      %6723 = vmatprep.subr.mxu0 0.0
      %6724 = vmatpush1.msra.mxu0 0.0
      %6725 = vmatprep.subr.mxu0 0.0
      %6726 = vmatpush1.msra.mxu0 0.0
      %6727 = vmatprep.subr.mxu0 0.0
      %6728 = vmatpush1.msra.mxu0 0.0
      %6729 = vmatprep.subr.mxu0 0.0
      %6730 = vmatpush1.msra.mxu0 0.0
      %6731 = vmatprep.subr.mxu0 0.0
      %6732 = vmatpush1.msra.mxu0 0.0
      %6733 = vmatprep.subr.mxu0 0.0
      %6734 = vmatpush1.msra.mxu0 0.0
      %6735 = vmatprep.subr.mxu0 0.0
      %6736 = vmatpush1.msra.mxu0 0.0
      %6737 = vmatprep.mubr.f32.mxu0 0.0
      %6738 = vmatmul.mubr.f32.gmra.mrb[0].mxu0 %v6574
      %v6739 = vpop.f32.mrb[0].mxu0
      %v6740 = vadd.f32 %v6570, %v6739
      %v6741 = vpop.f32.mrb[0].mxu0
      %6742 = vmatprep.mubr.f32.mxu0 0.0
      %6743 = vmatmul.mubr.f32.gmra.mrb[0].mxu0 %v6577
      %v6744 = vpop.f32.mrb[0].mxu0
      %v6745 = vadd.f32 %v6570, %v6744
      %v6746 = vpop.f32.mrb[0].mxu0
      %6747 = vmatprep.mubr.f32.mxu0 0.0
      %6748 = vmatmul.mubr.f32.gmra.mrb[0].mxu0 %v6580
      %v6749 = vpop.f32.mrb[0].mxu0
      %v6750 = vadd.f32 %v6570, %v6749
      %v6751 = vpop.f32.mrb[0].mxu0
      %6752 = vmatprep.mubr.f32.mxu0 0.0
      %6753 = vmatmul.mubr.f32.gmra.mrb[0].mxu0 %v6583
      %v6754 = vpop.f32.mrb[0].mxu0
      %v6755 = vadd.f32 %v6570, %v6754
      %v6756 = vpop.f32.mrb[0].mxu0
      %6757 = vmatprep.mubr.f32.mxu0 0.0
      %6758 = vmatmul.mubr.f32.gmra.mrb[0].mxu0 %v6586
      %v6759 = vpop.f32.mrb[0].mxu0
      %v6760 = vadd.f32 %v6570, %v6759
      %v6761 = vpop.f32.mrb[0].mxu0
      %6762 = vmatprep.mubr.f32.mxu0 0.0
      %6763 = vmatmul.mubr.f32.gmra.mrb[0].mxu0 %v6589
      %v6764 = vpop.f32.mrb[0].mxu0
      %v6765 = vadd.f32 %v6570, %v6764
      %v6766 = vpop.f32.mrb[0].mxu0
      %6767 = vmatprep.mubr.f32.mxu0 0.0
      %6768 = vmatmul.mubr.f32.gmra.mrb[0].mxu0 %v6592
      %v6769 = vpop.f32.mrb[0].mxu0
      %v6770 = vadd.f32 %v6570, %v6769
      %v6771 = vpop.f32.mrb[0].mxu0
      %6772 = vmatprep.mubr.f32.mxu0 0.0
      %6773 = vmatmul.mubr.f32.gmra.mrb[0].mxu0 %v6595
      %v6774 = vpop.f32.mrb[0].mxu0
      %v6775 = vadd.f32 %v6570, %v6774
      %v6776 = vpop.f32.mrb[0].mxu0
      %6777 = vmatprep.mubr.f32.mxu0 0.0
      %6778 = vmatmul.mubr.f32.gmra.mrb[0].mxu0 %v6598
      %v6779 = vpop.f32.mrb[0].mxu0
      %v6780 = vadd.f32 %v6570, %v6779
      %v6781 = vpop.f32.mrb[0].mxu0
      %6782 = vmatprep.mubr.f32.mxu0 0.0
      %6783 = vmatmul.mubr.f32.gmra.mrb[0].mxu0 %v6601
      %v6784 = vpop.f32.mrb[0].mxu0
      %v6785 = vadd.f32 %v6570, %v6784
      %v6786 = vpop.f32.mrb[0].mxu0
      %6787 = vmatprep.mubr.f32.mxu0 0.0
      %6788 = vmatmul.mubr.f32.gmra.mrb[0].mxu0 %v6604
      %v6789 = vpop.f32.mrb[0].mxu0
      %v6790 = vadd.f32 %v6570, %v6789
      %v6791 = vpop.f32.mrb[0].mxu0
      %6792 = vmatprep.mubr.f32.mxu0 0.0
      %6793 = vmatmul.mubr.f32.gmra.mrb[0].mxu0 %v6607
      %v6794 = vpop.f32.mrb[0].mxu0
      %v6795 = vadd.f32 %v6570, %v6794
      %v6796 = vpop.f32.mrb[0].mxu0
      %6797 = vmatprep.mubr.f32.mxu0 0.0
      %6798 = vmatmul.mubr.f32.gmra.mrb[0].mxu0 %v6610
      %v6799 = vpop.f32.mrb[0].mxu0
      %v6800 = vadd.f32 %v6570, %v6799
      %v6801 = vpop.f32.mrb[0].mxu0
      %6802 = vmatprep.mubr.f32.mxu0 0.0
      %6803 = vmatmul.mubr.f32.gmra.mrb[0].mxu0 %v6613
      %v6804 = vpop.f32.mrb[0].mxu0
      %v6805 = vadd.f32 %v6570, %v6804
      %v6806 = vpop.f32.mrb[0].mxu0
      %6807 = vmatprep.mubr.f32.mxu0 0.0
      %6808 = vmatmul.mubr.f32.gmra.mrb[0].mxu0 %v6616
      %v6809 = vpop.f32.mrb[0].mxu0
      %v6810 = vadd.f32 %v6570, %v6809
      %v6811 = vpop.f32.mrb[0].mxu0
      %6812 = vmatprep.mubr.f32.mxu0 0.0
      %6813 = vmatmul.mubr.f32.gmra.mrb[0].mxu0 %v6619
      %v6814 = vpop.f32.mrb[0].mxu0
      %v6815 = vadd.f32 %v6570, %v6814
      %v6816 = vpop.f32.mrb[0].mxu0
      %6817 = vmatprep.mubr.f32.mxu0 0.0
      %6818 = vmatmul.mubr.f32.gmra.mrb[0].mxu0 %v6622
      %v6819 = vpop.f32.mrb[0].mxu0
      %v6820 = vadd.f32 %v6570, %v6819
      %v6821 = vpop.f32.mrb[0].mxu0
      %6822 = vmatprep.mubr.f32.mxu0 0.0
      %6823 = vmatmul.mubr.f32.gmra.mrb[0].mxu0 %v6625
      %v6824 = vpop.f32.mrb[0].mxu0
      %v6825 = vadd.f32 %v6570, %v6824
      %v6826 = vpop.f32.mrb[0].mxu0
      %6827 = vmatprep.mubr.f32.mxu0 0.0
      %6828 = vmatmul.mubr.f32.gmra.mrb[0].mxu0 %v6628
      %v6829 = vpop.f32.mrb[0].mxu0
      %v6830 = vadd.f32 %v6570, %v6829
      %v6831 = vpop.f32.mrb[0].mxu0
      %6832 = vmatprep.mubr.f32.mxu0 0.0
      %6833 = vmatmul.mubr.f32.gmra.mrb[0].mxu0 %v6631
      %v6834 = vpop.f32.mrb[0].mxu0
      %v6835 = vadd.f32 %v6570, %v6834
      %v6836 = vpop.f32.mrb[0].mxu0
      %6837 = vmatprep.mubr.f32.mxu0 0.0
      %6838 = vmatmul.mubr.f32.gmra.mrb[0].mxu0 %v6634
      %v6839 = vpop.f32.mrb[0].mxu0
      %v6840 = vadd.f32 %v6570, %v6839
      %v6841 = vpop.f32.mrb[0].mxu0
      %6842 = vmatprep.mubr.f32.mxu0 0.0
      %6843 = vmatmul.mubr.f32.gmra.mrb[0].mxu0 %v6637
      %v6844 = vpop.f32.mrb[0].mxu0
      %v6845 = vadd.f32 %v6570, %v6844
      %v6846 = vpop.f32.mrb[0].mxu0
      %6847 = vmatprep.mubr.f32.mxu0 0.0
      %6848 = vmatmul.mubr.f32.gmra.mrb[0].mxu0 %v6640
      %v6849 = vpop.f32.mrb[0].mxu0
      %v6850 = vadd.f32 %v6570, %v6849
      %v6851 = vpop.f32.mrb[0].mxu0
      %6852 = vmatprep.mubr.f32.mxu0 0.0
      %6853 = vmatmul.mubr.f32.gmra.mrb[0].mxu0 %v6643
      %v6854 = vpop.f32.mrb[0].mxu0
      %v6855 = vadd.f32 %v6570, %v6854
      %v6856 = vpop.f32.mrb[0].mxu0
      %6857 = vmatprep.mubr.f32.mxu0 0.0
      %6858 = vmatmul.mubr.f32.gmra.mrb[0].mxu0 %v6646
      %v6859 = vpop.f32.mrb[0].mxu0
      %v6860 = vadd.f32 %v6570, %v6859
      %v6861 = vpop.f32.mrb[0].mxu0
      %6862 = vmatprep.mubr.f32.mxu0 0.0
      %6863 = vmatmul.mubr.f32.gmra.mrb[0].mxu0 %v6649
      %v6864 = vpop.f32.mrb[0].mxu0
      %v6865 = vadd.f32 %v6570, %v6864
      %v6866 = vpop.f32.mrb[0].mxu0
      %6867 = vmatprep.mubr.f32.mxu0 0.0
      %6868 = vmatmul.mubr.f32.gmra.mrb[0].mxu0 %v6652
      %v6869 = vpop.f32.mrb[0].mxu0
      %v6870 = vadd.f32 %v6570, %v6869
      %v6871 = vpop.f32.mrb[0].mxu0
      %6872 = vmatprep.mubr.f32.mxu0 0.0
      %6873 = vmatmul.mubr.f32.gmra.mrb[0].mxu0 %v6655
      %v6874 = vpop.f32.mrb[0].mxu0
      %v6875 = vadd.f32 %v6570, %v6874
      %v6876 = vpop.f32.mrb[0].mxu0
      %6877 = vmatprep.mubr.f32.mxu0 0.0
      %6878 = vmatmul.mubr.f32.gmra.mrb[0].mxu0 %v6658
      %v6879 = vpop.f32.mrb[0].mxu0
      %v6880 = vadd.f32 %v6570, %v6879
      %v6881 = vpop.f32.mrb[0].mxu0
      %6882 = vmatprep.mubr.f32.mxu0 0.0
      %6883 = vmatmul.mubr.f32.gmra.mrb[0].mxu0 %v6661
      %v6884 = vpop.f32.mrb[0].mxu0
      %v6885 = vadd.f32 %v6570, %v6884
      %v6886 = vpop.f32.mrb[0].mxu0
      %6887 = vmatprep.mubr.f32.mxu0 0.0
      %6888 = vmatmul.mubr.f32.gmra.mrb[0].mxu0 %v6664
      %v6889 = vpop.f32.mrb[0].mxu0
      %v6890 = vadd.f32 %v6570, %v6889
      %v6891 = vpop.f32.mrb[0].mxu0
      %6892 = vmatprep.mubr.f32.mxu0 0.0
      %6893 = vmatmul.mubr.f32.gmra.mrb[0].mxu0 %v6667
      %v6894 = vpop.f32.mrb[0].mxu0
      %v6895 = vadd.f32 %v6570, %v6894
      %v6896 = vpop.f32.mrb[0].mxu0
      %6897 = vdwg.mxu0
      %v6898 = vmax.f32 %v6740, 0.0
      %v6899 = vmax.f32 %v6745, 0.0
      %v6900 = vmax.f32 %v6750, 0.0
      %v6901 = vmax.f32 %v6755, 0.0
      %v6902 = vmax.f32 %v6760, 0.0
      %v6903 = vmax.f32 %v6765, 0.0
      %v6904 = vmax.f32 %v6770, 0.0
      %v6905 = vmax.f32 %v6775, 0.0
      %v6906 = vmax.f32 %v6780, 0.0
      %v6907 = vmax.f32 %v6785, 0.0
      %v6908 = vmax.f32 %v6790, 0.0
      %v6909 = vmax.f32 %v6795, 0.0
      %v6910 = vmax.f32 %v6800, 0.0
      %v6911 = vmax.f32 %v6805, 0.0
      %v6912 = vmax.f32 %v6810, 0.0
      %v6913 = vmax.f32 %v6815, 0.0
      %v6914 = vmax.f32 %v6820, 0.0
      %v6915 = vmax.f32 %v6825, 0.0
      %v6916 = vmax.f32 %v6830, 0.0
      %v6917 = vmax.f32 %v6835, 0.0
      %v6918 = vmax.f32 %v6840, 0.0
      %v6919 = vmax.f32 %v6845, 0.0
      %v6920 = vmax.f32 %v6850, 0.0
      %v6921 = vmax.f32 %v6855, 0.0
      %v6922 = vmax.f32 %v6860, 0.0
      %v6923 = vmax.f32 %v6865, 0.0
      %v6924 = vmax.f32 %v6870, 0.0
      %v6925 = vmax.f32 %v6875, 0.0
      %v6926 = vmax.f32 %v6880, 0.0
      %v6927 = vmax.f32 %v6885, 0.0
      %v6928 = vmax.f32 %v6890, 0.0
      %v6929 = vmax.f32 %v6895, 0.0
      %6930 = vst.msk [vmem:[%s325] sm:$0xff] %vm382, %v6898
      %6931 = vst.msk [vmem:[%s325 + $0x8] sm:$0xff] %vm382, %v6899
      %6932 = vst.msk [vmem:[%s325 + $0x10] sm:$0xff] %vm382, %v6900
      %6933 = vst.msk [vmem:[%s325 + $0x18] sm:$0xff] %vm382, %v6901
      %6934 = vst.msk [vmem:[%s325 + $0x20] sm:$0xff] %vm382, %v6902
      %6935 = vst.msk [vmem:[%s325 + $0x28] sm:$0xff] %vm382, %v6903
      %6936 = vst.msk [vmem:[%s325 + $0x30] sm:$0xff] %vm382, %v6904
      %6937 = vst.msk [vmem:[%s325 + $0x38] sm:$0xff] %vm382, %v6905
      %6938 = vst.msk [vmem:[%s325 + $0x40] sm:$0xff] %vm382, %v6906
      %6939 = vst.msk [vmem:[%s325 + $0x48] sm:$0xff] %vm382, %v6907
      %6940 = vst.msk [vmem:[%s325 + $0x50] sm:$0xff] %vm382, %v6908
      %6941 = vst.msk [vmem:[%s325 + $0x58] sm:$0xff] %vm382, %v6909
      %6942 = vst.msk [vmem:[%s325 + $0x60] sm:$0xff] %vm382, %v6910
      %6943 = vst.msk [vmem:[%s325 + $0x68] sm:$0xff] %vm382, %v6911
      %6944 = vst.msk [vmem:[%s325 + $0x70] sm:$0xff] %vm382, %v6912
      %6945 = vst.msk [vmem:[%s325 + $0x78] sm:$0xff] %vm382, %v6913
      %6946 = vst.msk [vmem:[%s325 + $0x80] sm:$0xff] %vm382, %v6914
      %6947 = vst.msk [vmem:[%s325 + $0x88] sm:$0xff] %vm382, %v6915
      %6948 = vst.msk [vmem:[%s325 + $0x90] sm:$0xff] %vm382, %v6916
      %6949 = vst.msk [vmem:[%s325 + $0x98] sm:$0xff] %vm382, %v6917
      %6950 = vst.msk [vmem:[%s325 + $0xa0] sm:$0xff] %vm382, %v6918
      %6951 = vst.msk [vmem:[%s325 + $0xa8] sm:$0xff] %vm382, %v6919
      %6952 = vst.msk [vmem:[%s325 + $0xb0] sm:$0xff] %vm382, %v6920
      %6953 = vst.msk [vmem:[%s325 + $0xb8] sm:$0xff] %vm382, %v6921
      %6954 = vst.msk [vmem:[%s325 + $0xc0] sm:$0xff] %vm382, %v6922
      %6955 = vst.msk [vmem:[%s325 + $0xc8] sm:$0xff] %vm382, %v6923
      %6956 = vst.msk [vmem:[%s325 + $0xd0] sm:$0xff] %vm382, %v6924
      %6957 = vst.msk [vmem:[%s325 + $0xd8] sm:$0xff] %vm382, %v6925
      %6958 = vst.msk [vmem:[%s325 + $0xe0] sm:$0xff] %vm382, %v6926
      %6959 = vst.msk [vmem:[%s325 + $0xe8] sm:$0xff] %vm382, %v6927
      %6960 = vst.msk [vmem:[%s325 + $0xf0] sm:$0xff] %vm382, %v6928
      %6961 = vst.msk [vmem:[%s325 + $0xf8] sm:$0xff] %vm382, %v6929
      %p6962 = scmp.lt.s32.totalorder %s19, 1
      %s6963 = scalar_select %p6962, %s19, 1
      %s6964 = smul.addr %s6963, 32
      %s6965 = smul.addr %s6964, 8
      %s6966 = scalar_lea.vmem %s8, %s6965
      // Predicated region
      $region53: #{decoder_block.1} parent=51 // pred_check
        %p6967 = pneg %p215
      $region54: #{decoder_block.1} parent=51 // pred_check_branch
        %6969 = sbr.rel (%p6967) target = $region56
      $region55: #{decoder_block.1} parent=51 // pred_region
        _
      $region56: #{decoder_block.1} parent=51 // pred_fallthru
        _
    $region52: #{decoder_block.1} parent=5 // pred_fallthru
      _
    %p6970 = scmp.le.s32.totalorder 2, %s14
    // Predicated region
    $region57: #{decoder_block.1} parent=5 // pred_check
      %p6971 = pneg %p6970
    $region58: #{decoder_block.1} parent=5 // pred_check_branch
      %6973 = sbr.rel (%p6971) target = $region60
    $region59: #{decoder_block.1} parent=5 // pred_region
      %s6974 = ssub.s32 %s14, 2
      // Predicated region
      $region61: #{decoder_block.1} parent=59 // pred_check
        %p6975 = pneg %p221
      $region62: #{decoder_block.1} parent=59 // pred_check_branch
        %6977 = sbr.rel (%p6975) target = $region64
      $region63: #{decoder_block.1} parent=59 // pred_region
        %p6978 = scmp.lt.s32.totalorder %s20, 1
        %s6979 = scalar_select %p6978, %s20, 1
        %s6980 = smul.addr %s6979, 32
        %s6981 = smul.addr %s6980, 8
        %s6982 = scalar_lea.vmem %s8, %s6981
      $region64: #{decoder_block.1} parent=59 // pred_fallthru
        _
    $region60: #{decoder_block.1} parent=5 // pred_fallthru
      _
  $region6: #{decoder_block.1} parent=0 // loop_footer
    %s18 = sadd.s32 1, %s14
  $region7: #{decoder_block.1} parent=0 // loop_footer_branch
    %13 = sbr.rel target = $region3
  $region8: #{decoder_block.1} parent=0 // loop_exit
    _

</llo_original>
